<compile_context>
chip_gen: v5e
topology: v5e:2x2
jax: 0.10.0
libtpu: 0.0.40
codegen_flags: <defaults>
</compile_context>

<pallas_src>
import jax
import jax.numpy as jnp
import numpy as np
from jax.experimental import pallas as pl
from jax.experimental.pallas import tpu as pltpu


_TAPS = tuple((ky, kx) for ky in range(3) for kx in range(3))


def faster_block_kernel(x_ref, wadj_ref, badj_ref, wpc_ref, wmlp_a_ref,
                        wmlp_b_ref, bmlp_ref, o_ref,
                        ya_ref, yb_ref, acc_ref):
    # x_ref     : (1, H+4, W, Cin) bf16   whole (2-row zero-padded) image, one batch
    # wadj_ref  : (Cin, D)    bf16        1x1 ConvBN weight (BN folded)
    # badj_ref  : (1, D)      f32         1x1 ConvBN bias   (BN folded)
    # wpc_ref   : (9, DC, DC) bf16        Partial_conv3 weight, one (ky,kx) tap per row
    # wmlp_a_ref: (9, DC, D)  bf16        mlp 3x3 weight, pconv-ed input channels
    # wmlp_b_ref: (9, DU, D)  bf16        mlp 3x3 weight, untouched input channels
    # bmlp_ref  : (1, D)      f32         mlp ConvBN bias (BN folded)
    # o_ref     : (1, TH*W, D) bf16       output strip
    # ya_ref    : (TH+4, W+2, DC) bf16    padded y[:, :DC]; holds z[:, :DC] after pconv
    # yb_ref    : (TH+4, W+2, DU) bf16    padded y[:, DC:] (untouched channels)
    # acc_ref   : (TH*W, D)   f32         f32 shortcut / accumulator
    h = pl.program_id(1)
    nh = pl.num_programs(1)

    TH = ya_ref.shape[0] - 4
    W = ya_ref.shape[1] - 2
    DC = ya_ref.shape[2]
    DU = yb_ref.shape[2]
    D = DC + DU
    Cin = x_ref.shape[3]
    THW = TH * W
    M2 = (TH + 2) * W
    bf16 = jnp.bfloat16
    f32 = jnp.float32

    # ---- adjust_channel: 1x1 ConvBN over a TH+4 row slab (2-row halo per side) ----
    row0 = h * TH
    if TH % 8 == 0:
        row0 = pl.multiple_of(row0, 8)
    xs = x_ref[0, pl.ds(row0, TH + 4), :, :]                        # (TH+4, W, Cin)
    y = jnp.dot(xs.reshape((TH + 4) * W, Cin), wadj_ref[...],
                preferred_element_type=f32) + badj_ref[...]         # f32

    # Shortcut for the TH interior rows lives in f32 VMEM scratch, not vregs.
    acc_ref[...] = y[2 * W:(TH + 2) * W, :]

    # Padded y split by channel group: every scratch store is full-lane.
    y16 = y.astype(bf16).reshape(TH + 4, W, D)
    ya_ref[:, 1:W + 1, :] = y16[:, :, :DC]
    yb_ref[:, 1:W + 1, :] = y16[:, :, DC:]
    ya_ref[:, 0:1, :] = jnp.zeros((TH + 4, 1, DC), bf16)
    ya_ref[:, W + 1:W + 2, :] = jnp.zeros((TH + 4, 1, DC), bf16)
    yb_ref[:, 0:1, :] = jnp.zeros((TH + 4, 1, DU), bf16)
    yb_ref[:, W + 1:W + 2, :] = jnp.zeros((TH + 4, 1, DU), bf16)

    # Halo rows that came from the pre-padded (zero) x rows picked up the bias;
    # the 3x3 convs need true zero padding of y there.
    @pl.when(h == 0)
    def _():
        ya_ref[0:2, :, :] = jnp.zeros((2, W + 2, DC), bf16)
        yb_ref[0:2, :, :] = jnp.zeros((2, W + 2, DU), bf16)

    @pl.when(h == nh - 1)
    def _():
        ya_ref[TH + 2:TH + 4, :, :] = jnp.zeros((2, W + 2, DC), bf16)
        yb_ref[TH + 2:TH + 4, :, :] = jnp.zeros((2, W + 2, DU), bf16)

    # ---- Partial_conv3: 3x3 / stride 1 / no bias on the first DC channels ----
    # Computed for TH+2 rows (1-row halo per side) -- exactly the z rows the mlp
    # conv needs.  Nine direct K=DC tap dots; no im2col materialization.
    pc = jnp.zeros((M2, DC), f32)
    for t, (ky, kx) in enumerate(_TAPS):
        tap = ya_ref[ky:ky + TH + 2, kx:kx + W, :].reshape(M2, DC)
        pc = pc + jnp.dot(tap, wpc_ref[t], preferred_element_type=f32)

    # z = split_cat(pconv(y[:, :DC]), y[:, DC:]): overwrite the DC-channel buffer
    # in place with the pconv result (full-channel store, no zero-row weights).
    ya_ref[1:TH + 3, 1:W + 1, :] = pc.reshape(TH + 2, W, DC).astype(bf16)

    # z rows outside the image are zero padding for the mlp conv, not pconv(pad(y)).
    @pl.when(h == 0)
    def _():
        ya_ref[1:2, :, :] = jnp.zeros((1, W + 2, DC), bf16)

    @pl.when(h == nh - 1)
    def _():
        ya_ref[TH + 2:TH + 3, :, :] = jnp.zeros((1, W + 2, DC), bf16)

    # ---- mlp: ConvBN(3x3) + SiLU, 9 tap dots split over z's channel groups ----
    m = jnp.zeros((THW, D), f32)
    for t, (ky, kx) in enumerate(_TAPS):
        za = ya_ref[ky + 1:ky + 1 + TH, kx:kx + W, :].reshape(THW, DC)
        zb = yb_ref[ky + 1:ky + 1 + TH, kx:kx + W, :].reshape(THW, DU)
        m = m + jnp.dot(za, wmlp_a_ref[t], preferred_element_type=f32)
        m = m + jnp.dot(zb, wmlp_b_ref[t], preferred_element_type=f32)
    m = m + bmlp_ref[...]
    m = m * jax.nn.sigmoid(m)                                       # SiLU

    # TODO(synk): DropPath (p=0.1) is identity at inference; the training-time
    # stochastic drop is not implemented.
    o_ref[0] = (acc_ref[...] + m).astype(o_ref.dtype)


def _pick_row_tile(H, W, target_rows=512):
    """Smallest multiple-of-8 divisor of H giving >= ~target_rows output rows."""
    for th in range(8, H, 8):
        if H % th == 0 and th * W >= target_rows:
            return th
    return H


def faster_block(x_nhwc, wadj, badj, wpc, wmlp_a, wmlp_b, bmlp, *, block_rows=None):
    B, H, W, Cin = x_nhwc.shape
    D = wadj.shape[1]
    DC = wpc.shape[1]
    DU = D - DC
    TH = block_rows if block_rows is not None else _pick_row_tile(H, W)
    assert H % TH == 0, "block_rows must divide H"
    NH = H // TH
    assert (TH * W) % 8 == 0 or NH == 1

    # 2-row zero halo top & bottom: each strip recomputes its halo of y locally.
    x_pad = jnp.pad(x_nhwc, ((0, 0), (2, 2), (0, 0), (0, 0)))

    # Explicit VMEM budget (double-buffered blocks + scratch), capped below v7x's
    # 64 MiB physical VMEM; leaves double-buffer headroom on all generations.
    blk_bytes = 2 * ((H + 4) * W * Cin * 2 + TH * W * D * 2)
    w_bytes = 2 * (Cin * D + 9 * DC * DC + 9 * DC * D + 9 * DU * D) * 2 + 4 * D * 4
    scratch_bytes = (TH + 4) * (W + 2) * D * 2 + TH * W * D * 4
    vmem_limit = int(min(max(4 * (blk_bytes + w_bytes + scratch_bytes),
                             16 * 1024 * 1024), 40 * 1024 * 1024))

    out = pl.pallas_call(
        faster_block_kernel,
        out_shape=jax.ShapeDtypeStruct((B, H * W, D), jnp.bfloat16),
        grid_spec=pltpu.PrefetchScalarGridSpec(
            num_scalar_prefetch=0,
            grid=(B, NH),
            in_specs=[
                # Padded image for one batch element stays VMEM-resident across
                # its NH strips (block index constant in h -> one DMA per batch).
                pl.BlockSpec((1, H + 4, W, Cin), lambda b, h: (b, 0, 0, 0)),
                pl.BlockSpec(wadj.shape, lambda b, h: (0, 0)),
                pl.BlockSpec(badj.shape, lambda b, h: (0, 0)),
                pl.BlockSpec(wpc.shape, lambda b, h: (0, 0, 0)),
                pl.BlockSpec(wmlp_a.shape, lambda b, h: (0, 0, 0)),
                pl.BlockSpec(wmlp_b.shape, lambda b, h: (0, 0, 0)),
                pl.BlockSpec(bmlp.shape, lambda b, h: (0, 0)),
            ],
            out_specs=pl.BlockSpec((1, TH * W, D), lambda b, h: (b, h, 0)),
            scratch_shapes=[
                pltpu.VMEM((TH + 4, W + 2, DC), jnp.bfloat16),   # padded y[:, :DC] -> z[:, :DC]
                pltpu.VMEM((TH + 4, W + 2, DU), jnp.bfloat16),   # padded y[:, DC:]
                pltpu.VMEM((TH * W, D), jnp.float32),            # f32 shortcut / accumulator
            ],
        ),
        compiler_params=pltpu.CompilerParams(
            dimension_semantics=("parallel", "parallel"),
            vmem_limit_bytes=vmem_limit),
    )(x_pad, wadj, badj, wpc, wmlp_a, wmlp_b, bmlp)
    return out.reshape(B, H, W, D)


def ref_forward(x_nchw, w_adj_t, b_adj_t, w_pc_t, w_mlp_t, b_mlp_t, dc, bn_scale):
    """Plain-JAX reference mirroring the PyTorch graph (eval mode)."""
    def conv(x, w, b, pad):
        y = jax.lax.conv_general_dilated(
            x, w, (1, 1), [(pad, pad), (pad, pad)],
            dimension_numbers=('NCHW', 'OIHW', 'NCHW'),
            precision=jax.lax.Precision.HIGHEST)
        if b is not None:
            y = y + b[None, :, None, None]
        return y

    bn = lambda y: y * bn_scale                      # eval BN: gamma=1, beta=0, mean=0, var=1
    y = bn(conv(x_nchw, w_adj_t, b_adj_t, 0))        # adjust_channel
    shortcut = y
    y1 = conv(y[:, :dc], w_pc_t, None, 1)            # Partial_conv3 (split_cat)
    z = jnp.concatenate([y1, y[:, dc:]], axis=1)
    m = bn(conv(z, w_mlp_t, b_mlp_t, 1))             # mlp ConvBN
    m = m * jax.nn.sigmoid(m)                        # SiLU
    return shortcut + m                              # drop_path = identity (eval)


if __name__ == "__main__":
    B, Cin, H, W = 2, 4, 16, 16                      # inc=4
    D = 16                                           # dim=16 (inc != dim -> adjust_channel)
    n_div = 4
    DC = D // n_div                                  # Partial_conv3 channels

    key = jax.random.PRNGKey(0)
    k0, k1, k2, k3, k4, k5 = jax.random.split(key, 6)

    x_nchw = jax.random.normal(k0, (B, Cin, H, W), jnp.float32)

    # PyTorch-shaped parameters (OIHW conv weights), deterministic init.
    w_adj_t = jax.random.normal(k1, (D, Cin, 1, 1), jnp.float32) * 0.1
    b_adj_t = jax.random.normal(k2, (D,), jnp.float32) * 0.1
    w_pc_t = jax.random.normal(k3, (DC, DC, 3, 3), jnp.float32) * 0.1
    w_mlp_t = jax.random.normal(k4, (D, D, 3, 3), jnp.float32) * 0.1
    b_mlp_t = jax.random.normal(k5, (D,), jnp.float32) * 0.1

    # Eval-mode BatchNorm folding: gamma=1, beta=0, running_mean=0, running_var=1.
    eps = 1e-5
    bn_scale = 1.0 / np.sqrt(1.0 + eps)

    # ---- kernel-layout parameters (bf16 weights, f32 biases, BN folded) ----
    wadj = jnp.asarray((w_adj_t[:, :, 0, 0] * bn_scale).T, jnp.bfloat16)        # (Cin, D)
    badj = (b_adj_t * bn_scale).reshape(1, D).astype(jnp.float32)               # (1, D)

    # Partial_conv3 weight, per-tap (in, out) layout -- no zero-row embedding.
    wpc = jnp.transpose(w_pc_t, (2, 3, 1, 0)).reshape(9, DC, DC).astype(jnp.bfloat16)

    # mlp 3x3 ConvBN weight, split by input-channel group (split_cat semantics),
    # again without zero rows -> no wasted MXU K.
    wm = jnp.transpose(w_mlp_t, (2, 3, 1, 0)) * bn_scale                         # (3,3,Din,Dout)
    wmlp_a = wm[:, :, :DC, :].reshape(9, DC, D).astype(jnp.bfloat16)             # pconv-ed chans
    wmlp_b = wm[:, :, DC:, :].reshape(9, D - DC, D).astype(jnp.bfloat16)         # untouched chans
    bmlp = (b_mlp_t * bn_scale).reshape(1, D).astype(jnp.float32)                # (1, D)

    x_nhwc = jnp.transpose(x_nchw, (0, 2, 3, 1)).astype(jnp.bfloat16)            # NCHW -> NHWC

    out = faster_block(x_nhwc, wadj, badj, wpc, wmlp_a, wmlp_b, bmlp,
                       block_rows=8)                 # 2 spatial strips per image
    out = jax.block_until_ready(out)
    out_nchw = jnp.transpose(out.astype(jnp.float32), (0, 3, 1, 2))

    ref = ref_forward(x_nchw, w_adj_t, b_adj_t, w_pc_t, w_mlp_t, b_mlp_t,
                      DC, bn_scale)
    ref = jax.block_until_ready(ref)

    # Tolerance accounts for bf16 inputs/weights/activations (reference is f32 HIGHEST).
    np.testing.assert_allclose(np.asarray(out_nchw), np.asarray(ref),
                               atol=3e-2, rtol=3e-2)
    print("KERNEL_OK")
</pallas_src>

<mosaic_0001>
module attributes {stable_mosaic.version = 11 : i64} {
  func.func @faster_block_kernel(%arg0: i32, %arg1: i32, %arg2: memref<1x20x16x4xbf16, #tpu.memory_space<vmem>>, %arg3: memref<4x16xbf16, #tpu.memory_space<vmem>>, %arg4: memref<1x16xf32, #tpu.memory_space<vmem>>, %arg5: memref<9x4x4xbf16, #tpu.memory_space<vmem>>, %arg6: memref<9x4x16xbf16, #tpu.memory_space<vmem>>, %arg7: memref<9x12x16xbf16, #tpu.memory_space<vmem>>, %arg8: memref<1x16xf32, #tpu.memory_space<vmem>>, %arg9: memref<1x128x16xbf16, #tpu.memory_space<vmem>>, %arg10: memref<12x18x4xbf16, #tpu.memory_space<vmem>>, %arg11: memref<12x18x12xbf16, #tpu.memory_space<vmem>>, %arg12: memref<128x16xf32, #tpu.memory_space<vmem>>) attributes {dimension_semantics = [#tpu.dimension_semantics<parallel>, #tpu.dimension_semantics<parallel>], iteration_bounds = array<i64: 2, 2>, scalar_prefetch = 0 : i64, scratch_operands = 3 : i64, tpu.core_type = #tpu.core_type<tc>, window_params = [{transform_indices = @transform_0, window_bounds = array<i64: 1, 20, 16, 4>}, {pipeline_mode = #tpu.pipeline_mode<synchronous>, transform_indices = @transform_1, window_bounds = array<i64: 4, 16>}, {pipeline_mode = #tpu.pipeline_mode<synchronous>, transform_indices = @transform_2, window_bounds = array<i64: 1, 16>}, {pipeline_mode = #tpu.pipeline_mode<synchronous>, transform_indices = @transform_3, window_bounds = array<i64: 9, 4, 4>}, {pipeline_mode = #tpu.pipeline_mode<synchronous>, transform_indices = @transform_4, window_bounds = array<i64: 9, 4, 16>}, {pipeline_mode = #tpu.pipeline_mode<synchronous>, transform_indices = @transform_5, window_bounds = array<i64: 9, 12, 16>}, {pipeline_mode = #tpu.pipeline_mode<synchronous>, transform_indices = @transform_6, window_bounds = array<i64: 1, 16>}, {transform_indices = @transform_7, window_bounds = array<i64: 1, 128, 16>}]} {
    %c8_i32 = arith.constant 8 : i32
    %0 = arith.muli %arg1, %c8_i32 : i32
    %1 = tpu.assume_multiple %0, 8 : i32
    %c0 = arith.constant 0 : index
    %2 = arith.index_cast %1 : i32 to index
    %c0_0 = arith.constant 0 : index
    %c0_1 = arith.constant 0 : index
    %3 = vector.load %arg2[%c0, %2, %c0_0, %c0_1] : memref<1x20x16x4xbf16, #tpu.memory_space<vmem>>, vector<1x12x16x4xbf16>
    %4 = vector.shape_cast %3 : vector<1x12x16x4xbf16> to vector<12x16x4xbf16>
    %5 = vector.shape_cast %4 : vector<12x16x4xbf16> to vector<192x4xbf16>
    %c0_2 = arith.constant 0 : index
    %c0_3 = arith.constant 0 : index
    %6 = vector.load %arg3[%c0_2, %c0_3] : memref<4x16xbf16, #tpu.memory_space<vmem>>, vector<4x16xbf16>
    %cst = arith.constant dense<0.000000e+00> : vector<192x16xf32>
    %7 = tpu.matmul %5, %6, %cst {dimension_numbers = #tpu.dot_dimension_numbers<[1], [0], [0], [1], [0, 0, 1, 1], [], []>} : vector<192x4xbf16>, vector<4x16xbf16>, vector<192x16xf32> -> vector<192x16xf32>
    %c0_4 = arith.constant 0 : index
    %c0_5 = arith.constant 0 : index
    %8 = vector.load %arg4[%c0_4, %c0_5] : memref<1x16xf32, #tpu.memory_space<vmem>>, vector<1x16xf32>
    %9 = vector.broadcast %8 : vector<1x16xf32> to vector<192x16xf32>
    %10 = arith.addf %7, %9 : vector<192x16xf32>
    %11 = vector.extract_strided_slice %10 {offsets = [32, 0], sizes = [128, 16], strides = [1, 1]} : vector<192x16xf32> to vector<128x16xf32>
    %c0_6 = arith.constant 0 : index
    %c0_7 = arith.constant 0 : index
    %12 = vector.load %arg12[%c0_6, %c0_7] : memref<128x16xf32, #tpu.memory_space<vmem>>, vector<128x16xf32>
    tpu.vector_store %arg12[%c0_6, %c0_7], %11 {strides = array<i32>} : memref<128x16xf32, #tpu.memory_space<vmem>>, vector<128x16xf32>,
    %13 = arith.truncf %10 : vector<192x16xf32> to vector<192x16xbf16>
    %14 = vector.shape_cast %13 : vector<192x16xbf16> to vector<12x16x16xbf16>
    %15 = vector.extract_strided_slice %14 {offsets = [0, 0, 0], sizes = [12, 16, 4], strides = [1, 1, 1]} : vector<12x16x16xbf16> to vector<12x16x4xbf16>
    %c0_8 = arith.constant 0 : index
    %c1 = arith.constant 1 : index
    %c0_9 = arith.constant 0 : index
    %16 = vector.load %arg10[%c0_8, %c1, %c0_9] : memref<12x18x4xbf16, #tpu.memory_space<vmem>>, vector<12x16x4xbf16>
    tpu.vector_store %arg10[%c0_8, %c1, %c0_9], %15 {strides = array<i32>} : memref<12x18x4xbf16, #tpu.memory_space<vmem>>, vector<12x16x4xbf16>,
    %17 = vector.extract_strided_slice %14 {offsets = [0, 0, 4], sizes = [12, 16, 12], strides = [1, 1, 1]} : vector<12x16x16xbf16> to vector<12x16x12xbf16>
    %c0_10 = arith.constant 0 : index
    %c1_11 = arith.constant 1 : index
    %c0_12 = arith.constant 0 : index
    %18 = vector.load %arg11[%c0_10, %c1_11, %c0_12] : memref<12x18x12xbf16, #tpu.memory_space<vmem>>, vector<12x16x12xbf16>
    tpu.vector_store %arg11[%c0_10, %c1_11, %c0_12], %17 {strides = array<i32>} : memref<12x18x12xbf16, #tpu.memory_space<vmem>>, vector<12x16x12xbf16>,
    %cst_13 = arith.constant 0.000000e+00 : bf16
    %19 = vector.broadcast %cst_13 : bf16 to vector<12x1x4xbf16>
    %c0_14 = arith.constant 0 : index
    %c0_15 = arith.constant 0 : index
    %c0_16 = arith.constant 0 : index
    %20 = vector.load %arg10[%c0_14, %c0_15, %c0_16] : memref<12x18x4xbf16, #tpu.memory_space<vmem>>, vector<12x1x4xbf16>
    tpu.vector_store %arg10[%c0_14, %c0_15, %c0_16], %19 {strides = array<i32>} : memref<12x18x4xbf16, #tpu.memory_space<vmem>>, vector<12x1x4xbf16>,
    %cst_17 = arith.constant 0.000000e+00 : bf16
    %21 = vector.broadcast %cst_17 : bf16 to vector<12x1x4xbf16>
    %c0_18 = arith.constant 0 : index
    %c17 = arith.constant 17 : index
    %c0_19 = arith.constant 0 : index
    %22 = vector.load %arg10[%c0_18, %c17, %c0_19] : memref<12x18x4xbf16, #tpu.memory_space<vmem>>, vector<12x1x4xbf16>
    tpu.vector_store %arg10[%c0_18, %c17, %c0_19], %21 {strides = array<i32>} : memref<12x18x4xbf16, #tpu.memory_space<vmem>>, vector<12x1x4xbf16>,
    %cst_20 = arith.constant 0.000000e+00 : bf16
    %23 = vector.broadcast %cst_20 : bf16 to vector<12x1x12xbf16>
    %c0_21 = arith.constant 0 : index
    %c0_22 = arith.constant 0 : index
    %c0_23 = arith.constant 0 : index
    %24 = vector.load %arg11[%c0_21, %c0_22, %c0_23] : memref<12x18x12xbf16, #tpu.memory_space<vmem>>, vector<12x1x12xbf16>
    tpu.vector_store %arg11[%c0_21, %c0_22, %c0_23], %23 {strides = array<i32>} : memref<12x18x12xbf16, #tpu.memory_space<vmem>>, vector<12x1x12xbf16>,
    %cst_24 = arith.constant 0.000000e+00 : bf16
    %25 = vector.broadcast %cst_24 : bf16 to vector<12x1x12xbf16>
    %c0_25 = arith.constant 0 : index
    %c17_26 = arith.constant 17 : index
    %c0_27 = arith.constant 0 : index
    %26 = vector.load %arg11[%c0_25, %c17_26, %c0_27] : memref<12x18x12xbf16, #tpu.memory_space<vmem>>, vector<12x1x12xbf16>
    tpu.vector_store %arg11[%c0_25, %c17_26, %c0_27], %25 {strides = array<i32>} : memref<12x18x12xbf16, #tpu.memory_space<vmem>>, vector<12x1x12xbf16>,
    %c0_i32 = arith.constant 0 : i32
    %27 = arith.cmpi eq, %arg1, %c0_i32 : i32
    %28 = arith.extui %27 : i1 to i32
    %c0_i32_28 = arith.constant 0 : i32
    %29 = arith.cmpi ne, %28, %c0_i32_28 : i32
    scf.if %29 {
      %cst_229 = arith.constant 0.000000e+00 : bf16
      %221 = vector.broadcast %cst_229 : bf16 to vector<2x18x4xbf16>
      %c0_230 = arith.constant 0 : index
      %c0_231 = arith.constant 0 : index
      %c0_232 = arith.constant 0 : index
      %222 = vector.load %arg10[%c0_230, %c0_231, %c0_232] : memref<12x18x4xbf16, #tpu.memory_space<vmem>>, vector<2x18x4xbf16>
      tpu.vector_store %arg10[%c0_230, %c0_231, %c0_232], %221 {strides = array<i32>} : memref<12x18x4xbf16, #tpu.memory_space<vmem>>, vector<2x18x4xbf16>,
      %cst_233 = arith.constant 0.000000e+00 : bf16
      %223 = vector.broadcast %cst_233 : bf16 to vector<2x18x12xbf16>
      %c0_234 = arith.constant 0 : index
      %c0_235 = arith.constant 0 : index
      %c0_236 = arith.constant 0 : index
      %224 = vector.load %arg11[%c0_234, %c0_235, %c0_236] : memref<12x18x12xbf16, #tpu.memory_space<vmem>>, vector<2x18x12xbf16>
      tpu.vector_store %arg11[%c0_234, %c0_235, %c0_236], %223 {strides = array<i32>} : memref<12x18x12xbf16, #tpu.memory_space<vmem>>, vector<2x18x12xbf16>,
    } else {
    }
    %c1_i32 = arith.constant 1 : i32
    %30 = arith.cmpi eq, %arg1, %c1_i32 : i32
    %31 = arith.extui %30 : i1 to i32
    %c0_i32_29 = arith.constant 0 : i32
    %32 = arith.cmpi ne, %31, %c0_i32_29 : i32
    scf.if %32 {
      %cst_229 = arith.constant 0.000000e+00 : bf16
      %221 = vector.broadcast %cst_229 : bf16 to vector<2x18x4xbf16>
      %c10 = arith.constant 10 : index
      %c0_230 = arith.constant 0 : index
      %c0_231 = arith.constant 0 : index
      %222 = vector.load %arg10[%c10, %c0_230, %c0_231] : memref<12x18x4xbf16, #tpu.memory_space<vmem>>, vector<2x18x4xbf16>
      tpu.vector_store %arg10[%c10, %c0_230, %c0_231], %221 {strides = array<i32>} : memref<12x18x4xbf16, #tpu.memory_space<vmem>>, vector<2x18x4xbf16>,
      %cst_232 = arith.constant 0.000000e+00 : bf16
      %223 = vector.broadcast %cst_232 : bf16 to vector<2x18x12xbf16>
      %c10_233 = arith.constant 10 : index
      %c0_234 = arith.constant 0 : index
      %c0_235 = arith.constant 0 : index
      %224 = vector.load %arg11[%c10_233, %c0_234, %c0_235] : memref<12x18x12xbf16, #tpu.memory_space<vmem>>, vector<2x18x12xbf16>
      tpu.vector_store %arg11[%c10_233, %c0_234, %c0_235], %223 {strides = array<i32>} : memref<12x18x12xbf16, #tpu.memory_space<vmem>>, vector<2x18x12xbf16>,
    } else {
    }
    %cst_30 = arith.constant 0.000000e+00 : f32
    %33 = vector.broadcast %cst_30 : f32 to vector<160x4xf32>
    %c0_31 = arith.constant 0 : index
    %c0_32 = arith.constant 0 : index
    %c0_33 = arith.constant 0 : index
    %34 = vector.load %arg10[%c0_31, %c0_32, %c0_33] : memref<12x18x4xbf16, #tpu.memory_space<vmem>>, vector<10x16x4xbf16>
    %35 = vector.shape_cast %34 : vector<10x16x4xbf16> to vector<160x4xbf16>
    %c0_34 = arith.constant 0 : index
    %c0_35 = arith.constant 0 : index
    %c0_36 = arith.constant 0 : index
    %36 = vector.load %arg5[%c0_34, %c0_35, %c0_36] : memref<9x4x4xbf16, #tpu.memory_space<vmem>>, vector<1x4x4xbf16>
    %37 = vector.shape_cast %36 : vector<1x4x4xbf16> to vector<4x4xbf16>
    %cst_37 = arith.constant dense<0.000000e+00> : vector<160x4xf32>
    %38 = tpu.matmul %35, %37, %cst_37 {dimension_numbers = #tpu.dot_dimension_numbers<[1], [0], [0], [1], [0, 0, 1, 1], [], []>} : vector<160x4xbf16>, vector<4x4xbf16>, vector<160x4xf32> -> vector<160x4xf32>
    %39 = arith.addf %33, %38 : vector<160x4xf32>
    %c0_38 = arith.constant 0 : index
    %c1_39 = arith.constant 1 : index
    %c0_40 = arith.constant 0 : index
    %40 = vector.load %arg10[%c0_38, %c1_39, %c0_40] : memref<12x18x4xbf16, #tpu.memory_space<vmem>>, vector<10x16x4xbf16>
    %41 = vector.shape_cast %40 : vector<10x16x4xbf16> to vector<160x4xbf16>
    %c1_41 = arith.constant 1 : index
    %c0_42 = arith.constant 0 : index
    %c0_43 = arith.constant 0 : index
    %42 = vector.load %arg5[%c1_41, %c0_42, %c0_43] : memref<9x4x4xbf16, #tpu.memory_space<vmem>>, vector<1x4x4xbf16>
    %43 = vector.shape_cast %42 : vector<1x4x4xbf16> to vector<4x4xbf16>
    %cst_44 = arith.constant dense<0.000000e+00> : vector<160x4xf32>
    %44 = tpu.matmul %41, %43, %cst_44 {dimension_numbers = #tpu.dot_dimension_numbers<[1], [0], [0], [1], [0, 0, 1, 1], [], []>} : vector<160x4xbf16>, vector<4x4xbf16>, vector<160x4xf32> -> vector<160x4xf32>
    %45 = arith.addf %39, %44 : vector<160x4xf32>
    %c0_45 = arith.constant 0 : index
    %c2 = arith.constant 2 : index
    %c0_46 = arith.constant 0 : index
    %46 = vector.load %arg10[%c0_45, %c2, %c0_46] : memref<12x18x4xbf16, #tpu.memory_space<vmem>>, vector<10x16x4xbf16>
    %47 = vector.shape_cast %46 : vector<10x16x4xbf16> to vector<160x4xbf16>
    %c2_47 = arith.constant 2 : index
    %c0_48 = arith.constant 0 : index
    %c0_49 = arith.constant 0 : index
    %48 = vector.load %arg5[%c2_47, %c0_48, %c0_49] : memref<9x4x4xbf16, #tpu.memory_space<vmem>>, vector<1x4x4xbf16>
    %49 = vector.shape_cast %48 : vector<1x4x4xbf16> to vector<4x4xbf16>
    %cst_50 = arith.constant dense<0.000000e+00> : vector<160x4xf32>
    %50 = tpu.matmul %47, %49, %cst_50 {dimension_numbers = #tpu.dot_dimension_numbers<[1], [0], [0], [1], [0, 0, 1, 1], [], []>} : vector<160x4xbf16>, vector<4x4xbf16>, vector<160x4xf32> -> vector<160x4xf32>
    %51 = arith.addf %45, %50 : vector<160x4xf32>
    %c1_51 = arith.constant 1 : index
    %c0_52 = arith.constant 0 : index
    %c0_53 = arith.constant 0 : index
    %52 = vector.load %arg10[%c1_51, %c0_52, %c0_53] : memref<12x18x4xbf16, #tpu.memory_space<vmem>>, vector<10x16x4xbf16>
    %53 = vector.shape_cast %52 : vector<10x16x4xbf16> to vector<160x4xbf16>
    %c3 = arith.constant 3 : index
    %c0_54 = arith.constant 0 : index
    %c0_55 = arith.constant 0 : index
    %54 = vector.load %arg5[%c3, %c0_54, %c0_55] : memref<9x4x4xbf16, #tpu.memory_space<vmem>>, vector<1x4x4xbf16>
    %55 = vector.shape_cast %54 : vector<1x4x4xbf16> to vector<4x4xbf16>
    %cst_56 = arith.constant dense<0.000000e+00> : vector<160x4xf32>
    %56 = tpu.matmul %53, %55, %cst_56 {dimension_numbers = #tpu.dot_dimension_numbers<[1], [0], [0], [1], [0, 0, 1, 1], [], []>} : vector<160x4xbf16>, vector<4x4xbf16>, vector<160x4xf32> -> vector<160x4xf32>
    %57 = arith.addf %51, %56 : vector<160x4xf32>
    %c1_57 = arith.constant 1 : index
    %c1_58 = arith.constant 1 : index
    %c0_59 = arith.constant 0 : index
    %58 = vector.load %arg10[%c1_57, %c1_58, %c0_59] : memref<12x18x4xbf16, #tpu.memory_space<vmem>>, vector<10x16x4xbf16>
    %59 = vector.shape_cast %58 : vector<10x16x4xbf16> to vector<160x4xbf16>
    %c4 = arith.constant 4 : index
    %c0_60 = arith.constant 0 : index
    %c0_61 = arith.constant 0 : index
    %60 = vector.load %arg5[%c4, %c0_60, %c0_61] : memref<9x4x4xbf16, #tpu.memory_space<vmem>>, vector<1x4x4xbf16>
    %61 = vector.shape_cast %60 : vector<1x4x4xbf16> to vector<4x4xbf16>
    %cst_62 = arith.constant dense<0.000000e+00> : vector<160x4xf32>
    %62 = tpu.matmul %59, %61, %cst_62 {dimension_numbers = #tpu.dot_dimension_numbers<[1], [0], [0], [1], [0, 0, 1, 1], [], []>} : vector<160x4xbf16>, vector<4x4xbf16>, vector<160x4xf32> -> vector<160x4xf32>
    %63 = arith.addf %57, %62 : vector<160x4xf32>
    %c1_63 = arith.constant 1 : index
    %c2_64 = arith.constant 2 : index
    %c0_65 = arith.constant 0 : index
    %64 = vector.load %arg10[%c1_63, %c2_64, %c0_65] : memref<12x18x4xbf16, #tpu.memory_space<vmem>>, vector<10x16x4xbf16>
    %65 = vector.shape_cast %64 : vector<10x16x4xbf16> to vector<160x4xbf16>
    %c5 = arith.constant 5 : index
    %c0_66 = arith.constant 0 : index
    %c0_67 = arith.constant 0 : index
    %66 = vector.load %arg5[%c5, %c0_66, %c0_67] : memref<9x4x4xbf16, #tpu.memory_space<vmem>>, vector<1x4x4xbf16>
    %67 = vector.shape_cast %66 : vector<1x4x4xbf16> to vector<4x4xbf16>
    %cst_68 = arith.constant dense<0.000000e+00> : vector<160x4xf32>
    %68 = tpu.matmul %65, %67, %cst_68 {dimension_numbers = #tpu.dot_dimension_numbers<[1], [0], [0], [1], [0, 0, 1, 1], [], []>} : vector<160x4xbf16>, vector<4x4xbf16>, vector<160x4xf32> -> vector<160x4xf32>
    %69 = arith.addf %63, %68 : vector<160x4xf32>
    %c2_69 = arith.constant 2 : index
    %c0_70 = arith.constant 0 : index
    %c0_71 = arith.constant 0 : index
    %70 = vector.load %arg10[%c2_69, %c0_70, %c0_71] : memref<12x18x4xbf16, #tpu.memory_space<vmem>>, vector<10x16x4xbf16>
    %71 = vector.shape_cast %70 : vector<10x16x4xbf16> to vector<160x4xbf16>
    %c6 = arith.constant 6 : index
    %c0_72 = arith.constant 0 : index
    %c0_73 = arith.constant 0 : index
    %72 = vector.load %arg5[%c6, %c0_72, %c0_73] : memref<9x4x4xbf16, #tpu.memory_space<vmem>>, vector<1x4x4xbf16>
    %73 = vector.shape_cast %72 : vector<1x4x4xbf16> to vector<4x4xbf16>
    %cst_74 = arith.constant dense<0.000000e+00> : vector<160x4xf32>
    %74 = tpu.matmul %71, %73, %cst_74 {dimension_numbers = #tpu.dot_dimension_numbers<[1], [0], [0], [1], [0, 0, 1, 1], [], []>} : vector<160x4xbf16>, vector<4x4xbf16>, vector<160x4xf32> -> vector<160x4xf32>
    %75 = arith.addf %69, %74 : vector<160x4xf32>
    %c2_75 = arith.constant 2 : index
    %c1_76 = arith.constant 1 : index
    %c0_77 = arith.constant 0 : index
    %76 = vector.load %arg10[%c2_75, %c1_76, %c0_77] : memref<12x18x4xbf16, #tpu.memory_space<vmem>>, vector<10x16x4xbf16>
    %77 = vector.shape_cast %76 : vector<10x16x4xbf16> to vector<160x4xbf16>
    %c7 = arith.constant 7 : index
    %c0_78 = arith.constant 0 : index
    %c0_79 = arith.constant 0 : index
    %78 = vector.load %arg5[%c7, %c0_78, %c0_79] : memref<9x4x4xbf16, #tpu.memory_space<vmem>>, vector<1x4x4xbf16>
    %79 = vector.shape_cast %78 : vector<1x4x4xbf16> to vector<4x4xbf16>
    %cst_80 = arith.constant dense<0.000000e+00> : vector<160x4xf32>
    %80 = tpu.matmul %77, %79, %cst_80 {dimension_numbers = #tpu.dot_dimension_numbers<[1], [0], [0], [1], [0, 0, 1, 1], [], []>} : vector<160x4xbf16>, vector<4x4xbf16>, vector<160x4xf32> -> vector<160x4xf32>
    %81 = arith.addf %75, %80 : vector<160x4xf32>
    %c2_81 = arith.constant 2 : index
    %c2_82 = arith.constant 2 : index
    %c0_83 = arith.constant 0 : index
    %82 = vector.load %arg10[%c2_81, %c2_82, %c0_83] : memref<12x18x4xbf16, #tpu.memory_space<vmem>>, vector<10x16x4xbf16>
    %83 = vector.shape_cast %82 : vector<10x16x4xbf16> to vector<160x4xbf16>
    %c8 = arith.constant 8 : index
    %c0_84 = arith.constant 0 : index
    %c0_85 = arith.constant 0 : index
    %84 = vector.load %arg5[%c8, %c0_84, %c0_85] : memref<9x4x4xbf16, #tpu.memory_space<vmem>>, vector<1x4x4xbf16>
    %85 = vector.shape_cast %84 : vector<1x4x4xbf16> to vector<4x4xbf16>
    %cst_86 = arith.constant dense<0.000000e+00> : vector<160x4xf32>
    %86 = tpu.matmul %83, %85, %cst_86 {dimension_numbers = #tpu.dot_dimension_numbers<[1], [0], [0], [1], [0, 0, 1, 1], [], []>} : vector<160x4xbf16>, vector<4x4xbf16>, vector<160x4xf32> -> vector<160x4xf32>
    %87 = arith.addf %81, %86 : vector<160x4xf32>
    %88 = vector.shape_cast %87 : vector<160x4xf32> to vector<10x16x4xf32>
    %89 = arith.truncf %88 : vector<10x16x4xf32> to vector<10x16x4xbf16>
    %c1_87 = arith.constant 1 : index
    %c1_88 = arith.constant 1 : index
    %c0_89 = arith.constant 0 : index
    %90 = vector.load %arg10[%c1_87, %c1_88, %c0_89] : memref<12x18x4xbf16, #tpu.memory_space<vmem>>, vector<10x16x4xbf16>
    tpu.vector_store %arg10[%c1_87, %c1_88, %c0_89], %89 {strides = array<i32>} : memref<12x18x4xbf16, #tpu.memory_space<vmem>>, vector<10x16x4xbf16>,
    %c0_i32_90 = arith.constant 0 : i32
    %91 = arith.cmpi eq, %arg1, %c0_i32_90 : i32
    %92 = arith.extui %91 : i1 to i32
    %c0_i32_91 = arith.constant 0 : i32
    %93 = arith.cmpi ne, %92, %c0_i32_91 : i32
    scf.if %93 {
      %cst_229 = arith.constant 0.000000e+00 : bf16
      %221 = vector.broadcast %cst_229 : bf16 to vector<1x18x4xbf16>
      %c1_230 = arith.constant 1 : index
      %c0_231 = arith.constant 0 : index
      %c0_232 = arith.constant 0 : index
      %222 = vector.load %arg10[%c1_230, %c0_231, %c0_232] : memref<12x18x4xbf16, #tpu.memory_space<vmem>>, vector<1x18x4xbf16>
      tpu.vector_store %arg10[%c1_230, %c0_231, %c0_232], %221 {strides = array<i32>} : memref<12x18x4xbf16, #tpu.memory_space<vmem>>, vector<1x18x4xbf16>,
    } else {
    }
    %c1_i32_92 = arith.constant 1 : i32
    %94 = arith.cmpi eq, %arg1, %c1_i32_92 : i32
    %95 = arith.extui %94 : i1 to i32
    %c0_i32_93 = arith.constant 0 : i32
    %96 = arith.cmpi ne, %95, %c0_i32_93 : i32
    scf.if %96 {
      %cst_229 = arith.constant 0.000000e+00 : bf16
      %221 = vector.broadcast %cst_229 : bf16 to vector<1x18x4xbf16>
      %c10 = arith.constant 10 : index
      %c0_230 = arith.constant 0 : index
      %c0_231 = arith.constant 0 : index
      %222 = vector.load %arg10[%c10, %c0_230, %c0_231] : memref<12x18x4xbf16, #tpu.memory_space<vmem>>, vector<1x18x4xbf16>
      tpu.vector_store %arg10[%c10, %c0_230, %c0_231], %221 {strides = array<i32>} : memref<12x18x4xbf16, #tpu.memory_space<vmem>>, vector<1x18x4xbf16>,
    } else {
    }
    %cst_94 = arith.constant 0.000000e+00 : f32
    %97 = vector.broadcast %cst_94 : f32 to vector<128x16xf32>
    %c1_95 = arith.constant 1 : index
    %c0_96 = arith.constant 0 : index
    %c0_97 = arith.constant 0 : index
    %98 = vector.load %arg10[%c1_95, %c0_96, %c0_97] : memref<12x18x4xbf16, #tpu.memory_space<vmem>>, vector<8x16x4xbf16>
    %99 = vector.shape_cast %98 : vector<8x16x4xbf16> to vector<128x4xbf16>
    %c1_98 = arith.constant 1 : index
    %c0_99 = arith.constant 0 : index
    %c0_100 = arith.constant 0 : index
    %100 = vector.load %arg11[%c1_98, %c0_99, %c0_100] : memref<12x18x12xbf16, #tpu.memory_space<vmem>>, vector<8x16x12xbf16>
    %101 = vector.shape_cast %100 : vector<8x16x12xbf16> to vector<128x12xbf16>
    %c0_101 = arith.constant 0 : index
    %c0_102 = arith.constant 0 : index
    %c0_103 = arith.constant 0 : index
    %102 = vector.load %arg6[%c0_101, %c0_102, %c0_103] : memref<9x4x16xbf16, #tpu.memory_space<vmem>>, vector<1x4x16xbf16>
    %103 = vector.shape_cast %102 : vector<1x4x16xbf16> to vector<4x16xbf16>
    %cst_104 = arith.constant dense<0.000000e+00> : vector<128x16xf32>
    %104 = tpu.matmul %99, %103, %cst_104 {dimension_numbers = #tpu.dot_dimension_numbers<[1], [0], [0], [1], [0, 0, 1, 1], [], []>} : vector<128x4xbf16>, vector<4x16xbf16>, vector<128x16xf32> -> vector<128x16xf32>
    %105 = arith.addf %97, %104 : vector<128x16xf32>
    %c0_105 = arith.constant 0 : index
    %c0_106 = arith.constant 0 : index
    %c0_107 = arith.constant 0 : index
    %106 = vector.load %arg7[%c0_105, %c0_106, %c0_107] : memref<9x12x16xbf16, #tpu.memory_space<vmem>>, vector<1x12x16xbf16>
    %107 = vector.shape_cast %106 : vector<1x12x16xbf16> to vector<12x16xbf16>
    %cst_108 = arith.constant dense<0.000000e+00> : vector<128x16xf32>
    %108 = tpu.matmul %101, %107, %cst_108 {dimension_numbers = #tpu.dot_dimension_numbers<[1], [0], [0], [1], [0, 0, 1, 1], [], []>} : vector<128x12xbf16>, vector<12x16xbf16>, vector<128x16xf32> -> vector<128x16xf32>
    %109 = arith.addf %105, %108 : vector<128x16xf32>
    %c1_109 = arith.constant 1 : index
    %c1_110 = arith.constant 1 : index
    %c0_111 = arith.constant 0 : index
    %110 = vector.load %arg10[%c1_109, %c1_110, %c0_111] : memref<12x18x4xbf16, #tpu.memory_space<vmem>>, vector<8x16x4xbf16>
    %111 = vector.shape_cast %110 : vector<8x16x4xbf16> to vector<128x4xbf16>
    %c1_112 = arith.constant 1 : index
    %c1_113 = arith.constant 1 : index
    %c0_114 = arith.constant 0 : index
    %112 = vector.load %arg11[%c1_112, %c1_113, %c0_114] : memref<12x18x12xbf16, #tpu.memory_space<vmem>>, vector<8x16x12xbf16>
    %113 = vector.shape_cast %112 : vector<8x16x12xbf16> to vector<128x12xbf16>
    %c1_115 = arith.constant 1 : index
    %c0_116 = arith.constant 0 : index
    %c0_117 = arith.constant 0 : index
    %114 = vector.load %arg6[%c1_115, %c0_116, %c0_117] : memref<9x4x16xbf16, #tpu.memory_space<vmem>>, vector<1x4x16xbf16>
    %115 = vector.shape_cast %114 : vector<1x4x16xbf16> to vector<4x16xbf16>
    %cst_118 = arith.constant dense<0.000000e+00> : vector<128x16xf32>
    %116 = tpu.matmul %111, %115, %cst_118 {dimension_numbers = #tpu.dot_dimension_numbers<[1], [0], [0], [1], [0, 0, 1, 1], [], []>} : vector<128x4xbf16>, vector<4x16xbf16>, vector<128x16xf32> -> vector<128x16xf32>
    %117 = arith.addf %109, %116 : vector<128x16xf32>
    %c1_119 = arith.constant 1 : index
    %c0_120 = arith.constant 0 : index
    %c0_121 = arith.constant 0 : index
    %118 = vector.load %arg7[%c1_119, %c0_120, %c0_121] : memref<9x12x16xbf16, #tpu.memory_space<vmem>>, vector<1x12x16xbf16>
    %119 = vector.shape_cast %118 : vector<1x12x16xbf16> to vector<12x16xbf16>
    %cst_122 = arith.constant dense<0.000000e+00> : vector<128x16xf32>
    %120 = tpu.matmul %113, %119, %cst_122 {dimension_numbers = #tpu.dot_dimension_numbers<[1], [0], [0], [1], [0, 0, 1, 1], [], []>} : vector<128x12xbf16>, vector<12x16xbf16>, vector<128x16xf32> -> vector<128x16xf32>
    %121 = arith.addf %117, %120 : vector<128x16xf32>
    %c1_123 = arith.constant 1 : index
    %c2_124 = arith.constant 2 : index
    %c0_125 = arith.constant 0 : index
    %122 = vector.load %arg10[%c1_123, %c2_124, %c0_125] : memref<12x18x4xbf16, #tpu.memory_space<vmem>>, vector<8x16x4xbf16>
    %123 = vector.shape_cast %122 : vector<8x16x4xbf16> to vector<128x4xbf16>
    %c1_126 = arith.constant 1 : index
    %c2_127 = arith.constant 2 : index
    %c0_128 = arith.constant 0 : index
    %124 = vector.load %arg11[%c1_126, %c2_127, %c0_128] : memref<12x18x12xbf16, #tpu.memory_space<vmem>>, vector<8x16x12xbf16>
    %125 = vector.shape_cast %124 : vector<8x16x12xbf16> to vector<128x12xbf16>
    %c2_129 = arith.constant 2 : index
    %c0_130 = arith.constant 0 : index
    %c0_131 = arith.constant 0 : index
    %126 = vector.load %arg6[%c2_129, %c0_130, %c0_131] : memref<9x4x16xbf16, #tpu.memory_space<vmem>>, vector<1x4x16xbf16>
    %127 = vector.shape_cast %126 : vector<1x4x16xbf16> to vector<4x16xbf16>
    %cst_132 = arith.constant dense<0.000000e+00> : vector<128x16xf32>
    %128 = tpu.matmul %123, %127, %cst_132 {dimension_numbers = #tpu.dot_dimension_numbers<[1], [0], [0], [1], [0, 0, 1, 1], [], []>} : vector<128x4xbf16>, vector<4x16xbf16>, vector<128x16xf32> -> vector<128x16xf32>
    %129 = arith.addf %121, %128 : vector<128x16xf32>
    %c2_133 = arith.constant 2 : index
    %c0_134 = arith.constant 0 : index
    %c0_135 = arith.constant 0 : index
    %130 = vector.load %arg7[%c2_133, %c0_134, %c0_135] : memref<9x12x16xbf16, #tpu.memory_space<vmem>>, vector<1x12x16xbf16>
    %131 = vector.shape_cast %130 : vector<1x12x16xbf16> to vector<12x16xbf16>
    %cst_136 = arith.constant dense<0.000000e+00> : vector<128x16xf32>
    %132 = tpu.matmul %125, %131, %cst_136 {dimension_numbers = #tpu.dot_dimension_numbers<[1], [0], [0], [1], [0, 0, 1, 1], [], []>} : vector<128x12xbf16>, vector<12x16xbf16>, vector<128x16xf32> -> vector<128x16xf32>
    %133 = arith.addf %129, %132 : vector<128x16xf32>
    %c2_137 = arith.constant 2 : index
    %c0_138 = arith.constant 0 : index
    %c0_139 = arith.constant 0 : index
    %134 = vector.load %arg10[%c2_137, %c0_138, %c0_139] : memref<12x18x4xbf16, #tpu.memory_space<vmem>>, vector<8x16x4xbf16>
    %135 = vector.shape_cast %134 : vector<8x16x4xbf16> to vector<128x4xbf16>
    %c2_140 = arith.constant 2 : index
    %c0_141 = arith.constant 0 : index
    %c0_142 = arith.constant 0 : index
    %136 = vector.load %arg11[%c2_140, %c0_141, %c0_142] : memref<12x18x12xbf16, #tpu.memory_space<vmem>>, vector<8x16x12xbf16>
    %137 = vector.shape_cast %136 : vector<8x16x12xbf16> to vector<128x12xbf16>
    %c3_143 = arith.constant 3 : index
    %c0_144 = arith.constant 0 : index
    %c0_145 = arith.constant 0 : index
    %138 = vector.load %arg6[%c3_143, %c0_144, %c0_145] : memref<9x4x16xbf16, #tpu.memory_space<vmem>>, vector<1x4x16xbf16>
    %139 = vector.shape_cast %138 : vector<1x4x16xbf16> to vector<4x16xbf16>
    %cst_146 = arith.constant dense<0.000000e+00> : vector<128x16xf32>
    %140 = tpu.matmul %135, %139, %cst_146 {dimension_numbers = #tpu.dot_dimension_numbers<[1], [0], [0], [1], [0, 0, 1, 1], [], []>} : vector<128x4xbf16>, vector<4x16xbf16>, vector<128x16xf32> -> vector<128x16xf32>
    %141 = arith.addf %133, %140 : vector<128x16xf32>
    %c3_147 = arith.constant 3 : index
    %c0_148 = arith.constant 0 : index
    %c0_149 = arith.constant 0 : index
    %142 = vector.load %arg7[%c3_147, %c0_148, %c0_149] : memref<9x12x16xbf16, #tpu.memory_space<vmem>>, vector<1x12x16xbf16>
    %143 = vector.shape_cast %142 : vector<1x12x16xbf16> to vector<12x16xbf16>
    %cst_150 = arith.constant dense<0.000000e+00> : vector<128x16xf32>
    %144 = tpu.matmul %137, %143, %cst_150 {dimension_numbers = #tpu.dot_dimension_numbers<[1], [0], [0], [1], [0, 0, 1, 1], [], []>} : vector<128x12xbf16>, vector<12x16xbf16>, vector<128x16xf32> -> vector<128x16xf32>
    %145 = arith.addf %141, %144 : vector<128x16xf32>
    %c2_151 = arith.constant 2 : index
    %c1_152 = arith.constant 1 : index
    %c0_153 = arith.constant 0 : index
    %146 = vector.load %arg10[%c2_151, %c1_152, %c0_153] : memref<12x18x4xbf16, #tpu.memory_space<vmem>>, vector<8x16x4xbf16>
    %147 = vector.shape_cast %146 : vector<8x16x4xbf16> to vector<128x4xbf16>
    %c2_154 = arith.constant 2 : index
    %c1_155 = arith.constant 1 : index
    %c0_156 = arith.constant 0 : index
    %148 = vector.load %arg11[%c2_154, %c1_155, %c0_156] : memref<12x18x12xbf16, #tpu.memory_space<vmem>>, vector<8x16x12xbf16>
    %149 = vector.shape_cast %148 : vector<8x16x12xbf16> to vector<128x12xbf16>
    %c4_157 = arith.constant 4 : index
    %c0_158 = arith.constant 0 : index
    %c0_159 = arith.constant 0 : index
    %150 = vector.load %arg6[%c4_157, %c0_158, %c0_159] : memref<9x4x16xbf16, #tpu.memory_space<vmem>>, vector<1x4x16xbf16>
    %151 = vector.shape_cast %150 : vector<1x4x16xbf16> to vector<4x16xbf16>
    %cst_160 = arith.constant dense<0.000000e+00> : vector<128x16xf32>
    %152 = tpu.matmul %147, %151, %cst_160 {dimension_numbers = #tpu.dot_dimension_numbers<[1], [0], [0], [1], [0, 0, 1, 1], [], []>} : vector<128x4xbf16>, vector<4x16xbf16>, vector<128x16xf32> -> vector<128x16xf32>
    %153 = arith.addf %145, %152 : vector<128x16xf32>
    %c4_161 = arith.constant 4 : index
    %c0_162 = arith.constant 0 : index
    %c0_163 = arith.constant 0 : index
    %154 = vector.load %arg7[%c4_161, %c0_162, %c0_163] : memref<9x12x16xbf16, #tpu.memory_space<vmem>>, vector<1x12x16xbf16>
    %155 = vector.shape_cast %154 : vector<1x12x16xbf16> to vector<12x16xbf16>
    %cst_164 = arith.constant dense<0.000000e+00> : vector<128x16xf32>
    %156 = tpu.matmul %149, %155, %cst_164 {dimension_numbers = #tpu.dot_dimension_numbers<[1], [0], [0], [1], [0, 0, 1, 1], [], []>} : vector<128x12xbf16>, vector<12x16xbf16>, vector<128x16xf32> -> vector<128x16xf32>
    %157 = arith.addf %153, %156 : vector<128x16xf32>
    %c2_165 = arith.constant 2 : index
    %c2_166 = arith.constant 2 : index
    %c0_167 = arith.constant 0 : index
    %158 = vector.load %arg10[%c2_165, %c2_166, %c0_167] : memref<12x18x4xbf16, #tpu.memory_space<vmem>>, vector<8x16x4xbf16>
    %159 = vector.shape_cast %158 : vector<8x16x4xbf16> to vector<128x4xbf16>
    %c2_168 = arith.constant 2 : index
    %c2_169 = arith.constant 2 : index
    %c0_170 = arith.constant 0 : index
    %160 = vector.load %arg11[%c2_168, %c2_169, %c0_170] : memref<12x18x12xbf16, #tpu.memory_space<vmem>>, vector<8x16x12xbf16>
    %161 = vector.shape_cast %160 : vector<8x16x12xbf16> to vector<128x12xbf16>
    %c5_171 = arith.constant 5 : index
    %c0_172 = arith.constant 0 : index
    %c0_173 = arith.constant 0 : index
    %162 = vector.load %arg6[%c5_171, %c0_172, %c0_173] : memref<9x4x16xbf16, #tpu.memory_space<vmem>>, vector<1x4x16xbf16>
    %163 = vector.shape_cast %162 : vector<1x4x16xbf16> to vector<4x16xbf16>
    %cst_174 = arith.constant dense<0.000000e+00> : vector<128x16xf32>
    %164 = tpu.matmul %159, %163, %cst_174 {dimension_numbers = #tpu.dot_dimension_numbers<[1], [0], [0], [1], [0, 0, 1, 1], [], []>} : vector<128x4xbf16>, vector<4x16xbf16>, vector<128x16xf32> -> vector<128x16xf32>
    %165 = arith.addf %157, %164 : vector<128x16xf32>
    %c5_175 = arith.constant 5 : index
    %c0_176 = arith.constant 0 : index
    %c0_177 = arith.constant 0 : index
    %166 = vector.load %arg7[%c5_175, %c0_176, %c0_177] : memref<9x12x16xbf16, #tpu.memory_space<vmem>>, vector<1x12x16xbf16>
    %167 = vector.shape_cast %166 : vector<1x12x16xbf16> to vector<12x16xbf16>
    %cst_178 = arith.constant dense<0.000000e+00> : vector<128x16xf32>
    %168 = tpu.matmul %161, %167, %cst_178 {dimension_numbers = #tpu.dot_dimension_numbers<[1], [0], [0], [1], [0, 0, 1, 1], [], []>} : vector<128x12xbf16>, vector<12x16xbf16>, vector<128x16xf32> -> vector<128x16xf32>
    %169 = arith.addf %165, %168 : vector<128x16xf32>
    %c3_179 = arith.constant 3 : index
    %c0_180 = arith.constant 0 : index
    %c0_181 = arith.constant 0 : index
    %170 = vector.load %arg10[%c3_179, %c0_180, %c0_181] : memref<12x18x4xbf16, #tpu.memory_space<vmem>>, vector<8x16x4xbf16>
    %171 = vector.shape_cast %170 : vector<8x16x4xbf16> to vector<128x4xbf16>
    %c3_182 = arith.constant 3 : index
    %c0_183 = arith.constant 0 : index
    %c0_184 = arith.constant 0 : index
    %172 = vector.load %arg11[%c3_182, %c0_183, %c0_184] : memref<12x18x12xbf16, #tpu.memory_space<vmem>>, vector<8x16x12xbf16>
    %173 = vector.shape_cast %172 : vector<8x16x12xbf16> to vector<128x12xbf16>
    %c6_185 = arith.constant 6 : index
    %c0_186 = arith.constant 0 : index
    %c0_187 = arith.constant 0 : index
    %174 = vector.load %arg6[%c6_185, %c0_186, %c0_187] : memref<9x4x16xbf16, #tpu.memory_space<vmem>>, vector<1x4x16xbf16>
    %175 = vector.shape_cast %174 : vector<1x4x16xbf16> to vector<4x16xbf16>
    %cst_188 = arith.constant dense<0.000000e+00> : vector<128x16xf32>
    %176 = tpu.matmul %171, %175, %cst_188 {dimension_numbers = #tpu.dot_dimension_numbers<[1], [0], [0], [1], [0, 0, 1, 1], [], []>} : vector<128x4xbf16>, vector<4x16xbf16>, vector<128x16xf32> -> vector<128x16xf32>
    %177 = arith.addf %169, %176 : vector<128x16xf32>
    %c6_189 = arith.constant 6 : index
    %c0_190 = arith.constant 0 : index
    %c0_191 = arith.constant 0 : index
    %178 = vector.load %arg7[%c6_189, %c0_190, %c0_191] : memref<9x12x16xbf16, #tpu.memory_space<vmem>>, vector<1x12x16xbf16>
    %179 = vector.shape_cast %178 : vector<1x12x16xbf16> to vector<12x16xbf16>
    %cst_192 = arith.constant dense<0.000000e+00> : vector<128x16xf32>
    %180 = tpu.matmul %173, %179, %cst_192 {dimension_numbers = #tpu.dot_dimension_numbers<[1], [0], [0], [1], [0, 0, 1, 1], [], []>} : vector<128x12xbf16>, vector<12x16xbf16>, vector<128x16xf32> -> vector<128x16xf32>
    %181 = arith.addf %177, %180 : vector<128x16xf32>
    %c3_193 = arith.constant 3 : index
    %c1_194 = arith.constant 1 : index
    %c0_195 = arith.constant 0 : index
    %182 = vector.load %arg10[%c3_193, %c1_194, %c0_195] : memref<12x18x4xbf16, #tpu.memory_space<vmem>>, vector<8x16x4xbf16>
    %183 = vector.shape_cast %182 : vector<8x16x4xbf16> to vector<128x4xbf16>
    %c3_196 = arith.constant 3 : index
    %c1_197 = arith.constant 1 : index
    %c0_198 = arith.constant 0 : index
    %184 = vector.load %arg11[%c3_196, %c1_197, %c0_198] : memref<12x18x12xbf16, #tpu.memory_space<vmem>>, vector<8x16x12xbf16>
    %185 = vector.shape_cast %184 : vector<8x16x12xbf16> to vector<128x12xbf16>
    %c7_199 = arith.constant 7 : index
    %c0_200 = arith.constant 0 : index
    %c0_201 = arith.constant 0 : index
    %186 = vector.load %arg6[%c7_199, %c0_200, %c0_201] : memref<9x4x16xbf16, #tpu.memory_space<vmem>>, vector<1x4x16xbf16>
    %187 = vector.shape_cast %186 : vector<1x4x16xbf16> to vector<4x16xbf16>
    %cst_202 = arith.constant dense<0.000000e+00> : vector<128x16xf32>
    %188 = tpu.matmul %183, %187, %cst_202 {dimension_numbers = #tpu.dot_dimension_numbers<[1], [0], [0], [1], [0, 0, 1, 1], [], []>} : vector<128x4xbf16>, vector<4x16xbf16>, vector<128x16xf32> -> vector<128x16xf32>
    %189 = arith.addf %181, %188 : vector<128x16xf32>
    %c7_203 = arith.constant 7 : index
    %c0_204 = arith.constant 0 : index
    %c0_205 = arith.constant 0 : index
    %190 = vector.load %arg7[%c7_203, %c0_204, %c0_205] : memref<9x12x16xbf16, #tpu.memory_space<vmem>>, vector<1x12x16xbf16>
    %191 = vector.shape_cast %190 : vector<1x12x16xbf16> to vector<12x16xbf16>
    %cst_206 = arith.constant dense<0.000000e+00> : vector<128x16xf32>
    %192 = tpu.matmul %185, %191, %cst_206 {dimension_numbers = #tpu.dot_dimension_numbers<[1], [0], [0], [1], [0, 0, 1, 1], [], []>} : vector<128x12xbf16>, vector<12x16xbf16>, vector<128x16xf32> -> vector<128x16xf32>
    %193 = arith.addf %189, %192 : vector<128x16xf32>
    %c3_207 = arith.constant 3 : index
    %c2_208 = arith.constant 2 : index
    %c0_209 = arith.constant 0 : index
    %194 = vector.load %arg10[%c3_207, %c2_208, %c0_209] : memref<12x18x4xbf16, #tpu.memory_space<vmem>>, vector<8x16x4xbf16>
    %195 = vector.shape_cast %194 : vector<8x16x4xbf16> to vector<128x4xbf16>
    %c3_210 = arith.constant 3 : index
    %c2_211 = arith.constant 2 : index
    %c0_212 = arith.constant 0 : index
    %196 = vector.load %arg11[%c3_210, %c2_211, %c0_212] : memref<12x18x12xbf16, #tpu.memory_space<vmem>>, vector<8x16x12xbf16>
    %197 = vector.shape_cast %196 : vector<8x16x12xbf16> to vector<128x12xbf16>
    %c8_213 = arith.constant 8 : index
    %c0_214 = arith.constant 0 : index
    %c0_215 = arith.constant 0 : index
    %198 = vector.load %arg6[%c8_213, %c0_214, %c0_215] : memref<9x4x16xbf16, #tpu.memory_space<vmem>>, vector<1x4x16xbf16>
    %199 = vector.shape_cast %198 : vector<1x4x16xbf16> to vector<4x16xbf16>
    %cst_216 = arith.constant dense<0.000000e+00> : vector<128x16xf32>
    %200 = tpu.matmul %195, %199, %cst_216 {dimension_numbers = #tpu.dot_dimension_numbers<[1], [0], [0], [1], [0, 0, 1, 1], [], []>} : vector<128x4xbf16>, vector<4x16xbf16>, vector<128x16xf32> -> vector<128x16xf32>
    %201 = arith.addf %193, %200 : vector<128x16xf32>
    %c8_217 = arith.constant 8 : index
    %c0_218 = arith.constant 0 : index
    %c0_219 = arith.constant 0 : index
    %202 = vector.load %arg7[%c8_217, %c0_218, %c0_219] : memref<9x12x16xbf16, #tpu.memory_space<vmem>>, vector<1x12x16xbf16>
    %203 = vector.shape_cast %202 : vector<1x12x16xbf16> to vector<12x16xbf16>
    %cst_220 = arith.constant dense<0.000000e+00> : vector<128x16xf32>
    %204 = tpu.matmul %197, %203, %cst_220 {dimension_numbers = #tpu.dot_dimension_numbers<[1], [0], [0], [1], [0, 0, 1, 1], [], []>} : vector<128x12xbf16>, vector<12x16xbf16>, vector<128x16xf32> -> vector<128x16xf32>
    %205 = arith.addf %201, %204 : vector<128x16xf32>
    %c0_221 = arith.constant 0 : index
    %c0_222 = arith.constant 0 : index
    %206 = vector.load %arg8[%c0_221, %c0_222] : memref<1x16xf32, #tpu.memory_space<vmem>>, vector<1x16xf32>
    %207 = vector.broadcast %206 : vector<1x16xf32> to vector<128x16xf32>
    %208 = arith.addf %205, %207 : vector<128x16xf32>
    %209 = arith.negf %208 : vector<128x16xf32>
    %210 = math.exp %209 : vector<128x16xf32>
    %cst_223 = arith.constant 1.000000e+00 : f32
    %211 = vector.broadcast %cst_223 : f32 to vector<128x16xf32>
    %212 = arith.addf %211, %210 : vector<128x16xf32>
    %213 = arith.divf %211, %212 : vector<128x16xf32>
    %214 = arith.mulf %208, %213 : vector<128x16xf32>
    %c0_224 = arith.constant 0 : index
    %c0_225 = arith.constant 0 : index
    %215 = vector.load %arg12[%c0_224, %c0_225] : memref<128x16xf32, #tpu.memory_space<vmem>>, vector<128x16xf32>
    %216 = arith.addf %215, %214 : vector<128x16xf32>
    %217 = arith.truncf %216 : vector<128x16xf32> to vector<128x16xbf16>
    %c0_226 = arith.constant 0 : index
    %c0_227 = arith.constant 0 : index
    %c0_228 = arith.constant 0 : index
    %218 = vector.load %arg9[%c0_226, %c0_227, %c0_228] : memref<1x128x16xbf16, #tpu.memory_space<vmem>>, vector<1x128x16xbf16>
    %219 = vector.shape_cast %218 : vector<1x128x16xbf16> to vector<128x16xbf16>
    %220 = vector.shape_cast %217 : vector<128x16xbf16> to vector<1x128x16xbf16>
    tpu.vector_store %arg9[%c0_226, %c0_227, %c0_228], %220 {strides = array<i32>} : memref<1x128x16xbf16, #tpu.memory_space<vmem>>, vector<1x128x16xbf16>,
    return
  }
  func.func @transform_0(%arg0: i32, %arg1: i32) -> (i32, i32, i32, i32) {
    %c0_i32 = arith.constant 0 : i32
    %c0_i32_0 = arith.constant 0 : i32
    %c0_i32_1 = arith.constant 0 : i32
    %c0_i32_2 = arith.constant 0 : i32
    return %arg0, %c0_i32, %c0_i32_0, %c0_i32_1 : i32, i32, i32, i32
  }
  func.func @transform_1(%arg0: i32, %arg1: i32) -> (i32, i32) {
    %c0_i32 = arith.constant 0 : i32
    %c0_i32_0 = arith.constant 0 : i32
    %c0_i32_1 = arith.constant 0 : i32
    return %c0_i32, %c0_i32_0 : i32, i32
  }
  func.func @transform_2(%arg0: i32, %arg1: i32) -> (i32, i32) {
    %c0_i32 = arith.constant 0 : i32
    %c0_i32_0 = arith.constant 0 : i32
    %c0_i32_1 = arith.constant 0 : i32
    return %c0_i32, %c0_i32_0 : i32, i32
  }
  func.func @transform_3(%arg0: i32, %arg1: i32) -> (i32, i32, i32) {
    %c0_i32 = arith.constant 0 : i32
    %c0_i32_0 = arith.constant 0 : i32
    %c0_i32_1 = arith.constant 0 : i32
    %c0_i32_2 = arith.constant 0 : i32
    return %c0_i32, %c0_i32_0, %c0_i32_1 : i32, i32, i32
  }
  func.func @transform_4(%arg0: i32, %arg1: i32) -> (i32, i32, i32) {
    %c0_i32 = arith.constant 0 : i32
    %c0_i32_0 = arith.constant 0 : i32
    %c0_i32_1 = arith.constant 0 : i32
    %c0_i32_2 = arith.constant 0 : i32
    return %c0_i32, %c0_i32_0, %c0_i32_1 : i32, i32, i32
  }
  func.func @transform_5(%arg0: i32, %arg1: i32) -> (i32, i32, i32) {
    %c0_i32 = arith.constant 0 : i32
    %c0_i32_0 = arith.constant 0 : i32
    %c0_i32_1 = arith.constant 0 : i32
    %c0_i32_2 = arith.constant 0 : i32
    return %c0_i32, %c0_i32_0, %c0_i32_1 : i32, i32, i32
  }
  func.func @transform_6(%arg0: i32, %arg1: i32) -> (i32, i32) {
    %c0_i32 = arith.constant 0 : i32
    %c0_i32_0 = arith.constant 0 : i32
    %c0_i32_1 = arith.constant 0 : i32
    return %c0_i32, %c0_i32_0 : i32, i32
  }
  func.func @transform_7(%arg0: i32, %arg1: i32) -> (i32, i32, i32) {
    %c0_i32 = arith.constant 0 : i32
    %c0_i32_0 = arith.constant 0 : i32
    return %arg0, %arg1, %c0_i32 : i32, i32, i32
  }
}

</mosaic_0001>

<llo_original>
// kernel: tpu_custom_call.1
$region0: #{tpu_custom_call.1}
  #allocation0 [shape = 'u32[]', space=smem, size = 0x4, offset = 0x4, fixed_abs, tag = 'smem constant byte address 0x4 - core index']
  #allocation1 [shape = 'u32[72,128]{1,0:T(1,128)}', space=vmem, size = 0x9000, scoped, tag = 'internal scratch']
  #allocation2 [shape = 'bf16[12,18,4]{2,1,0:T(8,128)(2,1)}', space=vmem, size = 0x12000, scoped, tag = 'scratch operand']
  #allocation3 [shape = 'bf16[12,18,12]{2,1,0:T(8,128)(2,1)}', space=vmem, size = 0x12000, scoped, tag = 'scratch operand']
  #allocation4 [shape = 'f32[128,16]{1,0:T(8,128)}', space=vmem, size = 0x10000, scoped, tag = 'scratch operand']
  %s0 = inlined_call_operand.vmem [shape: bf16[2,20,16,4], index: 0, kind: input, shape index: {}]
  %s1 = inlined_call_operand.vmem [shape: bf16[4,16], index: 1, kind: input, shape index: {}]
  %s2 = inlined_call_operand.vmem [shape: f32[1,16], index: 2, kind: input, shape index: {}]
  %s3 = inlined_call_operand.vmem [shape: bf16[9,4,4], index: 3, kind: input, shape index: {}]
  %s4 = inlined_call_operand.vmem [shape: bf16[9,4,16], index: 4, kind: input, shape index: {}]
  %s5 = inlined_call_operand.vmem [shape: bf16[9,12,16], index: 5, kind: input, shape index: {}]
  %s6 = inlined_call_operand.vmem [shape: f32[1,16], index: 6, kind: input, shape index: {}]
  %s7 = inlined_call_operand.vmem [shape: bf16[2,256,16], index: 7, kind: output, shape index: {}]
  %s8 = sld [smem:[#allocation0]]
  $region77: #{tpu_custom_call.1} parent=0
    _
  %s10 = ssub.s32 1, %s8
  %s11 = scalar_select 0, %s10, %s8
  loop: start=0, step=1, limit=6
  $region2: #{tpu_custom_call.1} parent=0 // loop_pre_header
    _
  $region3: #{tpu_custom_call.1} parent=0 // loop_header
    %s13 = sphi 0, %s17
    %p14 = scmp.ge.s32.totalorder %s13, 6
    %s20 = sphi 0, %s32
    %s21 = sphi 0, %s28
    %s22 = sphi 0, %s20
    %s23 = sphi 0, %s21
    %s24 = sphi 0, %s22
    %s25 = sphi 0, %s23
    %s35 = sphi 0, %s37
    %s38 = sphi 0, %s35
    %s39 = sphi 0, %s38
    %s55 = sphi 0, %s39
    %s59 = sphi 0, %s59
    %s61 = sphi 0, %s59
    %s62 = sphi 0, %s61
    %s76 = sphi 0, %s62
    %s80 = sphi 0, %s80
    %s82 = sphi 0, %s80
    %s83 = sphi 0, %s82
    %s97 = sphi 0, %s83
    %s101 = sphi 0, %s101
    %s103 = sphi 0, %s101
    %s104 = sphi 0, %s103
    %s118 = sphi 0, %s104
    %s122 = sphi 0, %s122
    %s124 = sphi 0, %s122
    %s125 = sphi 0, %s124
    %s139 = sphi 0, %s125
    %s143 = sphi 0, %s143
    %s145 = sphi 0, %s143
    %s146 = sphi 0, %s145
    %s160 = sphi 0, %s146
    %s164 = sphi 0, %s164
    %s166 = sphi 0, %s164
    %s167 = sphi 0, %s166
    %s181 = sphi 0, %s167
    %s189 = sphi 0, %s191
    %s192 = sphi 0, %s189
    %s193 = sphi 0, %s192
    %s209 = sphi 0, %s193
  $region4: #{tpu_custom_call.1} parent=0 // loop_header_branch
    %16 = sbr.rel (%p14) target = $region8
  $region5: #{tpu_custom_call.1} parent=0 // loop_body
    %s18 = ssub.s32 %s13, 1
    %s19 = ssub.s32 %s13, 2
    %s26 = sadd.s32 1, %s21
    %p27 = scmp.ge.s32.totalorder %s26, 2
    %s28 = scalar_select %p27, 0, %s26
    %s29 = sadd.s32 1, %s20
    %s30 = scalar_select %p27, %s29, %s20
    %p31 = scmp.ge.s32.totalorder %s30, 2
    %s32 = scalar_select %p31, 0, %s30
    %s33 = ssub.s32 %s20, %s32
    %p34 = scmp.eq.s32.totalorder %s33, 0
    %s36 = sadd.s32 %s35, 1
    %s37 = scalar_select %p34, %s35, %s36
    %p40 = pneg %p34
    %p41 = scmp.eq.s32.totalorder %s13, 3
    %p42 = por %p40, %p41
    %p43 = scmp.ne.s32.totalorder %s35, %s38
    %p44 = scmp.eq.s32.totalorder %s13, 0
    %p45 = por %p43, %p44
    %p46 = scmp.ne.s32.totalorder %s35, %s38
    %p47 = scmp.eq.s32.totalorder %s18, 3
    %p48 = por %p46, %p47
    %p49 = scmp.ne.s32.totalorder %s38, %s39
    %p50 = scmp.eq.s32.totalorder %s18, 0
    %p51 = por %p49, %p50
    %p52 = scmp.ne.s32.totalorder %s38, %s39
    %p53 = scmp.eq.s32.totalorder %s19, 3
    %p54 = por %p52, %p53
    %p56 = scmp.ne.s32.totalorder %s39, %s55
    %p57 = scmp.eq.s32.totalorder %s19, 0
    %p58 = por %p56, %p57
    %s60 = sadd.s32 %s59, 1
    %p63 = scmp.eq.s32.totalorder %s13, 3
    %p64 = scmp.ne.s32.totalorder %s59, %s61
    %p65 = scmp.eq.s32.totalorder %s13, 0
    %p66 = por %p64, %p65
    %p67 = scmp.ne.s32.totalorder %s59, %s61
    %p68 = scmp.eq.s32.totalorder %s18, 3
    %p69 = por %p67, %p68
    %p70 = scmp.ne.s32.totalorder %s61, %s62
    %p71 = scmp.eq.s32.totalorder %s18, 0
    %p72 = por %p70, %p71
    %p73 = scmp.ne.s32.totalorder %s61, %s62
    %p74 = scmp.eq.s32.totalorder %s19, 3
    %p75 = por %p73, %p74
    %p77 = scmp.ne.s32.totalorder %s62, %s76
    %p78 = scmp.eq.s32.totalorder %s19, 0
    %p79 = por %p77, %p78
    %s81 = sadd.s32 %s80, 1
    %p84 = scmp.eq.s32.totalorder %s13, 3
    %p85 = scmp.ne.s32.totalorder %s80, %s82
    %p86 = scmp.eq.s32.totalorder %s13, 0
    %p87 = por %p85, %p86
    %p88 = scmp.ne.s32.totalorder %s80, %s82
    %p89 = scmp.eq.s32.totalorder %s18, 3
    %p90 = por %p88, %p89
    %p91 = scmp.ne.s32.totalorder %s82, %s83
    %p92 = scmp.eq.s32.totalorder %s18, 0
    %p93 = por %p91, %p92
    %p94 = scmp.ne.s32.totalorder %s82, %s83
    %p95 = scmp.eq.s32.totalorder %s19, 3
    %p96 = por %p94, %p95
    %p98 = scmp.ne.s32.totalorder %s83, %s97
    %p99 = scmp.eq.s32.totalorder %s19, 0
    %p100 = por %p98, %p99
    %s102 = sadd.s32 %s101, 1
    %p105 = scmp.eq.s32.totalorder %s13, 3
    %p106 = scmp.ne.s32.totalorder %s101, %s103
    %p107 = scmp.eq.s32.totalorder %s13, 0
    %p108 = por %p106, %p107
    %p109 = scmp.ne.s32.totalorder %s101, %s103
    %p110 = scmp.eq.s32.totalorder %s18, 3
    %p111 = por %p109, %p110
    %p112 = scmp.ne.s32.totalorder %s103, %s104
    %p113 = scmp.eq.s32.totalorder %s18, 0
    %p114 = por %p112, %p113
    %p115 = scmp.ne.s32.totalorder %s103, %s104
    %p116 = scmp.eq.s32.totalorder %s19, 3
    %p117 = por %p115, %p116
    %p119 = scmp.ne.s32.totalorder %s104, %s118
    %p120 = scmp.eq.s32.totalorder %s19, 0
    %p121 = por %p119, %p120
    %s123 = sadd.s32 %s122, 1
    %p126 = scmp.eq.s32.totalorder %s13, 3
    %p127 = scmp.ne.s32.totalorder %s122, %s124
    %p128 = scmp.eq.s32.totalorder %s13, 0
    %p129 = por %p127, %p128
    %p130 = scmp.ne.s32.totalorder %s122, %s124
    %p131 = scmp.eq.s32.totalorder %s18, 3
    %p132 = por %p130, %p131
    %p133 = scmp.ne.s32.totalorder %s124, %s125
    %p134 = scmp.eq.s32.totalorder %s18, 0
    %p135 = por %p133, %p134
    %p136 = scmp.ne.s32.totalorder %s124, %s125
    %p137 = scmp.eq.s32.totalorder %s19, 3
    %p138 = por %p136, %p137
    %p140 = scmp.ne.s32.totalorder %s125, %s139
    %p141 = scmp.eq.s32.totalorder %s19, 0
    %p142 = por %p140, %p141
    %s144 = sadd.s32 %s143, 1
    %p147 = scmp.eq.s32.totalorder %s13, 3
    %p148 = scmp.ne.s32.totalorder %s143, %s145
    %p149 = scmp.eq.s32.totalorder %s13, 0
    %p150 = por %p148, %p149
    %p151 = scmp.ne.s32.totalorder %s143, %s145
    %p152 = scmp.eq.s32.totalorder %s18, 3
    %p153 = por %p151, %p152
    %p154 = scmp.ne.s32.totalorder %s145, %s146
    %p155 = scmp.eq.s32.totalorder %s18, 0
    %p156 = por %p154, %p155
    %p157 = scmp.ne.s32.totalorder %s145, %s146
    %p158 = scmp.eq.s32.totalorder %s19, 3
    %p159 = por %p157, %p158
    %p161 = scmp.ne.s32.totalorder %s146, %s160
    %p162 = scmp.eq.s32.totalorder %s19, 0
    %p163 = por %p161, %p162
    %s165 = sadd.s32 %s164, 1
    %p168 = scmp.eq.s32.totalorder %s13, 3
    %p169 = scmp.ne.s32.totalorder %s164, %s166
    %p170 = scmp.eq.s32.totalorder %s13, 0
    %p171 = por %p169, %p170
    %p172 = scmp.ne.s32.totalorder %s164, %s166
    %p173 = scmp.eq.s32.totalorder %s18, 3
    %p174 = por %p172, %p173
    %p175 = scmp.ne.s32.totalorder %s166, %s167
    %p176 = scmp.eq.s32.totalorder %s18, 0
    %p177 = por %p175, %p176
    %p178 = scmp.ne.s32.totalorder %s166, %s167
    %p179 = scmp.eq.s32.totalorder %s19, 3
    %p180 = por %p178, %p179
    %p182 = scmp.ne.s32.totalorder %s167, %s181
    %p183 = scmp.eq.s32.totalorder %s19, 0
    %p184 = por %p182, %p183
    %s185 = ssub.s32 %s20, %s32
    %s186 = ssub.s32 %s21, %s28
    %s187 = sor.u32 %s185, %s186
    %p188 = scmp.eq.s32.totalorder %s187, 0
    %s190 = sadd.s32 %s189, 1
    %s191 = scalar_select %p188, %s189, %s190
    %p194 = pneg %p188
    %p195 = scmp.eq.s32.totalorder %s13, 3
    %p196 = por %p194, %p195
    %p197 = scmp.ne.s32.totalorder %s189, %s192
    %p198 = scmp.eq.s32.totalorder %s13, 0
    %p199 = por %p197, %p198
    %p200 = scmp.ne.s32.totalorder %s189, %s192
    %p201 = scmp.eq.s32.totalorder %s18, 3
    %p202 = por %p200, %p201
    %p203 = scmp.ne.s32.totalorder %s192, %s193
    %p204 = scmp.eq.s32.totalorder %s18, 0
    %p205 = por %p203, %p204
    %p206 = scmp.ne.s32.totalorder %s192, %s193
    %p207 = scmp.eq.s32.totalorder %s19, 3
    %p208 = por %p206, %p207
    %p210 = scmp.ne.s32.totalorder %s193, %s209
    %p211 = scmp.eq.s32.totalorder %s19, 0
    %p212 = por %p210, %p211
    %p213 = scmp.le.s32.totalorder 1, %s13
    %p214 = scmp.lt.s32.totalorder %s13, 5
    %p215 = pnand %p213, %p214
    %p216 = pneg %p215
    // Predicated region
    $region9: #{tpu_custom_call.1} parent=5 // pred_check
      _
    $region10: #{tpu_custom_call.1} parent=5 // pred_check_branch
      %218 = sbr.rel (%p215) target = $region12
    $region11: #{tpu_custom_call.1} parent=5 // pred_region
      %s219 = ssub.s32 %s13, 1
      // Predicated region
      $region13: #{tpu_custom_call.1} parent=11 // pred_check
        %p220 = pneg %p72
      $region14: #{tpu_custom_call.1} parent=11 // pred_check_branch
        %222 = sbr.rel (%p220) target = $region16
      $region15: #{tpu_custom_call.1} parent=11 // pred_region
        _
      $region16: #{tpu_custom_call.1} parent=11 // pred_fallthru
        _
      // Predicated region
      $region17: #{tpu_custom_call.1} parent=11 // pred_check
        %p223 = pneg %p93
      $region18: #{tpu_custom_call.1} parent=11 // pred_check_branch
        %225 = sbr.rel (%p223) target = $region20
      $region19: #{tpu_custom_call.1} parent=11 // pred_region
        _
      $region20: #{tpu_custom_call.1} parent=11 // pred_fallthru
        _
      // Predicated region
      $region21: #{tpu_custom_call.1} parent=11 // pred_check
        %p226 = pneg %p114
      $region22: #{tpu_custom_call.1} parent=11 // pred_check_branch
        %228 = sbr.rel (%p226) target = $region24
      $region23: #{tpu_custom_call.1} parent=11 // pred_region
        _
      $region24: #{tpu_custom_call.1} parent=11 // pred_fallthru
        _
      // Predicated region
      $region25: #{tpu_custom_call.1} parent=11 // pred_check
        %p229 = pneg %p135
      $region26: #{tpu_custom_call.1} parent=11 // pred_check_branch
        %231 = sbr.rel (%p229) target = $region28
      $region27: #{tpu_custom_call.1} parent=11 // pred_region
        _
      $region28: #{tpu_custom_call.1} parent=11 // pred_fallthru
        _
      // Predicated region
      $region29: #{tpu_custom_call.1} parent=11 // pred_check
        %p232 = pneg %p156
      $region30: #{tpu_custom_call.1} parent=11 // pred_check_branch
        %234 = sbr.rel (%p232) target = $region32
      $region31: #{tpu_custom_call.1} parent=11 // pred_region
        _
      $region32: #{tpu_custom_call.1} parent=11 // pred_fallthru
        _
      // Predicated region
      $region33: #{tpu_custom_call.1} parent=11 // pred_check
        %p235 = pneg %p177
      $region34: #{tpu_custom_call.1} parent=11 // pred_check_branch
        %237 = sbr.rel (%p235) target = $region36
      $region35: #{tpu_custom_call.1} parent=11 // pred_region
        _
      $region36: #{tpu_custom_call.1} parent=11 // pred_fallthru
        _
    $region12: #{tpu_custom_call.1} parent=5 // pred_fallthru
      _
    %p238 = scmp.lt.s32.totalorder %s13, 4
    // Predicated region
    $region37: #{tpu_custom_call.1} parent=5 // pred_check
      %p239 = pneg %p238
    $region38: #{tpu_custom_call.1} parent=5 // pred_check_branch
      %241 = sbr.rel (%p239) target = $region40
    $region39: #{tpu_custom_call.1} parent=5 // pred_region
      // Predicated region
      $region41: #{tpu_custom_call.1} parent=39 // pred_check
        %p242 = pneg %p45
      $region42: #{tpu_custom_call.1} parent=39 // pred_check_branch
        %244 = sbr.rel (%p242) target = $region44
      $region43: #{tpu_custom_call.1} parent=39 // pred_region
        %p245 = scmp.lt.s32.totalorder %s20, 1
        %s246 = scalar_select %p245, %s20, 1
        %s247 = smul.addr %s246, 40
        %s248 = smul.addr %s247, 4
        %s249 = scalar_lea.vmem %s0, %s248
      $region44: #{tpu_custom_call.1} parent=39 // pred_fallthru
        _
    $region40: #{tpu_custom_call.1} parent=5 // pred_fallthru
      _
    %p250 = scmp.le.s32.totalorder 1, %s13
    %p251 = scmp.lt.s32.totalorder %s13, 5
    %p252 = pnand %p250, %p251
    %p253 = pneg %p252
    // Predicated region
    $region45: #{tpu_custom_call.1} parent=5 // pred_check
      _
    $region46: #{tpu_custom_call.1} parent=5 // pred_check_branch
      %255 = sbr.rel (%p252) target = $region48
    $region47: #{tpu_custom_call.1} parent=5 // pred_region
      %s256 = ssub.s32 %s13, 1
      %p257 = scmp.lt.s32.totalorder %s22, 1
      %s258 = scalar_select %p257, %s22, 1
      %s259 = smul.addr %s258, 40
      %s260 = smul.addr %s259, 4
      %s261 = scalar_lea.vmem %s0, %s260
      %p262 = pneg %p51
      %p263 = pneg %p48
      %p264 = pneg %p72
      %p265 = pneg %p69
      %p266 = pneg %p93
      %p267 = pneg %p90
      %p268 = pneg %p114
      %p269 = pneg %p111
      %p270 = pneg %p135
      %p271 = pneg %p132
      %p272 = pneg %p156
      %p273 = pneg %p153
      %p274 = pneg %p177
      %p275 = pneg %p174
      %p276 = pneg %p205
      %p277 = pneg %p202
      %s278 = smul.u32 16, %s23
      %p279 = scmp.lt.s32.totalorder %s22, 1
      %s280 = scalar_select %p279, %s22, 1
      %p281 = scmp.lt.s32.totalorder %s278, 31
      %s282 = scalar_select %p281, %s278, 31
      %s283 = smul.addr %s280, 32
      %s284 = sadd.s32 %s282, %s283
      %s285 = smul.addr %s284, 4
      %s286 = scalar_lea.vmem %s7, %s285
      %p287 = scmp.lt.s32.totalorder %s22, 1
      %s288 = scalar_select %p287, %s22, 1
      %s289 = smul.addr %s288, 40
      %s290 = smul.addr %s289, 4
      %s291 = scalar_lea.vmem %s0, %s290
      %s292 = smul.u32 16, %s23
      %p293 = scmp.lt.s32.totalorder %s22, 1
      %s294 = scalar_select %p293, %s22, 1
      %p295 = scmp.lt.s32.totalorder %s292, 31
      %s296 = scalar_select %p295, %s292, 31
      %s297 = smul.addr %s294, 32
      %s298 = sadd.s32 %s296, %s297
      %s299 = smul.addr %s298, 4
      %s300 = scalar_lea.vmem %s7, %s299
      %s301 = smul.u32 16, %s23
      %s303 = smul.u32 %s23, 8
      %s304 = smul.u32 %s303, 2
      %s305 = smul.addr %s304, 4
      %s306 = scalar_lea.vmem %s291, %s305
      %v307 = vld [vmem:[%s306] sm:$0xf]
      %v308 = vld [vmem:[%s306 + $0x4] sm:$0xf]
      %v309 = vld [vmem:[%s306 + $0x8] sm:$0xf]
      %v310 = vld [vmem:[%s306 + $0xc] sm:$0xf]
      %v311 = vld [vmem:[%s306 + $0x10] sm:$0xf]
      %v312 = vld [vmem:[%s306 + $0x14] sm:$0xf]
      %v313 = vld [vmem:[%s306 + $0x18] sm:$0xf]
      %v314 = vld [vmem:[%s306 + $0x1c] sm:$0xf]
      %v315 = vld [vmem:[%s306 + $0x20] sm:$0xf]
      %v316 = vld [vmem:[%s306 + $0x24] sm:$0xf]
      %v317 = vld [vmem:[%s306 + $0x28] sm:$0xf]
      %v318 = vld [vmem:[%s306 + $0x2c] sm:$0xf]
      %v319 = vld [vmem:[%s306 + $0x30] sm:$0xf]
      %v320 = vld [vmem:[%s306 + $0x34] sm:$0xf]
      %v321 = vld [vmem:[%s306 + $0x38] sm:$0xf]
      %v322 = vld [vmem:[%s306 + $0x3c] sm:$0xf]
      %v323 = vld [vmem:[%s306 + $0x40] sm:$0xf]
      %v324 = vld [vmem:[%s306 + $0x44] sm:$0xf]
      %v325 = vld [vmem:[%s306 + $0x48] sm:$0xf]
      %v326 = vld [vmem:[%s306 + $0x4c] sm:$0xf]
      %v327 = vld [vmem:[%s306 + $0x50] sm:$0xf]
      %v328 = vld [vmem:[%s306 + $0x54] sm:$0xf]
      %v329 = vld [vmem:[%s306 + $0x58] sm:$0xf]
      %v330 = vld [vmem:[%s306 + $0x5c] sm:$0xf]
      %v331 = vld [vmem:[%s1] sm:$0x3]
      %v332 = vld [vmem:[%s2] sm:$0x1]
      %v334 = vperm.slane %v332, 0
      %v360 = vunpack.c.l.b16 %v307
      %v361 = vunpack.c.l.b16 %v308
      %v362 = vunpack.c.l.b16 %v309
      %v363 = vunpack.c.l.b16 %v310
      %v364 = vunpack.c.l.b16 %v311
      %v365 = vunpack.c.l.b16 %v312
      %v366 = vunpack.c.l.b16 %v313
      %v367 = vunpack.c.l.b16 %v314
      %v368 = vunpack.c.l.b16 %v315
      %v369 = vunpack.c.l.b16 %v316
      %v370 = vunpack.c.l.b16 %v317
      %v371 = vunpack.c.l.b16 %v318
      %v372 = vunpack.c.l.b16 %v319
      %v373 = vunpack.c.l.b16 %v320
      %v374 = vunpack.c.l.b16 %v321
      %v375 = vunpack.c.l.b16 %v322
      %v376 = vunpack.c.l.b16 %v323
      %v377 = vunpack.c.l.b16 %v324
      %v378 = vunpack.c.l.b16 %v325
      %v379 = vunpack.c.l.b16 %v326
      %v380 = vunpack.c.l.b16 %v327
      %v381 = vunpack.c.l.b16 %v328
      %v382 = vunpack.c.l.b16 %v329
      %v383 = vunpack.c.l.b16 %v330
      %v384 = vpack.c.b16 %v361, %v360
      %v385 = vpack.c.b16 %v363, %v362
      %v386 = vpack.c.b16 %v365, %v364
      %v387 = vpack.c.b16 %v367, %v366
      %v388 = vpack.c.b16 %v369, %v368
      %v389 = vpack.c.b16 %v371, %v370
      %v390 = vpack.c.b16 %v373, %v372
      %v391 = vpack.c.b16 %v375, %v374
      %v392 = vpack.c.b16 %v377, %v376
      %v393 = vpack.c.b16 %v379, %v378
      %v394 = vpack.c.b16 %v381, %v380
      %v395 = vpack.c.b16 %v383, %v382
      %vm396 = vcmask 31744
      %v398 = vsel %vm396, %v384, 0
      %v401 = vsel %vm396, %v385, 0
      %v404 = vsel %vm396, %v386, 0
      %v407 = vsel %vm396, %v387, 0
      %v410 = vsel %vm396, %v388, 0
      %v413 = vsel %vm396, %v389, 0
      %v416 = vsel %vm396, %v390, 0
      %v419 = vsel %vm396, %v391, 0
      %v422 = vsel %vm396, %v392, 0
      %v425 = vsel %vm396, %v393, 0
      %v428 = vsel %vm396, %v394, 0
      %v431 = vsel %vm396, %v395, 0
      %vm433 = vcmask 1041408
      %v435 = vsel %vm433, %v331, 0
      %437 = vmatpush.bf16.msra.mxu0 0
      %438 = vmatpush.bf16.msra.mxu0 0
      %439 = vmatpush.bf16.msra.mxu0 0
      %440 = vmatpush.bf16.msra.mxu0 0
      %441 = vmatpush.bf16.msra.mxu0 0
      %442 = vmatpush.bf16.msra.mxu0 0
      %443 = vmatpush.bf16.msra.mxu0 0
      %444 = vmatpush.bf16.msra.mxu0 %v435
      %445 = vmatmul.bf16.gmra.mxu0 %v398
      %v446 = vpop.f32.mrf.mxu0
      %v447 = vadd.f32 %v334, %v446
      %v448 = vpop.f32.mrf.mxu0
      %v449 = vadd.f32 %v334, %v448
      %450 = vmatmul.bf16.gmra.mxu0 %v401
      %v451 = vpop.f32.mrf.mxu0
      %v452 = vadd.f32 %v334, %v451
      %v453 = vpop.f32.mrf.mxu0
      %v454 = vadd.f32 %v334, %v453
      %455 = vmatmul.bf16.gmra.mxu0 %v404
      %v456 = vpop.f32.mrf.mxu0
      %v457 = vadd.f32 %v334, %v456
      %v458 = vpop.f32.mrf.mxu0
      %v459 = vadd.f32 %v334, %v458
      %460 = vmatmul.bf16.gmra.mxu0 %v407
      %v461 = vpop.f32.mrf.mxu0
      %v462 = vadd.f32 %v334, %v461
      %v463 = vpop.f32.mrf.mxu0
      %v464 = vadd.f32 %v334, %v463
      %465 = vmatmul.bf16.gmra.mxu0 %v410
      %v466 = vpop.f32.mrf.mxu0
      %v467 = vadd.f32 %v334, %v466
      %v468 = vpop.f32.mrf.mxu0
      %v469 = vadd.f32 %v334, %v468
      %470 = vmatmul.bf16.gmra.mxu0 %v413
      %v471 = vpop.f32.mrf.mxu0
      %v472 = vadd.f32 %v334, %v471
      %v473 = vpop.f32.mrf.mxu0
      %v474 = vadd.f32 %v334, %v473
      %475 = vmatmul.bf16.gmra.mxu0 %v416
      %v476 = vpop.f32.mrf.mxu0
      %v477 = vadd.f32 %v334, %v476
      %v478 = vpop.f32.mrf.mxu0
      %v479 = vadd.f32 %v334, %v478
      %480 = vmatmul.bf16.gmra.mxu0 %v419
      %v481 = vpop.f32.mrf.mxu0
      %v482 = vadd.f32 %v334, %v481
      %v483 = vpop.f32.mrf.mxu0
      %v484 = vadd.f32 %v334, %v483
      %485 = vmatmul.bf16.gmra.mxu0 %v422
      %v486 = vpop.f32.mrf.mxu0
      %v487 = vadd.f32 %v334, %v486
      %v488 = vpop.f32.mrf.mxu0
      %v489 = vadd.f32 %v334, %v488
      %490 = vmatmul.bf16.gmra.mxu0 %v425
      %v491 = vpop.f32.mrf.mxu0
      %v492 = vadd.f32 %v334, %v491
      %v493 = vpop.f32.mrf.mxu0
      %v494 = vadd.f32 %v334, %v493
      %495 = vmatmul.bf16.gmra.mxu0 %v428
      %v496 = vpop.f32.mrf.mxu0
      %v497 = vadd.f32 %v334, %v496
      %v498 = vpop.f32.mrf.mxu0
      %v499 = vadd.f32 %v334, %v498
      %500 = vmatmul.bf16.gmra.mxu0 %v431
      %v501 = vpop.f32.mrf.mxu0
      %v502 = vadd.f32 %v334, %v501
      %v503 = vpop.f32.mrf.mxu0
      %v504 = vadd.f32 %v334, %v503
      %505 = vdwg.mxu0
      %vm506 = vcmask 130048
      %507 = vst.msk [vmem:[#allocation4] sm:$0xff] %vm506, %v457
      %508 = vst.msk [vmem:[#allocation4 + $0x8] sm:$0xff] %vm506, %v459
      %509 = vst.msk [vmem:[#allocation4 + $0x10] sm:$0xff] %vm506, %v462
      %510 = vst.msk [vmem:[#allocation4 + $0x18] sm:$0xff] %vm506, %v464
      %511 = vst.msk [vmem:[#allocation4 + $0x20] sm:$0xff] %vm506, %v467
      %512 = vst.msk [vmem:[#allocation4 + $0x28] sm:$0xff] %vm506, %v469
      %513 = vst.msk [vmem:[#allocation4 + $0x30] sm:$0xff] %vm506, %v472
      %514 = vst.msk [vmem:[#allocation4 + $0x38] sm:$0xff] %vm506, %v474
      %515 = vst.msk [vmem:[#allocation4 + $0x40] sm:$0xff] %vm506, %v477
      %516 = vst.msk [vmem:[#allocation4 + $0x48] sm:$0xff] %vm506, %v479
      %517 = vst.msk [vmem:[#allocation4 + $0x50] sm:$0xff] %vm506, %v482
      %518 = vst.msk [vmem:[#allocation4 + $0x58] sm:$0xff] %vm506, %v484
      %519 = vst.msk [vmem:[#allocation4 + $0x60] sm:$0xff] %vm506, %v487
      %520 = vst.msk [vmem:[#allocation4 + $0x68] sm:$0xff] %vm506, %v489
      %521 = vst.msk [vmem:[#allocation4 + $0x70] sm:$0xff] %vm506, %v492
      %522 = vst.msk [vmem:[#allocation4 + $0x78] sm:$0xff] %vm506, %v494
      %v523 = vpack.c.bf16 %v447, %v447
      %v524 = vpack.c.bf16 %v449, %v449
      %v525 = vpack.c.bf16 %v452, %v452
      %v526 = vpack.c.bf16 %v454, %v454
      %v527 = vpack.c.bf16 %v457, %v457
      %v528 = vpack.c.bf16 %v459, %v459
      %v529 = vpack.c.bf16 %v462, %v462
      %v530 = vpack.c.bf16 %v464, %v464
      %v531 = vpack.c.bf16 %v467, %v467
      %v532 = vpack.c.bf16 %v469, %v469
      %v533 = vpack.c.bf16 %v472, %v472
      %v534 = vpack.c.bf16 %v474, %v474
      %v535 = vpack.c.bf16 %v477, %v477
      %v536 = vpack.c.bf16 %v479, %v479
      %v537 = vpack.c.bf16 %v482, %v482
      %v538 = vpack.c.bf16 %v484, %v484
      %v539 = vpack.c.bf16 %v487, %v487
      %v540 = vpack.c.bf16 %v489, %v489
      %v541 = vpack.c.bf16 %v492, %v492
      %v542 = vpack.c.bf16 %v494, %v494
      %v543 = vpack.c.bf16 %v497, %v497
      %v544 = vpack.c.bf16 %v499, %v499
      %v545 = vpack.c.bf16 %v502, %v502
      %v546 = vpack.c.bf16 %v504, %v504
      %vm547 = vsmask.f32 256
      %vm548 = vsmask.f32 4368
      %vm549 = vmor %vm547, %vm548
      %v551 = vshrl.u32 %v523, 16
      %v553 = vrot.slane %v551, 7
      %v554 = vshll.u32 %v523, 16
      %v556 = vor.u32 %v553, %v554
      %v557 = vrot.slane %v553, 4
      %v559 = vshrl.u32 %v524, 16
      %v561 = vrot.slane %v559, 7
      %v562 = vshll.u32 %v524, 16
      %v564 = vor.u32 %v561, %v562
      %v565 = vsel %vm549, %v557, %v564
      %v566 = vrot.slane %v561, 4
      %v568 = vshrl.u32 %v525, 16
      %v570 = vrot.slane %v568, 7
      %v571 = vshll.u32 %v525, 16
      %v573 = vor.u32 %v570, %v571
      %v574 = vrot.slane %v570, 4
      %v576 = vshrl.u32 %v526, 16
      %v578 = vrot.slane %v576, 7
      %v579 = vshll.u32 %v526, 16
      %v581 = vor.u32 %v578, %v579
      %v582 = vsel %vm549, %v574, %v581
      %v583 = vrot.slane %v578, 4
      %v585 = vshrl.u32 %v527, 16
      %v587 = vrot.slane %v585, 7
      %v588 = vshll.u32 %v527, 16
      %v590 = vor.u32 %v587, %v588
      %v591 = vrot.slane %v587, 4
      %v593 = vshrl.u32 %v528, 16
      %v595 = vrot.slane %v593, 7
      %v596 = vshll.u32 %v528, 16
      %v598 = vor.u32 %v595, %v596
      %v599 = vsel %vm549, %v591, %v598
      %v600 = vrot.slane %v595, 4
      %v602 = vshrl.u32 %v529, 16
      %v604 = vrot.slane %v602, 7
      %v605 = vshll.u32 %v529, 16
      %v607 = vor.u32 %v604, %v605
      %v608 = vrot.slane %v604, 4
      %v610 = vshrl.u32 %v530, 16
      %v612 = vrot.slane %v610, 7
      %v613 = vshll.u32 %v530, 16
      %v615 = vor.u32 %v612, %v613
      %v616 = vsel %vm549, %v608, %v615
      %v617 = vrot.slane %v612, 4
      %v619 = vshrl.u32 %v531, 16
      %v621 = vrot.slane %v619, 7
      %v622 = vshll.u32 %v531, 16
      %v624 = vor.u32 %v621, %v622
      %v625 = vrot.slane %v621, 4
      %v627 = vshrl.u32 %v532, 16
      %v629 = vrot.slane %v627, 7
      %v630 = vshll.u32 %v532, 16
      %v632 = vor.u32 %v629, %v630
      %v633 = vsel %vm549, %v625, %v632
      %v634 = vrot.slane %v629, 4
      %v636 = vshrl.u32 %v533, 16
      %v638 = vrot.slane %v636, 7
      %v639 = vshll.u32 %v533, 16
      %v641 = vor.u32 %v638, %v639
      %v642 = vrot.slane %v638, 4
      %v644 = vshrl.u32 %v534, 16
      %v646 = vrot.slane %v644, 7
      %v647 = vshll.u32 %v534, 16
      %v649 = vor.u32 %v646, %v647
      %v650 = vsel %vm549, %v642, %v649
      %v651 = vrot.slane %v646, 4
      %v653 = vshrl.u32 %v535, 16
      %v655 = vrot.slane %v653, 7
      %v656 = vshll.u32 %v535, 16
      %v658 = vor.u32 %v655, %v656
      %v659 = vrot.slane %v655, 4
      %v661 = vshrl.u32 %v536, 16
      %v663 = vrot.slane %v661, 7
      %v664 = vshll.u32 %v536, 16
      %v666 = vor.u32 %v663, %v664
      %v667 = vsel %vm549, %v659, %v666
      %v668 = vrot.slane %v663, 4
      %v670 = vshrl.u32 %v537, 16
      %v672 = vrot.slane %v670, 7
      %v673 = vshll.u32 %v537, 16
      %v675 = vor.u32 %v672, %v673
      %v676 = vrot.slane %v672, 4
      %v678 = vshrl.u32 %v538, 16
      %v680 = vrot.slane %v678, 7
      %v681 = vshll.u32 %v538, 16
      %v683 = vor.u32 %v680, %v681
      %v684 = vsel %vm549, %v676, %v683
      %v685 = vrot.slane %v680, 4
      %v687 = vshrl.u32 %v539, 16
      %v689 = vrot.slane %v687, 7
      %v690 = vshll.u32 %v539, 16
      %v692 = vor.u32 %v689, %v690
      %v693 = vrot.slane %v689, 4
      %v695 = vshrl.u32 %v540, 16
      %v697 = vrot.slane %v695, 7
      %v698 = vshll.u32 %v540, 16
      %v700 = vor.u32 %v697, %v698
      %v701 = vsel %vm549, %v693, %v700
      %v702 = vrot.slane %v697, 4
      %v704 = vshrl.u32 %v541, 16
      %v706 = vrot.slane %v704, 7
      %v707 = vshll.u32 %v541, 16
      %v709 = vor.u32 %v706, %v707
      %v710 = vrot.slane %v706, 4
      %v712 = vshrl.u32 %v542, 16
      %v714 = vrot.slane %v712, 7
      %v715 = vshll.u32 %v542, 16
      %v717 = vor.u32 %v714, %v715
      %v718 = vsel %vm549, %v710, %v717
      %v719 = vrot.slane %v714, 4
      %v721 = vshrl.u32 %v543, 16
      %v723 = vrot.slane %v721, 7
      %v724 = vshll.u32 %v543, 16
      %v726 = vor.u32 %v723, %v724
      %v727 = vrot.slane %v723, 4
      %v729 = vshrl.u32 %v544, 16
      %v731 = vrot.slane %v729, 7
      %v732 = vshll.u32 %v544, 16
      %v734 = vor.u32 %v731, %v732
      %v735 = vsel %vm549, %v727, %v734
      %v736 = vrot.slane %v731, 4
      %v738 = vshrl.u32 %v545, 16
      %v740 = vrot.slane %v738, 7
      %v741 = vshll.u32 %v545, 16
      %v743 = vor.u32 %v740, %v741
      %v744 = vrot.slane %v740, 4
      %v746 = vshrl.u32 %v546, 16
      %v748 = vrot.slane %v746, 7
      %v749 = vshll.u32 %v546, 16
      %v751 = vor.u32 %v748, %v749
      %v752 = vsel %vm549, %v744, %v751
      %v753 = vrot.slane %v748, 4
      %vm790 = vcmask 27648
      %vm791 = vsmask.f32 7938
      %vm792 = vmand %vm790, %vm791
      %v793 = vld [vmem:[#allocation2] sm:$0xf]
      %v794 = vsel %vm792, %v556, %v793
      %795 = vst [vmem:[#allocation2] sm:$0xf] %v794
      %vm796 = vcmask 27648
      %797 = vst.msk [vmem:[#allocation2 + $0x4] sm:$0xf] %vm796, %v565
      %vm798 = vcmask 24576
      %vm799 = vmand %vm798, %vm547
      %v800 = vld [vmem:[#allocation2 + $0x8] sm:$0x1]
      %v801 = vsel %vm799, %v566, %v800
      %802 = vst [vmem:[#allocation2 + $0x8] sm:$0x1] %v801
      %v803 = vld [vmem:[#allocation2 + $0xc] sm:$0xf]
      %v804 = vsel %vm792, %v573, %v803
      %805 = vst [vmem:[#allocation2 + $0xc] sm:$0xf] %v804
      %806 = vst.msk [vmem:[#allocation2 + $0x10] sm:$0xf] %vm796, %v582
      %v807 = vld [vmem:[#allocation2 + $0x14] sm:$0x1]
      %v808 = vsel %vm799, %v583, %v807
      %809 = vst [vmem:[#allocation2 + $0x14] sm:$0x1] %v808
      %v810 = vld [vmem:[#allocation2 + $0x18] sm:$0xf]
      %v811 = vsel %vm792, %v590, %v810
      %812 = vst [vmem:[#allocation2 + $0x18] sm:$0xf] %v811
      %813 = vst.msk [vmem:[#allocation2 + $0x1c] sm:$0xf] %vm796, %v599
      %v814 = vld [vmem:[#allocation2 + $0x20] sm:$0x1]
      %v815 = vsel %vm799, %v600, %v814
      %816 = vst [vmem:[#allocation2 + $0x20] sm:$0x1] %v815
      %v817 = vld [vmem:[#allocation2 + $0x24] sm:$0xf]
      %v818 = vsel %vm792, %v607, %v817
      %819 = vst [vmem:[#allocation2 + $0x24] sm:$0xf] %v818
      %820 = vst.msk [vmem:[#allocation2 + $0x28] sm:$0xf] %vm796, %v616
      %v821 = vld [vmem:[#allocation2 + $0x2c] sm:$0x1]
      %v822 = vsel %vm799, %v617, %v821
      %823 = vst [vmem:[#allocation2 + $0x2c] sm:$0x1] %v822
      %v824 = vld [vmem:[#allocation2 + $0x30] sm:$0xf]
      %v825 = vsel %vm792, %v624, %v824
      %826 = vst [vmem:[#allocation2 + $0x30] sm:$0xf] %v825
      %827 = vst.msk [vmem:[#allocation2 + $0x34] sm:$0xf] %vm796, %v633
      %v828 = vld [vmem:[#allocation2 + $0x38] sm:$0x1]
      %v829 = vsel %vm799, %v634, %v828
      %830 = vst [vmem:[#allocation2 + $0x38] sm:$0x1] %v829
      %v831 = vld [vmem:[#allocation2 + $0x3c] sm:$0xf]
      %v832 = vsel %vm792, %v641, %v831
      %833 = vst [vmem:[#allocation2 + $0x3c] sm:$0xf] %v832
      %834 = vst.msk [vmem:[#allocation2 + $0x40] sm:$0xf] %vm796, %v650
      %v835 = vld [vmem:[#allocation2 + $0x44] sm:$0x1]
      %v836 = vsel %vm799, %v651, %v835
      %837 = vst [vmem:[#allocation2 + $0x44] sm:$0x1] %v836
      %v838 = vld [vmem:[#allocation2 + $0x48] sm:$0xf]
      %v839 = vsel %vm792, %v658, %v838
      %840 = vst [vmem:[#allocation2 + $0x48] sm:$0xf] %v839
      %841 = vst.msk [vmem:[#allocation2 + $0x4c] sm:$0xf] %vm796, %v667
      %v842 = vld [vmem:[#allocation2 + $0x50] sm:$0x1]
      %v843 = vsel %vm799, %v668, %v842
      %844 = vst [vmem:[#allocation2 + $0x50] sm:$0x1] %v843
      %v845 = vld [vmem:[#allocation2 + $0x54] sm:$0xf]
      %v846 = vsel %vm792, %v675, %v845
      %847 = vst [vmem:[#allocation2 + $0x54] sm:$0xf] %v846
      %848 = vst.msk [vmem:[#allocation2 + $0x58] sm:$0xf] %vm796, %v684
      %v849 = vld [vmem:[#allocation2 + $0x5c] sm:$0x1]
      %v850 = vsel %vm799, %v685, %v849
      %851 = vst [vmem:[#allocation2 + $0x5c] sm:$0x1] %v850
      %v852 = vld [vmem:[#allocation2 + $0x60] sm:$0xf]
      %v853 = vsel %vm792, %v692, %v852
      %854 = vst [vmem:[#allocation2 + $0x60] sm:$0xf] %v853
      %855 = vst.msk [vmem:[#allocation2 + $0x64] sm:$0xf] %vm796, %v701
      %v856 = vld [vmem:[#allocation2 + $0x68] sm:$0x1]
      %v857 = vsel %vm799, %v702, %v856
      %858 = vst [vmem:[#allocation2 + $0x68] sm:$0x1] %v857
      %v859 = vld [vmem:[#allocation2 + $0x6c] sm:$0xf]
      %v860 = vsel %vm792, %v709, %v859
      %861 = vst [vmem:[#allocation2 + $0x6c] sm:$0xf] %v860
      %862 = vst.msk [vmem:[#allocation2 + $0x70] sm:$0xf] %vm796, %v718
      %v863 = vld [vmem:[#allocation2 + $0x74] sm:$0x1]
      %v864 = vsel %vm799, %v719, %v863
      %865 = vst [vmem:[#allocation2 + $0x74] sm:$0x1] %v864
      %v866 = vld [vmem:[#allocation2 + $0x78] sm:$0xf]
      %v867 = vsel %vm792, %v726, %v866
      %868 = vst [vmem:[#allocation2 + $0x78] sm:$0xf] %v867
      %869 = vst.msk [vmem:[#allocation2 + $0x7c] sm:$0xf] %vm796, %v735
      %v870 = vld [vmem:[#allocation2 + $0x80] sm:$0x1]
      %v871 = vsel %vm799, %v736, %v870
      %872 = vst [vmem:[#allocation2 + $0x80] sm:$0x1] %v871
      %v873 = vld [vmem:[#allocation2 + $0x84] sm:$0xf]
      %v874 = vsel %vm792, %v743, %v873
      %875 = vst [vmem:[#allocation2 + $0x84] sm:$0xf] %v874
      %876 = vst.msk [vmem:[#allocation2 + $0x88] sm:$0xf] %vm796, %v752
      %v877 = vld [vmem:[#allocation2 + $0x8c] sm:$0x1]
      %v878 = vsel %vm799, %v753, %v877
      %879 = vst [vmem:[#allocation2 + $0x8c] sm:$0x1] %v878
      %880 = vrot.lane.b32.xlu0 %v556, 124
      %v881 = vpop.permute.xlu0 %880
      %882 = vrot.lane.b32.xlu0 %v565, 124
      %v883 = vpop.permute.xlu0 %882
      %884 = vrot.lane.b32.xlu0 %v566, 124
      %v885 = vpop.permute.xlu0 %884
      %886 = vrot.lane.b32.xlu0 %v573, 124
      %v887 = vpop.permute.xlu0 %886
      %888 = vrot.lane.b32.xlu0 %v582, 124
      %v889 = vpop.permute.xlu0 %888
      %890 = vrot.lane.b32.xlu0 %v583, 124
      %v891 = vpop.permute.xlu0 %890
      %892 = vrot.lane.b32.xlu0 %v590, 124
      %v893 = vpop.permute.xlu0 %892
      %894 = vrot.lane.b32.xlu0 %v599, 124
      %v895 = vpop.permute.xlu0 %894
      %896 = vrot.lane.b32.xlu0 %v600, 124
      %v897 = vpop.permute.xlu0 %896
      %898 = vrot.lane.b32.xlu0 %v607, 124
      %v899 = vpop.permute.xlu0 %898
      %900 = vrot.lane.b32.xlu0 %v616, 124
      %v901 = vpop.permute.xlu0 %900
      %902 = vrot.lane.b32.xlu0 %v617, 124
      %v903 = vpop.permute.xlu0 %902
      %904 = vrot.lane.b32.xlu0 %v624, 124
      %v905 = vpop.permute.xlu0 %904
      %906 = vrot.lane.b32.xlu0 %v633, 124
      %v907 = vpop.permute.xlu0 %906
      %908 = vrot.lane.b32.xlu0 %v634, 124
      %v909 = vpop.permute.xlu0 %908
      %910 = vrot.lane.b32.xlu0 %v641, 124
      %v911 = vpop.permute.xlu0 %910
      %912 = vrot.lane.b32.xlu0 %v650, 124
      %v913 = vpop.permute.xlu0 %912
      %914 = vrot.lane.b32.xlu0 %v651, 124
      %v915 = vpop.permute.xlu0 %914
      %916 = vrot.lane.b32.xlu0 %v658, 124
      %v917 = vpop.permute.xlu0 %916
      %918 = vrot.lane.b32.xlu0 %v667, 124
      %v919 = vpop.permute.xlu0 %918
      %920 = vrot.lane.b32.xlu0 %v668, 124
      %v921 = vpop.permute.xlu0 %920
      %922 = vrot.lane.b32.xlu0 %v675, 124
      %v923 = vpop.permute.xlu0 %922
      %924 = vrot.lane.b32.xlu0 %v684, 124
      %v925 = vpop.permute.xlu0 %924
      %926 = vrot.lane.b32.xlu0 %v685, 124
      %v927 = vpop.permute.xlu0 %926
      %928 = vrot.lane.b32.xlu0 %v692, 124
      %v929 = vpop.permute.xlu0 %928
      %930 = vrot.lane.b32.xlu0 %v701, 124
      %v931 = vpop.permute.xlu0 %930
      %932 = vrot.lane.b32.xlu0 %v702, 124
      %v933 = vpop.permute.xlu0 %932
      %934 = vrot.lane.b32.xlu0 %v709, 124
      %v935 = vpop.permute.xlu0 %934
      %936 = vrot.lane.b32.xlu0 %v718, 124
      %v937 = vpop.permute.xlu0 %936
      %938 = vrot.lane.b32.xlu0 %v719, 124
      %v939 = vpop.permute.xlu0 %938
      %940 = vrot.lane.b32.xlu0 %v726, 124
      %v941 = vpop.permute.xlu0 %940
      %942 = vrot.lane.b32.xlu0 %v735, 124
      %v943 = vpop.permute.xlu0 %942
      %944 = vrot.lane.b32.xlu0 %v736, 124
      %v945 = vpop.permute.xlu0 %944
      %946 = vrot.lane.b32.xlu0 %v743, 124
      %v947 = vpop.permute.xlu0 %946
      %948 = vrot.lane.b32.xlu0 %v752, 124
      %v949 = vpop.permute.xlu0 %948
      %950 = vrot.lane.b32.xlu0 %v753, 124
      %v951 = vpop.permute.xlu0 %950
      %vm988 = vcmask 93184
      %vm989 = vmand %vm988, %vm791
      %v990 = vld [vmem:[#allocation3] sm:$0xf]
      %v991 = vsel %vm989, %v881, %v990
      %992 = vst [vmem:[#allocation3] sm:$0xf] %v991
      %vm993 = vcmask 93184
      %994 = vst.msk [vmem:[#allocation3 + $0x4] sm:$0xf] %vm993, %v883
      %vm995 = vcmask 90112
      %vm996 = vmand %vm995, %vm547
      %v997 = vld [vmem:[#allocation3 + $0x8] sm:$0x1]
      %v998 = vsel %vm996, %v885, %v997
      %999 = vst [vmem:[#allocation3 + $0x8] sm:$0x1] %v998
      %v1000 = vld [vmem:[#allocation3 + $0xc] sm:$0xf]
      %v1001 = vsel %vm989, %v887, %v1000
      %1002 = vst [vmem:[#allocation3 + $0xc] sm:$0xf] %v1001
      %1003 = vst.msk [vmem:[#allocation3 + $0x10] sm:$0xf] %vm993, %v889
      %v1004 = vld [vmem:[#allocation3 + $0x14] sm:$0x1]
      %v1005 = vsel %vm996, %v891, %v1004
      %1006 = vst [vmem:[#allocation3 + $0x14] sm:$0x1] %v1005
      %v1007 = vld [vmem:[#allocation3 + $0x18] sm:$0xf]
      %v1008 = vsel %vm989, %v893, %v1007
      %1009 = vst [vmem:[#allocation3 + $0x18] sm:$0xf] %v1008
      %1010 = vst.msk [vmem:[#allocation3 + $0x1c] sm:$0xf] %vm993, %v895
      %v1011 = vld [vmem:[#allocation3 + $0x20] sm:$0x1]
      %v1012 = vsel %vm996, %v897, %v1011
      %1013 = vst [vmem:[#allocation3 + $0x20] sm:$0x1] %v1012
      %v1014 = vld [vmem:[#allocation3 + $0x24] sm:$0xf]
      %v1015 = vsel %vm989, %v899, %v1014
      %1016 = vst [vmem:[#allocation3 + $0x24] sm:$0xf] %v1015
      %1017 = vst.msk [vmem:[#allocation3 + $0x28] sm:$0xf] %vm993, %v901
      %v1018 = vld [vmem:[#allocation3 + $0x2c] sm:$0x1]
      %v1019 = vsel %vm996, %v903, %v1018
      %1020 = vst [vmem:[#allocation3 + $0x2c] sm:$0x1] %v1019
      %v1021 = vld [vmem:[#allocation3 + $0x30] sm:$0xf]
      %v1022 = vsel %vm989, %v905, %v1021
      %1023 = vst [vmem:[#allocation3 + $0x30] sm:$0xf] %v1022
      %1024 = vst.msk [vmem:[#allocation3 + $0x34] sm:$0xf] %vm993, %v907
      %v1025 = vld [vmem:[#allocation3 + $0x38] sm:$0x1]
      %v1026 = vsel %vm996, %v909, %v1025
      %1027 = vst [vmem:[#allocation3 + $0x38] sm:$0x1] %v1026
      %v1028 = vld [vmem:[#allocation3 + $0x3c] sm:$0xf]
      %v1029 = vsel %vm989, %v911, %v1028
      %1030 = vst [vmem:[#allocation3 + $0x3c] sm:$0xf] %v1029
      %1031 = vst.msk [vmem:[#allocation3 + $0x40] sm:$0xf] %vm993, %v913
      %v1032 = vld [vmem:[#allocation3 + $0x44] sm:$0x1]
      %v1033 = vsel %vm996, %v915, %v1032
      %1034 = vst [vmem:[#allocation3 + $0x44] sm:$0x1] %v1033
      %v1035 = vld [vmem:[#allocation3 + $0x48] sm:$0xf]
      %v1036 = vsel %vm989, %v917, %v1035
      %1037 = vst [vmem:[#allocation3 + $0x48] sm:$0xf] %v1036
      %1038 = vst.msk [vmem:[#allocation3 + $0x4c] sm:$0xf] %vm993, %v919
      %v1039 = vld [vmem:[#allocation3 + $0x50] sm:$0x1]
      %v1040 = vsel %vm996, %v921, %v1039
      %1041 = vst [vmem:[#allocation3 + $0x50] sm:$0x1] %v1040
      %v1042 = vld [vmem:[#allocation3 + $0x54] sm:$0xf]
      %v1043 = vsel %vm989, %v923, %v1042
      %1044 = vst [vmem:[#allocation3 + $0x54] sm:$0xf] %v1043
      %1045 = vst.msk [vmem:[#allocation3 + $0x58] sm:$0xf] %vm993, %v925
      %v1046 = vld [vmem:[#allocation3 + $0x5c] sm:$0x1]
      %v1047 = vsel %vm996, %v927, %v1046
      %1048 = vst [vmem:[#allocation3 + $0x5c] sm:$0x1] %v1047
      %v1049 = vld [vmem:[#allocation3 + $0x60] sm:$0xf]
      %v1050 = vsel %vm989, %v929, %v1049
      %1051 = vst [vmem:[#allocation3 + $0x60] sm:$0xf] %v1050
      %1052 = vst.msk [vmem:[#allocation3 + $0x64] sm:$0xf] %vm993, %v931
      %v1053 = vld [vmem:[#allocation3 + $0x68] sm:$0x1]
      %v1054 = vsel %vm996, %v933, %v1053
      %1055 = vst [vmem:[#allocation3 + $0x68] sm:$0x1] %v1054
      %v1056 = vld [vmem:[#allocation3 + $0x6c] sm:$0xf]
      %v1057 = vsel %vm989, %v935, %v1056
      %1058 = vst [vmem:[#allocation3 + $0x6c] sm:$0xf] %v1057
      %1059 = vst.msk [vmem:[#allocation3 + $0x70] sm:$0xf] %vm993, %v937
      %v1060 = vld [vmem:[#allocation3 + $0x74] sm:$0x1]
      %v1061 = vsel %vm996, %v939, %v1060
      %1062 = vst [vmem:[#allocation3 + $0x74] sm:$0x1] %v1061
      %v1063 = vld [vmem:[#allocation3 + $0x78] sm:$0xf]
      %v1064 = vsel %vm989, %v941, %v1063
      %1065 = vst [vmem:[#allocation3 + $0x78] sm:$0xf] %v1064
      %1066 = vst.msk [vmem:[#allocation3 + $0x7c] sm:$0xf] %vm993, %v943
      %v1067 = vld [vmem:[#allocation3 + $0x80] sm:$0x1]
      %v1068 = vsel %vm996, %v945, %v1067
      %1069 = vst [vmem:[#allocation3 + $0x80] sm:$0x1] %v1068
      %v1070 = vld [vmem:[#allocation3 + $0x84] sm:$0xf]
      %v1071 = vsel %vm989, %v947, %v1070
      %1072 = vst [vmem:[#allocation3 + $0x84] sm:$0xf] %v1071
      %1073 = vst.msk [vmem:[#allocation3 + $0x88] sm:$0xf] %vm993, %v949
      %v1074 = vld [vmem:[#allocation3 + $0x8c] sm:$0x1]
      %v1075 = vsel %vm996, %v951, %v1074
      %1076 = vst [vmem:[#allocation3 + $0x8c] sm:$0x1] %v1075
      %v1077 = vld [vmem:[#allocation2] sm:$0x1]
      %v1078 = vsel %vm799, 0, %v1077
      %1079 = vst [vmem:[#allocation2] sm:$0x1] %v1078
      %v1080 = vld [vmem:[#allocation2 + $0xc] sm:$0x1]
      %v1081 = vsel %vm799, 0, %v1080
      %1082 = vst [vmem:[#allocation2 + $0xc] sm:$0x1] %v1081
      %v1083 = vld [vmem:[#allocation2 + $0x18] sm:$0x1]
      %v1084 = vsel %vm799, 0, %v1083
      %1085 = vst [vmem:[#allocation2 + $0x18] sm:$0x1] %v1084
      %v1086 = vld [vmem:[#allocation2 + $0x24] sm:$0x1]
      %v1087 = vsel %vm799, 0, %v1086
      %1088 = vst [vmem:[#allocation2 + $0x24] sm:$0x1] %v1087
      %v1089 = vld [vmem:[#allocation2 + $0x30] sm:$0x1]
      %v1090 = vsel %vm799, 0, %v1089
      %1091 = vst [vmem:[#allocation2 + $0x30] sm:$0x1] %v1090
      %v1092 = vld [vmem:[#allocation2 + $0x3c] sm:$0x1]
      %v1093 = vsel %vm799, 0, %v1092
      %1094 = vst [vmem:[#allocation2 + $0x3c] sm:$0x1] %v1093
      %v1095 = vld [vmem:[#allocation2 + $0x48] sm:$0x1]
      %v1096 = vsel %vm799, 0, %v1095
      %1097 = vst [vmem:[#allocation2 + $0x48] sm:$0x1] %v1096
      %v1098 = vld [vmem:[#allocation2 + $0x54] sm:$0x1]
      %v1099 = vsel %vm799, 0, %v1098
      %1100 = vst [vmem:[#allocation2 + $0x54] sm:$0x1] %v1099
      %v1101 = vld [vmem:[#allocation2 + $0x60] sm:$0x1]
      %v1102 = vsel %vm799, 0, %v1101
      %1103 = vst [vmem:[#allocation2 + $0x60] sm:$0x1] %v1102
      %v1104 = vld [vmem:[#allocation2 + $0x6c] sm:$0x1]
      %v1105 = vsel %vm799, 0, %v1104
      %1106 = vst [vmem:[#allocation2 + $0x6c] sm:$0x1] %v1105
      %v1107 = vld [vmem:[#allocation2 + $0x78] sm:$0x1]
      %v1108 = vsel %vm799, 0, %v1107
      %1109 = vst [vmem:[#allocation2 + $0x78] sm:$0x1] %v1108
      %v1110 = vld [vmem:[#allocation2 + $0x84] sm:$0x1]
      %v1111 = vsel %vm799, 0, %v1110
      %1112 = vst [vmem:[#allocation2 + $0x84] sm:$0x1] %v1111
      %vm1113 = vmand %vm798, %vm791
      %v1114 = vld [vmem:[#allocation2 + $0x8] sm:$0x1]
      %v1115 = vsel %vm1113, 0, %v1114
      %1116 = vst [vmem:[#allocation2 + $0x8] sm:$0x1] %v1115
      %v1117 = vld [vmem:[#allocation2 + $0x14] sm:$0x1]
      %v1118 = vsel %vm1113, 0, %v1117
      %1119 = vst [vmem:[#allocation2 + $0x14] sm:$0x1] %v1118
      %v1120 = vld [vmem:[#allocation2 + $0x20] sm:$0x1]
      %v1121 = vsel %vm1113, 0, %v1120
      %1122 = vst [vmem:[#allocation2 + $0x20] sm:$0x1] %v1121
      %v1123 = vld [vmem:[#allocation2 + $0x2c] sm:$0x1]
      %v1124 = vsel %vm1113, 0, %v1123
      %1125 = vst [vmem:[#allocation2 + $0x2c] sm:$0x1] %v1124
      %v1126 = vld [vmem:[#allocation2 + $0x38] sm:$0x1]
      %v1127 = vsel %vm1113, 0, %v1126
      %1128 = vst [vmem:[#allocation2 + $0x38] sm:$0x1] %v1127
      %v1129 = vld [vmem:[#allocation2 + $0x44] sm:$0x1]
      %v1130 = vsel %vm1113, 0, %v1129
      %1131 = vst [vmem:[#allocation2 + $0x44] sm:$0x1] %v1130
      %v1132 = vld [vmem:[#allocation2 + $0x50] sm:$0x1]
      %v1133 = vsel %vm1113, 0, %v1132
      %1134 = vst [vmem:[#allocation2 + $0x50] sm:$0x1] %v1133
      %v1135 = vld [vmem:[#allocation2 + $0x5c] sm:$0x1]
      %v1136 = vsel %vm1113, 0, %v1135
      %1137 = vst [vmem:[#allocation2 + $0x5c] sm:$0x1] %v1136
      %v1138 = vld [vmem:[#allocation2 + $0x68] sm:$0x1]
      %v1139 = vsel %vm1113, 0, %v1138
      %1140 = vst [vmem:[#allocation2 + $0x68] sm:$0x1] %v1139
      %v1141 = vld [vmem:[#allocation2 + $0x74] sm:$0x1]
      %v1142 = vsel %vm1113, 0, %v1141
      %1143 = vst [vmem:[#allocation2 + $0x74] sm:$0x1] %v1142
      %v1144 = vld [vmem:[#allocation2 + $0x80] sm:$0x1]
      %v1145 = vsel %vm1113, 0, %v1144
      %1146 = vst [vmem:[#allocation2 + $0x80] sm:$0x1] %v1145
      %v1147 = vld [vmem:[#allocation2 + $0x8c] sm:$0x1]
      %v1148 = vsel %vm1113, 0, %v1147
      %1149 = vst [vmem:[#allocation2 + $0x8c] sm:$0x1] %v1148
      %v1150 = vld [vmem:[#allocation3] sm:$0x1]
      %v1151 = vsel %vm996, 0, %v1150
      %1152 = vst [vmem:[#allocation3] sm:$0x1] %v1151
      %v1153 = vld [vmem:[#allocation3 + $0xc] sm:$0x1]
      %v1154 = vsel %vm996, 0, %v1153
      %1155 = vst [vmem:[#allocation3 + $0xc] sm:$0x1] %v1154
      %v1156 = vld [vmem:[#allocation3 + $0x18] sm:$0x1]
      %v1157 = vsel %vm996, 0, %v1156
      %1158 = vst [vmem:[#allocation3 + $0x18] sm:$0x1] %v1157
      %v1159 = vld [vmem:[#allocation3 + $0x24] sm:$0x1]
      %v1160 = vsel %vm996, 0, %v1159
      %1161 = vst [vmem:[#allocation3 + $0x24] sm:$0x1] %v1160
      %v1162 = vld [vmem:[#allocation3 + $0x30] sm:$0x1]
      %v1163 = vsel %vm996, 0, %v1162
      %1164 = vst [vmem:[#allocation3 + $0x30] sm:$0x1] %v1163
      %v1165 = vld [vmem:[#allocation3 + $0x3c] sm:$0x1]
      %v1166 = vsel %vm996, 0, %v1165
      %1167 = vst [vmem:[#allocation3 + $0x3c] sm:$0x1] %v1166
      %v1168 = vld [vmem:[#allocation3 + $0x48] sm:$0x1]
      %v1169 = vsel %vm996, 0, %v1168
      %1170 = vst [vmem:[#allocation3 + $0x48] sm:$0x1] %v1169
      %v1171 = vld [vmem:[#allocation3 + $0x54] sm:$0x1]
      %v1172 = vsel %vm996, 0, %v1171
      %1173 = vst [vmem:[#allocation3 + $0x54] sm:$0x1] %v1172
      %v1174 = vld [vmem:[#allocation3 + $0x60] sm:$0x1]
      %v1175 = vsel %vm996, 0, %v1174
      %1176 = vst [vmem:[#allocation3 + $0x60] sm:$0x1] %v1175
      %v1177 = vld [vmem:[#allocation3 + $0x6c] sm:$0x1]
      %v1178 = vsel %vm996, 0, %v1177
      %1179 = vst [vmem:[#allocation3 + $0x6c] sm:$0x1] %v1178
      %v1180 = vld [vmem:[#allocation3 + $0x78] sm:$0x1]
      %v1181 = vsel %vm996, 0, %v1180
      %1182 = vst [vmem:[#allocation3 + $0x78] sm:$0x1] %v1181
      %v1183 = vld [vmem:[#allocation3 + $0x84] sm:$0x1]
      %v1184 = vsel %vm996, 0, %v1183
      %1185 = vst [vmem:[#allocation3 + $0x84] sm:$0x1] %v1184
      %vm1186 = vmand %vm995, %vm791
      %v1187 = vld [vmem:[#allocation3 + $0x8] sm:$0x1]
      %v1188 = vsel %vm1186, 0, %v1187
      %1189 = vst [vmem:[#allocation3 + $0x8] sm:$0x1] %v1188
      %v1190 = vld [vmem:[#allocation3 + $0x14] sm:$0x1]
      %v1191 = vsel %vm1186, 0, %v1190
      %1192 = vst [vmem:[#allocation3 + $0x14] sm:$0x1] %v1191
      %v1193 = vld [vmem:[#allocation3 + $0x20] sm:$0x1]
      %v1194 = vsel %vm1186, 0, %v1193
      %1195 = vst [vmem:[#allocation3 + $0x20] sm:$0x1] %v1194
      %v1196 = vld [vmem:[#allocation3 + $0x2c] sm:$0x1]
      %v1197 = vsel %vm1186, 0, %v1196
      %1198 = vst [vmem:[#allocation3 + $0x2c] sm:$0x1] %v1197
      %v1199 = vld [vmem:[#allocation3 + $0x38] sm:$0x1]
      %v1200 = vsel %vm1186, 0, %v1199
      %1201 = vst [vmem:[#allocation3 + $0x38] sm:$0x1] %v1200
      %v1202 = vld [vmem:[#allocation3 + $0x44] sm:$0x1]
      %v1203 = vsel %vm1186, 0, %v1202
      %1204 = vst [vmem:[#allocation3 + $0x44] sm:$0x1] %v1203
      %v1205 = vld [vmem:[#allocation3 + $0x50] sm:$0x1]
      %v1206 = vsel %vm1186, 0, %v1205
      %1207 = vst [vmem:[#allocation3 + $0x50] sm:$0x1] %v1206
      %v1208 = vld [vmem:[#allocation3 + $0x5c] sm:$0x1]
      %v1209 = vsel %vm1186, 0, %v1208
      %1210 = vst [vmem:[#allocation3 + $0x5c] sm:$0x1] %v1209
      %v1211 = vld [vmem:[#allocation3 + $0x68] sm:$0x1]
      %v1212 = vsel %vm1186, 0, %v1211
      %1213 = vst [vmem:[#allocation3 + $0x68] sm:$0x1] %v1212
      %v1214 = vld [vmem:[#allocation3 + $0x74] sm:$0x1]
      %v1215 = vsel %vm1186, 0, %v1214
      %1216 = vst [vmem:[#allocation3 + $0x74] sm:$0x1] %v1215
      %v1217 = vld [vmem:[#allocation3 + $0x80] sm:$0x1]
      %v1218 = vsel %vm1186, 0, %v1217
      %1219 = vst [vmem:[#allocation3 + $0x80] sm:$0x1] %v1218
      %v1220 = vld [vmem:[#allocation3 + $0x8c] sm:$0x1]
      %v1221 = vsel %vm1186, 0, %v1220
      %1222 = vst [vmem:[#allocation3 + $0x8c] sm:$0x1] %v1221
      %p1223 = scmp.eq.s32.totalorder %s23, 0
      // Predicated region
      $region49: #{tpu_custom_call.1} parent=47 // pred_check
        %p1224 = pneg %p1223
      $region50: #{tpu_custom_call.1} parent=47 // pred_check_branch
        %1226 = sbr.rel (%p1224) target = $region52
      $region51: #{tpu_custom_call.1} parent=47 // pred_region
        %1227 = vst.msk [vmem:[#allocation2] sm:$0xf] %vm796, 0
        %1228 = vst.msk [vmem:[#allocation2 + $0x4] sm:$0xf] %vm796, 0
        %vm1229 = vcmask 24576
        %1230 = vst.msk [vmem:[#allocation2 + $0x8] sm:$0x1] %vm1229, 0
        %1231 = vst.msk [vmem:[#allocation2 + $0xc] sm:$0xf] %vm796, 0
        %1232 = vst.msk [vmem:[#allocation2 + $0x10] sm:$0xf] %vm796, 0
        %1233 = vst.msk [vmem:[#allocation2 + $0x14] sm:$0x1] %vm1229, 0
        %1234 = vst.msk [vmem:[#allocation3] sm:$0xf] %vm993, 0
        %1235 = vst.msk [vmem:[#allocation3 + $0x4] sm:$0xf] %vm993, 0
        %vm1236 = vcmask 90112
        %1237 = vst.msk [vmem:[#allocation3 + $0x8] sm:$0x1] %vm1236, 0
        %1238 = vst.msk [vmem:[#allocation3 + $0xc] sm:$0xf] %vm993, 0
        %1239 = vst.msk [vmem:[#allocation3 + $0x10] sm:$0xf] %vm993, 0
        %1240 = vst.msk [vmem:[#allocation3 + $0x14] sm:$0x1] %vm1236, 0
      $region52: #{tpu_custom_call.1} parent=47 // pred_fallthru
        _
      %p1241 = scmp.eq.s32.totalorder %s23, 1
      // Predicated region
      $region53: #{tpu_custom_call.1} parent=47 // pred_check
        %p1242 = pneg %p1241
      $region54: #{tpu_custom_call.1} parent=47 // pred_check_branch
        %1244 = sbr.rel (%p1242) target = $region56
      $region55: #{tpu_custom_call.1} parent=47 // pred_region
        %s1245 = scalar_lea.vmem [#allocation2], 120
        %1246 = vst.msk [vmem:[%s1245] sm:$0xf] %vm796, 0
        %1247 = vst.msk [vmem:[%s1245 + $0x4] sm:$0xf] %vm796, 0
        %vm1248 = vcmask 24576
        %1249 = vst.msk [vmem:[%s1245 + $0x8] sm:$0x1] %vm1248, 0
        %1250 = vst.msk [vmem:[%s1245 + $0xc] sm:$0xf] %vm796, 0
        %1251 = vst.msk [vmem:[%s1245 + $0x10] sm:$0xf] %vm796, 0
        %1252 = vst.msk [vmem:[%s1245 + $0x14] sm:$0x1] %vm1248, 0
        %s1253 = scalar_lea.vmem [#allocation3], 120
        %1254 = vst.msk [vmem:[%s1253] sm:$0xf] %vm993, 0
        %1255 = vst.msk [vmem:[%s1253 + $0x4] sm:$0xf] %vm993, 0
        %vm1256 = vcmask 90112
        %1257 = vst.msk [vmem:[%s1253 + $0x8] sm:$0x1] %vm1256, 0
        %1258 = vst.msk [vmem:[%s1253 + $0xc] sm:$0xf] %vm993, 0
        %1259 = vst.msk [vmem:[%s1253 + $0x10] sm:$0xf] %vm993, 0
        %1260 = vst.msk [vmem:[%s1253 + $0x14] sm:$0x1] %vm1256, 0
      $region56: #{tpu_custom_call.1} parent=47 // pred_fallthru
        _
      %v1261 = vld [vmem:[#allocation2] sm:$0xf]
      %v1262 = vld [vmem:[#allocation2 + $0x4] sm:$0xf]
      %v1263 = vld [vmem:[#allocation2 + $0xc] sm:$0xf]
      %v1264 = vld [vmem:[#allocation2 + $0x10] sm:$0xf]
      %v1265 = vld [vmem:[#allocation2 + $0x18] sm:$0xf]
      %v1266 = vld [vmem:[#allocation2 + $0x1c] sm:$0xf]
      %v1267 = vld [vmem:[#allocation2 + $0x24] sm:$0xf]
      %v1268 = vld [vmem:[#allocation2 + $0x28] sm:$0xf]
      %v1269 = vld [vmem:[#allocation2 + $0x30] sm:$0xf]
      %v1270 = vld [vmem:[#allocation2 + $0x34] sm:$0xf]
      %v1271 = vld [vmem:[#allocation2 + $0x3c] sm:$0xf]
      %v1272 = vld [vmem:[#allocation2 + $0x40] sm:$0xf]
      %v1273 = vld [vmem:[#allocation2 + $0x48] sm:$0xf]
      %v1274 = vld [vmem:[#allocation2 + $0x4c] sm:$0xf]
      %v1275 = vld [vmem:[#allocation2 + $0x54] sm:$0xf]
      %v1276 = vld [vmem:[#allocation2 + $0x58] sm:$0xf]
      %v1277 = vld [vmem:[#allocation2 + $0x60] sm:$0xf]
      %v1278 = vld [vmem:[#allocation2 + $0x64] sm:$0xf]
      %v1279 = vld [vmem:[#allocation2 + $0x6c] sm:$0xf]
      %v1280 = vld [vmem:[#allocation2 + $0x70] sm:$0xf]
      %v1281 = vld [vmem:[%s3] sm:$0x3]
      %v1282 = vld [vmem:[#allocation2 + $0x8] sm:$0x1]
      %v1283 = vld [vmem:[#allocation2 + $0x14] sm:$0x1]
      %v1284 = vld [vmem:[#allocation2 + $0x20] sm:$0x1]
      %v1285 = vld [vmem:[#allocation2 + $0x2c] sm:$0x1]
      %v1286 = vld [vmem:[#allocation2 + $0x38] sm:$0x1]
      %v1287 = vld [vmem:[#allocation2 + $0x44] sm:$0x1]
      %v1288 = vld [vmem:[#allocation2 + $0x50] sm:$0x1]
      %v1289 = vld [vmem:[#allocation2 + $0x5c] sm:$0x1]
      %v1290 = vld [vmem:[#allocation2 + $0x68] sm:$0x1]
      %v1291 = vld [vmem:[#allocation2 + $0x74] sm:$0x1]
      %vm1292 = vsmask.f32 3328
      %vm1293 = vsmask.f32 7440
      %vm1294 = vmor %vm1292, %vm1293
      %v1296 = vshrl.u32 %v1261, 16
      %v1298 = vrot.slane %v1296, 4
      %v1299 = vshll.u32 %v1261, 16
      %v1301 = vrot.slane %v1299, 5
      %v1302 = vor.u32 %v1298, %v1301
      %v1303 = vrot.slane %v1302, 4
      %v1305 = vshll.u32 %v1262, 16
      %v1307 = vrot.slane %v1305, 5
      %v1308 = vsel %vm1294, %v1303, %v1307
      %v1309 = vshrl.u32 %v1262, 16
      %v1311 = vrot.slane %v1309, 4
      %v1312 = vor.u32 %v1311, %v1307
      %v1313 = vrot.slane %v1312, 4
      %v1315 = vshll.u32 %v1282, 16
      %v1317 = vrot.slane %v1315, 5
      %v1318 = vsel %vm1294, %v1313, %v1317
      %v1320 = vshrl.u32 %v1263, 16
      %v1322 = vrot.slane %v1320, 4
      %v1323 = vshll.u32 %v1263, 16
      %v1325 = vrot.slane %v1323, 5
      %v1326 = vor.u32 %v1322, %v1325
      %v1327 = vrot.slane %v1326, 4
      %v1329 = vshll.u32 %v1264, 16
      %v1331 = vrot.slane %v1329, 5
      %v1332 = vsel %vm1294, %v1327, %v1331
      %v1333 = vshrl.u32 %v1264, 16
      %v1335 = vrot.slane %v1333, 4
      %v1336 = vor.u32 %v1335, %v1331
      %v1337 = vrot.slane %v1336, 4
      %v1339 = vshll.u32 %v1283, 16
      %v1341 = vrot.slane %v1339, 5
      %v1342 = vsel %vm1294, %v1337, %v1341
      %v1344 = vshrl.u32 %v1265, 16
      %v1346 = vrot.slane %v1344, 4
      %v1347 = vshll.u32 %v1265, 16
      %v1349 = vrot.slane %v1347, 5
      %v1350 = vor.u32 %v1346, %v1349
      %v1351 = vrot.slane %v1350, 4
      %v1353 = vshll.u32 %v1266, 16
      %v1355 = vrot.slane %v1353, 5
      %v1356 = vsel %vm1294, %v1351, %v1355
      %v1357 = vshrl.u32 %v1266, 16
      %v1359 = vrot.slane %v1357, 4
      %v1360 = vor.u32 %v1359, %v1355
      %v1361 = vrot.slane %v1360, 4
      %v1363 = vshll.u32 %v1284, 16
      %v1365 = vrot.slane %v1363, 5
      %v1366 = vsel %vm1294, %v1361, %v1365
      %v1368 = vshrl.u32 %v1267, 16
      %v1370 = vrot.slane %v1368, 4
      %v1371 = vshll.u32 %v1267, 16
      %v1373 = vrot.slane %v1371, 5
      %v1374 = vor.u32 %v1370, %v1373
      %v1375 = vrot.slane %v1374, 4
      %v1377 = vshll.u32 %v1268, 16
      %v1379 = vrot.slane %v1377, 5
      %v1380 = vsel %vm1294, %v1375, %v1379
      %v1381 = vshrl.u32 %v1268, 16
      %v1383 = vrot.slane %v1381, 4
      %v1384 = vor.u32 %v1383, %v1379
      %v1385 = vrot.slane %v1384, 4
      %v1387 = vshll.u32 %v1285, 16
      %v1389 = vrot.slane %v1387, 5
      %v1390 = vsel %vm1294, %v1385, %v1389
      %v1392 = vshrl.u32 %v1269, 16
      %v1394 = vrot.slane %v1392, 4
      %v1395 = vshll.u32 %v1269, 16
      %v1397 = vrot.slane %v1395, 5
      %v1398 = vor.u32 %v1394, %v1397
      %v1399 = vrot.slane %v1398, 4
      %v1401 = vshll.u32 %v1270, 16
      %v1403 = vrot.slane %v1401, 5
      %v1404 = vsel %vm1294, %v1399, %v1403
      %v1405 = vshrl.u32 %v1270, 16
      %v1407 = vrot.slane %v1405, 4
      %v1408 = vor.u32 %v1407, %v1403
      %v1409 = vrot.slane %v1408, 4
      %v1411 = vshll.u32 %v1286, 16
      %v1413 = vrot.slane %v1411, 5
      %v1414 = vsel %vm1294, %v1409, %v1413
      %v1416 = vshrl.u32 %v1271, 16
      %v1418 = vrot.slane %v1416, 4
      %v1419 = vshll.u32 %v1271, 16
      %v1421 = vrot.slane %v1419, 5
      %v1422 = vor.u32 %v1418, %v1421
      %v1423 = vrot.slane %v1422, 4
      %v1425 = vshll.u32 %v1272, 16
      %v1427 = vrot.slane %v1425, 5
      %v1428 = vsel %vm1294, %v1423, %v1427
      %v1429 = vshrl.u32 %v1272, 16
      %v1431 = vrot.slane %v1429, 4
      %v1432 = vor.u32 %v1431, %v1427
      %v1433 = vrot.slane %v1432, 4
      %v1435 = vshll.u32 %v1287, 16
      %v1437 = vrot.slane %v1435, 5
      %v1438 = vsel %vm1294, %v1433, %v1437
      %v1440 = vshrl.u32 %v1273, 16
      %v1442 = vrot.slane %v1440, 4
      %v1443 = vshll.u32 %v1273, 16
      %v1445 = vrot.slane %v1443, 5
      %v1446 = vor.u32 %v1442, %v1445
      %v1447 = vrot.slane %v1446, 4
      %v1449 = vshll.u32 %v1274, 16
      %v1451 = vrot.slane %v1449, 5
      %v1452 = vsel %vm1294, %v1447, %v1451
      %v1453 = vshrl.u32 %v1274, 16
      %v1455 = vrot.slane %v1453, 4
      %v1456 = vor.u32 %v1455, %v1451
      %v1457 = vrot.slane %v1456, 4
      %v1459 = vshll.u32 %v1288, 16
      %v1461 = vrot.slane %v1459, 5
      %v1462 = vsel %vm1294, %v1457, %v1461
      %v1464 = vshrl.u32 %v1275, 16
      %v1466 = vrot.slane %v1464, 4
      %v1467 = vshll.u32 %v1275, 16
      %v1469 = vrot.slane %v1467, 5
      %v1470 = vor.u32 %v1466, %v1469
      %v1471 = vrot.slane %v1470, 4
      %v1473 = vshll.u32 %v1276, 16
      %v1475 = vrot.slane %v1473, 5
      %v1476 = vsel %vm1294, %v1471, %v1475
      %v1477 = vshrl.u32 %v1276, 16
      %v1479 = vrot.slane %v1477, 4
      %v1480 = vor.u32 %v1479, %v1475
      %v1481 = vrot.slane %v1480, 4
      %v1483 = vshll.u32 %v1289, 16
      %v1485 = vrot.slane %v1483, 5
      %v1486 = vsel %vm1294, %v1481, %v1485
      %v1488 = vshrl.u32 %v1277, 16
      %v1490 = vrot.slane %v1488, 4
      %v1491 = vshll.u32 %v1277, 16
      %v1493 = vrot.slane %v1491, 5
      %v1494 = vor.u32 %v1490, %v1493
      %v1495 = vrot.slane %v1494, 4
      %v1497 = vshll.u32 %v1278, 16
      %v1499 = vrot.slane %v1497, 5
      %v1500 = vsel %vm1294, %v1495, %v1499
      %v1501 = vshrl.u32 %v1278, 16
      %v1503 = vrot.slane %v1501, 4
      %v1504 = vor.u32 %v1503, %v1499
      %v1505 = vrot.slane %v1504, 4
      %v1507 = vshll.u32 %v1290, 16
      %v1509 = vrot.slane %v1507, 5
      %v1510 = vsel %vm1294, %v1505, %v1509
      %v1512 = vshrl.u32 %v1279, 16
      %v1514 = vrot.slane %v1512, 4
      %v1515 = vshll.u32 %v1279, 16
      %v1517 = vrot.slane %v1515, 5
      %v1518 = vor.u32 %v1514, %v1517
      %v1519 = vrot.slane %v1518, 4
      %v1521 = vshll.u32 %v1280, 16
      %v1523 = vrot.slane %v1521, 5
      %v1524 = vsel %vm1294, %v1519, %v1523
      %v1525 = vshrl.u32 %v1280, 16
      %v1527 = vrot.slane %v1525, 4
      %v1528 = vor.u32 %v1527, %v1523
      %v1529 = vrot.slane %v1528, 4
      %v1531 = vshll.u32 %v1291, 16
      %v1533 = vrot.slane %v1531, 5
      %v1534 = vsel %vm1294, %v1529, %v1533
      %s1535 = scalar_lea.vmem %s3, 2
      %v1536 = vld [vmem:[%s1535] sm:$0x3]
      %v1537 = vunpack.c.l.b16 %v1308
      %v1538 = vunpack.c.l.b16 %v1318
      %v1539 = vunpack.c.l.b16 %v1332
      %v1540 = vunpack.c.l.b16 %v1342
      %v1541 = vunpack.c.l.b16 %v1356
      %v1542 = vunpack.c.l.b16 %v1366
      %v1543 = vunpack.c.l.b16 %v1380
      %v1544 = vunpack.c.l.b16 %v1390
      %v1545 = vunpack.c.l.b16 %v1404
      %v1546 = vunpack.c.l.b16 %v1414
      %v1547 = vunpack.c.l.b16 %v1428
      %v1548 = vunpack.c.l.b16 %v1438
      %v1549 = vunpack.c.l.b16 %v1452
      %v1550 = vunpack.c.l.b16 %v1462
      %v1551 = vunpack.c.l.b16 %v1476
      %v1552 = vunpack.c.l.b16 %v1486
      %v1553 = vunpack.c.l.b16 %v1500
      %v1554 = vunpack.c.l.b16 %v1510
      %v1555 = vunpack.c.l.b16 %v1524
      %v1556 = vunpack.c.l.b16 %v1534
      %v1557 = vpack.c.b16 %v1538, %v1537
      %v1558 = vpack.c.b16 %v1540, %v1539
      %v1559 = vpack.c.b16 %v1542, %v1541
      %v1560 = vpack.c.b16 %v1544, %v1543
      %v1561 = vpack.c.b16 %v1546, %v1545
      %v1562 = vpack.c.b16 %v1548, %v1547
      %v1563 = vpack.c.b16 %v1550, %v1549
      %v1564 = vpack.c.b16 %v1552, %v1551
      %v1565 = vpack.c.b16 %v1554, %v1553
      %v1566 = vpack.c.b16 %v1556, %v1555
      %v1568 = vsel %vm396, %v1557, 0
      %v1571 = vsel %vm396, %v1558, 0
      %v1574 = vsel %vm396, %v1559, 0
      %v1577 = vsel %vm396, %v1560, 0
      %v1580 = vsel %vm396, %v1561, 0
      %v1583 = vsel %vm396, %v1562, 0
      %v1586 = vsel %vm396, %v1563, 0
      %v1589 = vsel %vm396, %v1564, 0
      %v1592 = vsel %vm396, %v1565, 0
      %v1595 = vsel %vm396, %v1566, 0
      %v1598 = vsel %vm433, %v1536, 0
      %1600 = vmatpush.bf16.msra.mxu0 0
      %1601 = vmatpush.bf16.msra.mxu0 0
      %1602 = vmatpush.bf16.msra.mxu0 0
      %1603 = vmatpush.bf16.msra.mxu0 0
      %1604 = vmatpush.bf16.msra.mxu0 0
      %1605 = vmatpush.bf16.msra.mxu0 0
      %1606 = vmatpush.bf16.msra.mxu0 0
      %1607 = vmatpush.bf16.msra.mxu0 %v1598
      %1608 = vmatmul.bf16.gmra.mxu0 %v1568
      %v1609 = vpop.f32.mrf.mxu0
      %v1610 = vadd.f32 0.0, %v1609
      %v1611 = vpop.f32.mrf.mxu0
      %v1612 = vadd.f32 0.0, %v1611
      %1613 = vmatmul.bf16.gmra.mxu0 %v1571
      %v1614 = vpop.f32.mrf.mxu0
      %v1615 = vadd.f32 0.0, %v1614
      %v1616 = vpop.f32.mrf.mxu0
      %v1617 = vadd.f32 0.0, %v1616
      %1618 = vmatmul.bf16.gmra.mxu0 %v1574
      %v1619 = vpop.f32.mrf.mxu0
      %v1620 = vadd.f32 0.0, %v1619
      %v1621 = vpop.f32.mrf.mxu0
      %v1622 = vadd.f32 0.0, %v1621
      %1623 = vmatmul.bf16.gmra.mxu0 %v1577
      %v1624 = vpop.f32.mrf.mxu0
      %v1625 = vadd.f32 0.0, %v1624
      %v1626 = vpop.f32.mrf.mxu0
      %v1627 = vadd.f32 0.0, %v1626
      %1628 = vmatmul.bf16.gmra.mxu0 %v1580
      %v1629 = vpop.f32.mrf.mxu0
      %v1630 = vadd.f32 0.0, %v1629
      %v1631 = vpop.f32.mrf.mxu0
      %v1632 = vadd.f32 0.0, %v1631
      %1633 = vmatmul.bf16.gmra.mxu0 %v1583
      %v1634 = vpop.f32.mrf.mxu0
      %v1635 = vadd.f32 0.0, %v1634
      %v1636 = vpop.f32.mrf.mxu0
      %v1637 = vadd.f32 0.0, %v1636
      %1638 = vmatmul.bf16.gmra.mxu0 %v1586
      %v1639 = vpop.f32.mrf.mxu0
      %v1640 = vadd.f32 0.0, %v1639
      %v1641 = vpop.f32.mrf.mxu0
      %v1642 = vadd.f32 0.0, %v1641
      %1643 = vmatmul.bf16.gmra.mxu0 %v1589
      %v1644 = vpop.f32.mrf.mxu0
      %v1645 = vadd.f32 0.0, %v1644
      %v1646 = vpop.f32.mrf.mxu0
      %v1647 = vadd.f32 0.0, %v1646
      %1648 = vmatmul.bf16.gmra.mxu0 %v1592
      %v1649 = vpop.f32.mrf.mxu0
      %v1650 = vadd.f32 0.0, %v1649
      %v1651 = vpop.f32.mrf.mxu0
      %v1652 = vadd.f32 0.0, %v1651
      %1653 = vmatmul.bf16.gmra.mxu0 %v1595
      %v1654 = vpop.f32.mrf.mxu0
      %v1655 = vadd.f32 0.0, %v1654
      %v1656 = vpop.f32.mrf.mxu0
      %v1657 = vadd.f32 0.0, %v1656
      %1658 = vdwg.mxu0
      %v1679 = vunpack.c.l.b16 %v1261
      %v1680 = vunpack.c.l.b16 %v1262
      %v1681 = vunpack.c.l.b16 %v1263
      %v1682 = vunpack.c.l.b16 %v1264
      %v1683 = vunpack.c.l.b16 %v1265
      %v1684 = vunpack.c.l.b16 %v1266
      %v1685 = vunpack.c.l.b16 %v1267
      %v1686 = vunpack.c.l.b16 %v1268
      %v1687 = vunpack.c.l.b16 %v1269
      %v1688 = vunpack.c.l.b16 %v1270
      %v1689 = vunpack.c.l.b16 %v1271
      %v1690 = vunpack.c.l.b16 %v1272
      %v1691 = vunpack.c.l.b16 %v1273
      %v1692 = vunpack.c.l.b16 %v1274
      %v1693 = vunpack.c.l.b16 %v1275
      %v1694 = vunpack.c.l.b16 %v1276
      %v1695 = vunpack.c.l.b16 %v1277
      %v1696 = vunpack.c.l.b16 %v1278
      %v1697 = vunpack.c.l.b16 %v1279
      %v1698 = vunpack.c.l.b16 %v1280
      %v1699 = vpack.c.b16 %v1680, %v1679
      %v1700 = vpack.c.b16 %v1682, %v1681
      %v1701 = vpack.c.b16 %v1684, %v1683
      %v1702 = vpack.c.b16 %v1686, %v1685
      %v1703 = vpack.c.b16 %v1688, %v1687
      %v1704 = vpack.c.b16 %v1690, %v1689
      %v1705 = vpack.c.b16 %v1692, %v1691
      %v1706 = vpack.c.b16 %v1694, %v1693
      %v1707 = vpack.c.b16 %v1696, %v1695
      %v1708 = vpack.c.b16 %v1698, %v1697
      %v1710 = vsel %vm396, %v1699, 0
      %v1713 = vsel %vm396, %v1700, 0
      %v1716 = vsel %vm396, %v1701, 0
      %v1719 = vsel %vm396, %v1702, 0
      %v1722 = vsel %vm396, %v1703, 0
      %v1725 = vsel %vm396, %v1704, 0
      %v1728 = vsel %vm396, %v1705, 0
      %v1731 = vsel %vm396, %v1706, 0
      %v1734 = vsel %vm396, %v1707, 0
      %v1737 = vsel %vm396, %v1708, 0
      %v1740 = vsel %vm433, %v1281, 0
      %1742 = vmatpush.bf16.msra.mxu0 0
      %1743 = vmatpush.bf16.msra.mxu0 0
      %1744 = vmatpush.bf16.msra.mxu0 0
      %1745 = vmatpush.bf16.msra.mxu0 0
      %1746 = vmatpush.bf16.msra.mxu0 0
      %1747 = vmatpush.bf16.msra.mxu0 0
      %1748 = vmatpush.bf16.msra.mxu0 0
      %1749 = vmatpush.bf16.msra.mxu0 %v1740
      %1750 = vmatmul.bf16.gmra.mxu0 %v1710
      %v1751 = vpop.f32.mrf.mxu0
      %v1752 = vadd.f32 %v1610, %v1751
      %v1753 = vpop.f32.mrf.mxu0
      %v1754 = vadd.f32 %v1612, %v1753
      %1755 = vmatmul.bf16.gmra.mxu0 %v1713
      %v1756 = vpop.f32.mrf.mxu0
      %v1757 = vadd.f32 %v1615, %v1756
      %v1758 = vpop.f32.mrf.mxu0
      %v1759 = vadd.f32 %v1617, %v1758
      %1760 = vmatmul.bf16.gmra.mxu0 %v1716
      %v1761 = vpop.f32.mrf.mxu0
      %v1762 = vadd.f32 %v1620, %v1761
      %v1763 = vpop.f32.mrf.mxu0
      %v1764 = vadd.f32 %v1622, %v1763
      %1765 = vmatmul.bf16.gmra.mxu0 %v1719
      %v1766 = vpop.f32.mrf.mxu0
      %v1767 = vadd.f32 %v1625, %v1766
      %v1768 = vpop.f32.mrf.mxu0
      %v1769 = vadd.f32 %v1627, %v1768
      %1770 = vmatmul.bf16.gmra.mxu0 %v1722
      %v1771 = vpop.f32.mrf.mxu0
      %v1772 = vadd.f32 %v1630, %v1771
      %v1773 = vpop.f32.mrf.mxu0
      %v1774 = vadd.f32 %v1632, %v1773
      %1775 = vmatmul.bf16.gmra.mxu0 %v1725
      %v1776 = vpop.f32.mrf.mxu0
      %v1777 = vadd.f32 %v1635, %v1776
      %v1778 = vpop.f32.mrf.mxu0
      %v1779 = vadd.f32 %v1637, %v1778
      %1780 = vmatmul.bf16.gmra.mxu0 %v1728
      %v1781 = vpop.f32.mrf.mxu0
      %v1782 = vadd.f32 %v1640, %v1781
      %v1783 = vpop.f32.mrf.mxu0
      %v1784 = vadd.f32 %v1642, %v1783
      %1785 = vmatmul.bf16.gmra.mxu0 %v1731
      %v1786 = vpop.f32.mrf.mxu0
      %v1787 = vadd.f32 %v1645, %v1786
      %v1788 = vpop.f32.mrf.mxu0
      %v1789 = vadd.f32 %v1647, %v1788
      %1790 = vmatmul.bf16.gmra.mxu0 %v1734
      %v1791 = vpop.f32.mrf.mxu0
      %v1792 = vadd.f32 %v1650, %v1791
      %v1793 = vpop.f32.mrf.mxu0
      %v1794 = vadd.f32 %v1652, %v1793
      %1795 = vmatmul.bf16.gmra.mxu0 %v1737
      %v1796 = vpop.f32.mrf.mxu0
      %v1797 = vadd.f32 %v1655, %v1796
      %v1798 = vpop.f32.mrf.mxu0
      %v1799 = vadd.f32 %v1657, %v1798
      %1800 = vdwg.mxu0
      %v1801 = vld [vmem:[#allocation2] sm:$0xe]
      %v1802 = vld [vmem:[#allocation2 + $0xc] sm:$0xe]
      %v1803 = vld [vmem:[#allocation2 + $0x18] sm:$0xe]
      %v1804 = vld [vmem:[#allocation2 + $0x24] sm:$0xe]
      %v1805 = vld [vmem:[#allocation2 + $0x30] sm:$0xe]
      %v1806 = vld [vmem:[#allocation2 + $0x3c] sm:$0xe]
      %v1807 = vld [vmem:[#allocation2 + $0x48] sm:$0xe]
      %v1808 = vld [vmem:[#allocation2 + $0x54] sm:$0xe]
      %v1809 = vld [vmem:[#allocation2 + $0x60] sm:$0xe]
      %v1810 = vld [vmem:[#allocation2 + $0x6c] sm:$0xe]
      %vm1831 = vcmask 1042432
      %vm1832 = vcmask 1046532
      %vm1833 = vmor %vm1831, %vm1832
      %v1834 = vrot.slane %v1801, 5
      %v1835 = vrot.slane %v1834, 4
      %v1836 = vrot.slane %v1262, 5
      %v1837 = vsel %vm1833, %v1835, %v1836
      %v1838 = vrot.slane %v1836, 4
      %v1839 = vrot.slane %v1282, 5
      %v1840 = vsel %vm1833, %v1838, %v1839
      %v1841 = vrot.slane %v1802, 5
      %v1842 = vrot.slane %v1841, 4
      %v1843 = vrot.slane %v1264, 5
      %v1844 = vsel %vm1833, %v1842, %v1843
      %v1845 = vrot.slane %v1843, 4
      %v1846 = vrot.slane %v1283, 5
      %v1847 = vsel %vm1833, %v1845, %v1846
      %v1848 = vrot.slane %v1803, 5
      %v1849 = vrot.slane %v1848, 4
      %v1850 = vrot.slane %v1266, 5
      %v1851 = vsel %vm1833, %v1849, %v1850
      %v1852 = vrot.slane %v1850, 4
      %v1853 = vrot.slane %v1284, 5
      %v1854 = vsel %vm1833, %v1852, %v1853
      %v1855 = vrot.slane %v1804, 5
      %v1856 = vrot.slane %v1855, 4
      %v1857 = vrot.slane %v1268, 5
      %v1858 = vsel %vm1833, %v1856, %v1857
      %v1859 = vrot.slane %v1857, 4
      %v1860 = vrot.slane %v1285, 5
      %v1861 = vsel %vm1833, %v1859, %v1860
      %v1862 = vrot.slane %v1805, 5
      %v1863 = vrot.slane %v1862, 4
      %v1864 = vrot.slane %v1270, 5
      %v1865 = vsel %vm1833, %v1863, %v1864
      %v1866 = vrot.slane %v1864, 4
      %v1867 = vrot.slane %v1286, 5
      %v1868 = vsel %vm1833, %v1866, %v1867
      %v1869 = vrot.slane %v1806, 5
      %v1870 = vrot.slane %v1869, 4
      %v1871 = vrot.slane %v1272, 5
      %v1872 = vsel %vm1833, %v1870, %v1871
      %v1873 = vrot.slane %v1871, 4
      %v1874 = vrot.slane %v1287, 5
      %v1875 = vsel %vm1833, %v1873, %v1874
      %v1876 = vrot.slane %v1807, 5
      %v1877 = vrot.slane %v1876, 4
      %v1878 = vrot.slane %v1274, 5
      %v1879 = vsel %vm1833, %v1877, %v1878
      %v1880 = vrot.slane %v1878, 4
      %v1881 = vrot.slane %v1288, 5
      %v1882 = vsel %vm1833, %v1880, %v1881
      %v1883 = vrot.slane %v1808, 5
      %v1884 = vrot.slane %v1883, 4
      %v1885 = vrot.slane %v1276, 5
      %v1886 = vsel %vm1833, %v1884, %v1885
      %v1887 = vrot.slane %v1885, 4
      %v1888 = vrot.slane %v1289, 5
      %v1889 = vsel %vm1833, %v1887, %v1888
      %v1890 = vrot.slane %v1809, 5
      %v1891 = vrot.slane %v1890, 4
      %v1892 = vrot.slane %v1278, 5
      %v1893 = vsel %vm1833, %v1891, %v1892
      %v1894 = vrot.slane %v1892, 4
      %v1895 = vrot.slane %v1290, 5
      %v1896 = vsel %vm1833, %v1894, %v1895
      %v1897 = vrot.slane %v1810, 5
      %v1898 = vrot.slane %v1897, 4
      %v1899 = vrot.slane %v1280, 5
      %v1900 = vsel %vm1833, %v1898, %v1899
      %v1901 = vrot.slane %v1899, 4
      %v1902 = vrot.slane %v1291, 5
      %v1903 = vsel %vm1833, %v1901, %v1902
      %s1904 = scalar_lea.vmem %s3, 4
      %v1905 = vld [vmem:[%s1904] sm:$0x3]
      %v1906 = vunpack.c.l.b16 %v1837
      %v1907 = vunpack.c.l.b16 %v1840
      %v1908 = vunpack.c.l.b16 %v1844
      %v1909 = vunpack.c.l.b16 %v1847
      %v1910 = vunpack.c.l.b16 %v1851
      %v1911 = vunpack.c.l.b16 %v1854
      %v1912 = vunpack.c.l.b16 %v1858
      %v1913 = vunpack.c.l.b16 %v1861
      %v1914 = vunpack.c.l.b16 %v1865
      %v1915 = vunpack.c.l.b16 %v1868
      %v1916 = vunpack.c.l.b16 %v1872
      %v1917 = vunpack.c.l.b16 %v1875
      %v1918 = vunpack.c.l.b16 %v1879
      %v1919 = vunpack.c.l.b16 %v1882
      %v1920 = vunpack.c.l.b16 %v1886
      %v1921 = vunpack.c.l.b16 %v1889
      %v1922 = vunpack.c.l.b16 %v1893
      %v1923 = vunpack.c.l.b16 %v1896
      %v1924 = vunpack.c.l.b16 %v1900
      %v1925 = vunpack.c.l.b16 %v1903
      %v1926 = vpack.c.b16 %v1907, %v1906
      %v1927 = vpack.c.b16 %v1909, %v1908
      %v1928 = vpack.c.b16 %v1911, %v1910
      %v1929 = vpack.c.b16 %v1913, %v1912
      %v1930 = vpack.c.b16 %v1915, %v1914
      %v1931 = vpack.c.b16 %v1917, %v1916
      %v1932 = vpack.c.b16 %v1919, %v1918
      %v1933 = vpack.c.b16 %v1921, %v1920
      %v1934 = vpack.c.b16 %v1923, %v1922
      %v1935 = vpack.c.b16 %v1925, %v1924
      %v1937 = vsel %vm396, %v1926, 0
      %v1940 = vsel %vm396, %v1927, 0
      %v1943 = vsel %vm396, %v1928, 0
      %v1946 = vsel %vm396, %v1929, 0
      %v1949 = vsel %vm396, %v1930, 0
      %v1952 = vsel %vm396, %v1931, 0
      %v1955 = vsel %vm396, %v1932, 0
      %v1958 = vsel %vm396, %v1933, 0
      %v1961 = vsel %vm396, %v1934, 0
      %v1964 = vsel %vm396, %v1935, 0
      %v1967 = vsel %vm433, %v1905, 0
      %1969 = vmatpush.bf16.msra.mxu0 0
      %1970 = vmatpush.bf16.msra.mxu0 0
      %1971 = vmatpush.bf16.msra.mxu0 0
      %1972 = vmatpush.bf16.msra.mxu0 0
      %1973 = vmatpush.bf16.msra.mxu0 0
      %1974 = vmatpush.bf16.msra.mxu0 0
      %1975 = vmatpush.bf16.msra.mxu0 0
      %1976 = vmatpush.bf16.msra.mxu0 %v1967
      %1977 = vmatmul.bf16.gmra.mxu0 %v1937
      %v1978 = vpop.f32.mrf.mxu0
      %v1979 = vadd.f32 0.0, %v1978
      %v1980 = vpop.f32.mrf.mxu0
      %v1981 = vadd.f32 0.0, %v1980
      %1982 = vmatmul.bf16.gmra.mxu0 %v1940
      %v1983 = vpop.f32.mrf.mxu0
      %v1984 = vadd.f32 0.0, %v1983
      %v1985 = vpop.f32.mrf.mxu0
      %v1986 = vadd.f32 0.0, %v1985
      %1987 = vmatmul.bf16.gmra.mxu0 %v1943
      %v1988 = vpop.f32.mrf.mxu0
      %v1989 = vadd.f32 0.0, %v1988
      %v1990 = vpop.f32.mrf.mxu0
      %v1991 = vadd.f32 0.0, %v1990
      %1992 = vmatmul.bf16.gmra.mxu0 %v1946
      %v1993 = vpop.f32.mrf.mxu0
      %v1994 = vadd.f32 0.0, %v1993
      %v1995 = vpop.f32.mrf.mxu0
      %v1996 = vadd.f32 0.0, %v1995
      %1997 = vmatmul.bf16.gmra.mxu0 %v1949
      %v1998 = vpop.f32.mrf.mxu0
      %v1999 = vadd.f32 0.0, %v1998
      %v2000 = vpop.f32.mrf.mxu0
      %v2001 = vadd.f32 0.0, %v2000
      %2002 = vmatmul.bf16.gmra.mxu0 %v1952
      %v2003 = vpop.f32.mrf.mxu0
      %v2004 = vadd.f32 0.0, %v2003
      %v2005 = vpop.f32.mrf.mxu0
      %v2006 = vadd.f32 0.0, %v2005
      %2007 = vmatmul.bf16.gmra.mxu0 %v1955
      %v2008 = vpop.f32.mrf.mxu0
      %v2009 = vadd.f32 0.0, %v2008
      %v2010 = vpop.f32.mrf.mxu0
      %v2011 = vadd.f32 0.0, %v2010
      %2012 = vmatmul.bf16.gmra.mxu0 %v1958
      %v2013 = vpop.f32.mrf.mxu0
      %v2014 = vadd.f32 0.0, %v2013
      %v2015 = vpop.f32.mrf.mxu0
      %v2016 = vadd.f32 0.0, %v2015
      %2017 = vmatmul.bf16.gmra.mxu0 %v1961
      %v2018 = vpop.f32.mrf.mxu0
      %v2019 = vadd.f32 0.0, %v2018
      %v2020 = vpop.f32.mrf.mxu0
      %v2021 = vadd.f32 0.0, %v2020
      %2022 = vmatmul.bf16.gmra.mxu0 %v1964
      %v2023 = vpop.f32.mrf.mxu0
      %v2024 = vadd.f32 0.0, %v2023
      %v2025 = vpop.f32.mrf.mxu0
      %v2026 = vadd.f32 0.0, %v2025
      %2027 = vdwg.mxu0
      %v2028 = vadd.f32 %v1752, %v1979
      %v2029 = vadd.f32 %v1754, %v1981
      %v2030 = vadd.f32 %v1757, %v1984
      %v2031 = vadd.f32 %v1759, %v1986
      %v2032 = vadd.f32 %v1762, %v1989
      %v2033 = vadd.f32 %v1764, %v1991
      %v2034 = vadd.f32 %v1767, %v1994
      %v2035 = vadd.f32 %v1769, %v1996
      %v2036 = vadd.f32 %v1772, %v1999
      %v2037 = vadd.f32 %v1774, %v2001
      %v2038 = vadd.f32 %v1777, %v2004
      %v2039 = vadd.f32 %v1779, %v2006
      %v2040 = vadd.f32 %v1782, %v2009
      %v2041 = vadd.f32 %v1784, %v2011
      %v2042 = vadd.f32 %v1787, %v2014
      %v2043 = vadd.f32 %v1789, %v2016
      %v2044 = vadd.f32 %v1792, %v2019
      %v2045 = vadd.f32 %v1794, %v2021
      %v2046 = vadd.f32 %v1797, %v2024
      %v2047 = vadd.f32 %v1799, %v2026
      %s2048 = scalar_lea.vmem [#allocation2], 12
      %v2049 = vld [vmem:[%s2048] sm:$0xf]
      %v2050 = vld [vmem:[%s2048 + $0x4] sm:$0xf]
      %v2051 = vld [vmem:[%s2048 + $0xc] sm:$0xf]
      %v2052 = vld [vmem:[%s2048 + $0x10] sm:$0xf]
      %v2053 = vld [vmem:[%s2048 + $0x18] sm:$0xf]
      %v2054 = vld [vmem:[%s2048 + $0x1c] sm:$0xf]
      %v2055 = vld [vmem:[%s2048 + $0x24] sm:$0xf]
      %v2056 = vld [vmem:[%s2048 + $0x28] sm:$0xf]
      %v2057 = vld [vmem:[%s2048 + $0x30] sm:$0xf]
      %v2058 = vld [vmem:[%s2048 + $0x34] sm:$0xf]
      %v2059 = vld [vmem:[%s2048 + $0x3c] sm:$0xf]
      %v2060 = vld [vmem:[%s2048 + $0x40] sm:$0xf]
      %v2061 = vld [vmem:[%s2048 + $0x48] sm:$0xf]
      %v2062 = vld [vmem:[%s2048 + $0x4c] sm:$0xf]
      %v2063 = vld [vmem:[%s2048 + $0x54] sm:$0xf]
      %v2064 = vld [vmem:[%s2048 + $0x58] sm:$0xf]
      %v2065 = vld [vmem:[%s2048 + $0x60] sm:$0xf]
      %v2066 = vld [vmem:[%s2048 + $0x64] sm:$0xf]
      %v2067 = vld [vmem:[%s2048 + $0x6c] sm:$0xf]
      %v2068 = vld [vmem:[%s2048 + $0x70] sm:$0xf]
      %s2069 = scalar_lea.vmem %s3, 6
      %v2070 = vld [vmem:[%s2069] sm:$0x3]
      %v2091 = vunpack.c.l.b16 %v2049
      %v2092 = vunpack.c.l.b16 %v2050
      %v2093 = vunpack.c.l.b16 %v2051
      %v2094 = vunpack.c.l.b16 %v2052
      %v2095 = vunpack.c.l.b16 %v2053
      %v2096 = vunpack.c.l.b16 %v2054
      %v2097 = vunpack.c.l.b16 %v2055
      %v2098 = vunpack.c.l.b16 %v2056
      %v2099 = vunpack.c.l.b16 %v2057
      %v2100 = vunpack.c.l.b16 %v2058
      %v2101 = vunpack.c.l.b16 %v2059
      %v2102 = vunpack.c.l.b16 %v2060
      %v2103 = vunpack.c.l.b16 %v2061
      %v2104 = vunpack.c.l.b16 %v2062
      %v2105 = vunpack.c.l.b16 %v2063
      %v2106 = vunpack.c.l.b16 %v2064
      %v2107 = vunpack.c.l.b16 %v2065
      %v2108 = vunpack.c.l.b16 %v2066
      %v2109 = vunpack.c.l.b16 %v2067
      %v2110 = vunpack.c.l.b16 %v2068
      %v2111 = vpack.c.b16 %v2092, %v2091
      %v2112 = vpack.c.b16 %v2094, %v2093
      %v2113 = vpack.c.b16 %v2096, %v2095
      %v2114 = vpack.c.b16 %v2098, %v2097
      %v2115 = vpack.c.b16 %v2100, %v2099
      %v2116 = vpack.c.b16 %v2102, %v2101
      %v2117 = vpack.c.b16 %v2104, %v2103
      %v2118 = vpack.c.b16 %v2106, %v2105
      %v2119 = vpack.c.b16 %v2108, %v2107
      %v2120 = vpack.c.b16 %v2110, %v2109
      %v2122 = vsel %vm396, %v2111, 0
      %v2125 = vsel %vm396, %v2112, 0
      %v2128 = vsel %vm396, %v2113, 0
      %v2131 = vsel %vm396, %v2114, 0
      %v2134 = vsel %vm396, %v2115, 0
      %v2137 = vsel %vm396, %v2116, 0
      %v2140 = vsel %vm396, %v2117, 0
      %v2143 = vsel %vm396, %v2118, 0
      %v2146 = vsel %vm396, %v2119, 0
      %v2149 = vsel %vm396, %v2120, 0
      %v2152 = vsel %vm433, %v2070, 0
      %2154 = vmatpush.bf16.msra.mxu0 0
      %2155 = vmatpush.bf16.msra.mxu0 0
      %2156 = vmatpush.bf16.msra.mxu0 0
      %2157 = vmatpush.bf16.msra.mxu0 0
      %2158 = vmatpush.bf16.msra.mxu0 0
      %2159 = vmatpush.bf16.msra.mxu0 0
      %2160 = vmatpush.bf16.msra.mxu0 0
      %2161 = vmatpush.bf16.msra.mxu0 %v2152
      %2162 = vmatmul.bf16.gmra.mxu0 %v2122
      %v2163 = vpop.f32.mrf.mxu0
      %v2164 = vadd.f32 0.0, %v2163
      %v2165 = vpop.f32.mrf.mxu0
      %v2166 = vadd.f32 0.0, %v2165
      %2167 = vmatmul.bf16.gmra.mxu0 %v2125
      %v2168 = vpop.f32.mrf.mxu0
      %v2169 = vadd.f32 0.0, %v2168
      %v2170 = vpop.f32.mrf.mxu0
      %v2171 = vadd.f32 0.0, %v2170
      %2172 = vmatmul.bf16.gmra.mxu0 %v2128
      %v2173 = vpop.f32.mrf.mxu0
      %v2174 = vadd.f32 0.0, %v2173
      %v2175 = vpop.f32.mrf.mxu0
      %v2176 = vadd.f32 0.0, %v2175
      %2177 = vmatmul.bf16.gmra.mxu0 %v2131
      %v2178 = vpop.f32.mrf.mxu0
      %v2179 = vadd.f32 0.0, %v2178
      %v2180 = vpop.f32.mrf.mxu0
      %v2181 = vadd.f32 0.0, %v2180
      %2182 = vmatmul.bf16.gmra.mxu0 %v2134
      %v2183 = vpop.f32.mrf.mxu0
      %v2184 = vadd.f32 0.0, %v2183
      %v2185 = vpop.f32.mrf.mxu0
      %v2186 = vadd.f32 0.0, %v2185
      %2187 = vmatmul.bf16.gmra.mxu0 %v2137
      %v2188 = vpop.f32.mrf.mxu0
      %v2189 = vadd.f32 0.0, %v2188
      %v2190 = vpop.f32.mrf.mxu0
      %v2191 = vadd.f32 0.0, %v2190
      %2192 = vmatmul.bf16.gmra.mxu0 %v2140
      %v2193 = vpop.f32.mrf.mxu0
      %v2194 = vadd.f32 0.0, %v2193
      %v2195 = vpop.f32.mrf.mxu0
      %v2196 = vadd.f32 0.0, %v2195
      %2197 = vmatmul.bf16.gmra.mxu0 %v2143
      %v2198 = vpop.f32.mrf.mxu0
      %v2199 = vadd.f32 0.0, %v2198
      %v2200 = vpop.f32.mrf.mxu0
      %v2201 = vadd.f32 0.0, %v2200
      %2202 = vmatmul.bf16.gmra.mxu0 %v2146
      %v2203 = vpop.f32.mrf.mxu0
      %v2204 = vadd.f32 0.0, %v2203
      %v2205 = vpop.f32.mrf.mxu0
      %v2206 = vadd.f32 0.0, %v2205
      %2207 = vmatmul.bf16.gmra.mxu0 %v2149
      %v2208 = vpop.f32.mrf.mxu0
      %v2209 = vadd.f32 0.0, %v2208
      %v2210 = vpop.f32.mrf.mxu0
      %v2211 = vadd.f32 0.0, %v2210
      %2212 = vdwg.mxu0
      %v2213 = vadd.f32 %v2028, %v2164
      %v2214 = vadd.f32 %v2029, %v2166
      %v2215 = vadd.f32 %v2030, %v2169
      %v2216 = vadd.f32 %v2031, %v2171
      %v2217 = vadd.f32 %v2032, %v2174
      %v2218 = vadd.f32 %v2033, %v2176
      %v2219 = vadd.f32 %v2034, %v2179
      %v2220 = vadd.f32 %v2035, %v2181
      %v2221 = vadd.f32 %v2036, %v2184
      %v2222 = vadd.f32 %v2037, %v2186
      %v2223 = vadd.f32 %v2038, %v2189
      %v2224 = vadd.f32 %v2039, %v2191
      %v2225 = vadd.f32 %v2040, %v2194
      %v2226 = vadd.f32 %v2041, %v2196
      %v2227 = vadd.f32 %v2042, %v2199
      %v2228 = vadd.f32 %v2043, %v2201
      %v2229 = vadd.f32 %v2044, %v2204
      %v2230 = vadd.f32 %v2045, %v2206
      %v2231 = vadd.f32 %v2046, %v2209
      %v2232 = vadd.f32 %v2047, %v2211
      %v2233 = vld [vmem:[%s2048] sm:$0xf]
      %v2234 = vld [vmem:[%s2048 + $0x4] sm:$0xf]
      %v2235 = vld [vmem:[%s2048 + $0x8] sm:$0x1]
      %v2236 = vld [vmem:[%s2048 + $0xc] sm:$0xf]
      %v2237 = vld [vmem:[%s2048 + $0x10] sm:$0xf]
      %v2238 = vld [vmem:[%s2048 + $0x14] sm:$0x1]
      %v2239 = vld [vmem:[%s2048 + $0x18] sm:$0xf]
      %v2240 = vld [vmem:[%s2048 + $0x1c] sm:$0xf]
      %v2241 = vld [vmem:[%s2048 + $0x20] sm:$0x1]
      %v2242 = vld [vmem:[%s2048 + $0x24] sm:$0xf]
      %v2243 = vld [vmem:[%s2048 + $0x28] sm:$0xf]
      %v2244 = vld [vmem:[%s2048 + $0x2c] sm:$0x1]
      %v2245 = vld [vmem:[%s2048 + $0x30] sm:$0xf]
      %v2246 = vld [vmem:[%s2048 + $0x34] sm:$0xf]
      %v2247 = vld [vmem:[%s2048 + $0x38] sm:$0x1]
      %v2248 = vld [vmem:[%s2048 + $0x3c] sm:$0xf]
      %v2249 = vld [vmem:[%s2048 + $0x40] sm:$0xf]
      %v2250 = vld [vmem:[%s2048 + $0x44] sm:$0x1]
      %v2251 = vld [vmem:[%s2048 + $0x48] sm:$0xf]
      %v2252 = vld [vmem:[%s2048 + $0x4c] sm:$0xf]
      %v2253 = vld [vmem:[%s2048 + $0x50] sm:$0x1]
      %v2254 = vld [vmem:[%s2048 + $0x54] sm:$0xf]
      %v2255 = vld [vmem:[%s2048 + $0x58] sm:$0xf]
      %v2256 = vld [vmem:[%s2048 + $0x5c] sm:$0x1]
      %v2257 = vld [vmem:[%s2048 + $0x60] sm:$0xf]
      %v2258 = vld [vmem:[%s2048 + $0x64] sm:$0xf]
      %v2259 = vld [vmem:[%s2048 + $0x68] sm:$0x1]
      %v2260 = vld [vmem:[%s2048 + $0x6c] sm:$0xf]
      %v2261 = vld [vmem:[%s2048 + $0x70] sm:$0xf]
      %v2262 = vld [vmem:[%s2048 + $0x74] sm:$0x1]
      %v2264 = vshrl.u32 %v2233, 16
      %v2266 = vrot.slane %v2264, 4
      %v2267 = vshll.u32 %v2233, 16
      %v2269 = vrot.slane %v2267, 5
      %v2270 = vor.u32 %v2266, %v2269
      %v2271 = vrot.slane %v2270, 4
      %v2273 = vshll.u32 %v2234, 16
      %v2275 = vrot.slane %v2273, 5
      %v2276 = vsel %vm1294, %v2271, %v2275
      %v2277 = vshrl.u32 %v2234, 16
      %v2279 = vrot.slane %v2277, 4
      %v2280 = vor.u32 %v2279, %v2275
      %v2281 = vrot.slane %v2280, 4
      %v2283 = vshll.u32 %v2235, 16
      %v2285 = vrot.slane %v2283, 5
      %v2286 = vsel %vm1294, %v2281, %v2285
      %v2288 = vshrl.u32 %v2236, 16
      %v2290 = vrot.slane %v2288, 4
      %v2291 = vshll.u32 %v2236, 16
      %v2293 = vrot.slane %v2291, 5
      %v2294 = vor.u32 %v2290, %v2293
      %v2295 = vrot.slane %v2294, 4
      %v2297 = vshll.u32 %v2237, 16
      %v2299 = vrot.slane %v2297, 5
      %v2300 = vsel %vm1294, %v2295, %v2299
      %v2301 = vshrl.u32 %v2237, 16
      %v2303 = vrot.slane %v2301, 4
      %v2304 = vor.u32 %v2303, %v2299
      %v2305 = vrot.slane %v2304, 4
      %v2307 = vshll.u32 %v2238, 16
      %v2309 = vrot.slane %v2307, 5
      %v2310 = vsel %vm1294, %v2305, %v2309
      %v2312 = vshrl.u32 %v2239, 16
      %v2314 = vrot.slane %v2312, 4
      %v2315 = vshll.u32 %v2239, 16
      %v2317 = vrot.slane %v2315, 5
      %v2318 = vor.u32 %v2314, %v2317
      %v2319 = vrot.slane %v2318, 4
      %v2321 = vshll.u32 %v2240, 16
      %v2323 = vrot.slane %v2321, 5
      %v2324 = vsel %vm1294, %v2319, %v2323
      %v2325 = vshrl.u32 %v2240, 16
      %v2327 = vrot.slane %v2325, 4
      %v2328 = vor.u32 %v2327, %v2323
      %v2329 = vrot.slane %v2328, 4
      %v2331 = vshll.u32 %v2241, 16
      %v2333 = vrot.slane %v2331, 5
      %v2334 = vsel %vm1294, %v2329, %v2333
      %v2336 = vshrl.u32 %v2242, 16
      %v2338 = vrot.slane %v2336, 4
      %v2339 = vshll.u32 %v2242, 16
      %v2341 = vrot.slane %v2339, 5
      %v2342 = vor.u32 %v2338, %v2341
      %v2343 = vrot.slane %v2342, 4
      %v2345 = vshll.u32 %v2243, 16
      %v2347 = vrot.slane %v2345, 5
      %v2348 = vsel %vm1294, %v2343, %v2347
      %v2349 = vshrl.u32 %v2243, 16
      %v2351 = vrot.slane %v2349, 4
      %v2352 = vor.u32 %v2351, %v2347
      %v2353 = vrot.slane %v2352, 4
      %v2355 = vshll.u32 %v2244, 16
      %v2357 = vrot.slane %v2355, 5
      %v2358 = vsel %vm1294, %v2353, %v2357
      %v2360 = vshrl.u32 %v2245, 16
      %v2362 = vrot.slane %v2360, 4
      %v2363 = vshll.u32 %v2245, 16
      %v2365 = vrot.slane %v2363, 5
      %v2366 = vor.u32 %v2362, %v2365
      %v2367 = vrot.slane %v2366, 4
      %v2369 = vshll.u32 %v2246, 16
      %v2371 = vrot.slane %v2369, 5
      %v2372 = vsel %vm1294, %v2367, %v2371
      %v2373 = vshrl.u32 %v2246, 16
      %v2375 = vrot.slane %v2373, 4
      %v2376 = vor.u32 %v2375, %v2371
      %v2377 = vrot.slane %v2376, 4
      %v2379 = vshll.u32 %v2247, 16
      %v2381 = vrot.slane %v2379, 5
      %v2382 = vsel %vm1294, %v2377, %v2381
      %v2384 = vshrl.u32 %v2248, 16
      %v2386 = vrot.slane %v2384, 4
      %v2387 = vshll.u32 %v2248, 16
      %v2389 = vrot.slane %v2387, 5
      %v2390 = vor.u32 %v2386, %v2389
      %v2391 = vrot.slane %v2390, 4
      %v2393 = vshll.u32 %v2249, 16
      %v2395 = vrot.slane %v2393, 5
      %v2396 = vsel %vm1294, %v2391, %v2395
      %v2397 = vshrl.u32 %v2249, 16
      %v2399 = vrot.slane %v2397, 4
      %v2400 = vor.u32 %v2399, %v2395
      %v2401 = vrot.slane %v2400, 4
      %v2403 = vshll.u32 %v2250, 16
      %v2405 = vrot.slane %v2403, 5
      %v2406 = vsel %vm1294, %v2401, %v2405
      %v2408 = vshrl.u32 %v2251, 16
      %v2410 = vrot.slane %v2408, 4
      %v2411 = vshll.u32 %v2251, 16
      %v2413 = vrot.slane %v2411, 5
      %v2414 = vor.u32 %v2410, %v2413
      %v2415 = vrot.slane %v2414, 4
      %v2417 = vshll.u32 %v2252, 16
      %v2419 = vrot.slane %v2417, 5
      %v2420 = vsel %vm1294, %v2415, %v2419
      %v2421 = vshrl.u32 %v2252, 16
      %v2423 = vrot.slane %v2421, 4
      %v2424 = vor.u32 %v2423, %v2419
      %v2425 = vrot.slane %v2424, 4
      %v2427 = vshll.u32 %v2253, 16
      %v2429 = vrot.slane %v2427, 5
      %v2430 = vsel %vm1294, %v2425, %v2429
      %v2432 = vshrl.u32 %v2254, 16
      %v2434 = vrot.slane %v2432, 4
      %v2435 = vshll.u32 %v2254, 16
      %v2437 = vrot.slane %v2435, 5
      %v2438 = vor.u32 %v2434, %v2437
      %v2439 = vrot.slane %v2438, 4
      %v2441 = vshll.u32 %v2255, 16
      %v2443 = vrot.slane %v2441, 5
      %v2444 = vsel %vm1294, %v2439, %v2443
      %v2445 = vshrl.u32 %v2255, 16
      %v2447 = vrot.slane %v2445, 4
      %v2448 = vor.u32 %v2447, %v2443
      %v2449 = vrot.slane %v2448, 4
      %v2451 = vshll.u32 %v2256, 16
      %v2453 = vrot.slane %v2451, 5
      %v2454 = vsel %vm1294, %v2449, %v2453
      %v2456 = vshrl.u32 %v2257, 16
      %v2458 = vrot.slane %v2456, 4
      %v2459 = vshll.u32 %v2257, 16
      %v2461 = vrot.slane %v2459, 5
      %v2462 = vor.u32 %v2458, %v2461
      %v2463 = vrot.slane %v2462, 4
      %v2465 = vshll.u32 %v2258, 16
      %v2467 = vrot.slane %v2465, 5
      %v2468 = vsel %vm1294, %v2463, %v2467
      %v2469 = vshrl.u32 %v2258, 16
      %v2471 = vrot.slane %v2469, 4
      %v2472 = vor.u32 %v2471, %v2467
      %v2473 = vrot.slane %v2472, 4
      %v2475 = vshll.u32 %v2259, 16
      %v2477 = vrot.slane %v2475, 5
      %v2478 = vsel %vm1294, %v2473, %v2477
      %v2480 = vshrl.u32 %v2260, 16
      %v2482 = vrot.slane %v2480, 4
      %v2483 = vshll.u32 %v2260, 16
      %v2485 = vrot.slane %v2483, 5
      %v2486 = vor.u32 %v2482, %v2485
      %v2487 = vrot.slane %v2486, 4
      %v2489 = vshll.u32 %v2261, 16
      %v2491 = vrot.slane %v2489, 5
      %v2492 = vsel %vm1294, %v2487, %v2491
      %v2493 = vshrl.u32 %v2261, 16
      %v2495 = vrot.slane %v2493, 4
      %v2496 = vor.u32 %v2495, %v2491
      %v2497 = vrot.slane %v2496, 4
      %v2499 = vshll.u32 %v2262, 16
      %v2501 = vrot.slane %v2499, 5
      %v2502 = vsel %vm1294, %v2497, %v2501
      %s2503 = scalar_lea.vmem %s3, 8
      %v2504 = vld [vmem:[%s2503] sm:$0x3]
      %v2505 = vunpack.c.l.b16 %v2276
      %v2506 = vunpack.c.l.b16 %v2286
      %v2507 = vunpack.c.l.b16 %v2300
      %v2508 = vunpack.c.l.b16 %v2310
      %v2509 = vunpack.c.l.b16 %v2324
      %v2510 = vunpack.c.l.b16 %v2334
      %v2511 = vunpack.c.l.b16 %v2348
      %v2512 = vunpack.c.l.b16 %v2358
      %v2513 = vunpack.c.l.b16 %v2372
      %v2514 = vunpack.c.l.b16 %v2382
      %v2515 = vunpack.c.l.b16 %v2396
      %v2516 = vunpack.c.l.b16 %v2406
      %v2517 = vunpack.c.l.b16 %v2420
      %v2518 = vunpack.c.l.b16 %v2430
      %v2519 = vunpack.c.l.b16 %v2444
      %v2520 = vunpack.c.l.b16 %v2454
      %v2521 = vunpack.c.l.b16 %v2468
      %v2522 = vunpack.c.l.b16 %v2478
      %v2523 = vunpack.c.l.b16 %v2492
      %v2524 = vunpack.c.l.b16 %v2502
      %v2525 = vpack.c.b16 %v2506, %v2505
      %v2526 = vpack.c.b16 %v2508, %v2507
      %v2527 = vpack.c.b16 %v2510, %v2509
      %v2528 = vpack.c.b16 %v2512, %v2511
      %v2529 = vpack.c.b16 %v2514, %v2513
      %v2530 = vpack.c.b16 %v2516, %v2515
      %v2531 = vpack.c.b16 %v2518, %v2517
      %v2532 = vpack.c.b16 %v2520, %v2519
      %v2533 = vpack.c.b16 %v2522, %v2521
      %v2534 = vpack.c.b16 %v2524, %v2523
      %v2536 = vsel %vm396, %v2525, 0
      %v2539 = vsel %vm396, %v2526, 0
      %v2542 = vsel %vm396, %v2527, 0
      %v2545 = vsel %vm396, %v2528, 0
      %v2548 = vsel %vm396, %v2529, 0
      %v2551 = vsel %vm396, %v2530, 0
      %v2554 = vsel %vm396, %v2531, 0
      %v2557 = vsel %vm396, %v2532, 0
      %v2560 = vsel %vm396, %v2533, 0
      %v2563 = vsel %vm396, %v2534, 0
      %v2566 = vsel %vm433, %v2504, 0
      %2568 = vmatpush.bf16.msra.mxu0 0
      %2569 = vmatpush.bf16.msra.mxu0 0
      %2570 = vmatpush.bf16.msra.mxu0 0
      %2571 = vmatpush.bf16.msra.mxu0 0
      %2572 = vmatpush.bf16.msra.mxu0 0
      %2573 = vmatpush.bf16.msra.mxu0 0
      %2574 = vmatpush.bf16.msra.mxu0 0
      %2575 = vmatpush.bf16.msra.mxu0 %v2566
      %2576 = vmatmul.bf16.gmra.mxu0 %v2536
      %v2577 = vpop.f32.mrf.mxu0
      %v2578 = vadd.f32 0.0, %v2577
      %v2579 = vpop.f32.mrf.mxu0
      %v2580 = vadd.f32 0.0, %v2579
      %2581 = vmatmul.bf16.gmra.mxu0 %v2539
      %v2582 = vpop.f32.mrf.mxu0
      %v2583 = vadd.f32 0.0, %v2582
      %v2584 = vpop.f32.mrf.mxu0
      %v2585 = vadd.f32 0.0, %v2584
      %2586 = vmatmul.bf16.gmra.mxu0 %v2542
      %v2587 = vpop.f32.mrf.mxu0
      %v2588 = vadd.f32 0.0, %v2587
      %v2589 = vpop.f32.mrf.mxu0
      %v2590 = vadd.f32 0.0, %v2589
      %2591 = vmatmul.bf16.gmra.mxu0 %v2545
      %v2592 = vpop.f32.mrf.mxu0
      %v2593 = vadd.f32 0.0, %v2592
      %v2594 = vpop.f32.mrf.mxu0
      %v2595 = vadd.f32 0.0, %v2594
      %2596 = vmatmul.bf16.gmra.mxu0 %v2548
      %v2597 = vpop.f32.mrf.mxu0
      %v2598 = vadd.f32 0.0, %v2597
      %v2599 = vpop.f32.mrf.mxu0
      %v2600 = vadd.f32 0.0, %v2599
      %2601 = vmatmul.bf16.gmra.mxu0 %v2551
      %v2602 = vpop.f32.mrf.mxu0
      %v2603 = vadd.f32 0.0, %v2602
      %v2604 = vpop.f32.mrf.mxu0
      %v2605 = vadd.f32 0.0, %v2604
      %2606 = vmatmul.bf16.gmra.mxu0 %v2554
      %v2607 = vpop.f32.mrf.mxu0
      %v2608 = vadd.f32 0.0, %v2607
      %v2609 = vpop.f32.mrf.mxu0
      %v2610 = vadd.f32 0.0, %v2609
      %2611 = vmatmul.bf16.gmra.mxu0 %v2557
      %v2612 = vpop.f32.mrf.mxu0
      %v2613 = vadd.f32 0.0, %v2612
      %v2614 = vpop.f32.mrf.mxu0
      %v2615 = vadd.f32 0.0, %v2614
      %2616 = vmatmul.bf16.gmra.mxu0 %v2560
      %v2617 = vpop.f32.mrf.mxu0
      %v2618 = vadd.f32 0.0, %v2617
      %v2619 = vpop.f32.mrf.mxu0
      %v2620 = vadd.f32 0.0, %v2619
      %2621 = vmatmul.bf16.gmra.mxu0 %v2563
      %v2622 = vpop.f32.mrf.mxu0
      %v2623 = vadd.f32 0.0, %v2622
      %v2624 = vpop.f32.mrf.mxu0
      %v2625 = vadd.f32 0.0, %v2624
      %2626 = vdwg.mxu0
      %v2627 = vadd.f32 %v2213, %v2578
      %v2628 = vadd.f32 %v2214, %v2580
      %v2629 = vadd.f32 %v2215, %v2583
      %v2630 = vadd.f32 %v2216, %v2585
      %v2631 = vadd.f32 %v2217, %v2588
      %v2632 = vadd.f32 %v2218, %v2590
      %v2633 = vadd.f32 %v2219, %v2593
      %v2634 = vadd.f32 %v2220, %v2595
      %v2635 = vadd.f32 %v2221, %v2598
      %v2636 = vadd.f32 %v2222, %v2600
      %v2637 = vadd.f32 %v2223, %v2603
      %v2638 = vadd.f32 %v2224, %v2605
      %v2639 = vadd.f32 %v2225, %v2608
      %v2640 = vadd.f32 %v2226, %v2610
      %v2641 = vadd.f32 %v2227, %v2613
      %v2642 = vadd.f32 %v2228, %v2615
      %v2643 = vadd.f32 %v2229, %v2618
      %v2644 = vadd.f32 %v2230, %v2620
      %v2645 = vadd.f32 %v2231, %v2623
      %v2646 = vadd.f32 %v2232, %v2625
      %v2647 = vld [vmem:[%s2048] sm:$0xe]
      %v2648 = vld [vmem:[%s2048 + $0xc] sm:$0xe]
      %v2649 = vld [vmem:[%s2048 + $0x18] sm:$0xe]
      %v2650 = vld [vmem:[%s2048 + $0x24] sm:$0xe]
      %v2651 = vld [vmem:[%s2048 + $0x30] sm:$0xe]
      %v2652 = vld [vmem:[%s2048 + $0x3c] sm:$0xe]
      %v2653 = vld [vmem:[%s2048 + $0x48] sm:$0xe]
      %v2654 = vld [vmem:[%s2048 + $0x54] sm:$0xe]
      %v2655 = vld [vmem:[%s2048 + $0x60] sm:$0xe]
      %v2656 = vld [vmem:[%s2048 + $0x6c] sm:$0xe]
      %v2687 = vrot.slane %v2647, 5
      %v2688 = vrot.slane %v2687, 4
      %v2689 = vrot.slane %v2234, 5
      %v2690 = vsel %vm1833, %v2688, %v2689
      %v2691 = vrot.slane %v2689, 4
      %v2692 = vrot.slane %v2235, 5
      %v2693 = vsel %vm1833, %v2691, %v2692
      %v2694 = vrot.slane %v2648, 5
      %v2695 = vrot.slane %v2694, 4
      %v2696 = vrot.slane %v2237, 5
      %v2697 = vsel %vm1833, %v2695, %v2696
      %v2698 = vrot.slane %v2696, 4
      %v2699 = vrot.slane %v2238, 5
      %v2700 = vsel %vm1833, %v2698, %v2699
      %v2701 = vrot.slane %v2649, 5
      %v2702 = vrot.slane %v2701, 4
      %v2703 = vrot.slane %v2240, 5
      %v2704 = vsel %vm1833, %v2702, %v2703
      %v2705 = vrot.slane %v2703, 4
      %v2706 = vrot.slane %v2241, 5
      %v2707 = vsel %vm1833, %v2705, %v2706
      %v2708 = vrot.slane %v2650, 5
      %v2709 = vrot.slane %v2708, 4
      %v2710 = vrot.slane %v2243, 5
      %v2711 = vsel %vm1833, %v2709, %v2710
      %v2712 = vrot.slane %v2710, 4
      %v2713 = vrot.slane %v2244, 5
      %v2714 = vsel %vm1833, %v2712, %v2713
      %v2715 = vrot.slane %v2651, 5
      %v2716 = vrot.slane %v2715, 4
      %v2717 = vrot.slane %v2246, 5
      %v2718 = vsel %vm1833, %v2716, %v2717
      %v2719 = vrot.slane %v2717, 4
      %v2720 = vrot.slane %v2247, 5
      %v2721 = vsel %vm1833, %v2719, %v2720
      %v2722 = vrot.slane %v2652, 5
      %v2723 = vrot.slane %v2722, 4
      %v2724 = vrot.slane %v2249, 5
      %v2725 = vsel %vm1833, %v2723, %v2724
      %v2726 = vrot.slane %v2724, 4
      %v2727 = vrot.slane %v2250, 5
      %v2728 = vsel %vm1833, %v2726, %v2727
      %v2729 = vrot.slane %v2653, 5
      %v2730 = vrot.slane %v2729, 4
      %v2731 = vrot.slane %v2252, 5
      %v2732 = vsel %vm1833, %v2730, %v2731
      %v2733 = vrot.slane %v2731, 4
      %v2734 = vrot.slane %v2253, 5
      %v2735 = vsel %vm1833, %v2733, %v2734
      %v2736 = vrot.slane %v2654, 5
      %v2737 = vrot.slane %v2736, 4
      %v2738 = vrot.slane %v2255, 5
      %v2739 = vsel %vm1833, %v2737, %v2738
      %v2740 = vrot.slane %v2738, 4
      %v2741 = vrot.slane %v2256, 5
      %v2742 = vsel %vm1833, %v2740, %v2741
      %v2743 = vrot.slane %v2655, 5
      %v2744 = vrot.slane %v2743, 4
      %v2745 = vrot.slane %v2258, 5
      %v2746 = vsel %vm1833, %v2744, %v2745
      %v2747 = vrot.slane %v2745, 4
      %v2748 = vrot.slane %v2259, 5
      %v2749 = vsel %vm1833, %v2747, %v2748
      %v2750 = vrot.slane %v2656, 5
      %v2751 = vrot.slane %v2750, 4
      %v2752 = vrot.slane %v2261, 5
      %v2753 = vsel %vm1833, %v2751, %v2752
      %v2754 = vrot.slane %v2752, 4
      %v2755 = vrot.slane %v2262, 5
      %v2756 = vsel %vm1833, %v2754, %v2755
      %s2757 = scalar_lea.vmem %s3, 10
      %v2758 = vld [vmem:[%s2757] sm:$0x3]
      %v2759 = vunpack.c.l.b16 %v2690
      %v2760 = vunpack.c.l.b16 %v2693
      %v2761 = vunpack.c.l.b16 %v2697
      %v2762 = vunpack.c.l.b16 %v2700
      %v2763 = vunpack.c.l.b16 %v2704
      %v2764 = vunpack.c.l.b16 %v2707
      %v2765 = vunpack.c.l.b16 %v2711
      %v2766 = vunpack.c.l.b16 %v2714
      %v2767 = vunpack.c.l.b16 %v2718
      %v2768 = vunpack.c.l.b16 %v2721
      %v2769 = vunpack.c.l.b16 %v2725
      %v2770 = vunpack.c.l.b16 %v2728
      %v2771 = vunpack.c.l.b16 %v2732
      %v2772 = vunpack.c.l.b16 %v2735
      %v2773 = vunpack.c.l.b16 %v2739
      %v2774 = vunpack.c.l.b16 %v2742
      %v2775 = vunpack.c.l.b16 %v2746
      %v2776 = vunpack.c.l.b16 %v2749
      %v2777 = vunpack.c.l.b16 %v2753
      %v2778 = vunpack.c.l.b16 %v2756
      %v2779 = vpack.c.b16 %v2760, %v2759
      %v2780 = vpack.c.b16 %v2762, %v2761
      %v2781 = vpack.c.b16 %v2764, %v2763
      %v2782 = vpack.c.b16 %v2766, %v2765
      %v2783 = vpack.c.b16 %v2768, %v2767
      %v2784 = vpack.c.b16 %v2770, %v2769
      %v2785 = vpack.c.b16 %v2772, %v2771
      %v2786 = vpack.c.b16 %v2774, %v2773
      %v2787 = vpack.c.b16 %v2776, %v2775
      %v2788 = vpack.c.b16 %v2778, %v2777
      %v2790 = vsel %vm396, %v2779, 0
      %v2793 = vsel %vm396, %v2780, 0
      %v2796 = vsel %vm396, %v2781, 0
      %v2799 = vsel %vm396, %v2782, 0
      %v2802 = vsel %vm396, %v2783, 0
      %v2805 = vsel %vm396, %v2784, 0
      %v2808 = vsel %vm396, %v2785, 0
      %v2811 = vsel %vm396, %v2786, 0
      %v2814 = vsel %vm396, %v2787, 0
      %v2817 = vsel %vm396, %v2788, 0
      %v2820 = vsel %vm433, %v2758, 0
      %2822 = vmatpush.bf16.msra.mxu0 0
      %2823 = vmatpush.bf16.msra.mxu0 0
      %2824 = vmatpush.bf16.msra.mxu0 0
      %2825 = vmatpush.bf16.msra.mxu0 0
      %2826 = vmatpush.bf16.msra.mxu0 0
      %2827 = vmatpush.bf16.msra.mxu0 0
      %2828 = vmatpush.bf16.msra.mxu0 0
      %2829 = vmatpush.bf16.msra.mxu0 %v2820
      %2830 = vmatmul.bf16.gmra.mxu0 %v2790
      %v2831 = vpop.f32.mrf.mxu0
      %v2832 = vadd.f32 0.0, %v2831
      %v2833 = vpop.f32.mrf.mxu0
      %v2834 = vadd.f32 0.0, %v2833
      %2835 = vmatmul.bf16.gmra.mxu0 %v2793
      %v2836 = vpop.f32.mrf.mxu0
      %v2837 = vadd.f32 0.0, %v2836
      %v2838 = vpop.f32.mrf.mxu0
      %v2839 = vadd.f32 0.0, %v2838
      %2840 = vmatmul.bf16.gmra.mxu0 %v2796
      %v2841 = vpop.f32.mrf.mxu0
      %v2842 = vadd.f32 0.0, %v2841
      %v2843 = vpop.f32.mrf.mxu0
      %v2844 = vadd.f32 0.0, %v2843
      %2845 = vmatmul.bf16.gmra.mxu0 %v2799
      %v2846 = vpop.f32.mrf.mxu0
      %v2847 = vadd.f32 0.0, %v2846
      %v2848 = vpop.f32.mrf.mxu0
      %v2849 = vadd.f32 0.0, %v2848
      %2850 = vmatmul.bf16.gmra.mxu0 %v2802
      %v2851 = vpop.f32.mrf.mxu0
      %v2852 = vadd.f32 0.0, %v2851
      %v2853 = vpop.f32.mrf.mxu0
      %v2854 = vadd.f32 0.0, %v2853
      %2855 = vmatmul.bf16.gmra.mxu0 %v2805
      %v2856 = vpop.f32.mrf.mxu0
      %v2857 = vadd.f32 0.0, %v2856
      %v2858 = vpop.f32.mrf.mxu0
      %v2859 = vadd.f32 0.0, %v2858
      %2860 = vmatmul.bf16.gmra.mxu0 %v2808
      %v2861 = vpop.f32.mrf.mxu0
      %v2862 = vadd.f32 0.0, %v2861
      %v2863 = vpop.f32.mrf.mxu0
      %v2864 = vadd.f32 0.0, %v2863
      %2865 = vmatmul.bf16.gmra.mxu0 %v2811
      %v2866 = vpop.f32.mrf.mxu0
      %v2867 = vadd.f32 0.0, %v2866
      %v2868 = vpop.f32.mrf.mxu0
      %v2869 = vadd.f32 0.0, %v2868
      %2870 = vmatmul.bf16.gmra.mxu0 %v2814
      %v2871 = vpop.f32.mrf.mxu0
      %v2872 = vadd.f32 0.0, %v2871
      %v2873 = vpop.f32.mrf.mxu0
      %v2874 = vadd.f32 0.0, %v2873
      %2875 = vmatmul.bf16.gmra.mxu0 %v2817
      %v2876 = vpop.f32.mrf.mxu0
      %v2877 = vadd.f32 0.0, %v2876
      %v2878 = vpop.f32.mrf.mxu0
      %v2879 = vadd.f32 0.0, %v2878
      %2880 = vdwg.mxu0
      %v2881 = vadd.f32 %v2627, %v2832
      %v2882 = vadd.f32 %v2628, %v2834
      %v2883 = vadd.f32 %v2629, %v2837
      %v2884 = vadd.f32 %v2630, %v2839
      %v2885 = vadd.f32 %v2631, %v2842
      %v2886 = vadd.f32 %v2632, %v2844
      %v2887 = vadd.f32 %v2633, %v2847
      %v2888 = vadd.f32 %v2634, %v2849
      %v2889 = vadd.f32 %v2635, %v2852
      %v2890 = vadd.f32 %v2636, %v2854
      %v2891 = vadd.f32 %v2637, %v2857
      %v2892 = vadd.f32 %v2638, %v2859
      %v2893 = vadd.f32 %v2639, %v2862
      %v2894 = vadd.f32 %v2640, %v2864
      %v2895 = vadd.f32 %v2641, %v2867
      %v2896 = vadd.f32 %v2642, %v2869
      %v2897 = vadd.f32 %v2643, %v2872
      %v2898 = vadd.f32 %v2644, %v2874
      %v2899 = vadd.f32 %v2645, %v2877
      %v2900 = vadd.f32 %v2646, %v2879
      %s2901 = scalar_lea.vmem [#allocation2], 24
      %v2902 = vld [vmem:[%s2901] sm:$0xf]
      %v2903 = vld [vmem:[%s2901 + $0x4] sm:$0xf]
      %v2904 = vld [vmem:[%s2901 + $0xc] sm:$0xf]
      %v2905 = vld [vmem:[%s2901 + $0x10] sm:$0xf]
      %v2906 = vld [vmem:[%s2901 + $0x18] sm:$0xf]
      %v2907 = vld [vmem:[%s2901 + $0x1c] sm:$0xf]
      %v2908 = vld [vmem:[%s2901 + $0x24] sm:$0xf]
      %v2909 = vld [vmem:[%s2901 + $0x28] sm:$0xf]
      %v2910 = vld [vmem:[%s2901 + $0x30] sm:$0xf]
      %v2911 = vld [vmem:[%s2901 + $0x34] sm:$0xf]
      %v2912 = vld [vmem:[%s2901 + $0x3c] sm:$0xf]
      %v2913 = vld [vmem:[%s2901 + $0x40] sm:$0xf]
      %v2914 = vld [vmem:[%s2901 + $0x48] sm:$0xf]
      %v2915 = vld [vmem:[%s2901 + $0x4c] sm:$0xf]
      %v2916 = vld [vmem:[%s2901 + $0x54] sm:$0xf]
      %v2917 = vld [vmem:[%s2901 + $0x58] sm:$0xf]
      %v2918 = vld [vmem:[%s2901 + $0x60] sm:$0xf]
      %v2919 = vld [vmem:[%s2901 + $0x64] sm:$0xf]
      %v2920 = vld [vmem:[%s2901 + $0x6c] sm:$0xf]
      %v2921 = vld [vmem:[%s2901 + $0x70] sm:$0xf]
      %s2922 = scalar_lea.vmem %s3, 12
      %v2923 = vld [vmem:[%s2922] sm:$0x3]
      %v2944 = vunpack.c.l.b16 %v2902
      %v2945 = vunpack.c.l.b16 %v2903
      %v2946 = vunpack.c.l.b16 %v2904
      %v2947 = vunpack.c.l.b16 %v2905
      %v2948 = vunpack.c.l.b16 %v2906
      %v2949 = vunpack.c.l.b16 %v2907
      %v2950 = vunpack.c.l.b16 %v2908
      %v2951 = vunpack.c.l.b16 %v2909
      %v2952 = vunpack.c.l.b16 %v2910
      %v2953 = vunpack.c.l.b16 %v2911
      %v2954 = vunpack.c.l.b16 %v2912
      %v2955 = vunpack.c.l.b16 %v2913
      %v2956 = vunpack.c.l.b16 %v2914
      %v2957 = vunpack.c.l.b16 %v2915
      %v2958 = vunpack.c.l.b16 %v2916
      %v2959 = vunpack.c.l.b16 %v2917
      %v2960 = vunpack.c.l.b16 %v2918
      %v2961 = vunpack.c.l.b16 %v2919
      %v2962 = vunpack.c.l.b16 %v2920
      %v2963 = vunpack.c.l.b16 %v2921
      %v2964 = vpack.c.b16 %v2945, %v2944
      %v2965 = vpack.c.b16 %v2947, %v2946
      %v2966 = vpack.c.b16 %v2949, %v2948
      %v2967 = vpack.c.b16 %v2951, %v2950
      %v2968 = vpack.c.b16 %v2953, %v2952
      %v2969 = vpack.c.b16 %v2955, %v2954
      %v2970 = vpack.c.b16 %v2957, %v2956
      %v2971 = vpack.c.b16 %v2959, %v2958
      %v2972 = vpack.c.b16 %v2961, %v2960
      %v2973 = vpack.c.b16 %v2963, %v2962
      %v2975 = vsel %vm396, %v2964, 0
      %v2978 = vsel %vm396, %v2965, 0
      %v2981 = vsel %vm396, %v2966, 0
      %v2984 = vsel %vm396, %v2967, 0
      %v2987 = vsel %vm396, %v2968, 0
      %v2990 = vsel %vm396, %v2969, 0
      %v2993 = vsel %vm396, %v2970, 0
      %v2996 = vsel %vm396, %v2971, 0
      %v2999 = vsel %vm396, %v2972, 0
      %v3002 = vsel %vm396, %v2973, 0
      %v3005 = vsel %vm433, %v2923, 0
      %3007 = vmatpush.bf16.msra.mxu0 0
      %3008 = vmatpush.bf16.msra.mxu0 0
      %3009 = vmatpush.bf16.msra.mxu0 0
      %3010 = vmatpush.bf16.msra.mxu0 0
      %3011 = vmatpush.bf16.msra.mxu0 0
      %3012 = vmatpush.bf16.msra.mxu0 0
      %3013 = vmatpush.bf16.msra.mxu0 0
      %3014 = vmatpush.bf16.msra.mxu0 %v3005
      %3015 = vmatmul.bf16.gmra.mxu0 %v2975
      %v3016 = vpop.f32.mrf.mxu0
      %v3017 = vadd.f32 0.0, %v3016
      %v3018 = vpop.f32.mrf.mxu0
      %v3019 = vadd.f32 0.0, %v3018
      %3020 = vmatmul.bf16.gmra.mxu0 %v2978
      %v3021 = vpop.f32.mrf.mxu0
      %v3022 = vadd.f32 0.0, %v3021
      %v3023 = vpop.f32.mrf.mxu0
      %v3024 = vadd.f32 0.0, %v3023
      %3025 = vmatmul.bf16.gmra.mxu0 %v2981
      %v3026 = vpop.f32.mrf.mxu0
      %v3027 = vadd.f32 0.0, %v3026
      %v3028 = vpop.f32.mrf.mxu0
      %v3029 = vadd.f32 0.0, %v3028
      %3030 = vmatmul.bf16.gmra.mxu0 %v2984
      %v3031 = vpop.f32.mrf.mxu0
      %v3032 = vadd.f32 0.0, %v3031
      %v3033 = vpop.f32.mrf.mxu0
      %v3034 = vadd.f32 0.0, %v3033
      %3035 = vmatmul.bf16.gmra.mxu0 %v2987
      %v3036 = vpop.f32.mrf.mxu0
      %v3037 = vadd.f32 0.0, %v3036
      %v3038 = vpop.f32.mrf.mxu0
      %v3039 = vadd.f32 0.0, %v3038
      %3040 = vmatmul.bf16.gmra.mxu0 %v2990
      %v3041 = vpop.f32.mrf.mxu0
      %v3042 = vadd.f32 0.0, %v3041
      %v3043 = vpop.f32.mrf.mxu0
      %v3044 = vadd.f32 0.0, %v3043
      %3045 = vmatmul.bf16.gmra.mxu0 %v2993
      %v3046 = vpop.f32.mrf.mxu0
      %v3047 = vadd.f32 0.0, %v3046
      %v3048 = vpop.f32.mrf.mxu0
      %v3049 = vadd.f32 0.0, %v3048
      %3050 = vmatmul.bf16.gmra.mxu0 %v2996
      %v3051 = vpop.f32.mrf.mxu0
      %v3052 = vadd.f32 0.0, %v3051
      %v3053 = vpop.f32.mrf.mxu0
      %v3054 = vadd.f32 0.0, %v3053
      %3055 = vmatmul.bf16.gmra.mxu0 %v2999
      %v3056 = vpop.f32.mrf.mxu0
      %v3057 = vadd.f32 0.0, %v3056
      %v3058 = vpop.f32.mrf.mxu0
      %v3059 = vadd.f32 0.0, %v3058
      %3060 = vmatmul.bf16.gmra.mxu0 %v3002
      %v3061 = vpop.f32.mrf.mxu0
      %v3062 = vadd.f32 0.0, %v3061
      %v3063 = vpop.f32.mrf.mxu0
      %v3064 = vadd.f32 0.0, %v3063
      %3065 = vdwg.mxu0
      %v3066 = vadd.f32 %v2881, %v3017
      %v3067 = vadd.f32 %v2882, %v3019
      %v3068 = vadd.f32 %v2883, %v3022
      %v3069 = vadd.f32 %v2884, %v3024
      %v3070 = vadd.f32 %v2885, %v3027
      %v3071 = vadd.f32 %v2886, %v3029
      %v3072 = vadd.f32 %v2887, %v3032
      %v3073 = vadd.f32 %v2888, %v3034
      %v3074 = vadd.f32 %v2889, %v3037
      %v3075 = vadd.f32 %v2890, %v3039
      %v3076 = vadd.f32 %v2891, %v3042
      %v3077 = vadd.f32 %v2892, %v3044
      %v3078 = vadd.f32 %v2893, %v3047
      %v3079 = vadd.f32 %v2894, %v3049
      %v3080 = vadd.f32 %v2895, %v3052
      %v3081 = vadd.f32 %v2896, %v3054
      %v3082 = vadd.f32 %v2897, %v3057
      %v3083 = vadd.f32 %v2898, %v3059
      %v3084 = vadd.f32 %v2899, %v3062
      %v3085 = vadd.f32 %v2900, %v3064
      %v3086 = vld [vmem:[%s2901] sm:$0xf]
      %v3087 = vld [vmem:[%s2901 + $0x4] sm:$0xf]
      %v3088 = vld [vmem:[%s2901 + $0x8] sm:$0x1]
      %v3089 = vld [vmem:[%s2901 + $0xc] sm:$0xf]
      %v3090 = vld [vmem:[%s2901 + $0x10] sm:$0xf]
      %v3091 = vld [vmem:[%s2901 + $0x14] sm:$0x1]
      %v3092 = vld [vmem:[%s2901 + $0x18] sm:$0xf]
      %v3093 = vld [vmem:[%s2901 + $0x1c] sm:$0xf]
      %v3094 = vld [vmem:[%s2901 + $0x20] sm:$0x1]
      %v3095 = vld [vmem:[%s2901 + $0x24] sm:$0xf]
      %v3096 = vld [vmem:[%s2901 + $0x28] sm:$0xf]
      %v3097 = vld [vmem:[%s2901 + $0x2c] sm:$0x1]
      %v3098 = vld [vmem:[%s2901 + $0x30] sm:$0xf]
      %v3099 = vld [vmem:[%s2901 + $0x34] sm:$0xf]
      %v3100 = vld [vmem:[%s2901 + $0x38] sm:$0x1]
      %v3101 = vld [vmem:[%s2901 + $0x3c] sm:$0xf]
      %v3102 = vld [vmem:[%s2901 + $0x40] sm:$0xf]
      %v3103 = vld [vmem:[%s2901 + $0x44] sm:$0x1]
      %v3104 = vld [vmem:[%s2901 + $0x48] sm:$0xf]
      %v3105 = vld [vmem:[%s2901 + $0x4c] sm:$0xf]
      %v3106 = vld [vmem:[%s2901 + $0x50] sm:$0x1]
      %v3107 = vld [vmem:[%s2901 + $0x54] sm:$0xf]
      %v3108 = vld [vmem:[%s2901 + $0x58] sm:$0xf]
      %v3109 = vld [vmem:[%s2901 + $0x5c] sm:$0x1]
      %v3110 = vld [vmem:[%s2901 + $0x60] sm:$0xf]
      %v3111 = vld [vmem:[%s2901 + $0x64] sm:$0xf]
      %v3112 = vld [vmem:[%s2901 + $0x68] sm:$0x1]
      %v3113 = vld [vmem:[%s2901 + $0x6c] sm:$0xf]
      %v3114 = vld [vmem:[%s2901 + $0x70] sm:$0xf]
      %v3115 = vld [vmem:[%s2901 + $0x74] sm:$0x1]
      %v3117 = vshrl.u32 %v3086, 16
      %v3119 = vrot.slane %v3117, 4
      %v3120 = vshll.u32 %v3086, 16
      %v3122 = vrot.slane %v3120, 5
      %v3123 = vor.u32 %v3119, %v3122
      %v3124 = vrot.slane %v3123, 4
      %v3126 = vshll.u32 %v3087, 16
      %v3128 = vrot.slane %v3126, 5
      %v3129 = vsel %vm1294, %v3124, %v3128
      %v3130 = vshrl.u32 %v3087, 16
      %v3132 = vrot.slane %v3130, 4
      %v3133 = vor.u32 %v3132, %v3128
      %v3134 = vrot.slane %v3133, 4
      %v3136 = vshll.u32 %v3088, 16
      %v3138 = vrot.slane %v3136, 5
      %v3139 = vsel %vm1294, %v3134, %v3138
      %v3141 = vshrl.u32 %v3089, 16
      %v3143 = vrot.slane %v3141, 4
      %v3144 = vshll.u32 %v3089, 16
      %v3146 = vrot.slane %v3144, 5
      %v3147 = vor.u32 %v3143, %v3146
      %v3148 = vrot.slane %v3147, 4
      %v3150 = vshll.u32 %v3090, 16
      %v3152 = vrot.slane %v3150, 5
      %v3153 = vsel %vm1294, %v3148, %v3152
      %v3154 = vshrl.u32 %v3090, 16
      %v3156 = vrot.slane %v3154, 4
      %v3157 = vor.u32 %v3156, %v3152
      %v3158 = vrot.slane %v3157, 4
      %v3160 = vshll.u32 %v3091, 16
      %v3162 = vrot.slane %v3160, 5
      %v3163 = vsel %vm1294, %v3158, %v3162
      %v3165 = vshrl.u32 %v3092, 16
      %v3167 = vrot.slane %v3165, 4
      %v3168 = vshll.u32 %v3092, 16
      %v3170 = vrot.slane %v3168, 5
      %v3171 = vor.u32 %v3167, %v3170
      %v3172 = vrot.slane %v3171, 4
      %v3174 = vshll.u32 %v3093, 16
      %v3176 = vrot.slane %v3174, 5
      %v3177 = vsel %vm1294, %v3172, %v3176
      %v3178 = vshrl.u32 %v3093, 16
      %v3180 = vrot.slane %v3178, 4
      %v3181 = vor.u32 %v3180, %v3176
      %v3182 = vrot.slane %v3181, 4
      %v3184 = vshll.u32 %v3094, 16
      %v3186 = vrot.slane %v3184, 5
      %v3187 = vsel %vm1294, %v3182, %v3186
      %v3189 = vshrl.u32 %v3095, 16
      %v3191 = vrot.slane %v3189, 4
      %v3192 = vshll.u32 %v3095, 16
      %v3194 = vrot.slane %v3192, 5
      %v3195 = vor.u32 %v3191, %v3194
      %v3196 = vrot.slane %v3195, 4
      %v3198 = vshll.u32 %v3096, 16
      %v3200 = vrot.slane %v3198, 5
      %v3201 = vsel %vm1294, %v3196, %v3200
      %v3202 = vshrl.u32 %v3096, 16
      %v3204 = vrot.slane %v3202, 4
      %v3205 = vor.u32 %v3204, %v3200
      %v3206 = vrot.slane %v3205, 4
      %v3208 = vshll.u32 %v3097, 16
      %v3210 = vrot.slane %v3208, 5
      %v3211 = vsel %vm1294, %v3206, %v3210
      %v3213 = vshrl.u32 %v3098, 16
      %v3215 = vrot.slane %v3213, 4
      %v3216 = vshll.u32 %v3098, 16
      %v3218 = vrot.slane %v3216, 5
      %v3219 = vor.u32 %v3215, %v3218
      %v3220 = vrot.slane %v3219, 4
      %v3222 = vshll.u32 %v3099, 16
      %v3224 = vrot.slane %v3222, 5
      %v3225 = vsel %vm1294, %v3220, %v3224
      %v3226 = vshrl.u32 %v3099, 16
      %v3228 = vrot.slane %v3226, 4
      %v3229 = vor.u32 %v3228, %v3224
      %v3230 = vrot.slane %v3229, 4
      %v3232 = vshll.u32 %v3100, 16
      %v3234 = vrot.slane %v3232, 5
      %v3235 = vsel %vm1294, %v3230, %v3234
      %v3237 = vshrl.u32 %v3101, 16
      %v3239 = vrot.slane %v3237, 4
      %v3240 = vshll.u32 %v3101, 16
      %v3242 = vrot.slane %v3240, 5
      %v3243 = vor.u32 %v3239, %v3242
      %v3244 = vrot.slane %v3243, 4
      %v3246 = vshll.u32 %v3102, 16
      %v3248 = vrot.slane %v3246, 5
      %v3249 = vsel %vm1294, %v3244, %v3248
      %v3250 = vshrl.u32 %v3102, 16
      %v3252 = vrot.slane %v3250, 4
      %v3253 = vor.u32 %v3252, %v3248
      %v3254 = vrot.slane %v3253, 4
      %v3256 = vshll.u32 %v3103, 16
      %v3258 = vrot.slane %v3256, 5
      %v3259 = vsel %vm1294, %v3254, %v3258
      %v3261 = vshrl.u32 %v3104, 16
      %v3263 = vrot.slane %v3261, 4
      %v3264 = vshll.u32 %v3104, 16
      %v3266 = vrot.slane %v3264, 5
      %v3267 = vor.u32 %v3263, %v3266
      %v3268 = vrot.slane %v3267, 4
      %v3270 = vshll.u32 %v3105, 16
      %v3272 = vrot.slane %v3270, 5
      %v3273 = vsel %vm1294, %v3268, %v3272
      %v3274 = vshrl.u32 %v3105, 16
      %v3276 = vrot.slane %v3274, 4
      %v3277 = vor.u32 %v3276, %v3272
      %v3278 = vrot.slane %v3277, 4
      %v3280 = vshll.u32 %v3106, 16
      %v3282 = vrot.slane %v3280, 5
      %v3283 = vsel %vm1294, %v3278, %v3282
      %v3285 = vshrl.u32 %v3107, 16
      %v3287 = vrot.slane %v3285, 4
      %v3288 = vshll.u32 %v3107, 16
      %v3290 = vrot.slane %v3288, 5
      %v3291 = vor.u32 %v3287, %v3290
      %v3292 = vrot.slane %v3291, 4
      %v3294 = vshll.u32 %v3108, 16
      %v3296 = vrot.slane %v3294, 5
      %v3297 = vsel %vm1294, %v3292, %v3296
      %v3298 = vshrl.u32 %v3108, 16
      %v3300 = vrot.slane %v3298, 4
      %v3301 = vor.u32 %v3300, %v3296
      %v3302 = vrot.slane %v3301, 4
      %v3304 = vshll.u32 %v3109, 16
      %v3306 = vrot.slane %v3304, 5
      %v3307 = vsel %vm1294, %v3302, %v3306
      %v3309 = vshrl.u32 %v3110, 16
      %v3311 = vrot.slane %v3309, 4
      %v3312 = vshll.u32 %v3110, 16
      %v3314 = vrot.slane %v3312, 5
      %v3315 = vor.u32 %v3311, %v3314
      %v3316 = vrot.slane %v3315, 4
      %v3318 = vshll.u32 %v3111, 16
      %v3320 = vrot.slane %v3318, 5
      %v3321 = vsel %vm1294, %v3316, %v3320
      %v3322 = vshrl.u32 %v3111, 16
      %v3324 = vrot.slane %v3322, 4
      %v3325 = vor.u32 %v3324, %v3320
      %v3326 = vrot.slane %v3325, 4
      %v3328 = vshll.u32 %v3112, 16
      %v3330 = vrot.slane %v3328, 5
      %v3331 = vsel %vm1294, %v3326, %v3330
      %v3333 = vshrl.u32 %v3113, 16
      %v3335 = vrot.slane %v3333, 4
      %v3336 = vshll.u32 %v3113, 16
      %v3338 = vrot.slane %v3336, 5
      %v3339 = vor.u32 %v3335, %v3338
      %v3340 = vrot.slane %v3339, 4
      %v3342 = vshll.u32 %v3114, 16
      %v3344 = vrot.slane %v3342, 5
      %v3345 = vsel %vm1294, %v3340, %v3344
      %v3346 = vshrl.u32 %v3114, 16
      %v3348 = vrot.slane %v3346, 4
      %v3349 = vor.u32 %v3348, %v3344
      %v3350 = vrot.slane %v3349, 4
      %v3352 = vshll.u32 %v3115, 16
      %v3354 = vrot.slane %v3352, 5
      %v3355 = vsel %vm1294, %v3350, %v3354
      %s3356 = scalar_lea.vmem %s3, 14
      %v3357 = vld [vmem:[%s3356] sm:$0x3]
      %v3358 = vunpack.c.l.b16 %v3129
      %v3359 = vunpack.c.l.b16 %v3139
      %v3360 = vunpack.c.l.b16 %v3153
      %v3361 = vunpack.c.l.b16 %v3163
      %v3362 = vunpack.c.l.b16 %v3177
      %v3363 = vunpack.c.l.b16 %v3187
      %v3364 = vunpack.c.l.b16 %v3201
      %v3365 = vunpack.c.l.b16 %v3211
      %v3366 = vunpack.c.l.b16 %v3225
      %v3367 = vunpack.c.l.b16 %v3235
      %v3368 = vunpack.c.l.b16 %v3249
      %v3369 = vunpack.c.l.b16 %v3259
      %v3370 = vunpack.c.l.b16 %v3273
      %v3371 = vunpack.c.l.b16 %v3283
      %v3372 = vunpack.c.l.b16 %v3297
      %v3373 = vunpack.c.l.b16 %v3307
      %v3374 = vunpack.c.l.b16 %v3321
      %v3375 = vunpack.c.l.b16 %v3331
      %v3376 = vunpack.c.l.b16 %v3345
      %v3377 = vunpack.c.l.b16 %v3355
      %v3378 = vpack.c.b16 %v3359, %v3358
      %v3379 = vpack.c.b16 %v3361, %v3360
      %v3380 = vpack.c.b16 %v3363, %v3362
      %v3381 = vpack.c.b16 %v3365, %v3364
      %v3382 = vpack.c.b16 %v3367, %v3366
      %v3383 = vpack.c.b16 %v3369, %v3368
      %v3384 = vpack.c.b16 %v3371, %v3370
      %v3385 = vpack.c.b16 %v3373, %v3372
      %v3386 = vpack.c.b16 %v3375, %v3374
      %v3387 = vpack.c.b16 %v3377, %v3376
      %v3389 = vsel %vm396, %v3378, 0
      %v3392 = vsel %vm396, %v3379, 0
      %v3395 = vsel %vm396, %v3380, 0
      %v3398 = vsel %vm396, %v3381, 0
      %v3401 = vsel %vm396, %v3382, 0
      %v3404 = vsel %vm396, %v3383, 0
      %v3407 = vsel %vm396, %v3384, 0
      %v3410 = vsel %vm396, %v3385, 0
      %v3413 = vsel %vm396, %v3386, 0
      %v3416 = vsel %vm396, %v3387, 0
      %v3419 = vsel %vm433, %v3357, 0
      %3421 = vmatpush.bf16.msra.mxu0 0
      %3422 = vmatpush.bf16.msra.mxu0 0
      %3423 = vmatpush.bf16.msra.mxu0 0
      %3424 = vmatpush.bf16.msra.mxu0 0
      %3425 = vmatpush.bf16.msra.mxu0 0
      %3426 = vmatpush.bf16.msra.mxu0 0
      %3427 = vmatpush.bf16.msra.mxu0 0
      %3428 = vmatpush.bf16.msra.mxu0 %v3419
      %3429 = vmatmul.bf16.gmra.mxu0 %v3389
      %v3430 = vpop.f32.mrf.mxu0
      %v3431 = vadd.f32 0.0, %v3430
      %v3432 = vpop.f32.mrf.mxu0
      %v3433 = vadd.f32 0.0, %v3432
      %3434 = vmatmul.bf16.gmra.mxu0 %v3392
      %v3435 = vpop.f32.mrf.mxu0
      %v3436 = vadd.f32 0.0, %v3435
      %v3437 = vpop.f32.mrf.mxu0
      %v3438 = vadd.f32 0.0, %v3437
      %3439 = vmatmul.bf16.gmra.mxu0 %v3395
      %v3440 = vpop.f32.mrf.mxu0
      %v3441 = vadd.f32 0.0, %v3440
      %v3442 = vpop.f32.mrf.mxu0
      %v3443 = vadd.f32 0.0, %v3442
      %3444 = vmatmul.bf16.gmra.mxu0 %v3398
      %v3445 = vpop.f32.mrf.mxu0
      %v3446 = vadd.f32 0.0, %v3445
      %v3447 = vpop.f32.mrf.mxu0
      %v3448 = vadd.f32 0.0, %v3447
      %3449 = vmatmul.bf16.gmra.mxu0 %v3401
      %v3450 = vpop.f32.mrf.mxu0
      %v3451 = vadd.f32 0.0, %v3450
      %v3452 = vpop.f32.mrf.mxu0
      %v3453 = vadd.f32 0.0, %v3452
      %3454 = vmatmul.bf16.gmra.mxu0 %v3404
      %v3455 = vpop.f32.mrf.mxu0
      %v3456 = vadd.f32 0.0, %v3455
      %v3457 = vpop.f32.mrf.mxu0
      %v3458 = vadd.f32 0.0, %v3457
      %3459 = vmatmul.bf16.gmra.mxu0 %v3407
      %v3460 = vpop.f32.mrf.mxu0
      %v3461 = vadd.f32 0.0, %v3460
      %v3462 = vpop.f32.mrf.mxu0
      %v3463 = vadd.f32 0.0, %v3462
      %3464 = vmatmul.bf16.gmra.mxu0 %v3410
      %v3465 = vpop.f32.mrf.mxu0
      %v3466 = vadd.f32 0.0, %v3465
      %v3467 = vpop.f32.mrf.mxu0
      %v3468 = vadd.f32 0.0, %v3467
      %3469 = vmatmul.bf16.gmra.mxu0 %v3413
      %v3470 = vpop.f32.mrf.mxu0
      %v3471 = vadd.f32 0.0, %v3470
      %v3472 = vpop.f32.mrf.mxu0
      %v3473 = vadd.f32 0.0, %v3472
      %3474 = vmatmul.bf16.gmra.mxu0 %v3416
      %v3475 = vpop.f32.mrf.mxu0
      %v3476 = vadd.f32 0.0, %v3475
      %v3477 = vpop.f32.mrf.mxu0
      %v3478 = vadd.f32 0.0, %v3477
      %3479 = vdwg.mxu0
      %v3480 = vadd.f32 %v3066, %v3431
      %v3481 = vadd.f32 %v3067, %v3433
      %v3482 = vadd.f32 %v3068, %v3436
      %v3483 = vadd.f32 %v3069, %v3438
      %v3484 = vadd.f32 %v3070, %v3441
      %v3485 = vadd.f32 %v3071, %v3443
      %v3486 = vadd.f32 %v3072, %v3446
      %v3487 = vadd.f32 %v3073, %v3448
      %v3488 = vadd.f32 %v3074, %v3451
      %v3489 = vadd.f32 %v3075, %v3453
      %v3490 = vadd.f32 %v3076, %v3456
      %v3491 = vadd.f32 %v3077, %v3458
      %v3492 = vadd.f32 %v3078, %v3461
      %v3493 = vadd.f32 %v3079, %v3463
      %v3494 = vadd.f32 %v3080, %v3466
      %v3495 = vadd.f32 %v3081, %v3468
      %v3496 = vadd.f32 %v3082, %v3471
      %v3497 = vadd.f32 %v3083, %v3473
      %v3498 = vadd.f32 %v3084, %v3476
      %v3499 = vadd.f32 %v3085, %v3478
      %v3500 = vld [vmem:[%s2901] sm:$0xe]
      %v3501 = vld [vmem:[%s2901 + $0xc] sm:$0xe]
      %v3502 = vld [vmem:[%s2901 + $0x18] sm:$0xe]
      %v3503 = vld [vmem:[%s2901 + $0x24] sm:$0xe]
      %v3504 = vld [vmem:[%s2901 + $0x30] sm:$0xe]
      %v3505 = vld [vmem:[%s2901 + $0x3c] sm:$0xe]
      %v3506 = vld [vmem:[%s2901 + $0x48] sm:$0xe]
      %v3507 = vld [vmem:[%s2901 + $0x54] sm:$0xe]
      %v3508 = vld [vmem:[%s2901 + $0x60] sm:$0xe]
      %v3509 = vld [vmem:[%s2901 + $0x6c] sm:$0xe]
      %v3540 = vrot.slane %v3500, 5
      %v3541 = vrot.slane %v3540, 4
      %v3542 = vrot.slane %v3087, 5
      %v3543 = vsel %vm1833, %v3541, %v3542
      %v3544 = vrot.slane %v3542, 4
      %v3545 = vrot.slane %v3088, 5
      %v3546 = vsel %vm1833, %v3544, %v3545
      %v3547 = vrot.slane %v3501, 5
      %v3548 = vrot.slane %v3547, 4
      %v3549 = vrot.slane %v3090, 5
      %v3550 = vsel %vm1833, %v3548, %v3549
      %v3551 = vrot.slane %v3549, 4
      %v3552 = vrot.slane %v3091, 5
      %v3553 = vsel %vm1833, %v3551, %v3552
      %v3554 = vrot.slane %v3502, 5
      %v3555 = vrot.slane %v3554, 4
      %v3556 = vrot.slane %v3093, 5
      %v3557 = vsel %vm1833, %v3555, %v3556
      %v3558 = vrot.slane %v3556, 4
      %v3559 = vrot.slane %v3094, 5
      %v3560 = vsel %vm1833, %v3558, %v3559
      %v3561 = vrot.slane %v3503, 5
      %v3562 = vrot.slane %v3561, 4
      %v3563 = vrot.slane %v3096, 5
      %v3564 = vsel %vm1833, %v3562, %v3563
      %v3565 = vrot.slane %v3563, 4
      %v3566 = vrot.slane %v3097, 5
      %v3567 = vsel %vm1833, %v3565, %v3566
      %v3568 = vrot.slane %v3504, 5
      %v3569 = vrot.slane %v3568, 4
      %v3570 = vrot.slane %v3099, 5
      %v3571 = vsel %vm1833, %v3569, %v3570
      %v3572 = vrot.slane %v3570, 4
      %v3573 = vrot.slane %v3100, 5
      %v3574 = vsel %vm1833, %v3572, %v3573
      %v3575 = vrot.slane %v3505, 5
      %v3576 = vrot.slane %v3575, 4
      %v3577 = vrot.slane %v3102, 5
      %v3578 = vsel %vm1833, %v3576, %v3577
      %v3579 = vrot.slane %v3577, 4
      %v3580 = vrot.slane %v3103, 5
      %v3581 = vsel %vm1833, %v3579, %v3580
      %v3582 = vrot.slane %v3506, 5
      %v3583 = vrot.slane %v3582, 4
      %v3584 = vrot.slane %v3105, 5
      %v3585 = vsel %vm1833, %v3583, %v3584
      %v3586 = vrot.slane %v3584, 4
      %v3587 = vrot.slane %v3106, 5
      %v3588 = vsel %vm1833, %v3586, %v3587
      %v3589 = vrot.slane %v3507, 5
      %v3590 = vrot.slane %v3589, 4
      %v3591 = vrot.slane %v3108, 5
      %v3592 = vsel %vm1833, %v3590, %v3591
      %v3593 = vrot.slane %v3591, 4
      %v3594 = vrot.slane %v3109, 5
      %v3595 = vsel %vm1833, %v3593, %v3594
      %v3596 = vrot.slane %v3508, 5
      %v3597 = vrot.slane %v3596, 4
      %v3598 = vrot.slane %v3111, 5
      %v3599 = vsel %vm1833, %v3597, %v3598
      %v3600 = vrot.slane %v3598, 4
      %v3601 = vrot.slane %v3112, 5
      %v3602 = vsel %vm1833, %v3600, %v3601
      %v3603 = vrot.slane %v3509, 5
      %v3604 = vrot.slane %v3603, 4
      %v3605 = vrot.slane %v3114, 5
      %v3606 = vsel %vm1833, %v3604, %v3605
      %v3607 = vrot.slane %v3605, 4
      %v3608 = vrot.slane %v3115, 5
      %v3609 = vsel %vm1833, %v3607, %v3608
      %s3610 = scalar_lea.vmem %s3, 16
      %v3611 = vld [vmem:[%s3610] sm:$0x3]
      %v3612 = vunpack.c.l.b16 %v3543
      %v3613 = vunpack.c.l.b16 %v3546
      %v3614 = vunpack.c.l.b16 %v3550
      %v3615 = vunpack.c.l.b16 %v3553
      %v3616 = vunpack.c.l.b16 %v3557
      %v3617 = vunpack.c.l.b16 %v3560
      %v3618 = vunpack.c.l.b16 %v3564
      %v3619 = vunpack.c.l.b16 %v3567
      %v3620 = vunpack.c.l.b16 %v3571
      %v3621 = vunpack.c.l.b16 %v3574
      %v3622 = vunpack.c.l.b16 %v3578
      %v3623 = vunpack.c.l.b16 %v3581
      %v3624 = vunpack.c.l.b16 %v3585
      %v3625 = vunpack.c.l.b16 %v3588
      %v3626 = vunpack.c.l.b16 %v3592
      %v3627 = vunpack.c.l.b16 %v3595
      %v3628 = vunpack.c.l.b16 %v3599
      %v3629 = vunpack.c.l.b16 %v3602
      %v3630 = vunpack.c.l.b16 %v3606
      %v3631 = vunpack.c.l.b16 %v3609
      %v3632 = vpack.c.b16 %v3613, %v3612
      %v3633 = vpack.c.b16 %v3615, %v3614
      %v3634 = vpack.c.b16 %v3617, %v3616
      %v3635 = vpack.c.b16 %v3619, %v3618
      %v3636 = vpack.c.b16 %v3621, %v3620
      %v3637 = vpack.c.b16 %v3623, %v3622
      %v3638 = vpack.c.b16 %v3625, %v3624
      %v3639 = vpack.c.b16 %v3627, %v3626
      %v3640 = vpack.c.b16 %v3629, %v3628
      %v3641 = vpack.c.b16 %v3631, %v3630
      %v3643 = vsel %vm396, %v3632, 0
      %v3646 = vsel %vm396, %v3633, 0
      %v3649 = vsel %vm396, %v3634, 0
      %v3652 = vsel %vm396, %v3635, 0
      %v3655 = vsel %vm396, %v3636, 0
      %v3658 = vsel %vm396, %v3637, 0
      %v3661 = vsel %vm396, %v3638, 0
      %v3664 = vsel %vm396, %v3639, 0
      %v3667 = vsel %vm396, %v3640, 0
      %v3670 = vsel %vm396, %v3641, 0
      %v3673 = vsel %vm433, %v3611, 0
      %3675 = vmatpush.bf16.msra.mxu0 0
      %3676 = vmatpush.bf16.msra.mxu0 0
      %3677 = vmatpush.bf16.msra.mxu0 0
      %3678 = vmatpush.bf16.msra.mxu0 0
      %3679 = vmatpush.bf16.msra.mxu0 0
      %3680 = vmatpush.bf16.msra.mxu0 0
      %3681 = vmatpush.bf16.msra.mxu0 0
      %3682 = vmatpush.bf16.msra.mxu0 %v3673
      %3683 = vmatmul.bf16.gmra.mxu0 %v3643
      %v3684 = vpop.f32.mrf.mxu0
      %v3685 = vadd.f32 0.0, %v3684
      %v3686 = vpop.f32.mrf.mxu0
      %v3687 = vadd.f32 0.0, %v3686
      %3688 = vmatmul.bf16.gmra.mxu0 %v3646
      %v3689 = vpop.f32.mrf.mxu0
      %v3690 = vadd.f32 0.0, %v3689
      %v3691 = vpop.f32.mrf.mxu0
      %v3692 = vadd.f32 0.0, %v3691
      %3693 = vmatmul.bf16.gmra.mxu0 %v3649
      %v3694 = vpop.f32.mrf.mxu0
      %v3695 = vadd.f32 0.0, %v3694
      %v3696 = vpop.f32.mrf.mxu0
      %v3697 = vadd.f32 0.0, %v3696
      %3698 = vmatmul.bf16.gmra.mxu0 %v3652
      %v3699 = vpop.f32.mrf.mxu0
      %v3700 = vadd.f32 0.0, %v3699
      %v3701 = vpop.f32.mrf.mxu0
      %v3702 = vadd.f32 0.0, %v3701
      %3703 = vmatmul.bf16.gmra.mxu0 %v3655
      %v3704 = vpop.f32.mrf.mxu0
      %v3705 = vadd.f32 0.0, %v3704
      %v3706 = vpop.f32.mrf.mxu0
      %v3707 = vadd.f32 0.0, %v3706
      %3708 = vmatmul.bf16.gmra.mxu0 %v3658
      %v3709 = vpop.f32.mrf.mxu0
      %v3710 = vadd.f32 0.0, %v3709
      %v3711 = vpop.f32.mrf.mxu0
      %v3712 = vadd.f32 0.0, %v3711
      %3713 = vmatmul.bf16.gmra.mxu0 %v3661
      %v3714 = vpop.f32.mrf.mxu0
      %v3715 = vadd.f32 0.0, %v3714
      %v3716 = vpop.f32.mrf.mxu0
      %v3717 = vadd.f32 0.0, %v3716
      %3718 = vmatmul.bf16.gmra.mxu0 %v3664
      %v3719 = vpop.f32.mrf.mxu0
      %v3720 = vadd.f32 0.0, %v3719
      %v3721 = vpop.f32.mrf.mxu0
      %v3722 = vadd.f32 0.0, %v3721
      %3723 = vmatmul.bf16.gmra.mxu0 %v3667
      %v3724 = vpop.f32.mrf.mxu0
      %v3725 = vadd.f32 0.0, %v3724
      %v3726 = vpop.f32.mrf.mxu0
      %v3727 = vadd.f32 0.0, %v3726
      %3728 = vmatmul.bf16.gmra.mxu0 %v3670
      %v3729 = vpop.f32.mrf.mxu0
      %v3730 = vadd.f32 0.0, %v3729
      %v3731 = vpop.f32.mrf.mxu0
      %v3732 = vadd.f32 0.0, %v3731
      %3733 = vdwg.mxu0
      %v3734 = vadd.f32 %v3480, %v3685
      %v3735 = vadd.f32 %v3481, %v3687
      %v3736 = vadd.f32 %v3482, %v3690
      %v3737 = vadd.f32 %v3483, %v3692
      %v3738 = vadd.f32 %v3484, %v3695
      %v3739 = vadd.f32 %v3485, %v3697
      %v3740 = vadd.f32 %v3486, %v3700
      %v3741 = vadd.f32 %v3487, %v3702
      %v3742 = vadd.f32 %v3488, %v3705
      %v3743 = vadd.f32 %v3489, %v3707
      %v3744 = vadd.f32 %v3490, %v3710
      %v3745 = vadd.f32 %v3491, %v3712
      %v3746 = vadd.f32 %v3492, %v3715
      %v3747 = vadd.f32 %v3493, %v3717
      %v3748 = vadd.f32 %v3494, %v3720
      %v3749 = vadd.f32 %v3495, %v3722
      %v3750 = vadd.f32 %v3496, %v3725
      %v3751 = vadd.f32 %v3497, %v3727
      %v3752 = vadd.f32 %v3498, %v3730
      %v3753 = vadd.f32 %v3499, %v3732
      %v3754 = vpack.c.bf16 %v3734, %v3734
      %v3755 = vpack.c.bf16 %v3735, %v3735
      %v3756 = vpack.c.bf16 %v3736, %v3736
      %v3757 = vpack.c.bf16 %v3737, %v3737
      %v3758 = vpack.c.bf16 %v3738, %v3738
      %v3759 = vpack.c.bf16 %v3739, %v3739
      %v3760 = vpack.c.bf16 %v3740, %v3740
      %v3761 = vpack.c.bf16 %v3741, %v3741
      %v3762 = vpack.c.bf16 %v3742, %v3742
      %v3763 = vpack.c.bf16 %v3743, %v3743
      %v3764 = vpack.c.bf16 %v3744, %v3744
      %v3765 = vpack.c.bf16 %v3745, %v3745
      %v3766 = vpack.c.bf16 %v3746, %v3746
      %v3767 = vpack.c.bf16 %v3747, %v3747
      %v3768 = vpack.c.bf16 %v3748, %v3748
      %v3769 = vpack.c.bf16 %v3749, %v3749
      %v3770 = vpack.c.bf16 %v3750, %v3750
      %v3771 = vpack.c.bf16 %v3751, %v3751
      %v3772 = vpack.c.bf16 %v3752, %v3752
      %v3773 = vpack.c.bf16 %v3753, %v3753
      %v3775 = vshrl.u32 %v3754, 16
      %v3777 = vrot.slane %v3775, 7
      %v3778 = vshll.u32 %v3754, 16
      %v3780 = vor.u32 %v3777, %v3778
      %v3781 = vrot.slane %v3777, 4
      %v3783 = vshrl.u32 %v3755, 16
      %v3785 = vrot.slane %v3783, 7
      %v3786 = vshll.u32 %v3755, 16
      %v3788 = vor.u32 %v3785, %v3786
      %v3789 = vsel %vm549, %v3781, %v3788
      %v3790 = vrot.slane %v3785, 4
      %v3792 = vshrl.u32 %v3756, 16
      %v3794 = vrot.slane %v3792, 7
      %v3795 = vshll.u32 %v3756, 16
      %v3797 = vor.u32 %v3794, %v3795
      %v3798 = vrot.slane %v3794, 4
      %v3800 = vshrl.u32 %v3757, 16
      %v3802 = vrot.slane %v3800, 7
      %v3803 = vshll.u32 %v3757, 16
      %v3805 = vor.u32 %v3802, %v3803
      %v3806 = vsel %vm549, %v3798, %v3805
      %v3807 = vrot.slane %v3802, 4
      %v3809 = vshrl.u32 %v3758, 16
      %v3811 = vrot.slane %v3809, 7
      %v3812 = vshll.u32 %v3758, 16
      %v3814 = vor.u32 %v3811, %v3812
      %v3815 = vrot.slane %v3811, 4
      %v3817 = vshrl.u32 %v3759, 16
      %v3819 = vrot.slane %v3817, 7
      %v3820 = vshll.u32 %v3759, 16
      %v3822 = vor.u32 %v3819, %v3820
      %v3823 = vsel %vm549, %v3815, %v3822
      %v3824 = vrot.slane %v3819, 4
      %v3826 = vshrl.u32 %v3760, 16
      %v3828 = vrot.slane %v3826, 7
      %v3829 = vshll.u32 %v3760, 16
      %v3831 = vor.u32 %v3828, %v3829
      %v3832 = vrot.slane %v3828, 4
      %v3834 = vshrl.u32 %v3761, 16
      %v3836 = vrot.slane %v3834, 7
      %v3837 = vshll.u32 %v3761, 16
      %v3839 = vor.u32 %v3836, %v3837
      %v3840 = vsel %vm549, %v3832, %v3839
      %v3841 = vrot.slane %v3836, 4
      %v3843 = vshrl.u32 %v3762, 16
      %v3845 = vrot.slane %v3843, 7
      %v3846 = vshll.u32 %v3762, 16
      %v3848 = vor.u32 %v3845, %v3846
      %v3849 = vrot.slane %v3845, 4
      %v3851 = vshrl.u32 %v3763, 16
      %v3853 = vrot.slane %v3851, 7
      %v3854 = vshll.u32 %v3763, 16
      %v3856 = vor.u32 %v3853, %v3854
      %v3857 = vsel %vm549, %v3849, %v3856
      %v3858 = vrot.slane %v3853, 4
      %v3860 = vshrl.u32 %v3764, 16
      %v3862 = vrot.slane %v3860, 7
      %v3863 = vshll.u32 %v3764, 16
      %v3865 = vor.u32 %v3862, %v3863
      %v3866 = vrot.slane %v3862, 4
      %v3868 = vshrl.u32 %v3765, 16
      %v3870 = vrot.slane %v3868, 7
      %v3871 = vshll.u32 %v3765, 16
      %v3873 = vor.u32 %v3870, %v3871
      %v3874 = vsel %vm549, %v3866, %v3873
      %v3875 = vrot.slane %v3870, 4
      %v3877 = vshrl.u32 %v3766, 16
      %v3879 = vrot.slane %v3877, 7
      %v3880 = vshll.u32 %v3766, 16
      %v3882 = vor.u32 %v3879, %v3880
      %v3883 = vrot.slane %v3879, 4
      %v3885 = vshrl.u32 %v3767, 16
      %v3887 = vrot.slane %v3885, 7
      %v3888 = vshll.u32 %v3767, 16
      %v3890 = vor.u32 %v3887, %v3888
      %v3891 = vsel %vm549, %v3883, %v3890
      %v3892 = vrot.slane %v3887, 4
      %v3894 = vshrl.u32 %v3768, 16
      %v3896 = vrot.slane %v3894, 7
      %v3897 = vshll.u32 %v3768, 16
      %v3899 = vor.u32 %v3896, %v3897
      %v3900 = vrot.slane %v3896, 4
      %v3902 = vshrl.u32 %v3769, 16
      %v3904 = vrot.slane %v3902, 7
      %v3905 = vshll.u32 %v3769, 16
      %v3907 = vor.u32 %v3904, %v3905
      %v3908 = vsel %vm549, %v3900, %v3907
      %v3909 = vrot.slane %v3904, 4
      %v3911 = vshrl.u32 %v3770, 16
      %v3913 = vrot.slane %v3911, 7
      %v3914 = vshll.u32 %v3770, 16
      %v3916 = vor.u32 %v3913, %v3914
      %v3917 = vrot.slane %v3913, 4
      %v3919 = vshrl.u32 %v3771, 16
      %v3921 = vrot.slane %v3919, 7
      %v3922 = vshll.u32 %v3771, 16
      %v3924 = vor.u32 %v3921, %v3922
      %v3925 = vsel %vm549, %v3917, %v3924
      %v3926 = vrot.slane %v3921, 4
      %v3928 = vshrl.u32 %v3772, 16
      %v3930 = vrot.slane %v3928, 7
      %v3931 = vshll.u32 %v3772, 16
      %v3933 = vor.u32 %v3930, %v3931
      %v3934 = vrot.slane %v3930, 4
      %v3936 = vshrl.u32 %v3773, 16
      %v3938 = vrot.slane %v3936, 7
      %v3939 = vshll.u32 %v3773, 16
      %v3941 = vor.u32 %v3938, %v3939
      %v3942 = vsel %vm549, %v3934, %v3941
      %v3943 = vrot.slane %v3938, 4
      %v3974 = vsel %vm792, %v3780, %v2233
      %3975 = vst [vmem:[%s2048] sm:$0xf] %v3974
      %3976 = vst.msk [vmem:[%s2048 + $0x4] sm:$0xf] %vm796, %v3789
      %v3977 = vld [vmem:[%s2048 + $0x8] sm:$0x1]
      %v3978 = vsel %vm799, %v3790, %v3977
      %3979 = vst [vmem:[%s2048 + $0x8] sm:$0x1] %v3978
      %v3980 = vld [vmem:[%s2048 + $0xc] sm:$0xf]
      %v3981 = vsel %vm792, %v3797, %v3980
      %3982 = vst [vmem:[%s2048 + $0xc] sm:$0xf] %v3981
      %3983 = vst.msk [vmem:[%s2048 + $0x10] sm:$0xf] %vm796, %v3806
      %v3984 = vld [vmem:[%s2048 + $0x14] sm:$0x1]
      %v3985 = vsel %vm799, %v3807, %v3984
      %3986 = vst [vmem:[%s2048 + $0x14] sm:$0x1] %v3985
      %v3987 = vld [vmem:[%s2048 + $0x18] sm:$0xf]
      %v3988 = vsel %vm792, %v3814, %v3987
      %3989 = vst [vmem:[%s2048 + $0x18] sm:$0xf] %v3988
      %3990 = vst.msk [vmem:[%s2048 + $0x1c] sm:$0xf] %vm796, %v3823
      %v3991 = vld [vmem:[%s2048 + $0x20] sm:$0x1]
      %v3992 = vsel %vm799, %v3824, %v3991
      %3993 = vst [vmem:[%s2048 + $0x20] sm:$0x1] %v3992
      %v3994 = vld [vmem:[%s2048 + $0x24] sm:$0xf]
      %v3995 = vsel %vm792, %v3831, %v3994
      %3996 = vst [vmem:[%s2048 + $0x24] sm:$0xf] %v3995
      %3997 = vst.msk [vmem:[%s2048 + $0x28] sm:$0xf] %vm796, %v3840
      %v3998 = vld [vmem:[%s2048 + $0x2c] sm:$0x1]
      %v3999 = vsel %vm799, %v3841, %v3998
      %4000 = vst [vmem:[%s2048 + $0x2c] sm:$0x1] %v3999
      %v4001 = vld [vmem:[%s2048 + $0x30] sm:$0xf]
      %v4002 = vsel %vm792, %v3848, %v4001
      %4003 = vst [vmem:[%s2048 + $0x30] sm:$0xf] %v4002
      %4004 = vst.msk [vmem:[%s2048 + $0x34] sm:$0xf] %vm796, %v3857
      %v4005 = vld [vmem:[%s2048 + $0x38] sm:$0x1]
      %v4006 = vsel %vm799, %v3858, %v4005
      %4007 = vst [vmem:[%s2048 + $0x38] sm:$0x1] %v4006
      %v4008 = vld [vmem:[%s2048 + $0x3c] sm:$0xf]
      %v4009 = vsel %vm792, %v3865, %v4008
      %4010 = vst [vmem:[%s2048 + $0x3c] sm:$0xf] %v4009
      %4011 = vst.msk [vmem:[%s2048 + $0x40] sm:$0xf] %vm796, %v3874
      %v4012 = vld [vmem:[%s2048 + $0x44] sm:$0x1]
      %v4013 = vsel %vm799, %v3875, %v4012
      %4014 = vst [vmem:[%s2048 + $0x44] sm:$0x1] %v4013
      %v4015 = vld [vmem:[%s2048 + $0x48] sm:$0xf]
      %v4016 = vsel %vm792, %v3882, %v4015
      %4017 = vst [vmem:[%s2048 + $0x48] sm:$0xf] %v4016
      %4018 = vst.msk [vmem:[%s2048 + $0x4c] sm:$0xf] %vm796, %v3891
      %v4019 = vld [vmem:[%s2048 + $0x50] sm:$0x1]
      %v4020 = vsel %vm799, %v3892, %v4019
      %4021 = vst [vmem:[%s2048 + $0x50] sm:$0x1] %v4020
      %v4022 = vld [vmem:[%s2048 + $0x54] sm:$0xf]
      %v4023 = vsel %vm792, %v3899, %v4022
      %4024 = vst [vmem:[%s2048 + $0x54] sm:$0xf] %v4023
      %4025 = vst.msk [vmem:[%s2048 + $0x58] sm:$0xf] %vm796, %v3908
      %v4026 = vld [vmem:[%s2048 + $0x5c] sm:$0x1]
      %v4027 = vsel %vm799, %v3909, %v4026
      %4028 = vst [vmem:[%s2048 + $0x5c] sm:$0x1] %v4027
      %v4029 = vld [vmem:[%s2048 + $0x60] sm:$0xf]
      %v4030 = vsel %vm792, %v3916, %v4029
      %4031 = vst [vmem:[%s2048 + $0x60] sm:$0xf] %v4030
      %4032 = vst.msk [vmem:[%s2048 + $0x64] sm:$0xf] %vm796, %v3925
      %v4033 = vld [vmem:[%s2048 + $0x68] sm:$0x1]
      %v4034 = vsel %vm799, %v3926, %v4033
      %4035 = vst [vmem:[%s2048 + $0x68] sm:$0x1] %v4034
      %v4036 = vld [vmem:[%s2048 + $0x6c] sm:$0xf]
      %v4037 = vsel %vm792, %v3933, %v4036
      %4038 = vst [vmem:[%s2048 + $0x6c] sm:$0xf] %v4037
      %4039 = vst.msk [vmem:[%s2048 + $0x70] sm:$0xf] %vm796, %v3942
      %v4040 = vld [vmem:[%s2048 + $0x74] sm:$0x1]
      %v4041 = vsel %vm799, %v3943, %v4040
      %4042 = vst [vmem:[%s2048 + $0x74] sm:$0x1] %v4041
      // Predicated region
      $region57: #{tpu_custom_call.1} parent=47 // pred_check
        %p4043 = pneg %p1223
      $region58: #{tpu_custom_call.1} parent=47 // pred_check_branch
        %4045 = sbr.rel (%p4043) target = $region60
      $region59: #{tpu_custom_call.1} parent=47 // pred_region
        %4046 = vst.msk [vmem:[%s2048] sm:$0xf] %vm796, 0
        %4047 = vst.msk [vmem:[%s2048 + $0x4] sm:$0xf] %vm796, 0
        %vm4048 = vcmask 24576
        %4049 = vst.msk [vmem:[%s2048 + $0x8] sm:$0x1] %vm4048, 0
      $region60: #{tpu_custom_call.1} parent=47 // pred_fallthru
        _
      // Predicated region
      $region61: #{tpu_custom_call.1} parent=47 // pred_check
        %p4050 = pneg %p1241
      $region62: #{tpu_custom_call.1} parent=47 // pred_check_branch
        %4052 = sbr.rel (%p4050) target = $region64
      $region63: #{tpu_custom_call.1} parent=47 // pred_region
        %s4053 = scalar_lea.vmem [#allocation2], 120
        %4054 = vst.msk [vmem:[%s4053] sm:$0xf] %vm796, 0
        %4055 = vst.msk [vmem:[%s4053 + $0x4] sm:$0xf] %vm796, 0
        %vm4056 = vcmask 24576
        %4057 = vst.msk [vmem:[%s4053 + $0x8] sm:$0x1] %vm4056, 0
      $region64: #{tpu_custom_call.1} parent=47 // pred_fallthru
        _
      %v4058 = vld [vmem:[%s2048] sm:$0xf]
      %v4059 = vld [vmem:[%s2048 + $0x4] sm:$0xf]
      %v4060 = vld [vmem:[%s2048 + $0xc] sm:$0xf]
      %v4061 = vld [vmem:[%s2048 + $0x10] sm:$0xf]
      %v4062 = vld [vmem:[%s2048 + $0x18] sm:$0xf]
      %v4063 = vld [vmem:[%s2048 + $0x1c] sm:$0xf]
      %v4064 = vld [vmem:[%s2048 + $0x24] sm:$0xf]
      %v4065 = vld [vmem:[%s2048 + $0x28] sm:$0xf]
      %v4066 = vld [vmem:[%s2048 + $0x30] sm:$0xf]
      %v4067 = vld [vmem:[%s2048 + $0x34] sm:$0xf]
      %v4068 = vld [vmem:[%s2048 + $0x3c] sm:$0xf]
      %v4069 = vld [vmem:[%s2048 + $0x40] sm:$0xf]
      %v4070 = vld [vmem:[%s2048 + $0x48] sm:$0xf]
      %v4071 = vld [vmem:[%s2048 + $0x4c] sm:$0xf]
      %v4072 = vld [vmem:[%s2048 + $0x54] sm:$0xf]
      %v4073 = vld [vmem:[%s2048 + $0x58] sm:$0xf]
      %s4074 = scalar_lea.vmem [#allocation3], 12
      %v4075 = vld [vmem:[%s4074] sm:$0xf]
      %v4076 = vld [vmem:[%s4074 + $0x4] sm:$0xf]
      %v4077 = vld [vmem:[%s4074 + $0xc] sm:$0xf]
      %v4078 = vld [vmem:[%s4074 + $0x10] sm:$0xf]
      %v4079 = vld [vmem:[%s4074 + $0x18] sm:$0xf]
      %v4080 = vld [vmem:[%s4074 + $0x1c] sm:$0xf]
      %v4081 = vld [vmem:[%s4074 + $0x24] sm:$0xf]
      %v4082 = vld [vmem:[%s4074 + $0x28] sm:$0xf]
      %v4083 = vld [vmem:[%s4074 + $0x30] sm:$0xf]
      %v4084 = vld [vmem:[%s4074 + $0x34] sm:$0xf]
      %v4085 = vld [vmem:[%s4074 + $0x3c] sm:$0xf]
      %v4086 = vld [vmem:[%s4074 + $0x40] sm:$0xf]
      %v4087 = vld [vmem:[%s4074 + $0x48] sm:$0xf]
      %v4088 = vld [vmem:[%s4074 + $0x4c] sm:$0xf]
      %v4089 = vld [vmem:[%s4074 + $0x54] sm:$0xf]
      %v4090 = vld [vmem:[%s4074 + $0x58] sm:$0xf]
      %v4091 = vld [vmem:[%s4] sm:$0x3]
      %v4092 = vld [vmem:[%s5] sm:$0xf]
      %v4093 = vld [vmem:[%s5 + $0x4] sm:$0x3]
      %v4110 = vunpack.c.l.b16 %v4075
      %v4111 = vunpack.c.l.b16 %v4076
      %v4112 = vunpack.c.l.b16 %v4077
      %v4113 = vunpack.c.l.b16 %v4078
      %v4114 = vunpack.c.l.b16 %v4079
      %v4115 = vunpack.c.l.b16 %v4080
      %v4116 = vunpack.c.l.b16 %v4081
      %v4117 = vunpack.c.l.b16 %v4082
      %v4118 = vunpack.c.l.b16 %v4083
      %v4119 = vunpack.c.l.b16 %v4084
      %v4120 = vunpack.c.l.b16 %v4085
      %v4121 = vunpack.c.l.b16 %v4086
      %v4122 = vunpack.c.l.b16 %v4087
      %v4123 = vunpack.c.l.b16 %v4088
      %v4124 = vunpack.c.l.b16 %v4089
      %v4125 = vunpack.c.l.b16 %v4090
      %v4126 = vpack.c.b16 %v4111, %v4110
      %v4127 = vpack.c.b16 %v4113, %v4112
      %v4128 = vpack.c.b16 %v4115, %v4114
      %v4129 = vpack.c.b16 %v4117, %v4116
      %v4130 = vpack.c.b16 %v4119, %v4118
      %v4131 = vpack.c.b16 %v4121, %v4120
      %v4132 = vpack.c.b16 %v4123, %v4122
      %v4133 = vpack.c.b16 %v4125, %v4124
      %v4136 = vunpack.c.l.b16 %v4092
      %v4137 = vunpack.c.l.b16 %v4093
      %v4138 = vpack.c.b16 %v4137, %v4136
      %vm4139 = vcmask 97280
      %v4141 = vsel %vm4139, %v4126, 0
      %v4144 = vsel %vm4139, %v4127, 0
      %v4147 = vsel %vm4139, %v4128, 0
      %v4150 = vsel %vm4139, %v4129, 0
      %v4153 = vsel %vm4139, %v4130, 0
      %v4156 = vsel %vm4139, %v4131, 0
      %v4159 = vsel %vm4139, %v4132, 0
      %v4162 = vsel %vm4139, %v4133, 0
      %vm4164 = vcmask 1045504
      %v4166 = vsel %vm4164, %v4138, 0
      %4168 = vmatpush.bf16.msra.mxu0 0
      %4169 = vmatpush.bf16.msra.mxu0 0
      %4170 = vmatpush.bf16.msra.mxu0 0
      %4171 = vmatpush.bf16.msra.mxu0 0
      %4172 = vmatpush.bf16.msra.mxu0 0
      %4173 = vmatpush.bf16.msra.mxu0 0
      %4174 = vmatpush.bf16.msra.mxu0 0
      %4175 = vmatpush.bf16.msra.mxu0 %v4166
      %4176 = vmatmul.bf16.gmra.mxu0 %v4141
      %v4177 = vpop.f32.mrf.mxu0
      %v4178 = vadd.f32 0.0, %v4177
      %v4179 = vpop.f32.mrf.mxu0
      %v4180 = vadd.f32 0.0, %v4179
      %4181 = vmatmul.bf16.gmra.mxu0 %v4144
      %v4182 = vpop.f32.mrf.mxu0
      %v4183 = vadd.f32 0.0, %v4182
      %v4184 = vpop.f32.mrf.mxu0
      %v4185 = vadd.f32 0.0, %v4184
      %4186 = vmatmul.bf16.gmra.mxu0 %v4147
      %v4187 = vpop.f32.mrf.mxu0
      %v4188 = vadd.f32 0.0, %v4187
      %v4189 = vpop.f32.mrf.mxu0
      %v4190 = vadd.f32 0.0, %v4189
      %4191 = vmatmul.bf16.gmra.mxu0 %v4150
      %v4192 = vpop.f32.mrf.mxu0
      %v4193 = vadd.f32 0.0, %v4192
      %v4194 = vpop.f32.mrf.mxu0
      %v4195 = vadd.f32 0.0, %v4194
      %4196 = vmatmul.bf16.gmra.mxu0 %v4153
      %v4197 = vpop.f32.mrf.mxu0
      %v4198 = vadd.f32 0.0, %v4197
      %v4199 = vpop.f32.mrf.mxu0
      %v4200 = vadd.f32 0.0, %v4199
      %4201 = vmatmul.bf16.gmra.mxu0 %v4156
      %v4202 = vpop.f32.mrf.mxu0
      %v4203 = vadd.f32 0.0, %v4202
      %v4204 = vpop.f32.mrf.mxu0
      %v4205 = vadd.f32 0.0, %v4204
      %4206 = vmatmul.bf16.gmra.mxu0 %v4159
      %v4207 = vpop.f32.mrf.mxu0
      %v4208 = vadd.f32 0.0, %v4207
      %v4209 = vpop.f32.mrf.mxu0
      %v4210 = vadd.f32 0.0, %v4209
      %4211 = vmatmul.bf16.gmra.mxu0 %v4162
      %v4212 = vpop.f32.mrf.mxu0
      %v4213 = vadd.f32 0.0, %v4212
      %v4214 = vpop.f32.mrf.mxu0
      %v4215 = vadd.f32 0.0, %v4214
      %4216 = vdwg.mxu0
      %v4233 = vunpack.c.l.b16 %v4058
      %v4234 = vunpack.c.l.b16 %v4059
      %v4235 = vunpack.c.l.b16 %v4060
      %v4236 = vunpack.c.l.b16 %v4061
      %v4237 = vunpack.c.l.b16 %v4062
      %v4238 = vunpack.c.l.b16 %v4063
      %v4239 = vunpack.c.l.b16 %v4064
      %v4240 = vunpack.c.l.b16 %v4065
      %v4241 = vunpack.c.l.b16 %v4066
      %v4242 = vunpack.c.l.b16 %v4067
      %v4243 = vunpack.c.l.b16 %v4068
      %v4244 = vunpack.c.l.b16 %v4069
      %v4245 = vunpack.c.l.b16 %v4070
      %v4246 = vunpack.c.l.b16 %v4071
      %v4247 = vunpack.c.l.b16 %v4072
      %v4248 = vunpack.c.l.b16 %v4073
      %v4249 = vpack.c.b16 %v4234, %v4233
      %v4250 = vpack.c.b16 %v4236, %v4235
      %v4251 = vpack.c.b16 %v4238, %v4237
      %v4252 = vpack.c.b16 %v4240, %v4239
      %v4253 = vpack.c.b16 %v4242, %v4241
      %v4254 = vpack.c.b16 %v4244, %v4243
      %v4255 = vpack.c.b16 %v4246, %v4245
      %v4256 = vpack.c.b16 %v4248, %v4247
      %v4258 = vsel %vm396, %v4249, 0
      %v4261 = vsel %vm396, %v4250, 0
      %v4264 = vsel %vm396, %v4251, 0
      %v4267 = vsel %vm396, %v4252, 0
      %v4270 = vsel %vm396, %v4253, 0
      %v4273 = vsel %vm396, %v4254, 0
      %v4276 = vsel %vm396, %v4255, 0
      %v4279 = vsel %vm396, %v4256, 0
      %v4282 = vsel %vm433, %v4091, 0
      %4284 = vmatpush.bf16.msra.mxu0 0
      %4285 = vmatpush.bf16.msra.mxu0 0
      %4286 = vmatpush.bf16.msra.mxu0 0
      %4287 = vmatpush.bf16.msra.mxu0 0
      %4288 = vmatpush.bf16.msra.mxu0 0
      %4289 = vmatpush.bf16.msra.mxu0 0
      %4290 = vmatpush.bf16.msra.mxu0 0
      %4291 = vmatpush.bf16.msra.mxu0 %v4282
      %4292 = vmatmul.bf16.gmra.mxu0 %v4258
      %v4293 = vpop.f32.mrf.mxu0
      %v4294 = vadd.f32 %v4178, %v4293
      %v4295 = vpop.f32.mrf.mxu0
      %v4296 = vadd.f32 %v4180, %v4295
      %4297 = vmatmul.bf16.gmra.mxu0 %v4261
      %v4298 = vpop.f32.mrf.mxu0
      %v4299 = vadd.f32 %v4183, %v4298
      %v4300 = vpop.f32.mrf.mxu0
      %v4301 = vadd.f32 %v4185, %v4300
      %4302 = vmatmul.bf16.gmra.mxu0 %v4264
      %v4303 = vpop.f32.mrf.mxu0
      %v4304 = vadd.f32 %v4188, %v4303
      %v4305 = vpop.f32.mrf.mxu0
      %v4306 = vadd.f32 %v4190, %v4305
      %4307 = vmatmul.bf16.gmra.mxu0 %v4267
      %v4308 = vpop.f32.mrf.mxu0
      %v4309 = vadd.f32 %v4193, %v4308
      %v4310 = vpop.f32.mrf.mxu0
      %v4311 = vadd.f32 %v4195, %v4310
      %4312 = vmatmul.bf16.gmra.mxu0 %v4270
      %v4313 = vpop.f32.mrf.mxu0
      %v4314 = vadd.f32 %v4198, %v4313
      %v4315 = vpop.f32.mrf.mxu0
      %v4316 = vadd.f32 %v4200, %v4315
      %4317 = vmatmul.bf16.gmra.mxu0 %v4273
      %v4318 = vpop.f32.mrf.mxu0
      %v4319 = vadd.f32 %v4203, %v4318
      %v4320 = vpop.f32.mrf.mxu0
      %v4321 = vadd.f32 %v4205, %v4320
      %4322 = vmatmul.bf16.gmra.mxu0 %v4276
      %v4323 = vpop.f32.mrf.mxu0
      %v4324 = vadd.f32 %v4208, %v4323
      %v4325 = vpop.f32.mrf.mxu0
      %v4326 = vadd.f32 %v4210, %v4325
      %4327 = vmatmul.bf16.gmra.mxu0 %v4279
      %v4328 = vpop.f32.mrf.mxu0
      %v4329 = vadd.f32 %v4213, %v4328
      %v4330 = vpop.f32.mrf.mxu0
      %v4331 = vadd.f32 %v4215, %v4330
      %4332 = vdwg.mxu0
      %v4333 = vld [vmem:[%s2048] sm:$0xf]
      %v4334 = vld [vmem:[%s2048 + $0x4] sm:$0xf]
      %v4335 = vld [vmem:[%s2048 + $0x8] sm:$0x1]
      %v4336 = vld [vmem:[%s2048 + $0xc] sm:$0xf]
      %v4337 = vld [vmem:[%s2048 + $0x10] sm:$0xf]
      %v4338 = vld [vmem:[%s2048 + $0x14] sm:$0x1]
      %v4339 = vld [vmem:[%s2048 + $0x18] sm:$0xf]
      %v4340 = vld [vmem:[%s2048 + $0x1c] sm:$0xf]
      %v4341 = vld [vmem:[%s2048 + $0x20] sm:$0x1]
      %v4342 = vld [vmem:[%s2048 + $0x24] sm:$0xf]
      %v4343 = vld [vmem:[%s2048 + $0x28] sm:$0xf]
      %v4344 = vld [vmem:[%s2048 + $0x2c] sm:$0x1]
      %v4345 = vld [vmem:[%s2048 + $0x30] sm:$0xf]
      %v4346 = vld [vmem:[%s2048 + $0x34] sm:$0xf]
      %v4347 = vld [vmem:[%s2048 + $0x38] sm:$0x1]
      %v4348 = vld [vmem:[%s2048 + $0x3c] sm:$0xf]
      %v4349 = vld [vmem:[%s2048 + $0x40] sm:$0xf]
      %v4350 = vld [vmem:[%s2048 + $0x44] sm:$0x1]
      %v4351 = vld [vmem:[%s2048 + $0x48] sm:$0xf]
      %v4352 = vld [vmem:[%s2048 + $0x4c] sm:$0xf]
      %v4353 = vld [vmem:[%s2048 + $0x50] sm:$0x1]
      %v4354 = vld [vmem:[%s2048 + $0x54] sm:$0xf]
      %v4355 = vld [vmem:[%s2048 + $0x58] sm:$0xf]
      %v4356 = vld [vmem:[%s2048 + $0x5c] sm:$0x1]
      %v4358 = vshrl.u32 %v4333, 16
      %v4360 = vrot.slane %v4358, 4
      %v4361 = vshll.u32 %v4333, 16
      %v4363 = vrot.slane %v4361, 5
      %v4364 = vor.u32 %v4360, %v4363
      %v4365 = vrot.slane %v4364, 4
      %v4367 = vshll.u32 %v4334, 16
      %v4369 = vrot.slane %v4367, 5
      %v4370 = vsel %vm1294, %v4365, %v4369
      %v4371 = vshrl.u32 %v4334, 16
      %v4373 = vrot.slane %v4371, 4
      %v4374 = vor.u32 %v4373, %v4369
      %v4375 = vrot.slane %v4374, 4
      %v4377 = vshll.u32 %v4335, 16
      %v4379 = vrot.slane %v4377, 5
      %v4380 = vsel %vm1294, %v4375, %v4379
      %v4382 = vshrl.u32 %v4336, 16
      %v4384 = vrot.slane %v4382, 4
      %v4385 = vshll.u32 %v4336, 16
      %v4387 = vrot.slane %v4385, 5
      %v4388 = vor.u32 %v4384, %v4387
      %v4389 = vrot.slane %v4388, 4
      %v4391 = vshll.u32 %v4337, 16
      %v4393 = vrot.slane %v4391, 5
      %v4394 = vsel %vm1294, %v4389, %v4393
      %v4395 = vshrl.u32 %v4337, 16
      %v4397 = vrot.slane %v4395, 4
      %v4398 = vor.u32 %v4397, %v4393
      %v4399 = vrot.slane %v4398, 4
      %v4401 = vshll.u32 %v4338, 16
      %v4403 = vrot.slane %v4401, 5
      %v4404 = vsel %vm1294, %v4399, %v4403
      %v4406 = vshrl.u32 %v4339, 16
      %v4408 = vrot.slane %v4406, 4
      %v4409 = vshll.u32 %v4339, 16
      %v4411 = vrot.slane %v4409, 5
      %v4412 = vor.u32 %v4408, %v4411
      %v4413 = vrot.slane %v4412, 4
      %v4415 = vshll.u32 %v4340, 16
      %v4417 = vrot.slane %v4415, 5
      %v4418 = vsel %vm1294, %v4413, %v4417
      %v4419 = vshrl.u32 %v4340, 16
      %v4421 = vrot.slane %v4419, 4
      %v4422 = vor.u32 %v4421, %v4417
      %v4423 = vrot.slane %v4422, 4
      %v4425 = vshll.u32 %v4341, 16
      %v4427 = vrot.slane %v4425, 5
      %v4428 = vsel %vm1294, %v4423, %v4427
      %v4430 = vshrl.u32 %v4342, 16
      %v4432 = vrot.slane %v4430, 4
      %v4433 = vshll.u32 %v4342, 16
      %v4435 = vrot.slane %v4433, 5
      %v4436 = vor.u32 %v4432, %v4435
      %v4437 = vrot.slane %v4436, 4
      %v4439 = vshll.u32 %v4343, 16
      %v4441 = vrot.slane %v4439, 5
      %v4442 = vsel %vm1294, %v4437, %v4441
      %v4443 = vshrl.u32 %v4343, 16
      %v4445 = vrot.slane %v4443, 4
      %v4446 = vor.u32 %v4445, %v4441
      %v4447 = vrot.slane %v4446, 4
      %v4449 = vshll.u32 %v4344, 16
      %v4451 = vrot.slane %v4449, 5
      %v4452 = vsel %vm1294, %v4447, %v4451
      %v4454 = vshrl.u32 %v4345, 16
      %v4456 = vrot.slane %v4454, 4
      %v4457 = vshll.u32 %v4345, 16
      %v4459 = vrot.slane %v4457, 5
      %v4460 = vor.u32 %v4456, %v4459
      %v4461 = vrot.slane %v4460, 4
      %v4463 = vshll.u32 %v4346, 16
      %v4465 = vrot.slane %v4463, 5
      %v4466 = vsel %vm1294, %v4461, %v4465
      %v4467 = vshrl.u32 %v4346, 16
      %v4469 = vrot.slane %v4467, 4
      %v4470 = vor.u32 %v4469, %v4465
      %v4471 = vrot.slane %v4470, 4
      %v4473 = vshll.u32 %v4347, 16
      %v4475 = vrot.slane %v4473, 5
      %v4476 = vsel %vm1294, %v4471, %v4475
      %v4478 = vshrl.u32 %v4348, 16
      %v4480 = vrot.slane %v4478, 4
      %v4481 = vshll.u32 %v4348, 16
      %v4483 = vrot.slane %v4481, 5
      %v4484 = vor.u32 %v4480, %v4483
      %v4485 = vrot.slane %v4484, 4
      %v4487 = vshll.u32 %v4349, 16
      %v4489 = vrot.slane %v4487, 5
      %v4490 = vsel %vm1294, %v4485, %v4489
      %v4491 = vshrl.u32 %v4349, 16
      %v4493 = vrot.slane %v4491, 4
      %v4494 = vor.u32 %v4493, %v4489
      %v4495 = vrot.slane %v4494, 4
      %v4497 = vshll.u32 %v4350, 16
      %v4499 = vrot.slane %v4497, 5
      %v4500 = vsel %vm1294, %v4495, %v4499
      %v4502 = vshrl.u32 %v4351, 16
      %v4504 = vrot.slane %v4502, 4
      %v4505 = vshll.u32 %v4351, 16
      %v4507 = vrot.slane %v4505, 5
      %v4508 = vor.u32 %v4504, %v4507
      %v4509 = vrot.slane %v4508, 4
      %v4511 = vshll.u32 %v4352, 16
      %v4513 = vrot.slane %v4511, 5
      %v4514 = vsel %vm1294, %v4509, %v4513
      %v4515 = vshrl.u32 %v4352, 16
      %v4517 = vrot.slane %v4515, 4
      %v4518 = vor.u32 %v4517, %v4513
      %v4519 = vrot.slane %v4518, 4
      %v4521 = vshll.u32 %v4353, 16
      %v4523 = vrot.slane %v4521, 5
      %v4524 = vsel %vm1294, %v4519, %v4523
      %v4526 = vshrl.u32 %v4354, 16
      %v4528 = vrot.slane %v4526, 4
      %v4529 = vshll.u32 %v4354, 16
      %v4531 = vrot.slane %v4529, 5
      %v4532 = vor.u32 %v4528, %v4531
      %v4533 = vrot.slane %v4532, 4
      %v4535 = vshll.u32 %v4355, 16
      %v4537 = vrot.slane %v4535, 5
      %v4538 = vsel %vm1294, %v4533, %v4537
      %v4539 = vshrl.u32 %v4355, 16
      %v4541 = vrot.slane %v4539, 4
      %v4542 = vor.u32 %v4541, %v4537
      %v4543 = vrot.slane %v4542, 4
      %v4545 = vshll.u32 %v4356, 16
      %v4547 = vrot.slane %v4545, 5
      %v4548 = vsel %vm1294, %v4543, %v4547
      %v4549 = vld [vmem:[%s4074] sm:$0xf]
      %v4550 = vld [vmem:[%s4074 + $0x4] sm:$0xf]
      %v4551 = vld [vmem:[%s4074 + $0x8] sm:$0x1]
      %v4552 = vld [vmem:[%s4074 + $0xc] sm:$0xf]
      %v4553 = vld [vmem:[%s4074 + $0x10] sm:$0xf]
      %v4554 = vld [vmem:[%s4074 + $0x14] sm:$0x1]
      %v4555 = vld [vmem:[%s4074 + $0x18] sm:$0xf]
      %v4556 = vld [vmem:[%s4074 + $0x1c] sm:$0xf]
      %v4557 = vld [vmem:[%s4074 + $0x20] sm:$0x1]
      %v4558 = vld [vmem:[%s4074 + $0x24] sm:$0xf]
      %v4559 = vld [vmem:[%s4074 + $0x28] sm:$0xf]
      %v4560 = vld [vmem:[%s4074 + $0x2c] sm:$0x1]
      %v4561 = vld [vmem:[%s4074 + $0x30] sm:$0xf]
      %v4562 = vld [vmem:[%s4074 + $0x34] sm:$0xf]
      %v4563 = vld [vmem:[%s4074 + $0x38] sm:$0x1]
      %v4564 = vld [vmem:[%s4074 + $0x3c] sm:$0xf]
      %v4565 = vld [vmem:[%s4074 + $0x40] sm:$0xf]
      %v4566 = vld [vmem:[%s4074 + $0x44] sm:$0x1]
      %v4567 = vld [vmem:[%s4074 + $0x48] sm:$0xf]
      %v4568 = vld [vmem:[%s4074 + $0x4c] sm:$0xf]
      %v4569 = vld [vmem:[%s4074 + $0x50] sm:$0x1]
      %v4570 = vld [vmem:[%s4074 + $0x54] sm:$0xf]
      %v4571 = vld [vmem:[%s4074 + $0x58] sm:$0xf]
      %v4572 = vld [vmem:[%s4074 + $0x5c] sm:$0x1]
      %v4574 = vshrl.u32 %v4549, 16
      %v4576 = vrot.slane %v4574, 4
      %v4577 = vshll.u32 %v4549, 16
      %v4579 = vrot.slane %v4577, 5
      %v4580 = vor.u32 %v4576, %v4579
      %v4581 = vrot.slane %v4580, 4
      %v4583 = vshll.u32 %v4550, 16
      %v4585 = vrot.slane %v4583, 5
      %v4586 = vsel %vm1294, %v4581, %v4585
      %v4587 = vshrl.u32 %v4550, 16
      %v4589 = vrot.slane %v4587, 4
      %v4590 = vor.u32 %v4589, %v4585
      %v4591 = vrot.slane %v4590, 4
      %v4593 = vshll.u32 %v4551, 16
      %v4595 = vrot.slane %v4593, 5
      %v4596 = vsel %vm1294, %v4591, %v4595
      %v4598 = vshrl.u32 %v4552, 16
      %v4600 = vrot.slane %v4598, 4
      %v4601 = vshll.u32 %v4552, 16
      %v4603 = vrot.slane %v4601, 5
      %v4604 = vor.u32 %v4600, %v4603
      %v4605 = vrot.slane %v4604, 4
      %v4607 = vshll.u32 %v4553, 16
      %v4609 = vrot.slane %v4607, 5
      %v4610 = vsel %vm1294, %v4605, %v4609
      %v4611 = vshrl.u32 %v4553, 16
      %v4613 = vrot.slane %v4611, 4
      %v4614 = vor.u32 %v4613, %v4609
      %v4615 = vrot.slane %v4614, 4
      %v4617 = vshll.u32 %v4554, 16
      %v4619 = vrot.slane %v4617, 5
      %v4620 = vsel %vm1294, %v4615, %v4619
      %v4622 = vshrl.u32 %v4555, 16
      %v4624 = vrot.slane %v4622, 4
      %v4625 = vshll.u32 %v4555, 16
      %v4627 = vrot.slane %v4625, 5
      %v4628 = vor.u32 %v4624, %v4627
      %v4629 = vrot.slane %v4628, 4
      %v4631 = vshll.u32 %v4556, 16
      %v4633 = vrot.slane %v4631, 5
      %v4634 = vsel %vm1294, %v4629, %v4633
      %v4635 = vshrl.u32 %v4556, 16
      %v4637 = vrot.slane %v4635, 4
      %v4638 = vor.u32 %v4637, %v4633
      %v4639 = vrot.slane %v4638, 4
      %v4641 = vshll.u32 %v4557, 16
      %v4643 = vrot.slane %v4641, 5
      %v4644 = vsel %vm1294, %v4639, %v4643
      %v4646 = vshrl.u32 %v4558, 16
      %v4648 = vrot.slane %v4646, 4
      %v4649 = vshll.u32 %v4558, 16
      %v4651 = vrot.slane %v4649, 5
      %v4652 = vor.u32 %v4648, %v4651
      %v4653 = vrot.slane %v4652, 4
      %v4655 = vshll.u32 %v4559, 16
      %v4657 = vrot.slane %v4655, 5
      %v4658 = vsel %vm1294, %v4653, %v4657
      %v4659 = vshrl.u32 %v4559, 16
      %v4661 = vrot.slane %v4659, 4
      %v4662 = vor.u32 %v4661, %v4657
      %v4663 = vrot.slane %v4662, 4
      %v4665 = vshll.u32 %v4560, 16
      %v4667 = vrot.slane %v4665, 5
      %v4668 = vsel %vm1294, %v4663, %v4667
      %v4670 = vshrl.u32 %v4561, 16
      %v4672 = vrot.slane %v4670, 4
      %v4673 = vshll.u32 %v4561, 16
      %v4675 = vrot.slane %v4673, 5
      %v4676 = vor.u32 %v4672, %v4675
      %v4677 = vrot.slane %v4676, 4
      %v4679 = vshll.u32 %v4562, 16
      %v4681 = vrot.slane %v4679, 5
      %v4682 = vsel %vm1294, %v4677, %v4681
      %v4683 = vshrl.u32 %v4562, 16
      %v4685 = vrot.slane %v4683, 4
      %v4686 = vor.u32 %v4685, %v4681
      %v4687 = vrot.slane %v4686, 4
      %v4689 = vshll.u32 %v4563, 16
      %v4691 = vrot.slane %v4689, 5
      %v4692 = vsel %vm1294, %v4687, %v4691
      %v4694 = vshrl.u32 %v4564, 16
      %v4696 = vrot.slane %v4694, 4
      %v4697 = vshll.u32 %v4564, 16
      %v4699 = vrot.slane %v4697, 5
      %v4700 = vor.u32 %v4696, %v4699
      %v4701 = vrot.slane %v4700, 4
      %v4703 = vshll.u32 %v4565, 16
      %v4705 = vrot.slane %v4703, 5
      %v4706 = vsel %vm1294, %v4701, %v4705
      %v4707 = vshrl.u32 %v4565, 16
      %v4709 = vrot.slane %v4707, 4
      %v4710 = vor.u32 %v4709, %v4705
      %v4711 = vrot.slane %v4710, 4
      %v4713 = vshll.u32 %v4566, 16
      %v4715 = vrot.slane %v4713, 5
      %v4716 = vsel %vm1294, %v4711, %v4715
      %v4718 = vshrl.u32 %v4567, 16
      %v4720 = vrot.slane %v4718, 4
      %v4721 = vshll.u32 %v4567, 16
      %v4723 = vrot.slane %v4721, 5
      %v4724 = vor.u32 %v4720, %v4723
      %v4725 = vrot.slane %v4724, 4
      %v4727 = vshll.u32 %v4568, 16
      %v4729 = vrot.slane %v4727, 5
      %v4730 = vsel %vm1294, %v4725, %v4729
      %v4731 = vshrl.u32 %v4568, 16
      %v4733 = vrot.slane %v4731, 4
      %v4734 = vor.u32 %v4733, %v4729
      %v4735 = vrot.slane %v4734, 4
      %v4737 = vshll.u32 %v4569, 16
      %v4739 = vrot.slane %v4737, 5
      %v4740 = vsel %vm1294, %v4735, %v4739
      %v4742 = vshrl.u32 %v4570, 16
      %v4744 = vrot.slane %v4742, 4
      %v4745 = vshll.u32 %v4570, 16
      %v4747 = vrot.slane %v4745, 5
      %v4748 = vor.u32 %v4744, %v4747
      %v4749 = vrot.slane %v4748, 4
      %v4751 = vshll.u32 %v4571, 16
      %v4753 = vrot.slane %v4751, 5
      %v4754 = vsel %vm1294, %v4749, %v4753
      %v4755 = vshrl.u32 %v4571, 16
      %v4757 = vrot.slane %v4755, 4
      %v4758 = vor.u32 %v4757, %v4753
      %v4759 = vrot.slane %v4758, 4
      %v4761 = vshll.u32 %v4572, 16
      %v4763 = vrot.slane %v4761, 5
      %v4764 = vsel %vm1294, %v4759, %v4763
      %s4765 = scalar_lea.vmem %s4, 2
      %v4766 = vld [vmem:[%s4765] sm:$0x3]
      %v4767 = vunpack.c.l.b16 %v4370
      %v4768 = vunpack.c.l.b16 %v4380
      %v4769 = vunpack.c.l.b16 %v4394
      %v4770 = vunpack.c.l.b16 %v4404
      %v4771 = vunpack.c.l.b16 %v4418
      %v4772 = vunpack.c.l.b16 %v4428
      %v4773 = vunpack.c.l.b16 %v4442
      %v4774 = vunpack.c.l.b16 %v4452
      %v4775 = vunpack.c.l.b16 %v4466
      %v4776 = vunpack.c.l.b16 %v4476
      %v4777 = vunpack.c.l.b16 %v4490
      %v4778 = vunpack.c.l.b16 %v4500
      %v4779 = vunpack.c.l.b16 %v4514
      %v4780 = vunpack.c.l.b16 %v4524
      %v4781 = vunpack.c.l.b16 %v4538
      %v4782 = vunpack.c.l.b16 %v4548
      %v4783 = vpack.c.b16 %v4768, %v4767
      %v4784 = vpack.c.b16 %v4770, %v4769
      %v4785 = vpack.c.b16 %v4772, %v4771
      %v4786 = vpack.c.b16 %v4774, %v4773
      %v4787 = vpack.c.b16 %v4776, %v4775
      %v4788 = vpack.c.b16 %v4778, %v4777
      %v4789 = vpack.c.b16 %v4780, %v4779
      %v4790 = vpack.c.b16 %v4782, %v4781
      %v4792 = vsel %vm396, %v4783, 0
      %v4795 = vsel %vm396, %v4784, 0
      %v4798 = vsel %vm396, %v4785, 0
      %v4801 = vsel %vm396, %v4786, 0
      %v4804 = vsel %vm396, %v4787, 0
      %v4807 = vsel %vm396, %v4788, 0
      %v4810 = vsel %vm396, %v4789, 0
      %v4813 = vsel %vm396, %v4790, 0
      %v4816 = vsel %vm433, %v4766, 0
      %4818 = vmatpush.bf16.msra.mxu0 0
      %4819 = vmatpush.bf16.msra.mxu0 0
      %4820 = vmatpush.bf16.msra.mxu0 0
      %4821 = vmatpush.bf16.msra.mxu0 0
      %4822 = vmatpush.bf16.msra.mxu0 0
      %4823 = vmatpush.bf16.msra.mxu0 0
      %4824 = vmatpush.bf16.msra.mxu0 0
      %4825 = vmatpush.bf16.msra.mxu0 %v4816
      %4826 = vmatmul.bf16.gmra.mxu0 %v4792
      %v4827 = vpop.f32.mrf.mxu0
      %v4828 = vadd.f32 0.0, %v4827
      %v4829 = vpop.f32.mrf.mxu0
      %v4830 = vadd.f32 0.0, %v4829
      %4831 = vmatmul.bf16.gmra.mxu0 %v4795
      %v4832 = vpop.f32.mrf.mxu0
      %v4833 = vadd.f32 0.0, %v4832
      %v4834 = vpop.f32.mrf.mxu0
      %v4835 = vadd.f32 0.0, %v4834
      %4836 = vmatmul.bf16.gmra.mxu0 %v4798
      %v4837 = vpop.f32.mrf.mxu0
      %v4838 = vadd.f32 0.0, %v4837
      %v4839 = vpop.f32.mrf.mxu0
      %v4840 = vadd.f32 0.0, %v4839
      %4841 = vmatmul.bf16.gmra.mxu0 %v4801
      %v4842 = vpop.f32.mrf.mxu0
      %v4843 = vadd.f32 0.0, %v4842
      %v4844 = vpop.f32.mrf.mxu0
      %v4845 = vadd.f32 0.0, %v4844
      %4846 = vmatmul.bf16.gmra.mxu0 %v4804
      %v4847 = vpop.f32.mrf.mxu0
      %v4848 = vadd.f32 0.0, %v4847
      %v4849 = vpop.f32.mrf.mxu0
      %v4850 = vadd.f32 0.0, %v4849
      %4851 = vmatmul.bf16.gmra.mxu0 %v4807
      %v4852 = vpop.f32.mrf.mxu0
      %v4853 = vadd.f32 0.0, %v4852
      %v4854 = vpop.f32.mrf.mxu0
      %v4855 = vadd.f32 0.0, %v4854
      %4856 = vmatmul.bf16.gmra.mxu0 %v4810
      %v4857 = vpop.f32.mrf.mxu0
      %v4858 = vadd.f32 0.0, %v4857
      %v4859 = vpop.f32.mrf.mxu0
      %v4860 = vadd.f32 0.0, %v4859
      %4861 = vmatmul.bf16.gmra.mxu0 %v4813
      %v4862 = vpop.f32.mrf.mxu0
      %v4863 = vadd.f32 0.0, %v4862
      %v4864 = vpop.f32.mrf.mxu0
      %v4865 = vadd.f32 0.0, %v4864
      %4866 = vdwg.mxu0
      %v4867 = vadd.f32 %v4294, %v4828
      %v4868 = vadd.f32 %v4296, %v4830
      %v4869 = vadd.f32 %v4299, %v4833
      %v4870 = vadd.f32 %v4301, %v4835
      %v4871 = vadd.f32 %v4304, %v4838
      %v4872 = vadd.f32 %v4306, %v4840
      %v4873 = vadd.f32 %v4309, %v4843
      %v4874 = vadd.f32 %v4311, %v4845
      %v4875 = vadd.f32 %v4314, %v4848
      %v4876 = vadd.f32 %v4316, %v4850
      %v4877 = vadd.f32 %v4319, %v4853
      %v4878 = vadd.f32 %v4321, %v4855
      %v4879 = vadd.f32 %v4324, %v4858
      %v4880 = vadd.f32 %v4326, %v4860
      %v4881 = vadd.f32 %v4329, %v4863
      %v4882 = vadd.f32 %v4331, %v4865
      %s4883 = scalar_lea.vmem %s5, 8
      %v4884 = vld [vmem:[%s4883] sm:$0xf]
      %v4885 = vld [vmem:[%s4883 + $0x4] sm:$0x3]
      %v4886 = vunpack.c.l.b16 %v4586
      %v4887 = vunpack.c.l.b16 %v4596
      %v4888 = vunpack.c.l.b16 %v4610
      %v4889 = vunpack.c.l.b16 %v4620
      %v4890 = vunpack.c.l.b16 %v4634
      %v4891 = vunpack.c.l.b16 %v4644
      %v4892 = vunpack.c.l.b16 %v4658
      %v4893 = vunpack.c.l.b16 %v4668
      %v4894 = vunpack.c.l.b16 %v4682
      %v4895 = vunpack.c.l.b16 %v4692
      %v4896 = vunpack.c.l.b16 %v4706
      %v4897 = vunpack.c.l.b16 %v4716
      %v4898 = vunpack.c.l.b16 %v4730
      %v4899 = vunpack.c.l.b16 %v4740
      %v4900 = vunpack.c.l.b16 %v4754
      %v4901 = vunpack.c.l.b16 %v4764
      %v4902 = vpack.c.b16 %v4887, %v4886
      %v4903 = vpack.c.b16 %v4889, %v4888
      %v4904 = vpack.c.b16 %v4891, %v4890
      %v4905 = vpack.c.b16 %v4893, %v4892
      %v4906 = vpack.c.b16 %v4895, %v4894
      %v4907 = vpack.c.b16 %v4897, %v4896
      %v4908 = vpack.c.b16 %v4899, %v4898
      %v4909 = vpack.c.b16 %v4901, %v4900
      %v4912 = vunpack.c.l.b16 %v4884
      %v4913 = vunpack.c.l.b16 %v4885
      %v4914 = vpack.c.b16 %v4913, %v4912
      %v4916 = vsel %vm4139, %v4902, 0
      %v4919 = vsel %vm4139, %v4903, 0
      %v4922 = vsel %vm4139, %v4904, 0
      %v4925 = vsel %vm4139, %v4905, 0
      %v4928 = vsel %vm4139, %v4906, 0
      %v4931 = vsel %vm4139, %v4907, 0
      %v4934 = vsel %vm4139, %v4908, 0
      %v4937 = vsel %vm4139, %v4909, 0
      %v4940 = vsel %vm4164, %v4914, 0
      %4942 = vmatpush.bf16.msra.mxu0 0
      %4943 = vmatpush.bf16.msra.mxu0 0
      %4944 = vmatpush.bf16.msra.mxu0 0
      %4945 = vmatpush.bf16.msra.mxu0 0
      %4946 = vmatpush.bf16.msra.mxu0 0
      %4947 = vmatpush.bf16.msra.mxu0 0
      %4948 = vmatpush.bf16.msra.mxu0 0
      %4949 = vmatpush.bf16.msra.mxu0 %v4940
      %4950 = vmatmul.bf16.gmra.mxu0 %v4916
      %v4951 = vpop.f32.mrf.mxu0
      %v4952 = vadd.f32 0.0, %v4951
      %v4953 = vpop.f32.mrf.mxu0
      %v4954 = vadd.f32 0.0, %v4953
      %4955 = vmatmul.bf16.gmra.mxu0 %v4919
      %v4956 = vpop.f32.mrf.mxu0
      %v4957 = vadd.f32 0.0, %v4956
      %v4958 = vpop.f32.mrf.mxu0
      %v4959 = vadd.f32 0.0, %v4958
      %4960 = vmatmul.bf16.gmra.mxu0 %v4922
      %v4961 = vpop.f32.mrf.mxu0
      %v4962 = vadd.f32 0.0, %v4961
      %v4963 = vpop.f32.mrf.mxu0
      %v4964 = vadd.f32 0.0, %v4963
      %4965 = vmatmul.bf16.gmra.mxu0 %v4925
      %v4966 = vpop.f32.mrf.mxu0
      %v4967 = vadd.f32 0.0, %v4966
      %v4968 = vpop.f32.mrf.mxu0
      %v4969 = vadd.f32 0.0, %v4968
      %4970 = vmatmul.bf16.gmra.mxu0 %v4928
      %v4971 = vpop.f32.mrf.mxu0
      %v4972 = vadd.f32 0.0, %v4971
      %v4973 = vpop.f32.mrf.mxu0
      %v4974 = vadd.f32 0.0, %v4973
      %4975 = vmatmul.bf16.gmra.mxu0 %v4931
      %v4976 = vpop.f32.mrf.mxu0
      %v4977 = vadd.f32 0.0, %v4976
      %v4978 = vpop.f32.mrf.mxu0
      %v4979 = vadd.f32 0.0, %v4978
      %4980 = vmatmul.bf16.gmra.mxu0 %v4934
      %v4981 = vpop.f32.mrf.mxu0
      %v4982 = vadd.f32 0.0, %v4981
      %v4983 = vpop.f32.mrf.mxu0
      %v4984 = vadd.f32 0.0, %v4983
      %4985 = vmatmul.bf16.gmra.mxu0 %v4937
      %v4986 = vpop.f32.mrf.mxu0
      %v4987 = vadd.f32 0.0, %v4986
      %v4988 = vpop.f32.mrf.mxu0
      %v4989 = vadd.f32 0.0, %v4988
      %4990 = vdwg.mxu0
      %v4991 = vadd.f32 %v4867, %v4952
      %v4992 = vadd.f32 %v4868, %v4954
      %v4993 = vadd.f32 %v4869, %v4957
      %v4994 = vadd.f32 %v4870, %v4959
      %v4995 = vadd.f32 %v4871, %v4962
      %v4996 = vadd.f32 %v4872, %v4964
      %v4997 = vadd.f32 %v4873, %v4967
      %v4998 = vadd.f32 %v4874, %v4969
      %v4999 = vadd.f32 %v4875, %v4972
      %v5000 = vadd.f32 %v4876, %v4974
      %v5001 = vadd.f32 %v4877, %v4977
      %v5002 = vadd.f32 %v4878, %v4979
      %v5003 = vadd.f32 %v4879, %v4982
      %v5004 = vadd.f32 %v4880, %v4984
      %v5005 = vadd.f32 %v4881, %v4987
      %v5006 = vadd.f32 %v4882, %v4989
      %v5007 = vld [vmem:[%s2048] sm:$0xe]
      %v5008 = vld [vmem:[%s2048 + $0xc] sm:$0xe]
      %v5009 = vld [vmem:[%s2048 + $0x18] sm:$0xe]
      %v5010 = vld [vmem:[%s2048 + $0x24] sm:$0xe]
      %v5011 = vld [vmem:[%s2048 + $0x30] sm:$0xe]
      %v5012 = vld [vmem:[%s2048 + $0x3c] sm:$0xe]
      %v5013 = vld [vmem:[%s2048 + $0x48] sm:$0xe]
      %v5014 = vld [vmem:[%s2048 + $0x54] sm:$0xe]
      %v5039 = vrot.slane %v5007, 5
      %v5040 = vrot.slane %v5039, 4
      %v5041 = vrot.slane %v4334, 5
      %v5042 = vsel %vm1833, %v5040, %v5041
      %v5043 = vrot.slane %v5041, 4
      %v5044 = vrot.slane %v4335, 5
      %v5045 = vsel %vm1833, %v5043, %v5044
      %v5046 = vrot.slane %v5008, 5
      %v5047 = vrot.slane %v5046, 4
      %v5048 = vrot.slane %v4337, 5
      %v5049 = vsel %vm1833, %v5047, %v5048
      %v5050 = vrot.slane %v5048, 4
      %v5051 = vrot.slane %v4338, 5
      %v5052 = vsel %vm1833, %v5050, %v5051
      %v5053 = vrot.slane %v5009, 5
      %v5054 = vrot.slane %v5053, 4
      %v5055 = vrot.slane %v4340, 5
      %v5056 = vsel %vm1833, %v5054, %v5055
      %v5057 = vrot.slane %v5055, 4
      %v5058 = vrot.slane %v4341, 5
      %v5059 = vsel %vm1833, %v5057, %v5058
      %v5060 = vrot.slane %v5010, 5
      %v5061 = vrot.slane %v5060, 4
      %v5062 = vrot.slane %v4343, 5
      %v5063 = vsel %vm1833, %v5061, %v5062
      %v5064 = vrot.slane %v5062, 4
      %v5065 = vrot.slane %v4344, 5
      %v5066 = vsel %vm1833, %v5064, %v5065
      %v5067 = vrot.slane %v5011, 5
      %v5068 = vrot.slane %v5067, 4
      %v5069 = vrot.slane %v4346, 5
      %v5070 = vsel %vm1833, %v5068, %v5069
      %v5071 = vrot.slane %v5069, 4
      %v5072 = vrot.slane %v4347, 5
      %v5073 = vsel %vm1833, %v5071, %v5072
      %v5074 = vrot.slane %v5012, 5
      %v5075 = vrot.slane %v5074, 4
      %v5076 = vrot.slane %v4349, 5
      %v5077 = vsel %vm1833, %v5075, %v5076
      %v5078 = vrot.slane %v5076, 4
      %v5079 = vrot.slane %v4350, 5
      %v5080 = vsel %vm1833, %v5078, %v5079
      %v5081 = vrot.slane %v5013, 5
      %v5082 = vrot.slane %v5081, 4
      %v5083 = vrot.slane %v4352, 5
      %v5084 = vsel %vm1833, %v5082, %v5083
      %v5085 = vrot.slane %v5083, 4
      %v5086 = vrot.slane %v4353, 5
      %v5087 = vsel %vm1833, %v5085, %v5086
      %v5088 = vrot.slane %v5014, 5
      %v5089 = vrot.slane %v5088, 4
      %v5090 = vrot.slane %v4355, 5
      %v5091 = vsel %vm1833, %v5089, %v5090
      %v5092 = vrot.slane %v5090, 4
      %v5093 = vrot.slane %v4356, 5
      %v5094 = vsel %vm1833, %v5092, %v5093
      %v5095 = vld [vmem:[%s4074] sm:$0xe]
      %v5096 = vld [vmem:[%s4074 + $0xc] sm:$0xe]
      %v5097 = vld [vmem:[%s4074 + $0x18] sm:$0xe]
      %v5098 = vld [vmem:[%s4074 + $0x24] sm:$0xe]
      %v5099 = vld [vmem:[%s4074 + $0x30] sm:$0xe]
      %v5100 = vld [vmem:[%s4074 + $0x3c] sm:$0xe]
      %v5101 = vld [vmem:[%s4074 + $0x48] sm:$0xe]
      %v5102 = vld [vmem:[%s4074 + $0x54] sm:$0xe]
      %v5127 = vrot.slane %v5095, 5
      %v5128 = vrot.slane %v5127, 4
      %v5129 = vrot.slane %v4550, 5
      %v5130 = vsel %vm1833, %v5128, %v5129
      %v5131 = vrot.slane %v5129, 4
      %v5132 = vrot.slane %v4551, 5
      %v5133 = vsel %vm1833, %v5131, %v5132
      %v5134 = vrot.slane %v5096, 5
      %v5135 = vrot.slane %v5134, 4
      %v5136 = vrot.slane %v4553, 5
      %v5137 = vsel %vm1833, %v5135, %v5136
      %v5138 = vrot.slane %v5136, 4
      %v5139 = vrot.slane %v4554, 5
      %v5140 = vsel %vm1833, %v5138, %v5139
      %v5141 = vrot.slane %v5097, 5
      %v5142 = vrot.slane %v5141, 4
      %v5143 = vrot.slane %v4556, 5
      %v5144 = vsel %vm1833, %v5142, %v5143
      %v5145 = vrot.slane %v5143, 4
      %v5146 = vrot.slane %v4557, 5
      %v5147 = vsel %vm1833, %v5145, %v5146
      %v5148 = vrot.slane %v5098, 5
      %v5149 = vrot.slane %v5148, 4
      %v5150 = vrot.slane %v4559, 5
      %v5151 = vsel %vm1833, %v5149, %v5150
      %v5152 = vrot.slane %v5150, 4
      %v5153 = vrot.slane %v4560, 5
      %v5154 = vsel %vm1833, %v5152, %v5153
      %v5155 = vrot.slane %v5099, 5
      %v5156 = vrot.slane %v5155, 4
      %v5157 = vrot.slane %v4562, 5
      %v5158 = vsel %vm1833, %v5156, %v5157
      %v5159 = vrot.slane %v5157, 4
      %v5160 = vrot.slane %v4563, 5
      %v5161 = vsel %vm1833, %v5159, %v5160
      %v5162 = vrot.slane %v5100, 5
      %v5163 = vrot.slane %v5162, 4
      %v5164 = vrot.slane %v4565, 5
      %v5165 = vsel %vm1833, %v5163, %v5164
      %v5166 = vrot.slane %v5164, 4
      %v5167 = vrot.slane %v4566, 5
      %v5168 = vsel %vm1833, %v5166, %v5167
      %v5169 = vrot.slane %v5101, 5
      %v5170 = vrot.slane %v5169, 4
      %v5171 = vrot.slane %v4568, 5
      %v5172 = vsel %vm1833, %v5170, %v5171
      %v5173 = vrot.slane %v5171, 4
      %v5174 = vrot.slane %v4569, 5
      %v5175 = vsel %vm1833, %v5173, %v5174
      %v5176 = vrot.slane %v5102, 5
      %v5177 = vrot.slane %v5176, 4
      %v5178 = vrot.slane %v4571, 5
      %v5179 = vsel %vm1833, %v5177, %v5178
      %v5180 = vrot.slane %v5178, 4
      %v5181 = vrot.slane %v4572, 5
      %v5182 = vsel %vm1833, %v5180, %v5181
      %s5183 = scalar_lea.vmem %s4, 4
      %v5184 = vld [vmem:[%s5183] sm:$0x3]
      %v5185 = vunpack.c.l.b16 %v5042
      %v5186 = vunpack.c.l.b16 %v5045
      %v5187 = vunpack.c.l.b16 %v5049
      %v5188 = vunpack.c.l.b16 %v5052
      %v5189 = vunpack.c.l.b16 %v5056
      %v5190 = vunpack.c.l.b16 %v5059
      %v5191 = vunpack.c.l.b16 %v5063
      %v5192 = vunpack.c.l.b16 %v5066
      %v5193 = vunpack.c.l.b16 %v5070
      %v5194 = vunpack.c.l.b16 %v5073
      %v5195 = vunpack.c.l.b16 %v5077
      %v5196 = vunpack.c.l.b16 %v5080
      %v5197 = vunpack.c.l.b16 %v5084
      %v5198 = vunpack.c.l.b16 %v5087
      %v5199 = vunpack.c.l.b16 %v5091
      %v5200 = vunpack.c.l.b16 %v5094
      %v5201 = vpack.c.b16 %v5186, %v5185
      %v5202 = vpack.c.b16 %v5188, %v5187
      %v5203 = vpack.c.b16 %v5190, %v5189
      %v5204 = vpack.c.b16 %v5192, %v5191
      %v5205 = vpack.c.b16 %v5194, %v5193
      %v5206 = vpack.c.b16 %v5196, %v5195
      %v5207 = vpack.c.b16 %v5198, %v5197
      %v5208 = vpack.c.b16 %v5200, %v5199
      %v5210 = vsel %vm396, %v5201, 0
      %v5213 = vsel %vm396, %v5202, 0
      %v5216 = vsel %vm396, %v5203, 0
      %v5219 = vsel %vm396, %v5204, 0
      %v5222 = vsel %vm396, %v5205, 0
      %v5225 = vsel %vm396, %v5206, 0
      %v5228 = vsel %vm396, %v5207, 0
      %v5231 = vsel %vm396, %v5208, 0
      %v5234 = vsel %vm433, %v5184, 0
      %5236 = vmatpush.bf16.msra.mxu0 0
      %5237 = vmatpush.bf16.msra.mxu0 0
      %5238 = vmatpush.bf16.msra.mxu0 0
      %5239 = vmatpush.bf16.msra.mxu0 0
      %5240 = vmatpush.bf16.msra.mxu0 0
      %5241 = vmatpush.bf16.msra.mxu0 0
      %5242 = vmatpush.bf16.msra.mxu0 0
      %5243 = vmatpush.bf16.msra.mxu0 %v5234
      %5244 = vmatmul.bf16.gmra.mxu0 %v5210
      %v5245 = vpop.f32.mrf.mxu0
      %v5246 = vadd.f32 0.0, %v5245
      %v5247 = vpop.f32.mrf.mxu0
      %v5248 = vadd.f32 0.0, %v5247
      %5249 = vmatmul.bf16.gmra.mxu0 %v5213
      %v5250 = vpop.f32.mrf.mxu0
      %v5251 = vadd.f32 0.0, %v5250
      %v5252 = vpop.f32.mrf.mxu0
      %v5253 = vadd.f32 0.0, %v5252
      %5254 = vmatmul.bf16.gmra.mxu0 %v5216
      %v5255 = vpop.f32.mrf.mxu0
      %v5256 = vadd.f32 0.0, %v5255
      %v5257 = vpop.f32.mrf.mxu0
      %v5258 = vadd.f32 0.0, %v5257
      %5259 = vmatmul.bf16.gmra.mxu0 %v5219
      %v5260 = vpop.f32.mrf.mxu0
      %v5261 = vadd.f32 0.0, %v5260
      %v5262 = vpop.f32.mrf.mxu0
      %v5263 = vadd.f32 0.0, %v5262
      %5264 = vmatmul.bf16.gmra.mxu0 %v5222
      %v5265 = vpop.f32.mrf.mxu0
      %v5266 = vadd.f32 0.0, %v5265
      %v5267 = vpop.f32.mrf.mxu0
      %v5268 = vadd.f32 0.0, %v5267
      %5269 = vmatmul.bf16.gmra.mxu0 %v5225
      %v5270 = vpop.f32.mrf.mxu0
      %v5271 = vadd.f32 0.0, %v5270
      %v5272 = vpop.f32.mrf.mxu0
      %v5273 = vadd.f32 0.0, %v5272
      %5274 = vmatmul.bf16.gmra.mxu0 %v5228
      %v5275 = vpop.f32.mrf.mxu0
      %v5276 = vadd.f32 0.0, %v5275
      %v5277 = vpop.f32.mrf.mxu0
      %v5278 = vadd.f32 0.0, %v5277
      %5279 = vmatmul.bf16.gmra.mxu0 %v5231
      %v5280 = vpop.f32.mrf.mxu0
      %v5281 = vadd.f32 0.0, %v5280
      %v5282 = vpop.f32.mrf.mxu0
      %v5283 = vadd.f32 0.0, %v5282
      %5284 = vdwg.mxu0
      %v5285 = vadd.f32 %v4991, %v5246
      %v5286 = vadd.f32 %v4992, %v5248
      %v5287 = vadd.f32 %v4993, %v5251
      %v5288 = vadd.f32 %v4994, %v5253
      %v5289 = vadd.f32 %v4995, %v5256
      %v5290 = vadd.f32 %v4996, %v5258
      %v5291 = vadd.f32 %v4997, %v5261
      %v5292 = vadd.f32 %v4998, %v5263
      %v5293 = vadd.f32 %v4999, %v5266
      %v5294 = vadd.f32 %v5000, %v5268
      %v5295 = vadd.f32 %v5001, %v5271
      %v5296 = vadd.f32 %v5002, %v5273
      %v5297 = vadd.f32 %v5003, %v5276
      %v5298 = vadd.f32 %v5004, %v5278
      %v5299 = vadd.f32 %v5005, %v5281
      %v5300 = vadd.f32 %v5006, %v5283
      %s5301 = scalar_lea.vmem %s5, 16
      %v5302 = vld [vmem:[%s5301] sm:$0xf]
      %v5303 = vld [vmem:[%s5301 + $0x4] sm:$0x3]
      %v5304 = vunpack.c.l.b16 %v5130
      %v5305 = vunpack.c.l.b16 %v5133
      %v5306 = vunpack.c.l.b16 %v5137
      %v5307 = vunpack.c.l.b16 %v5140
      %v5308 = vunpack.c.l.b16 %v5144
      %v5309 = vunpack.c.l.b16 %v5147
      %v5310 = vunpack.c.l.b16 %v5151
      %v5311 = vunpack.c.l.b16 %v5154
      %v5312 = vunpack.c.l.b16 %v5158
      %v5313 = vunpack.c.l.b16 %v5161
      %v5314 = vunpack.c.l.b16 %v5165
      %v5315 = vunpack.c.l.b16 %v5168
      %v5316 = vunpack.c.l.b16 %v5172
      %v5317 = vunpack.c.l.b16 %v5175
      %v5318 = vunpack.c.l.b16 %v5179
      %v5319 = vunpack.c.l.b16 %v5182
      %v5320 = vpack.c.b16 %v5305, %v5304
      %v5321 = vpack.c.b16 %v5307, %v5306
      %v5322 = vpack.c.b16 %v5309, %v5308
      %v5323 = vpack.c.b16 %v5311, %v5310
      %v5324 = vpack.c.b16 %v5313, %v5312
      %v5325 = vpack.c.b16 %v5315, %v5314
      %v5326 = vpack.c.b16 %v5317, %v5316
      %v5327 = vpack.c.b16 %v5319, %v5318
      %v5330 = vunpack.c.l.b16 %v5302
      %v5331 = vunpack.c.l.b16 %v5303
      %v5332 = vpack.c.b16 %v5331, %v5330
      %v5334 = vsel %vm4139, %v5320, 0
      %v5337 = vsel %vm4139, %v5321, 0
      %v5340 = vsel %vm4139, %v5322, 0
      %v5343 = vsel %vm4139, %v5323, 0
      %v5346 = vsel %vm4139, %v5324, 0
      %v5349 = vsel %vm4139, %v5325, 0
      %v5352 = vsel %vm4139, %v5326, 0
      %v5355 = vsel %vm4139, %v5327, 0
      %v5358 = vsel %vm4164, %v5332, 0
      %5360 = vmatpush.bf16.msra.mxu0 0
      %5361 = vmatpush.bf16.msra.mxu0 0
      %5362 = vmatpush.bf16.msra.mxu0 0
      %5363 = vmatpush.bf16.msra.mxu0 0
      %5364 = vmatpush.bf16.msra.mxu0 0
      %5365 = vmatpush.bf16.msra.mxu0 0
      %5366 = vmatpush.bf16.msra.mxu0 0
      %5367 = vmatpush.bf16.msra.mxu0 %v5358
      %5368 = vmatmul.bf16.gmra.mxu0 %v5334
      %v5369 = vpop.f32.mrf.mxu0
      %v5370 = vadd.f32 0.0, %v5369
      %v5371 = vpop.f32.mrf.mxu0
      %v5372 = vadd.f32 0.0, %v5371
      %5373 = vmatmul.bf16.gmra.mxu0 %v5337
      %v5374 = vpop.f32.mrf.mxu0
      %v5375 = vadd.f32 0.0, %v5374
      %v5376 = vpop.f32.mrf.mxu0
      %v5377 = vadd.f32 0.0, %v5376
      %5378 = vmatmul.bf16.gmra.mxu0 %v5340
      %v5379 = vpop.f32.mrf.mxu0
      %v5380 = vadd.f32 0.0, %v5379
      %v5381 = vpop.f32.mrf.mxu0
      %v5382 = vadd.f32 0.0, %v5381
      %5383 = vmatmul.bf16.gmra.mxu0 %v5343
      %v5384 = vpop.f32.mrf.mxu0
      %v5385 = vadd.f32 0.0, %v5384
      %v5386 = vpop.f32.mrf.mxu0
      %v5387 = vadd.f32 0.0, %v5386
      %5388 = vmatmul.bf16.gmra.mxu0 %v5346
      %v5389 = vpop.f32.mrf.mxu0
      %v5390 = vadd.f32 0.0, %v5389
      %v5391 = vpop.f32.mrf.mxu0
      %v5392 = vadd.f32 0.0, %v5391
      %5393 = vmatmul.bf16.gmra.mxu0 %v5349
      %v5394 = vpop.f32.mrf.mxu0
      %v5395 = vadd.f32 0.0, %v5394
      %v5396 = vpop.f32.mrf.mxu0
      %v5397 = vadd.f32 0.0, %v5396
      %5398 = vmatmul.bf16.gmra.mxu0 %v5352
      %v5399 = vpop.f32.mrf.mxu0
      %v5400 = vadd.f32 0.0, %v5399
      %v5401 = vpop.f32.mrf.mxu0
      %v5402 = vadd.f32 0.0, %v5401
      %5403 = vmatmul.bf16.gmra.mxu0 %v5355
      %v5404 = vpop.f32.mrf.mxu0
      %v5405 = vadd.f32 0.0, %v5404
      %v5406 = vpop.f32.mrf.mxu0
      %v5407 = vadd.f32 0.0, %v5406
      %5408 = vdwg.mxu0
      %v5409 = vadd.f32 %v5285, %v5370
      %v5410 = vadd.f32 %v5286, %v5372
      %v5411 = vadd.f32 %v5287, %v5375
      %v5412 = vadd.f32 %v5288, %v5377
      %v5413 = vadd.f32 %v5289, %v5380
      %v5414 = vadd.f32 %v5290, %v5382
      %v5415 = vadd.f32 %v5291, %v5385
      %v5416 = vadd.f32 %v5292, %v5387
      %v5417 = vadd.f32 %v5293, %v5390
      %v5418 = vadd.f32 %v5294, %v5392
      %v5419 = vadd.f32 %v5295, %v5395
      %v5420 = vadd.f32 %v5296, %v5397
      %v5421 = vadd.f32 %v5297, %v5400
      %v5422 = vadd.f32 %v5298, %v5402
      %v5423 = vadd.f32 %v5299, %v5405
      %v5424 = vadd.f32 %v5300, %v5407
      %v5425 = vld [vmem:[%s2901] sm:$0xf]
      %v5426 = vld [vmem:[%s2901 + $0x4] sm:$0xf]
      %v5427 = vld [vmem:[%s2901 + $0xc] sm:$0xf]
      %v5428 = vld [vmem:[%s2901 + $0x10] sm:$0xf]
      %v5429 = vld [vmem:[%s2901 + $0x18] sm:$0xf]
      %v5430 = vld [vmem:[%s2901 + $0x1c] sm:$0xf]
      %v5431 = vld [vmem:[%s2901 + $0x24] sm:$0xf]
      %v5432 = vld [vmem:[%s2901 + $0x28] sm:$0xf]
      %v5433 = vld [vmem:[%s2901 + $0x30] sm:$0xf]
      %v5434 = vld [vmem:[%s2901 + $0x34] sm:$0xf]
      %v5435 = vld [vmem:[%s2901 + $0x3c] sm:$0xf]
      %v5436 = vld [vmem:[%s2901 + $0x40] sm:$0xf]
      %v5437 = vld [vmem:[%s2901 + $0x48] sm:$0xf]
      %v5438 = vld [vmem:[%s2901 + $0x4c] sm:$0xf]
      %v5439 = vld [vmem:[%s2901 + $0x54] sm:$0xf]
      %v5440 = vld [vmem:[%s2901 + $0x58] sm:$0xf]
      %s5441 = scalar_lea.vmem [#allocation3], 24
      %v5442 = vld [vmem:[%s5441] sm:$0xf]
      %v5443 = vld [vmem:[%s5441 + $0x4] sm:$0xf]
      %v5444 = vld [vmem:[%s5441 + $0xc] sm:$0xf]
      %v5445 = vld [vmem:[%s5441 + $0x10] sm:$0xf]
      %v5446 = vld [vmem:[%s5441 + $0x18] sm:$0xf]
      %v5447 = vld [vmem:[%s5441 + $0x1c] sm:$0xf]
      %v5448 = vld [vmem:[%s5441 + $0x24] sm:$0xf]
      %v5449 = vld [vmem:[%s5441 + $0x28] sm:$0xf]
      %v5450 = vld [vmem:[%s5441 + $0x30] sm:$0xf]
      %v5451 = vld [vmem:[%s5441 + $0x34] sm:$0xf]
      %v5452 = vld [vmem:[%s5441 + $0x3c] sm:$0xf]
      %v5453 = vld [vmem:[%s5441 + $0x40] sm:$0xf]
      %v5454 = vld [vmem:[%s5441 + $0x48] sm:$0xf]
      %v5455 = vld [vmem:[%s5441 + $0x4c] sm:$0xf]
      %v5456 = vld [vmem:[%s5441 + $0x54] sm:$0xf]
      %v5457 = vld [vmem:[%s5441 + $0x58] sm:$0xf]
      %s5458 = scalar_lea.vmem %s4, 6
      %v5459 = vld [vmem:[%s5458] sm:$0x3]
      %v5476 = vunpack.c.l.b16 %v5425
      %v5477 = vunpack.c.l.b16 %v5426
      %v5478 = vunpack.c.l.b16 %v5427
      %v5479 = vunpack.c.l.b16 %v5428
      %v5480 = vunpack.c.l.b16 %v5429
      %v5481 = vunpack.c.l.b16 %v5430
      %v5482 = vunpack.c.l.b16 %v5431
      %v5483 = vunpack.c.l.b16 %v5432
      %v5484 = vunpack.c.l.b16 %v5433
      %v5485 = vunpack.c.l.b16 %v5434
      %v5486 = vunpack.c.l.b16 %v5435
      %v5487 = vunpack.c.l.b16 %v5436
      %v5488 = vunpack.c.l.b16 %v5437
      %v5489 = vunpack.c.l.b16 %v5438
      %v5490 = vunpack.c.l.b16 %v5439
      %v5491 = vunpack.c.l.b16 %v5440
      %v5492 = vpack.c.b16 %v5477, %v5476
      %v5493 = vpack.c.b16 %v5479, %v5478
      %v5494 = vpack.c.b16 %v5481, %v5480
      %v5495 = vpack.c.b16 %v5483, %v5482
      %v5496 = vpack.c.b16 %v5485, %v5484
      %v5497 = vpack.c.b16 %v5487, %v5486
      %v5498 = vpack.c.b16 %v5489, %v5488
      %v5499 = vpack.c.b16 %v5491, %v5490
      %v5501 = vsel %vm396, %v5492, 0
      %v5504 = vsel %vm396, %v5493, 0
      %v5507 = vsel %vm396, %v5494, 0
      %v5510 = vsel %vm396, %v5495, 0
      %v5513 = vsel %vm396, %v5496, 0
      %v5516 = vsel %vm396, %v5497, 0
      %v5519 = vsel %vm396, %v5498, 0
      %v5522 = vsel %vm396, %v5499, 0
      %v5525 = vsel %vm433, %v5459, 0
      %5527 = vmatpush.bf16.msra.mxu0 0
      %5528 = vmatpush.bf16.msra.mxu0 0
      %5529 = vmatpush.bf16.msra.mxu0 0
      %5530 = vmatpush.bf16.msra.mxu0 0
      %5531 = vmatpush.bf16.msra.mxu0 0
      %5532 = vmatpush.bf16.msra.mxu0 0
      %5533 = vmatpush.bf16.msra.mxu0 0
      %5534 = vmatpush.bf16.msra.mxu0 %v5525
      %5535 = vmatmul.bf16.gmra.mxu0 %v5501
      %v5536 = vpop.f32.mrf.mxu0
      %v5537 = vadd.f32 0.0, %v5536
      %v5538 = vpop.f32.mrf.mxu0
      %v5539 = vadd.f32 0.0, %v5538
      %5540 = vmatmul.bf16.gmra.mxu0 %v5504
      %v5541 = vpop.f32.mrf.mxu0
      %v5542 = vadd.f32 0.0, %v5541
      %v5543 = vpop.f32.mrf.mxu0
      %v5544 = vadd.f32 0.0, %v5543
      %5545 = vmatmul.bf16.gmra.mxu0 %v5507
      %v5546 = vpop.f32.mrf.mxu0
      %v5547 = vadd.f32 0.0, %v5546
      %v5548 = vpop.f32.mrf.mxu0
      %v5549 = vadd.f32 0.0, %v5548
      %5550 = vmatmul.bf16.gmra.mxu0 %v5510
      %v5551 = vpop.f32.mrf.mxu0
      %v5552 = vadd.f32 0.0, %v5551
      %v5553 = vpop.f32.mrf.mxu0
      %v5554 = vadd.f32 0.0, %v5553
      %5555 = vmatmul.bf16.gmra.mxu0 %v5513
      %v5556 = vpop.f32.mrf.mxu0
      %v5557 = vadd.f32 0.0, %v5556
      %v5558 = vpop.f32.mrf.mxu0
      %v5559 = vadd.f32 0.0, %v5558
      %5560 = vmatmul.bf16.gmra.mxu0 %v5516
      %v5561 = vpop.f32.mrf.mxu0
      %v5562 = vadd.f32 0.0, %v5561
      %v5563 = vpop.f32.mrf.mxu0
      %v5564 = vadd.f32 0.0, %v5563
      %5565 = vmatmul.bf16.gmra.mxu0 %v5519
      %v5566 = vpop.f32.mrf.mxu0
      %v5567 = vadd.f32 0.0, %v5566
      %v5568 = vpop.f32.mrf.mxu0
      %v5569 = vadd.f32 0.0, %v5568
      %5570 = vmatmul.bf16.gmra.mxu0 %v5522
      %v5571 = vpop.f32.mrf.mxu0
      %v5572 = vadd.f32 0.0, %v5571
      %v5573 = vpop.f32.mrf.mxu0
      %v5574 = vadd.f32 0.0, %v5573
      %5575 = vdwg.mxu0
      %v5576 = vadd.f32 %v5409, %v5537
      %v5577 = vadd.f32 %v5410, %v5539
      %v5578 = vadd.f32 %v5411, %v5542
      %v5579 = vadd.f32 %v5412, %v5544
      %v5580 = vadd.f32 %v5413, %v5547
      %v5581 = vadd.f32 %v5414, %v5549
      %v5582 = vadd.f32 %v5415, %v5552
      %v5583 = vadd.f32 %v5416, %v5554
      %v5584 = vadd.f32 %v5417, %v5557
      %v5585 = vadd.f32 %v5418, %v5559
      %v5586 = vadd.f32 %v5419, %v5562
      %v5587 = vadd.f32 %v5420, %v5564
      %v5588 = vadd.f32 %v5421, %v5567
      %v5589 = vadd.f32 %v5422, %v5569
      %v5590 = vadd.f32 %v5423, %v5572
      %v5591 = vadd.f32 %v5424, %v5574
      %s5592 = scalar_lea.vmem %s5, 24
      %v5593 = vld [vmem:[%s5592] sm:$0xf]
      %v5594 = vld [vmem:[%s5592 + $0x4] sm:$0x3]
      %v5611 = vunpack.c.l.b16 %v5442
      %v5612 = vunpack.c.l.b16 %v5443
      %v5613 = vunpack.c.l.b16 %v5444
      %v5614 = vunpack.c.l.b16 %v5445
      %v5615 = vunpack.c.l.b16 %v5446
      %v5616 = vunpack.c.l.b16 %v5447
      %v5617 = vunpack.c.l.b16 %v5448
      %v5618 = vunpack.c.l.b16 %v5449
      %v5619 = vunpack.c.l.b16 %v5450
      %v5620 = vunpack.c.l.b16 %v5451
      %v5621 = vunpack.c.l.b16 %v5452
      %v5622 = vunpack.c.l.b16 %v5453
      %v5623 = vunpack.c.l.b16 %v5454
      %v5624 = vunpack.c.l.b16 %v5455
      %v5625 = vunpack.c.l.b16 %v5456
      %v5626 = vunpack.c.l.b16 %v5457
      %v5627 = vpack.c.b16 %v5612, %v5611
      %v5628 = vpack.c.b16 %v5614, %v5613
      %v5629 = vpack.c.b16 %v5616, %v5615
      %v5630 = vpack.c.b16 %v5618, %v5617
      %v5631 = vpack.c.b16 %v5620, %v5619
      %v5632 = vpack.c.b16 %v5622, %v5621
      %v5633 = vpack.c.b16 %v5624, %v5623
      %v5634 = vpack.c.b16 %v5626, %v5625
      %v5637 = vunpack.c.l.b16 %v5593
      %v5638 = vunpack.c.l.b16 %v5594
      %v5639 = vpack.c.b16 %v5638, %v5637
      %v5641 = vsel %vm4139, %v5627, 0
      %v5644 = vsel %vm4139, %v5628, 0
      %v5647 = vsel %vm4139, %v5629, 0
      %v5650 = vsel %vm4139, %v5630, 0
      %v5653 = vsel %vm4139, %v5631, 0
      %v5656 = vsel %vm4139, %v5632, 0
      %v5659 = vsel %vm4139, %v5633, 0
      %v5662 = vsel %vm4139, %v5634, 0
      %v5665 = vsel %vm4164, %v5639, 0
      %5667 = vmatpush.bf16.msra.mxu0 0
      %5668 = vmatpush.bf16.msra.mxu0 0
      %5669 = vmatpush.bf16.msra.mxu0 0
      %5670 = vmatpush.bf16.msra.mxu0 0
      %5671 = vmatpush.bf16.msra.mxu0 0
      %5672 = vmatpush.bf16.msra.mxu0 0
      %5673 = vmatpush.bf16.msra.mxu0 0
      %5674 = vmatpush.bf16.msra.mxu0 %v5665
      %5675 = vmatmul.bf16.gmra.mxu0 %v5641
      %v5676 = vpop.f32.mrf.mxu0
      %v5677 = vadd.f32 0.0, %v5676
      %v5678 = vpop.f32.mrf.mxu0
      %v5679 = vadd.f32 0.0, %v5678
      %5680 = vmatmul.bf16.gmra.mxu0 %v5644
      %v5681 = vpop.f32.mrf.mxu0
      %v5682 = vadd.f32 0.0, %v5681
      %v5683 = vpop.f32.mrf.mxu0
      %v5684 = vadd.f32 0.0, %v5683
      %5685 = vmatmul.bf16.gmra.mxu0 %v5647
      %v5686 = vpop.f32.mrf.mxu0
      %v5687 = vadd.f32 0.0, %v5686
      %v5688 = vpop.f32.mrf.mxu0
      %v5689 = vadd.f32 0.0, %v5688
      %5690 = vmatmul.bf16.gmra.mxu0 %v5650
      %v5691 = vpop.f32.mrf.mxu0
      %v5692 = vadd.f32 0.0, %v5691
      %v5693 = vpop.f32.mrf.mxu0
      %v5694 = vadd.f32 0.0, %v5693
      %5695 = vmatmul.bf16.gmra.mxu0 %v5653
      %v5696 = vpop.f32.mrf.mxu0
      %v5697 = vadd.f32 0.0, %v5696
      %v5698 = vpop.f32.mrf.mxu0
      %v5699 = vadd.f32 0.0, %v5698
      %5700 = vmatmul.bf16.gmra.mxu0 %v5656
      %v5701 = vpop.f32.mrf.mxu0
      %v5702 = vadd.f32 0.0, %v5701
      %v5703 = vpop.f32.mrf.mxu0
      %v5704 = vadd.f32 0.0, %v5703
      %5705 = vmatmul.bf16.gmra.mxu0 %v5659
      %v5706 = vpop.f32.mrf.mxu0
      %v5707 = vadd.f32 0.0, %v5706
      %v5708 = vpop.f32.mrf.mxu0
      %v5709 = vadd.f32 0.0, %v5708
      %5710 = vmatmul.bf16.gmra.mxu0 %v5662
      %v5711 = vpop.f32.mrf.mxu0
      %v5712 = vadd.f32 0.0, %v5711
      %v5713 = vpop.f32.mrf.mxu0
      %v5714 = vadd.f32 0.0, %v5713
      %5715 = vdwg.mxu0
      %v5716 = vadd.f32 %v5576, %v5677
      %v5717 = vadd.f32 %v5577, %v5679
      %v5718 = vadd.f32 %v5578, %v5682
      %v5719 = vadd.f32 %v5579, %v5684
      %v5720 = vadd.f32 %v5580, %v5687
      %v5721 = vadd.f32 %v5581, %v5689
      %v5722 = vadd.f32 %v5582, %v5692
      %v5723 = vadd.f32 %v5583, %v5694
      %v5724 = vadd.f32 %v5584, %v5697
      %v5725 = vadd.f32 %v5585, %v5699
      %v5726 = vadd.f32 %v5586, %v5702
      %v5727 = vadd.f32 %v5587, %v5704
      %v5728 = vadd.f32 %v5588, %v5707
      %v5729 = vadd.f32 %v5589, %v5709
      %v5730 = vadd.f32 %v5590, %v5712
      %v5731 = vadd.f32 %v5591, %v5714
      %v5732 = vld [vmem:[%s2901] sm:$0xf]
      %v5733 = vld [vmem:[%s2901 + $0x4] sm:$0xf]
      %v5734 = vld [vmem:[%s2901 + $0x8] sm:$0x1]
      %v5735 = vld [vmem:[%s2901 + $0xc] sm:$0xf]
      %v5736 = vld [vmem:[%s2901 + $0x10] sm:$0xf]
      %v5737 = vld [vmem:[%s2901 + $0x14] sm:$0x1]
      %v5738 = vld [vmem:[%s2901 + $0x18] sm:$0xf]
      %v5739 = vld [vmem:[%s2901 + $0x1c] sm:$0xf]
      %v5740 = vld [vmem:[%s2901 + $0x20] sm:$0x1]
      %v5741 = vld [vmem:[%s2901 + $0x24] sm:$0xf]
      %v5742 = vld [vmem:[%s2901 + $0x28] sm:$0xf]
      %v5743 = vld [vmem:[%s2901 + $0x2c] sm:$0x1]
      %v5744 = vld [vmem:[%s2901 + $0x30] sm:$0xf]
      %v5745 = vld [vmem:[%s2901 + $0x34] sm:$0xf]
      %v5746 = vld [vmem:[%s2901 + $0x38] sm:$0x1]
      %v5747 = vld [vmem:[%s2901 + $0x3c] sm:$0xf]
      %v5748 = vld [vmem:[%s2901 + $0x40] sm:$0xf]
      %v5749 = vld [vmem:[%s2901 + $0x44] sm:$0x1]
      %v5750 = vld [vmem:[%s2901 + $0x48] sm:$0xf]
      %v5751 = vld [vmem:[%s2901 + $0x4c] sm:$0xf]
      %v5752 = vld [vmem:[%s2901 + $0x50] sm:$0x1]
      %v5753 = vld [vmem:[%s2901 + $0x54] sm:$0xf]
      %v5754 = vld [vmem:[%s2901 + $0x58] sm:$0xf]
      %v5755 = vld [vmem:[%s2901 + $0x5c] sm:$0x1]
      %v5757 = vshrl.u32 %v5732, 16
      %v5759 = vrot.slane %v5757, 4
      %v5760 = vshll.u32 %v5732, 16
      %v5762 = vrot.slane %v5760, 5
      %v5763 = vor.u32 %v5759, %v5762
      %v5764 = vrot.slane %v5763, 4
      %v5766 = vshll.u32 %v5733, 16
      %v5768 = vrot.slane %v5766, 5
      %v5769 = vsel %vm1294, %v5764, %v5768
      %v5770 = vshrl.u32 %v5733, 16
      %v5772 = vrot.slane %v5770, 4
      %v5773 = vor.u32 %v5772, %v5768
      %v5774 = vrot.slane %v5773, 4
      %v5776 = vshll.u32 %v5734, 16
      %v5778 = vrot.slane %v5776, 5
      %v5779 = vsel %vm1294, %v5774, %v5778
      %v5781 = vshrl.u32 %v5735, 16
      %v5783 = vrot.slane %v5781, 4
      %v5784 = vshll.u32 %v5735, 16
      %v5786 = vrot.slane %v5784, 5
      %v5787 = vor.u32 %v5783, %v5786
      %v5788 = vrot.slane %v5787, 4
      %v5790 = vshll.u32 %v5736, 16
      %v5792 = vrot.slane %v5790, 5
      %v5793 = vsel %vm1294, %v5788, %v5792
      %v5794 = vshrl.u32 %v5736, 16
      %v5796 = vrot.slane %v5794, 4
      %v5797 = vor.u32 %v5796, %v5792
      %v5798 = vrot.slane %v5797, 4
      %v5800 = vshll.u32 %v5737, 16
      %v5802 = vrot.slane %v5800, 5
      %v5803 = vsel %vm1294, %v5798, %v5802
      %v5805 = vshrl.u32 %v5738, 16
      %v5807 = vrot.slane %v5805, 4
      %v5808 = vshll.u32 %v5738, 16
      %v5810 = vrot.slane %v5808, 5
      %v5811 = vor.u32 %v5807, %v5810
      %v5812 = vrot.slane %v5811, 4
      %v5814 = vshll.u32 %v5739, 16
      %v5816 = vrot.slane %v5814, 5
      %v5817 = vsel %vm1294, %v5812, %v5816
      %v5818 = vshrl.u32 %v5739, 16
      %v5820 = vrot.slane %v5818, 4
      %v5821 = vor.u32 %v5820, %v5816
      %v5822 = vrot.slane %v5821, 4
      %v5824 = vshll.u32 %v5740, 16
      %v5826 = vrot.slane %v5824, 5
      %v5827 = vsel %vm1294, %v5822, %v5826
      %v5829 = vshrl.u32 %v5741, 16
      %v5831 = vrot.slane %v5829, 4
      %v5832 = vshll.u32 %v5741, 16
      %v5834 = vrot.slane %v5832, 5
      %v5835 = vor.u32 %v5831, %v5834
      %v5836 = vrot.slane %v5835, 4
      %v5838 = vshll.u32 %v5742, 16
      %v5840 = vrot.slane %v5838, 5
      %v5841 = vsel %vm1294, %v5836, %v5840
      %v5842 = vshrl.u32 %v5742, 16
      %v5844 = vrot.slane %v5842, 4
      %v5845 = vor.u32 %v5844, %v5840
      %v5846 = vrot.slane %v5845, 4
      %v5848 = vshll.u32 %v5743, 16
      %v5850 = vrot.slane %v5848, 5
      %v5851 = vsel %vm1294, %v5846, %v5850
      %v5853 = vshrl.u32 %v5744, 16
      %v5855 = vrot.slane %v5853, 4
      %v5856 = vshll.u32 %v5744, 16
      %v5858 = vrot.slane %v5856, 5
      %v5859 = vor.u32 %v5855, %v5858
      %v5860 = vrot.slane %v5859, 4
      %v5862 = vshll.u32 %v5745, 16
      %v5864 = vrot.slane %v5862, 5
      %v5865 = vsel %vm1294, %v5860, %v5864
      %v5866 = vshrl.u32 %v5745, 16
      %v5868 = vrot.slane %v5866, 4
      %v5869 = vor.u32 %v5868, %v5864
      %v5870 = vrot.slane %v5869, 4
      %v5872 = vshll.u32 %v5746, 16
      %v5874 = vrot.slane %v5872, 5
      %v5875 = vsel %vm1294, %v5870, %v5874
      %v5877 = vshrl.u32 %v5747, 16
      %v5879 = vrot.slane %v5877, 4
      %v5880 = vshll.u32 %v5747, 16
      %v5882 = vrot.slane %v5880, 5
      %v5883 = vor.u32 %v5879, %v5882
      %v5884 = vrot.slane %v5883, 4
      %v5886 = vshll.u32 %v5748, 16
      %v5888 = vrot.slane %v5886, 5
      %v5889 = vsel %vm1294, %v5884, %v5888
      %v5890 = vshrl.u32 %v5748, 16
      %v5892 = vrot.slane %v5890, 4
      %v5893 = vor.u32 %v5892, %v5888
      %v5894 = vrot.slane %v5893, 4
      %v5896 = vshll.u32 %v5749, 16
      %v5898 = vrot.slane %v5896, 5
      %v5899 = vsel %vm1294, %v5894, %v5898
      %v5901 = vshrl.u32 %v5750, 16
      %v5903 = vrot.slane %v5901, 4
      %v5904 = vshll.u32 %v5750, 16
      %v5906 = vrot.slane %v5904, 5
      %v5907 = vor.u32 %v5903, %v5906
      %v5908 = vrot.slane %v5907, 4
      %v5910 = vshll.u32 %v5751, 16
      %v5912 = vrot.slane %v5910, 5
      %v5913 = vsel %vm1294, %v5908, %v5912
      %v5914 = vshrl.u32 %v5751, 16
      %v5916 = vrot.slane %v5914, 4
      %v5917 = vor.u32 %v5916, %v5912
      %v5918 = vrot.slane %v5917, 4
      %v5920 = vshll.u32 %v5752, 16
      %v5922 = vrot.slane %v5920, 5
      %v5923 = vsel %vm1294, %v5918, %v5922
      %v5925 = vshrl.u32 %v5753, 16
      %v5927 = vrot.slane %v5925, 4
      %v5928 = vshll.u32 %v5753, 16
      %v5930 = vrot.slane %v5928, 5
      %v5931 = vor.u32 %v5927, %v5930
      %v5932 = vrot.slane %v5931, 4
      %v5934 = vshll.u32 %v5754, 16
      %v5936 = vrot.slane %v5934, 5
      %v5937 = vsel %vm1294, %v5932, %v5936
      %v5938 = vshrl.u32 %v5754, 16
      %v5940 = vrot.slane %v5938, 4
      %v5941 = vor.u32 %v5940, %v5936
      %v5942 = vrot.slane %v5941, 4
      %v5944 = vshll.u32 %v5755, 16
      %v5946 = vrot.slane %v5944, 5
      %v5947 = vsel %vm1294, %v5942, %v5946
      %v5948 = vld [vmem:[%s5441] sm:$0xf]
      %v5949 = vld [vmem:[%s5441 + $0x4] sm:$0xf]
      %v5950 = vld [vmem:[%s5441 + $0x8] sm:$0x1]
      %v5951 = vld [vmem:[%s5441 + $0xc] sm:$0xf]
      %v5952 = vld [vmem:[%s5441 + $0x10] sm:$0xf]
      %v5953 = vld [vmem:[%s5441 + $0x14] sm:$0x1]
      %v5954 = vld [vmem:[%s5441 + $0x18] sm:$0xf]
      %v5955 = vld [vmem:[%s5441 + $0x1c] sm:$0xf]
      %v5956 = vld [vmem:[%s5441 + $0x20] sm:$0x1]
      %v5957 = vld [vmem:[%s5441 + $0x24] sm:$0xf]
      %v5958 = vld [vmem:[%s5441 + $0x28] sm:$0xf]
      %v5959 = vld [vmem:[%s5441 + $0x2c] sm:$0x1]
      %v5960 = vld [vmem:[%s5441 + $0x30] sm:$0xf]
      %v5961 = vld [vmem:[%s5441 + $0x34] sm:$0xf]
      %v5962 = vld [vmem:[%s5441 + $0x38] sm:$0x1]
      %v5963 = vld [vmem:[%s5441 + $0x3c] sm:$0xf]
      %v5964 = vld [vmem:[%s5441 + $0x40] sm:$0xf]
      %v5965 = vld [vmem:[%s5441 + $0x44] sm:$0x1]
      %v5966 = vld [vmem:[%s5441 + $0x48] sm:$0xf]
      %v5967 = vld [vmem:[%s5441 + $0x4c] sm:$0xf]
      %v5968 = vld [vmem:[%s5441 + $0x50] sm:$0x1]
      %v5969 = vld [vmem:[%s5441 + $0x54] sm:$0xf]
      %v5970 = vld [vmem:[%s5441 + $0x58] sm:$0xf]
      %v5971 = vld [vmem:[%s5441 + $0x5c] sm:$0x1]
      %v5973 = vshrl.u32 %v5948, 16
      %v5975 = vrot.slane %v5973, 4
      %v5976 = vshll.u32 %v5948, 16
      %v5978 = vrot.slane %v5976, 5
      %v5979 = vor.u32 %v5975, %v5978
      %v5980 = vrot.slane %v5979, 4
      %v5982 = vshll.u32 %v5949, 16
      %v5984 = vrot.slane %v5982, 5
      %v5985 = vsel %vm1294, %v5980, %v5984
      %v5986 = vshrl.u32 %v5949, 16
      %v5988 = vrot.slane %v5986, 4
      %v5989 = vor.u32 %v5988, %v5984
      %v5990 = vrot.slane %v5989, 4
      %v5992 = vshll.u32 %v5950, 16
      %v5994 = vrot.slane %v5992, 5
      %v5995 = vsel %vm1294, %v5990, %v5994
      %v5997 = vshrl.u32 %v5951, 16
      %v5999 = vrot.slane %v5997, 4
      %v6000 = vshll.u32 %v5951, 16
      %v6002 = vrot.slane %v6000, 5
      %v6003 = vor.u32 %v5999, %v6002
      %v6004 = vrot.slane %v6003, 4
      %v6006 = vshll.u32 %v5952, 16
      %v6008 = vrot.slane %v6006, 5
      %v6009 = vsel %vm1294, %v6004, %v6008
      %v6010 = vshrl.u32 %v5952, 16
      %v6012 = vrot.slane %v6010, 4
      %v6013 = vor.u32 %v6012, %v6008
      %v6014 = vrot.slane %v6013, 4
      %v6016 = vshll.u32 %v5953, 16
      %v6018 = vrot.slane %v6016, 5
      %v6019 = vsel %vm1294, %v6014, %v6018
      %v6021 = vshrl.u32 %v5954, 16
      %v6023 = vrot.slane %v6021, 4
      %v6024 = vshll.u32 %v5954, 16
      %v6026 = vrot.slane %v6024, 5
      %v6027 = vor.u32 %v6023, %v6026
      %v6028 = vrot.slane %v6027, 4
      %v6030 = vshll.u32 %v5955, 16
      %v6032 = vrot.slane %v6030, 5
      %v6033 = vsel %vm1294, %v6028, %v6032
      %v6034 = vshrl.u32 %v5955, 16
      %v6036 = vrot.slane %v6034, 4
      %v6037 = vor.u32 %v6036, %v6032
      %v6038 = vrot.slane %v6037, 4
      %v6040 = vshll.u32 %v5956, 16
      %v6042 = vrot.slane %v6040, 5
      %v6043 = vsel %vm1294, %v6038, %v6042
      %v6045 = vshrl.u32 %v5957, 16
      %v6047 = vrot.slane %v6045, 4
      %v6048 = vshll.u32 %v5957, 16
      %v6050 = vrot.slane %v6048, 5
      %v6051 = vor.u32 %v6047, %v6050
      %v6052 = vrot.slane %v6051, 4
      %v6054 = vshll.u32 %v5958, 16
      %v6056 = vrot.slane %v6054, 5
      %v6057 = vsel %vm1294, %v6052, %v6056
      %v6058 = vshrl.u32 %v5958, 16
      %v6060 = vrot.slane %v6058, 4
      %v6061 = vor.u32 %v6060, %v6056
      %v6062 = vrot.slane %v6061, 4
      %v6064 = vshll.u32 %v5959, 16
      %v6066 = vrot.slane %v6064, 5
      %v6067 = vsel %vm1294, %v6062, %v6066
      %v6069 = vshrl.u32 %v5960, 16
      %v6071 = vrot.slane %v6069, 4
      %v6072 = vshll.u32 %v5960, 16
      %v6074 = vrot.slane %v6072, 5
      %v6075 = vor.u32 %v6071, %v6074
      %v6076 = vrot.slane %v6075, 4
      %v6078 = vshll.u32 %v5961, 16
      %v6080 = vrot.slane %v6078, 5
      %v6081 = vsel %vm1294, %v6076, %v6080
      %v6082 = vshrl.u32 %v5961, 16
      %v6084 = vrot.slane %v6082, 4
      %v6085 = vor.u32 %v6084, %v6080
      %v6086 = vrot.slane %v6085, 4
      %v6088 = vshll.u32 %v5962, 16
      %v6090 = vrot.slane %v6088, 5
      %v6091 = vsel %vm1294, %v6086, %v6090
      %v6093 = vshrl.u32 %v5963, 16
      %v6095 = vrot.slane %v6093, 4
      %v6096 = vshll.u32 %v5963, 16
      %v6098 = vrot.slane %v6096, 5
      %v6099 = vor.u32 %v6095, %v6098
      %v6100 = vrot.slane %v6099, 4
      %v6102 = vshll.u32 %v5964, 16
      %v6104 = vrot.slane %v6102, 5
      %v6105 = vsel %vm1294, %v6100, %v6104
      %v6106 = vshrl.u32 %v5964, 16
      %v6108 = vrot.slane %v6106, 4
      %v6109 = vor.u32 %v6108, %v6104
      %v6110 = vrot.slane %v6109, 4
      %v6112 = vshll.u32 %v5965, 16
      %v6114 = vrot.slane %v6112, 5
      %v6115 = vsel %vm1294, %v6110, %v6114
      %v6117 = vshrl.u32 %v5966, 16
      %v6119 = vrot.slane %v6117, 4
      %v6120 = vshll.u32 %v5966, 16
      %v6122 = vrot.slane %v6120, 5
      %v6123 = vor.u32 %v6119, %v6122
      %v6124 = vrot.slane %v6123, 4
      %v6126 = vshll.u32 %v5967, 16
      %v6128 = vrot.slane %v6126, 5
      %v6129 = vsel %vm1294, %v6124, %v6128
      %v6130 = vshrl.u32 %v5967, 16
      %v6132 = vrot.slane %v6130, 4
      %v6133 = vor.u32 %v6132, %v6128
      %v6134 = vrot.slane %v6133, 4
      %v6136 = vshll.u32 %v5968, 16
      %v6138 = vrot.slane %v6136, 5
      %v6139 = vsel %vm1294, %v6134, %v6138
      %v6141 = vshrl.u32 %v5969, 16
      %v6143 = vrot.slane %v6141, 4
      %v6144 = vshll.u32 %v5969, 16
      %v6146 = vrot.slane %v6144, 5
      %v6147 = vor.u32 %v6143, %v6146
      %v6148 = vrot.slane %v6147, 4
      %v6150 = vshll.u32 %v5970, 16
      %v6152 = vrot.slane %v6150, 5
      %v6153 = vsel %vm1294, %v6148, %v6152
      %v6154 = vshrl.u32 %v5970, 16
      %v6156 = vrot.slane %v6154, 4
      %v6157 = vor.u32 %v6156, %v6152
      %v6158 = vrot.slane %v6157, 4
      %v6160 = vshll.u32 %v5971, 16
      %v6162 = vrot.slane %v6160, 5
      %v6163 = vsel %vm1294, %v6158, %v6162
      %s6164 = scalar_lea.vmem %s4, 8
      %v6165 = vld [vmem:[%s6164] sm:$0x3]
      %v6166 = vunpack.c.l.b16 %v5769
      %v6167 = vunpack.c.l.b16 %v5779
      %v6168 = vunpack.c.l.b16 %v5793
      %v6169 = vunpack.c.l.b16 %v5803
      %v6170 = vunpack.c.l.b16 %v5817
      %v6171 = vunpack.c.l.b16 %v5827
      %v6172 = vunpack.c.l.b16 %v5841
      %v6173 = vunpack.c.l.b16 %v5851
      %v6174 = vunpack.c.l.b16 %v5865
      %v6175 = vunpack.c.l.b16 %v5875
      %v6176 = vunpack.c.l.b16 %v5889
      %v6177 = vunpack.c.l.b16 %v5899
      %v6178 = vunpack.c.l.b16 %v5913
      %v6179 = vunpack.c.l.b16 %v5923
      %v6180 = vunpack.c.l.b16 %v5937
      %v6181 = vunpack.c.l.b16 %v5947
      %v6182 = vpack.c.b16 %v6167, %v6166
      %v6183 = vpack.c.b16 %v6169, %v6168
      %v6184 = vpack.c.b16 %v6171, %v6170
      %v6185 = vpack.c.b16 %v6173, %v6172
      %v6186 = vpack.c.b16 %v6175, %v6174
      %v6187 = vpack.c.b16 %v6177, %v6176
      %v6188 = vpack.c.b16 %v6179, %v6178
      %v6189 = vpack.c.b16 %v6181, %v6180
      %v6191 = vsel %vm396, %v6182, 0
      %v6194 = vsel %vm396, %v6183, 0
      %v6197 = vsel %vm396, %v6184, 0
      %v6200 = vsel %vm396, %v6185, 0
      %v6203 = vsel %vm396, %v6186, 0
      %v6206 = vsel %vm396, %v6187, 0
      %v6209 = vsel %vm396, %v6188, 0
      %v6212 = vsel %vm396, %v6189, 0
      %v6215 = vsel %vm433, %v6165, 0
      %6217 = vmatpush.bf16.msra.mxu0 0
      %6218 = vmatpush.bf16.msra.mxu0 0
      %6219 = vmatpush.bf16.msra.mxu0 0
      %6220 = vmatpush.bf16.msra.mxu0 0
      %6221 = vmatpush.bf16.msra.mxu0 0
      %6222 = vmatpush.bf16.msra.mxu0 0
      %6223 = vmatpush.bf16.msra.mxu0 0
      %6224 = vmatpush.bf16.msra.mxu0 %v6215
      %6225 = vmatmul.bf16.gmra.mxu0 %v6191
      %v6226 = vpop.f32.mrf.mxu0
      %v6227 = vadd.f32 0.0, %v6226
      %v6228 = vpop.f32.mrf.mxu0
      %v6229 = vadd.f32 0.0, %v6228
      %6230 = vmatmul.bf16.gmra.mxu0 %v6194
      %v6231 = vpop.f32.mrf.mxu0
      %v6232 = vadd.f32 0.0, %v6231
      %v6233 = vpop.f32.mrf.mxu0
      %v6234 = vadd.f32 0.0, %v6233
      %6235 = vmatmul.bf16.gmra.mxu0 %v6197
      %v6236 = vpop.f32.mrf.mxu0
      %v6237 = vadd.f32 0.0, %v6236
      %v6238 = vpop.f32.mrf.mxu0
      %v6239 = vadd.f32 0.0, %v6238
      %6240 = vmatmul.bf16.gmra.mxu0 %v6200
      %v6241 = vpop.f32.mrf.mxu0
      %v6242 = vadd.f32 0.0, %v6241
      %v6243 = vpop.f32.mrf.mxu0
      %v6244 = vadd.f32 0.0, %v6243
      %6245 = vmatmul.bf16.gmra.mxu0 %v6203
      %v6246 = vpop.f32.mrf.mxu0
      %v6247 = vadd.f32 0.0, %v6246
      %v6248 = vpop.f32.mrf.mxu0
      %v6249 = vadd.f32 0.0, %v6248
      %6250 = vmatmul.bf16.gmra.mxu0 %v6206
      %v6251 = vpop.f32.mrf.mxu0
      %v6252 = vadd.f32 0.0, %v6251
      %v6253 = vpop.f32.mrf.mxu0
      %v6254 = vadd.f32 0.0, %v6253
      %6255 = vmatmul.bf16.gmra.mxu0 %v6209
      %v6256 = vpop.f32.mrf.mxu0
      %v6257 = vadd.f32 0.0, %v6256
      %v6258 = vpop.f32.mrf.mxu0
      %v6259 = vadd.f32 0.0, %v6258
      %6260 = vmatmul.bf16.gmra.mxu0 %v6212
      %v6261 = vpop.f32.mrf.mxu0
      %v6262 = vadd.f32 0.0, %v6261
      %v6263 = vpop.f32.mrf.mxu0
      %v6264 = vadd.f32 0.0, %v6263
      %6265 = vdwg.mxu0
      %v6266 = vadd.f32 %v5716, %v6227
      %v6267 = vadd.f32 %v5717, %v6229
      %v6268 = vadd.f32 %v5718, %v6232
      %v6269 = vadd.f32 %v5719, %v6234
      %v6270 = vadd.f32 %v5720, %v6237
      %v6271 = vadd.f32 %v5721, %v6239
      %v6272 = vadd.f32 %v5722, %v6242
      %v6273 = vadd.f32 %v5723, %v6244
      %v6274 = vadd.f32 %v5724, %v6247
      %v6275 = vadd.f32 %v5725, %v6249
      %v6276 = vadd.f32 %v5726, %v6252
      %v6277 = vadd.f32 %v5727, %v6254
      %v6278 = vadd.f32 %v5728, %v6257
      %v6279 = vadd.f32 %v5729, %v6259
      %v6280 = vadd.f32 %v5730, %v6262
      %v6281 = vadd.f32 %v5731, %v6264
      %s6282 = scalar_lea.vmem %s5, 32
      %v6283 = vld [vmem:[%s6282] sm:$0xf]
      %v6284 = vld [vmem:[%s6282 + $0x4] sm:$0x3]
      %v6285 = vunpack.c.l.b16 %v5985
      %v6286 = vunpack.c.l.b16 %v5995
      %v6287 = vunpack.c.l.b16 %v6009
      %v6288 = vunpack.c.l.b16 %v6019
      %v6289 = vunpack.c.l.b16 %v6033
      %v6290 = vunpack.c.l.b16 %v6043
      %v6291 = vunpack.c.l.b16 %v6057
      %v6292 = vunpack.c.l.b16 %v6067
      %v6293 = vunpack.c.l.b16 %v6081
      %v6294 = vunpack.c.l.b16 %v6091
      %v6295 = vunpack.c.l.b16 %v6105
      %v6296 = vunpack.c.l.b16 %v6115
      %v6297 = vunpack.c.l.b16 %v6129
      %v6298 = vunpack.c.l.b16 %v6139
      %v6299 = vunpack.c.l.b16 %v6153
      %v6300 = vunpack.c.l.b16 %v6163
      %v6301 = vpack.c.b16 %v6286, %v6285
      %v6302 = vpack.c.b16 %v6288, %v6287
      %v6303 = vpack.c.b16 %v6290, %v6289
      %v6304 = vpack.c.b16 %v6292, %v6291
      %v6305 = vpack.c.b16 %v6294, %v6293
      %v6306 = vpack.c.b16 %v6296, %v6295
      %v6307 = vpack.c.b16 %v6298, %v6297
      %v6308 = vpack.c.b16 %v6300, %v6299
      %v6311 = vunpack.c.l.b16 %v6283
      %v6312 = vunpack.c.l.b16 %v6284
      %v6313 = vpack.c.b16 %v6312, %v6311
      %v6315 = vsel %vm4139, %v6301, 0
      %v6318 = vsel %vm4139, %v6302, 0
      %v6321 = vsel %vm4139, %v6303, 0
      %v6324 = vsel %vm4139, %v6304, 0
      %v6327 = vsel %vm4139, %v6305, 0
      %v6330 = vsel %vm4139, %v6306, 0
      %v6333 = vsel %vm4139, %v6307, 0
      %v6336 = vsel %vm4139, %v6308, 0
      %v6339 = vsel %vm4164, %v6313, 0
      %6341 = vmatpush.bf16.msra.mxu0 0
      %6342 = vmatpush.bf16.msra.mxu0 0
      %6343 = vmatpush.bf16.msra.mxu0 0
      %6344 = vmatpush.bf16.msra.mxu0 0
      %6345 = vmatpush.bf16.msra.mxu0 0
      %6346 = vmatpush.bf16.msra.mxu0 0
      %6347 = vmatpush.bf16.msra.mxu0 0
      %6348 = vmatpush.bf16.msra.mxu0 %v6339
      %6349 = vmatmul.bf16.gmra.mxu0 %v6315
      %v6350 = vpop.f32.mrf.mxu0
      %v6351 = vadd.f32 0.0, %v6350
      %v6352 = vpop.f32.mrf.mxu0
      %v6353 = vadd.f32 0.0, %v6352
      %6354 = vmatmul.bf16.gmra.mxu0 %v6318
      %v6355 = vpop.f32.mrf.mxu0
      %v6356 = vadd.f32 0.0, %v6355
      %v6357 = vpop.f32.mrf.mxu0
      %v6358 = vadd.f32 0.0, %v6357
      %6359 = vmatmul.bf16.gmra.mxu0 %v6321
      %v6360 = vpop.f32.mrf.mxu0
      %v6361 = vadd.f32 0.0, %v6360
      %v6362 = vpop.f32.mrf.mxu0
      %v6363 = vadd.f32 0.0, %v6362
      %6364 = vmatmul.bf16.gmra.mxu0 %v6324
      %v6365 = vpop.f32.mrf.mxu0
      %v6366 = vadd.f32 0.0, %v6365
      %v6367 = vpop.f32.mrf.mxu0
      %v6368 = vadd.f32 0.0, %v6367
      %6369 = vmatmul.bf16.gmra.mxu0 %v6327
      %v6370 = vpop.f32.mrf.mxu0
      %v6371 = vadd.f32 0.0, %v6370
      %v6372 = vpop.f32.mrf.mxu0
      %v6373 = vadd.f32 0.0, %v6372
      %6374 = vmatmul.bf16.gmra.mxu0 %v6330
      %v6375 = vpop.f32.mrf.mxu0
      %v6376 = vadd.f32 0.0, %v6375
      %v6377 = vpop.f32.mrf.mxu0
      %v6378 = vadd.f32 0.0, %v6377
      %6379 = vmatmul.bf16.gmra.mxu0 %v6333
      %v6380 = vpop.f32.mrf.mxu0
      %v6381 = vadd.f32 0.0, %v6380
      %v6382 = vpop.f32.mrf.mxu0
      %v6383 = vadd.f32 0.0, %v6382
      %6384 = vmatmul.bf16.gmra.mxu0 %v6336
      %v6385 = vpop.f32.mrf.mxu0
      %v6386 = vadd.f32 0.0, %v6385
      %v6387 = vpop.f32.mrf.mxu0
      %v6388 = vadd.f32 0.0, %v6387
      %6389 = vdwg.mxu0
      %v6390 = vadd.f32 %v6266, %v6351
      %v6391 = vadd.f32 %v6267, %v6353
      %v6392 = vadd.f32 %v6268, %v6356
      %v6393 = vadd.f32 %v6269, %v6358
      %v6394 = vadd.f32 %v6270, %v6361
      %v6395 = vadd.f32 %v6271, %v6363
      %v6396 = vadd.f32 %v6272, %v6366
      %v6397 = vadd.f32 %v6273, %v6368
      %v6398 = vadd.f32 %v6274, %v6371
      %v6399 = vadd.f32 %v6275, %v6373
      %v6400 = vadd.f32 %v6276, %v6376
      %v6401 = vadd.f32 %v6277, %v6378
      %v6402 = vadd.f32 %v6278, %v6381
      %v6403 = vadd.f32 %v6279, %v6383
      %v6404 = vadd.f32 %v6280, %v6386
      %v6405 = vadd.f32 %v6281, %v6388
      %v6406 = vld [vmem:[%s2901] sm:$0xe]
      %v6407 = vld [vmem:[%s2901 + $0xc] sm:$0xe]
      %v6408 = vld [vmem:[%s2901 + $0x18] sm:$0xe]
      %v6409 = vld [vmem:[%s2901 + $0x24] sm:$0xe]
      %v6410 = vld [vmem:[%s2901 + $0x30] sm:$0xe]
      %v6411 = vld [vmem:[%s2901 + $0x3c] sm:$0xe]
      %v6412 = vld [vmem:[%s2901 + $0x48] sm:$0xe]
      %v6413 = vld [vmem:[%s2901 + $0x54] sm:$0xe]
      %v6438 = vrot.slane %v6406, 5
      %v6439 = vrot.slane %v6438, 4
      %v6440 = vrot.slane %v5733, 5
      %v6441 = vsel %vm1833, %v6439, %v6440
      %v6442 = vrot.slane %v6440, 4
      %v6443 = vrot.slane %v5734, 5
      %v6444 = vsel %vm1833, %v6442, %v6443
      %v6445 = vrot.slane %v6407, 5
      %v6446 = vrot.slane %v6445, 4
      %v6447 = vrot.slane %v5736, 5
      %v6448 = vsel %vm1833, %v6446, %v6447
      %v6449 = vrot.slane %v6447, 4
      %v6450 = vrot.slane %v5737, 5
      %v6451 = vsel %vm1833, %v6449, %v6450
      %v6452 = vrot.slane %v6408, 5
      %v6453 = vrot.slane %v6452, 4
      %v6454 = vrot.slane %v5739, 5
      %v6455 = vsel %vm1833, %v6453, %v6454
      %v6456 = vrot.slane %v6454, 4
      %v6457 = vrot.slane %v5740, 5
      %v6458 = vsel %vm1833, %v6456, %v6457
      %v6459 = vrot.slane %v6409, 5
      %v6460 = vrot.slane %v6459, 4
      %v6461 = vrot.slane %v5742, 5
      %v6462 = vsel %vm1833, %v6460, %v6461
      %v6463 = vrot.slane %v6461, 4
      %v6464 = vrot.slane %v5743, 5
      %v6465 = vsel %vm1833, %v6463, %v6464
      %v6466 = vrot.slane %v6410, 5
      %v6467 = vrot.slane %v6466, 4
      %v6468 = vrot.slane %v5745, 5
      %v6469 = vsel %vm1833, %v6467, %v6468
      %v6470 = vrot.slane %v6468, 4
      %v6471 = vrot.slane %v5746, 5
      %v6472 = vsel %vm1833, %v6470, %v6471
      %v6473 = vrot.slane %v6411, 5
      %v6474 = vrot.slane %v6473, 4
      %v6475 = vrot.slane %v5748, 5
      %v6476 = vsel %vm1833, %v6474, %v6475
      %v6477 = vrot.slane %v6475, 4
      %v6478 = vrot.slane %v5749, 5
      %v6479 = vsel %vm1833, %v6477, %v6478
      %v6480 = vrot.slane %v6412, 5
      %v6481 = vrot.slane %v6480, 4
      %v6482 = vrot.slane %v5751, 5
      %v6483 = vsel %vm1833, %v6481, %v6482
      %v6484 = vrot.slane %v6482, 4
      %v6485 = vrot.slane %v5752, 5
      %v6486 = vsel %vm1833, %v6484, %v6485
      %v6487 = vrot.slane %v6413, 5
      %v6488 = vrot.slane %v6487, 4
      %v6489 = vrot.slane %v5754, 5
      %v6490 = vsel %vm1833, %v6488, %v6489
      %v6491 = vrot.slane %v6489, 4
      %v6492 = vrot.slane %v5755, 5
      %v6493 = vsel %vm1833, %v6491, %v6492
      %v6494 = vld [vmem:[%s5441] sm:$0xe]
      %v6495 = vld [vmem:[%s5441 + $0xc] sm:$0xe]
      %v6496 = vld [vmem:[%s5441 + $0x18] sm:$0xe]
      %v6497 = vld [vmem:[%s5441 + $0x24] sm:$0xe]
      %v6498 = vld [vmem:[%s5441 + $0x30] sm:$0xe]
      %v6499 = vld [vmem:[%s5441 + $0x3c] sm:$0xe]
      %v6500 = vld [vmem:[%s5441 + $0x48] sm:$0xe]
      %v6501 = vld [vmem:[%s5441 + $0x54] sm:$0xe]
      %v6526 = vrot.slane %v6494, 5
      %v6527 = vrot.slane %v6526, 4
      %v6528 = vrot.slane %v5949, 5
      %v6529 = vsel %vm1833, %v6527, %v6528
      %v6530 = vrot.slane %v6528, 4
      %v6531 = vrot.slane %v5950, 5
      %v6532 = vsel %vm1833, %v6530, %v6531
      %v6533 = vrot.slane %v6495, 5
      %v6534 = vrot.slane %v6533, 4
      %v6535 = vrot.slane %v5952, 5
      %v6536 = vsel %vm1833, %v6534, %v6535
      %v6537 = vrot.slane %v6535, 4
      %v6538 = vrot.slane %v5953, 5
      %v6539 = vsel %vm1833, %v6537, %v6538
      %v6540 = vrot.slane %v6496, 5
      %v6541 = vrot.slane %v6540, 4
      %v6542 = vrot.slane %v5955, 5
      %v6543 = vsel %vm1833, %v6541, %v6542
      %v6544 = vrot.slane %v6542, 4
      %v6545 = vrot.slane %v5956, 5
      %v6546 = vsel %vm1833, %v6544, %v6545
      %v6547 = vrot.slane %v6497, 5
      %v6548 = vrot.slane %v6547, 4
      %v6549 = vrot.slane %v5958, 5
      %v6550 = vsel %vm1833, %v6548, %v6549
      %v6551 = vrot.slane %v6549, 4
      %v6552 = vrot.slane %v5959, 5
      %v6553 = vsel %vm1833, %v6551, %v6552
      %v6554 = vrot.slane %v6498, 5
      %v6555 = vrot.slane %v6554, 4
      %v6556 = vrot.slane %v5961, 5
      %v6557 = vsel %vm1833, %v6555, %v6556
      %v6558 = vrot.slane %v6556, 4
      %v6559 = vrot.slane %v5962, 5
      %v6560 = vsel %vm1833, %v6558, %v6559
      %v6561 = vrot.slane %v6499, 5
      %v6562 = vrot.slane %v6561, 4
      %v6563 = vrot.slane %v5964, 5
      %v6564 = vsel %vm1833, %v6562, %v6563
      %v6565 = vrot.slane %v6563, 4
      %v6566 = vrot.slane %v5965, 5
      %v6567 = vsel %vm1833, %v6565, %v6566
      %v6568 = vrot.slane %v6500, 5
      %v6569 = vrot.slane %v6568, 4
      %v6570 = vrot.slane %v5967, 5
      %v6571 = vsel %vm1833, %v6569, %v6570
      %v6572 = vrot.slane %v6570, 4
      %v6573 = vrot.slane %v5968, 5
      %v6574 = vsel %vm1833, %v6572, %v6573
      %v6575 = vrot.slane %v6501, 5
      %v6576 = vrot.slane %v6575, 4
      %v6577 = vrot.slane %v5970, 5
      %v6578 = vsel %vm1833, %v6576, %v6577
      %v6579 = vrot.slane %v6577, 4
      %v6580 = vrot.slane %v5971, 5
      %v6581 = vsel %vm1833, %v6579, %v6580
      %s6582 = scalar_lea.vmem %s4, 10
      %v6583 = vld [vmem:[%s6582] sm:$0x3]
      %v6584 = vunpack.c.l.b16 %v6441
      %v6585 = vunpack.c.l.b16 %v6444
      %v6586 = vunpack.c.l.b16 %v6448
      %v6587 = vunpack.c.l.b16 %v6451
      %v6588 = vunpack.c.l.b16 %v6455
      %v6589 = vunpack.c.l.b16 %v6458
      %v6590 = vunpack.c.l.b16 %v6462
      %v6591 = vunpack.c.l.b16 %v6465
      %v6592 = vunpack.c.l.b16 %v6469
      %v6593 = vunpack.c.l.b16 %v6472
      %v6594 = vunpack.c.l.b16 %v6476
      %v6595 = vunpack.c.l.b16 %v6479
      %v6596 = vunpack.c.l.b16 %v6483
      %v6597 = vunpack.c.l.b16 %v6486
      %v6598 = vunpack.c.l.b16 %v6490
      %v6599 = vunpack.c.l.b16 %v6493
      %v6600 = vpack.c.b16 %v6585, %v6584
      %v6601 = vpack.c.b16 %v6587, %v6586
      %v6602 = vpack.c.b16 %v6589, %v6588
      %v6603 = vpack.c.b16 %v6591, %v6590
      %v6604 = vpack.c.b16 %v6593, %v6592
      %v6605 = vpack.c.b16 %v6595, %v6594
      %v6606 = vpack.c.b16 %v6597, %v6596
      %v6607 = vpack.c.b16 %v6599, %v6598
      %v6609 = vsel %vm396, %v6600, 0
      %v6612 = vsel %vm396, %v6601, 0
      %v6615 = vsel %vm396, %v6602, 0
      %v6618 = vsel %vm396, %v6603, 0
      %v6621 = vsel %vm396, %v6604, 0
      %v6624 = vsel %vm396, %v6605, 0
      %v6627 = vsel %vm396, %v6606, 0
      %v6630 = vsel %vm396, %v6607, 0
      %v6633 = vsel %vm433, %v6583, 0
      %6635 = vmatpush.bf16.msra.mxu0 0
      %6636 = vmatpush.bf16.msra.mxu0 0
      %6637 = vmatpush.bf16.msra.mxu0 0
      %6638 = vmatpush.bf16.msra.mxu0 0
      %6639 = vmatpush.bf16.msra.mxu0 0
      %6640 = vmatpush.bf16.msra.mxu0 0
      %6641 = vmatpush.bf16.msra.mxu0 0
      %6642 = vmatpush.bf16.msra.mxu0 %v6633
      %6643 = vmatmul.bf16.gmra.mxu0 %v6609
      %v6644 = vpop.f32.mrf.mxu0
      %v6645 = vadd.f32 0.0, %v6644
      %v6646 = vpop.f32.mrf.mxu0
      %v6647 = vadd.f32 0.0, %v6646
      %6648 = vmatmul.bf16.gmra.mxu0 %v6612
      %v6649 = vpop.f32.mrf.mxu0
      %v6650 = vadd.f32 0.0, %v6649
      %v6651 = vpop.f32.mrf.mxu0
      %v6652 = vadd.f32 0.0, %v6651
      %6653 = vmatmul.bf16.gmra.mxu0 %v6615
      %v6654 = vpop.f32.mrf.mxu0
      %v6655 = vadd.f32 0.0, %v6654
      %v6656 = vpop.f32.mrf.mxu0
      %v6657 = vadd.f32 0.0, %v6656
      %6658 = vmatmul.bf16.gmra.mxu0 %v6618
      %v6659 = vpop.f32.mrf.mxu0
      %v6660 = vadd.f32 0.0, %v6659
      %v6661 = vpop.f32.mrf.mxu0
      %v6662 = vadd.f32 0.0, %v6661
      %6663 = vmatmul.bf16.gmra.mxu0 %v6621
      %v6664 = vpop.f32.mrf.mxu0
      %v6665 = vadd.f32 0.0, %v6664
      %v6666 = vpop.f32.mrf.mxu0
      %v6667 = vadd.f32 0.0, %v6666
      %6668 = vmatmul.bf16.gmra.mxu0 %v6624
      %v6669 = vpop.f32.mrf.mxu0
      %v6670 = vadd.f32 0.0, %v6669
      %v6671 = vpop.f32.mrf.mxu0
      %v6672 = vadd.f32 0.0, %v6671
      %6673 = vmatmul.bf16.gmra.mxu0 %v6627
      %v6674 = vpop.f32.mrf.mxu0
      %v6675 = vadd.f32 0.0, %v6674
      %v6676 = vpop.f32.mrf.mxu0
      %v6677 = vadd.f32 0.0, %v6676
      %6678 = vmatmul.bf16.gmra.mxu0 %v6630
      %v6679 = vpop.f32.mrf.mxu0
      %v6680 = vadd.f32 0.0, %v6679
      %v6681 = vpop.f32.mrf.mxu0
      %v6682 = vadd.f32 0.0, %v6681
      %6683 = vdwg.mxu0
      %v6684 = vadd.f32 %v6390, %v6645
      %v6685 = vadd.f32 %v6391, %v6647
      %v6686 = vadd.f32 %v6392, %v6650
      %v6687 = vadd.f32 %v6393, %v6652
      %v6688 = vadd.f32 %v6394, %v6655
      %v6689 = vadd.f32 %v6395, %v6657
      %v6690 = vadd.f32 %v6396, %v6660
      %v6691 = vadd.f32 %v6397, %v6662
      %v6692 = vadd.f32 %v6398, %v6665
      %v6693 = vadd.f32 %v6399, %v6667
      %v6694 = vadd.f32 %v6400, %v6670
      %v6695 = vadd.f32 %v6401, %v6672
      %v6696 = vadd.f32 %v6402, %v6675
      %v6697 = vadd.f32 %v6403, %v6677
      %v6698 = vadd.f32 %v6404, %v6680
      %v6699 = vadd.f32 %v6405, %v6682
      %s6700 = scalar_lea.vmem %s5, 40
      %v6701 = vld [vmem:[%s6700] sm:$0xf]
      %v6702 = vld [vmem:[%s6700 + $0x4] sm:$0x3]
      %v6703 = vunpack.c.l.b16 %v6529
      %v6704 = vunpack.c.l.b16 %v6532
      %v6705 = vunpack.c.l.b16 %v6536
      %v6706 = vunpack.c.l.b16 %v6539
      %v6707 = vunpack.c.l.b16 %v6543
      %v6708 = vunpack.c.l.b16 %v6546
      %v6709 = vunpack.c.l.b16 %v6550
      %v6710 = vunpack.c.l.b16 %v6553
      %v6711 = vunpack.c.l.b16 %v6557
      %v6712 = vunpack.c.l.b16 %v6560
      %v6713 = vunpack.c.l.b16 %v6564
      %v6714 = vunpack.c.l.b16 %v6567
      %v6715 = vunpack.c.l.b16 %v6571
      %v6716 = vunpack.c.l.b16 %v6574
      %v6717 = vunpack.c.l.b16 %v6578
      %v6718 = vunpack.c.l.b16 %v6581
      %v6719 = vpack.c.b16 %v6704, %v6703
      %v6720 = vpack.c.b16 %v6706, %v6705
      %v6721 = vpack.c.b16 %v6708, %v6707
      %v6722 = vpack.c.b16 %v6710, %v6709
      %v6723 = vpack.c.b16 %v6712, %v6711
      %v6724 = vpack.c.b16 %v6714, %v6713
      %v6725 = vpack.c.b16 %v6716, %v6715
      %v6726 = vpack.c.b16 %v6718, %v6717
      %v6729 = vunpack.c.l.b16 %v6701
      %v6730 = vunpack.c.l.b16 %v6702
      %v6731 = vpack.c.b16 %v6730, %v6729
      %v6733 = vsel %vm4139, %v6719, 0
      %v6736 = vsel %vm4139, %v6720, 0
      %v6739 = vsel %vm4139, %v6721, 0
      %v6742 = vsel %vm4139, %v6722, 0
      %v6745 = vsel %vm4139, %v6723, 0
      %v6748 = vsel %vm4139, %v6724, 0
      %v6751 = vsel %vm4139, %v6725, 0
      %v6754 = vsel %vm4139, %v6726, 0
      %v6757 = vsel %vm4164, %v6731, 0
      %6759 = vmatpush.bf16.msra.mxu0 0
      %6760 = vmatpush.bf16.msra.mxu0 0
      %6761 = vmatpush.bf16.msra.mxu0 0
      %6762 = vmatpush.bf16.msra.mxu0 0
      %6763 = vmatpush.bf16.msra.mxu0 0
      %6764 = vmatpush.bf16.msra.mxu0 0
      %6765 = vmatpush.bf16.msra.mxu0 0
      %6766 = vmatpush.bf16.msra.mxu0 %v6757
      %6767 = vmatmul.bf16.gmra.mxu0 %v6733
      %v6768 = vpop.f32.mrf.mxu0
      %v6769 = vadd.f32 0.0, %v6768
      %v6770 = vpop.f32.mrf.mxu0
      %v6771 = vadd.f32 0.0, %v6770
      %6772 = vmatmul.bf16.gmra.mxu0 %v6736
      %v6773 = vpop.f32.mrf.mxu0
      %v6774 = vadd.f32 0.0, %v6773
      %v6775 = vpop.f32.mrf.mxu0
      %v6776 = vadd.f32 0.0, %v6775
      %6777 = vmatmul.bf16.gmra.mxu0 %v6739
      %v6778 = vpop.f32.mrf.mxu0
      %v6779 = vadd.f32 0.0, %v6778
      %v6780 = vpop.f32.mrf.mxu0
      %v6781 = vadd.f32 0.0, %v6780
      %6782 = vmatmul.bf16.gmra.mxu0 %v6742
      %v6783 = vpop.f32.mrf.mxu0
      %v6784 = vadd.f32 0.0, %v6783
      %v6785 = vpop.f32.mrf.mxu0
      %v6786 = vadd.f32 0.0, %v6785
      %6787 = vmatmul.bf16.gmra.mxu0 %v6745
      %v6788 = vpop.f32.mrf.mxu0
      %v6789 = vadd.f32 0.0, %v6788
      %v6790 = vpop.f32.mrf.mxu0
      %v6791 = vadd.f32 0.0, %v6790
      %6792 = vmatmul.bf16.gmra.mxu0 %v6748
      %v6793 = vpop.f32.mrf.mxu0
      %v6794 = vadd.f32 0.0, %v6793
      %v6795 = vpop.f32.mrf.mxu0
      %v6796 = vadd.f32 0.0, %v6795
      %6797 = vmatmul.bf16.gmra.mxu0 %v6751
      %v6798 = vpop.f32.mrf.mxu0
      %v6799 = vadd.f32 0.0, %v6798
      %v6800 = vpop.f32.mrf.mxu0
      %v6801 = vadd.f32 0.0, %v6800
      %6802 = vmatmul.bf16.gmra.mxu0 %v6754
      %v6803 = vpop.f32.mrf.mxu0
      %v6804 = vadd.f32 0.0, %v6803
      %v6805 = vpop.f32.mrf.mxu0
      %v6806 = vadd.f32 0.0, %v6805
      %6807 = vdwg.mxu0
      %v6808 = vadd.f32 %v6684, %v6769
      %v6809 = vadd.f32 %v6685, %v6771
      %v6810 = vadd.f32 %v6686, %v6774
      %v6811 = vadd.f32 %v6687, %v6776
      %v6812 = vadd.f32 %v6688, %v6779
      %v6813 = vadd.f32 %v6689, %v6781
      %v6814 = vadd.f32 %v6690, %v6784
      %v6815 = vadd.f32 %v6691, %v6786
      %v6816 = vadd.f32 %v6692, %v6789
      %v6817 = vadd.f32 %v6693, %v6791
      %v6818 = vadd.f32 %v6694, %v6794
      %v6819 = vadd.f32 %v6695, %v6796
      %v6820 = vadd.f32 %v6696, %v6799
      %v6821 = vadd.f32 %v6697, %v6801
      %v6822 = vadd.f32 %v6698, %v6804
      %v6823 = vadd.f32 %v6699, %v6806
      %s6824 = scalar_lea.vmem [#allocation2], 36
      %v6825 = vld [vmem:[%s6824] sm:$0xf]
      %v6826 = vld [vmem:[%s6824 + $0x4] sm:$0xf]
      %v6827 = vld [vmem:[%s6824 + $0xc] sm:$0xf]
      %v6828 = vld [vmem:[%s6824 + $0x10] sm:$0xf]
      %v6829 = vld [vmem:[%s6824 + $0x18] sm:$0xf]
      %v6830 = vld [vmem:[%s6824 + $0x1c] sm:$0xf]
      %v6831 = vld [vmem:[%s6824 + $0x24] sm:$0xf]
      %v6832 = vld [vmem:[%s6824 + $0x28] sm:$0xf]
      %v6833 = vld [vmem:[%s6824 + $0x30] sm:$0xf]
      %v6834 = vld [vmem:[%s6824 + $0x34] sm:$0xf]
      %v6835 = vld [vmem:[%s6824 + $0x3c] sm:$0xf]
      %v6836 = vld [vmem:[%s6824 + $0x40] sm:$0xf]
      %v6837 = vld [vmem:[%s6824 + $0x48] sm:$0xf]
      %v6838 = vld [vmem:[%s6824 + $0x4c] sm:$0xf]
      %v6839 = vld [vmem:[%s6824 + $0x54] sm:$0xf]
      %v6840 = vld [vmem:[%s6824 + $0x58] sm:$0xf]
      %s6841 = scalar_lea.vmem [#allocation3], 36
      %v6842 = vld [vmem:[%s6841] sm:$0xf]
      %v6843 = vld [vmem:[%s6841 + $0x4] sm:$0xf]
      %v6844 = vld [vmem:[%s6841 + $0xc] sm:$0xf]
      %v6845 = vld [vmem:[%s6841 + $0x10] sm:$0xf]
      %v6846 = vld [vmem:[%s6841 + $0x18] sm:$0xf]
      %v6847 = vld [vmem:[%s6841 + $0x1c] sm:$0xf]
      %v6848 = vld [vmem:[%s6841 + $0x24] sm:$0xf]
      %v6849 = vld [vmem:[%s6841 + $0x28] sm:$0xf]
      %v6850 = vld [vmem:[%s6841 + $0x30] sm:$0xf]
      %v6851 = vld [vmem:[%s6841 + $0x34] sm:$0xf]
      %v6852 = vld [vmem:[%s6841 + $0x3c] sm:$0xf]
      %v6853 = vld [vmem:[%s6841 + $0x40] sm:$0xf]
      %v6854 = vld [vmem:[%s6841 + $0x48] sm:$0xf]
      %v6855 = vld [vmem:[%s6841 + $0x4c] sm:$0xf]
      %v6856 = vld [vmem:[%s6841 + $0x54] sm:$0xf]
      %v6857 = vld [vmem:[%s6841 + $0x58] sm:$0xf]
      %s6858 = scalar_lea.vmem %s4, 12
      %v6859 = vld [vmem:[%s6858] sm:$0x3]
      %v6876 = vunpack.c.l.b16 %v6825
      %v6877 = vunpack.c.l.b16 %v6826
      %v6878 = vunpack.c.l.b16 %v6827
      %v6879 = vunpack.c.l.b16 %v6828
      %v6880 = vunpack.c.l.b16 %v6829
      %v6881 = vunpack.c.l.b16 %v6830
      %v6882 = vunpack.c.l.b16 %v6831
      %v6883 = vunpack.c.l.b16 %v6832
      %v6884 = vunpack.c.l.b16 %v6833
      %v6885 = vunpack.c.l.b16 %v6834
      %v6886 = vunpack.c.l.b16 %v6835
      %v6887 = vunpack.c.l.b16 %v6836
      %v6888 = vunpack.c.l.b16 %v6837
      %v6889 = vunpack.c.l.b16 %v6838
      %v6890 = vunpack.c.l.b16 %v6839
      %v6891 = vunpack.c.l.b16 %v6840
      %v6892 = vpack.c.b16 %v6877, %v6876
      %v6893 = vpack.c.b16 %v6879, %v6878
      %v6894 = vpack.c.b16 %v6881, %v6880
      %v6895 = vpack.c.b16 %v6883, %v6882
      %v6896 = vpack.c.b16 %v6885, %v6884
      %v6897 = vpack.c.b16 %v6887, %v6886
      %v6898 = vpack.c.b16 %v6889, %v6888
      %v6899 = vpack.c.b16 %v6891, %v6890
      %v6901 = vsel %vm396, %v6892, 0
      %v6904 = vsel %vm396, %v6893, 0
      %v6907 = vsel %vm396, %v6894, 0
      %v6910 = vsel %vm396, %v6895, 0
      %v6913 = vsel %vm396, %v6896, 0
      %v6916 = vsel %vm396, %v6897, 0
      %v6919 = vsel %vm396, %v6898, 0
      %v6922 = vsel %vm396, %v6899, 0
      %v6925 = vsel %vm433, %v6859, 0
      %6927 = vmatpush.bf16.msra.mxu0 0
      %6928 = vmatpush.bf16.msra.mxu0 0
      %6929 = vmatpush.bf16.msra.mxu0 0
      %6930 = vmatpush.bf16.msra.mxu0 0
      %6931 = vmatpush.bf16.msra.mxu0 0
      %6932 = vmatpush.bf16.msra.mxu0 0
      %6933 = vmatpush.bf16.msra.mxu0 0
      %6934 = vmatpush.bf16.msra.mxu0 %v6925
      %6935 = vmatmul.bf16.gmra.mxu0 %v6901
      %v6936 = vpop.f32.mrf.mxu0
      %v6937 = vadd.f32 0.0, %v6936
      %v6938 = vpop.f32.mrf.mxu0
      %v6939 = vadd.f32 0.0, %v6938
      %6940 = vmatmul.bf16.gmra.mxu0 %v6904
      %v6941 = vpop.f32.mrf.mxu0
      %v6942 = vadd.f32 0.0, %v6941
      %v6943 = vpop.f32.mrf.mxu0
      %v6944 = vadd.f32 0.0, %v6943
      %6945 = vmatmul.bf16.gmra.mxu0 %v6907
      %v6946 = vpop.f32.mrf.mxu0
      %v6947 = vadd.f32 0.0, %v6946
      %v6948 = vpop.f32.mrf.mxu0
      %v6949 = vadd.f32 0.0, %v6948
      %6950 = vmatmul.bf16.gmra.mxu0 %v6910
      %v6951 = vpop.f32.mrf.mxu0
      %v6952 = vadd.f32 0.0, %v6951
      %v6953 = vpop.f32.mrf.mxu0
      %v6954 = vadd.f32 0.0, %v6953
      %6955 = vmatmul.bf16.gmra.mxu0 %v6913
      %v6956 = vpop.f32.mrf.mxu0
      %v6957 = vadd.f32 0.0, %v6956
      %v6958 = vpop.f32.mrf.mxu0
      %v6959 = vadd.f32 0.0, %v6958
      %6960 = vmatmul.bf16.gmra.mxu0 %v6916
      %v6961 = vpop.f32.mrf.mxu0
      %v6962 = vadd.f32 0.0, %v6961
      %v6963 = vpop.f32.mrf.mxu0
      %v6964 = vadd.f32 0.0, %v6963
      %6965 = vmatmul.bf16.gmra.mxu0 %v6919
      %v6966 = vpop.f32.mrf.mxu0
      %v6967 = vadd.f32 0.0, %v6966
      %v6968 = vpop.f32.mrf.mxu0
      %v6969 = vadd.f32 0.0, %v6968
      %6970 = vmatmul.bf16.gmra.mxu0 %v6922
      %v6971 = vpop.f32.mrf.mxu0
      %v6972 = vadd.f32 0.0, %v6971
      %v6973 = vpop.f32.mrf.mxu0
      %v6974 = vadd.f32 0.0, %v6973
      %6975 = vdwg.mxu0
      %v6976 = vadd.f32 %v6808, %v6937
      %v6977 = vadd.f32 %v6809, %v6939
      %v6978 = vadd.f32 %v6810, %v6942
      %v6979 = vadd.f32 %v6811, %v6944
      %v6980 = vadd.f32 %v6812, %v6947
      %v6981 = vadd.f32 %v6813, %v6949
      %v6982 = vadd.f32 %v6814, %v6952
      %v6983 = vadd.f32 %v6815, %v6954
      %v6984 = vadd.f32 %v6816, %v6957
      %v6985 = vadd.f32 %v6817, %v6959
      %v6986 = vadd.f32 %v6818, %v6962
      %v6987 = vadd.f32 %v6819, %v6964
      %v6988 = vadd.f32 %v6820, %v6967
      %v6989 = vadd.f32 %v6821, %v6969
      %v6990 = vadd.f32 %v6822, %v6972
      %v6991 = vadd.f32 %v6823, %v6974
      %s6992 = scalar_lea.vmem %s5, 48
      %v6993 = vld [vmem:[%s6992] sm:$0xf]
      %v6994 = vld [vmem:[%s6992 + $0x4] sm:$0x3]
      %v7011 = vunpack.c.l.b16 %v6842
      %v7012 = vunpack.c.l.b16 %v6843
      %v7013 = vunpack.c.l.b16 %v6844
      %v7014 = vunpack.c.l.b16 %v6845
      %v7015 = vunpack.c.l.b16 %v6846
      %v7016 = vunpack.c.l.b16 %v6847
      %v7017 = vunpack.c.l.b16 %v6848
      %v7018 = vunpack.c.l.b16 %v6849
      %v7019 = vunpack.c.l.b16 %v6850
      %v7020 = vunpack.c.l.b16 %v6851
      %v7021 = vunpack.c.l.b16 %v6852
      %v7022 = vunpack.c.l.b16 %v6853
      %v7023 = vunpack.c.l.b16 %v6854
      %v7024 = vunpack.c.l.b16 %v6855
      %v7025 = vunpack.c.l.b16 %v6856
      %v7026 = vunpack.c.l.b16 %v6857
      %v7027 = vpack.c.b16 %v7012, %v7011
      %v7028 = vpack.c.b16 %v7014, %v7013
      %v7029 = vpack.c.b16 %v7016, %v7015
      %v7030 = vpack.c.b16 %v7018, %v7017
      %v7031 = vpack.c.b16 %v7020, %v7019
      %v7032 = vpack.c.b16 %v7022, %v7021
      %v7033 = vpack.c.b16 %v7024, %v7023
      %v7034 = vpack.c.b16 %v7026, %v7025
      %v7037 = vunpack.c.l.b16 %v6993
      %v7038 = vunpack.c.l.b16 %v6994
      %v7039 = vpack.c.b16 %v7038, %v7037
      %v7041 = vsel %vm4139, %v7027, 0
      %v7044 = vsel %vm4139, %v7028, 0
      %v7047 = vsel %vm4139, %v7029, 0
      %v7050 = vsel %vm4139, %v7030, 0
      %v7053 = vsel %vm4139, %v7031, 0
      %v7056 = vsel %vm4139, %v7032, 0
      %v7059 = vsel %vm4139, %v7033, 0
      %v7062 = vsel %vm4139, %v7034, 0
      %v7065 = vsel %vm4164, %v7039, 0
      %7067 = vmatpush.bf16.msra.mxu0 0
      %7068 = vmatpush.bf16.msra.mxu0 0
      %7069 = vmatpush.bf16.msra.mxu0 0
      %7070 = vmatpush.bf16.msra.mxu0 0
      %7071 = vmatpush.bf16.msra.mxu0 0
      %7072 = vmatpush.bf16.msra.mxu0 0
      %7073 = vmatpush.bf16.msra.mxu0 0
      %7074 = vmatpush.bf16.msra.mxu0 %v7065
      %7075 = vmatmul.bf16.gmra.mxu0 %v7041
      %v7076 = vpop.f32.mrf.mxu0
      %v7077 = vadd.f32 0.0, %v7076
      %v7078 = vpop.f32.mrf.mxu0
      %v7079 = vadd.f32 0.0, %v7078
      %7080 = vmatmul.bf16.gmra.mxu0 %v7044
      %v7081 = vpop.f32.mrf.mxu0
      %v7082 = vadd.f32 0.0, %v7081
      %v7083 = vpop.f32.mrf.mxu0
      %v7084 = vadd.f32 0.0, %v7083
      %7085 = vmatmul.bf16.gmra.mxu0 %v7047
      %v7086 = vpop.f32.mrf.mxu0
      %v7087 = vadd.f32 0.0, %v7086
      %v7088 = vpop.f32.mrf.mxu0
      %v7089 = vadd.f32 0.0, %v7088
      %7090 = vmatmul.bf16.gmra.mxu0 %v7050
      %v7091 = vpop.f32.mrf.mxu0
      %v7092 = vadd.f32 0.0, %v7091
      %v7093 = vpop.f32.mrf.mxu0
      %v7094 = vadd.f32 0.0, %v7093
      %7095 = vmatmul.bf16.gmra.mxu0 %v7053
      %v7096 = vpop.f32.mrf.mxu0
      %v7097 = vadd.f32 0.0, %v7096
      %v7098 = vpop.f32.mrf.mxu0
      %v7099 = vadd.f32 0.0, %v7098
      %7100 = vmatmul.bf16.gmra.mxu0 %v7056
      %v7101 = vpop.f32.mrf.mxu0
      %v7102 = vadd.f32 0.0, %v7101
      %v7103 = vpop.f32.mrf.mxu0
      %v7104 = vadd.f32 0.0, %v7103
      %7105 = vmatmul.bf16.gmra.mxu0 %v7059
      %v7106 = vpop.f32.mrf.mxu0
      %v7107 = vadd.f32 0.0, %v7106
      %v7108 = vpop.f32.mrf.mxu0
      %v7109 = vadd.f32 0.0, %v7108
      %7110 = vmatmul.bf16.gmra.mxu0 %v7062
      %v7111 = vpop.f32.mrf.mxu0
      %v7112 = vadd.f32 0.0, %v7111
      %v7113 = vpop.f32.mrf.mxu0
      %v7114 = vadd.f32 0.0, %v7113
      %7115 = vdwg.mxu0
      %v7116 = vadd.f32 %v6976, %v7077
      %v7117 = vadd.f32 %v6977, %v7079
      %v7118 = vadd.f32 %v6978, %v7082
      %v7119 = vadd.f32 %v6979, %v7084
      %v7120 = vadd.f32 %v6980, %v7087
      %v7121 = vadd.f32 %v6981, %v7089
      %v7122 = vadd.f32 %v6982, %v7092
      %v7123 = vadd.f32 %v6983, %v7094
      %v7124 = vadd.f32 %v6984, %v7097
      %v7125 = vadd.f32 %v6985, %v7099
      %v7126 = vadd.f32 %v6986, %v7102
      %v7127 = vadd.f32 %v6987, %v7104
      %v7128 = vadd.f32 %v6988, %v7107
      %v7129 = vadd.f32 %v6989, %v7109
      %v7130 = vadd.f32 %v6990, %v7112
      %v7131 = vadd.f32 %v6991, %v7114
      %v7132 = vld [vmem:[%s6824] sm:$0xf]
      %v7133 = vld [vmem:[%s6824 + $0x4] sm:$0xf]
      %v7134 = vld [vmem:[%s6824 + $0x8] sm:$0x1]
      %v7135 = vld [vmem:[%s6824 + $0xc] sm:$0xf]
      %v7136 = vld [vmem:[%s6824 + $0x10] sm:$0xf]
      %v7137 = vld [vmem:[%s6824 + $0x14] sm:$0x1]
      %v7138 = vld [vmem:[%s6824 + $0x18] sm:$0xf]
      %v7139 = vld [vmem:[%s6824 + $0x1c] sm:$0xf]
      %v7140 = vld [vmem:[%s6824 + $0x20] sm:$0x1]
      %v7141 = vld [vmem:[%s6824 + $0x24] sm:$0xf]
      %v7142 = vld [vmem:[%s6824 + $0x28] sm:$0xf]
      %v7143 = vld [vmem:[%s6824 + $0x2c] sm:$0x1]
      %v7144 = vld [vmem:[%s6824 + $0x30] sm:$0xf]
      %v7145 = vld [vmem:[%s6824 + $0x34] sm:$0xf]
      %v7146 = vld [vmem:[%s6824 + $0x38] sm:$0x1]
      %v7147 = vld [vmem:[%s6824 + $0x3c] sm:$0xf]
      %v7148 = vld [vmem:[%s6824 + $0x40] sm:$0xf]
      %v7149 = vld [vmem:[%s6824 + $0x44] sm:$0x1]
      %v7150 = vld [vmem:[%s6824 + $0x48] sm:$0xf]
      %v7151 = vld [vmem:[%s6824 + $0x4c] sm:$0xf]
      %v7152 = vld [vmem:[%s6824 + $0x50] sm:$0x1]
      %v7153 = vld [vmem:[%s6824 + $0x54] sm:$0xf]
      %v7154 = vld [vmem:[%s6824 + $0x58] sm:$0xf]
      %v7155 = vld [vmem:[%s6824 + $0x5c] sm:$0x1]
      %v7157 = vshrl.u32 %v7132, 16
      %v7159 = vrot.slane %v7157, 4
      %v7160 = vshll.u32 %v7132, 16
      %v7162 = vrot.slane %v7160, 5
      %v7163 = vor.u32 %v7159, %v7162
      %v7164 = vrot.slane %v7163, 4
      %v7166 = vshll.u32 %v7133, 16
      %v7168 = vrot.slane %v7166, 5
      %v7169 = vsel %vm1294, %v7164, %v7168
      %v7170 = vshrl.u32 %v7133, 16
      %v7172 = vrot.slane %v7170, 4
      %v7173 = vor.u32 %v7172, %v7168
      %v7174 = vrot.slane %v7173, 4
      %v7176 = vshll.u32 %v7134, 16
      %v7178 = vrot.slane %v7176, 5
      %v7179 = vsel %vm1294, %v7174, %v7178
      %v7181 = vshrl.u32 %v7135, 16
      %v7183 = vrot.slane %v7181, 4
      %v7184 = vshll.u32 %v7135, 16
      %v7186 = vrot.slane %v7184, 5
      %v7187 = vor.u32 %v7183, %v7186
      %v7188 = vrot.slane %v7187, 4
      %v7190 = vshll.u32 %v7136, 16
      %v7192 = vrot.slane %v7190, 5
      %v7193 = vsel %vm1294, %v7188, %v7192
      %v7194 = vshrl.u32 %v7136, 16
      %v7196 = vrot.slane %v7194, 4
      %v7197 = vor.u32 %v7196, %v7192
      %v7198 = vrot.slane %v7197, 4
      %v7200 = vshll.u32 %v7137, 16
      %v7202 = vrot.slane %v7200, 5
      %v7203 = vsel %vm1294, %v7198, %v7202
      %v7205 = vshrl.u32 %v7138, 16
      %v7207 = vrot.slane %v7205, 4
      %v7208 = vshll.u32 %v7138, 16
      %v7210 = vrot.slane %v7208, 5
      %v7211 = vor.u32 %v7207, %v7210
      %v7212 = vrot.slane %v7211, 4
      %v7214 = vshll.u32 %v7139, 16
      %v7216 = vrot.slane %v7214, 5
      %v7217 = vsel %vm1294, %v7212, %v7216
      %v7218 = vshrl.u32 %v7139, 16
      %v7220 = vrot.slane %v7218, 4
      %v7221 = vor.u32 %v7220, %v7216
      %v7222 = vrot.slane %v7221, 4
      %v7224 = vshll.u32 %v7140, 16
      %v7226 = vrot.slane %v7224, 5
      %v7227 = vsel %vm1294, %v7222, %v7226
      %v7229 = vshrl.u32 %v7141, 16
      %v7231 = vrot.slane %v7229, 4
      %v7232 = vshll.u32 %v7141, 16
      %v7234 = vrot.slane %v7232, 5
      %v7235 = vor.u32 %v7231, %v7234
      %v7236 = vrot.slane %v7235, 4
      %v7238 = vshll.u32 %v7142, 16
      %v7240 = vrot.slane %v7238, 5
      %v7241 = vsel %vm1294, %v7236, %v7240
      %v7242 = vshrl.u32 %v7142, 16
      %v7244 = vrot.slane %v7242, 4
      %v7245 = vor.u32 %v7244, %v7240
      %v7246 = vrot.slane %v7245, 4
      %v7248 = vshll.u32 %v7143, 16
      %v7250 = vrot.slane %v7248, 5
      %v7251 = vsel %vm1294, %v7246, %v7250
      %v7253 = vshrl.u32 %v7144, 16
      %v7255 = vrot.slane %v7253, 4
      %v7256 = vshll.u32 %v7144, 16
      %v7258 = vrot.slane %v7256, 5
      %v7259 = vor.u32 %v7255, %v7258
      %v7260 = vrot.slane %v7259, 4
      %v7262 = vshll.u32 %v7145, 16
      %v7264 = vrot.slane %v7262, 5
      %v7265 = vsel %vm1294, %v7260, %v7264
      %v7266 = vshrl.u32 %v7145, 16
      %v7268 = vrot.slane %v7266, 4
      %v7269 = vor.u32 %v7268, %v7264
      %v7270 = vrot.slane %v7269, 4
      %v7272 = vshll.u32 %v7146, 16
      %v7274 = vrot.slane %v7272, 5
      %v7275 = vsel %vm1294, %v7270, %v7274
      %v7277 = vshrl.u32 %v7147, 16
      %v7279 = vrot.slane %v7277, 4
      %v7280 = vshll.u32 %v7147, 16
      %v7282 = vrot.slane %v7280, 5
      %v7283 = vor.u32 %v7279, %v7282
      %v7284 = vrot.slane %v7283, 4
      %v7286 = vshll.u32 %v7148, 16
      %v7288 = vrot.slane %v7286, 5
      %v7289 = vsel %vm1294, %v7284, %v7288
      %v7290 = vshrl.u32 %v7148, 16
      %v7292 = vrot.slane %v7290, 4
      %v7293 = vor.u32 %v7292, %v7288
      %v7294 = vrot.slane %v7293, 4
      %v7296 = vshll.u32 %v7149, 16
      %v7298 = vrot.slane %v7296, 5
      %v7299 = vsel %vm1294, %v7294, %v7298
      %v7301 = vshrl.u32 %v7150, 16
      %v7303 = vrot.slane %v7301, 4
      %v7304 = vshll.u32 %v7150, 16
      %v7306 = vrot.slane %v7304, 5
      %v7307 = vor.u32 %v7303, %v7306
      %v7308 = vrot.slane %v7307, 4
      %v7310 = vshll.u32 %v7151, 16
      %v7312 = vrot.slane %v7310, 5
      %v7313 = vsel %vm1294, %v7308, %v7312
      %v7314 = vshrl.u32 %v7151, 16
      %v7316 = vrot.slane %v7314, 4
      %v7317 = vor.u32 %v7316, %v7312
      %v7318 = vrot.slane %v7317, 4
      %v7320 = vshll.u32 %v7152, 16
      %v7322 = vrot.slane %v7320, 5
      %v7323 = vsel %vm1294, %v7318, %v7322
      %v7325 = vshrl.u32 %v7153, 16
      %v7327 = vrot.slane %v7325, 4
      %v7328 = vshll.u32 %v7153, 16
      %v7330 = vrot.slane %v7328, 5
      %v7331 = vor.u32 %v7327, %v7330
      %v7332 = vrot.slane %v7331, 4
      %v7334 = vshll.u32 %v7154, 16
      %v7336 = vrot.slane %v7334, 5
      %v7337 = vsel %vm1294, %v7332, %v7336
      %v7338 = vshrl.u32 %v7154, 16
      %v7340 = vrot.slane %v7338, 4
      %v7341 = vor.u32 %v7340, %v7336
      %v7342 = vrot.slane %v7341, 4
      %v7344 = vshll.u32 %v7155, 16
      %v7346 = vrot.slane %v7344, 5
      %v7347 = vsel %vm1294, %v7342, %v7346
      %v7348 = vld [vmem:[%s6841] sm:$0xf]
      %v7349 = vld [vmem:[%s6841 + $0x4] sm:$0xf]
      %v7350 = vld [vmem:[%s6841 + $0x8] sm:$0x1]
      %v7351 = vld [vmem:[%s6841 + $0xc] sm:$0xf]
      %v7352 = vld [vmem:[%s6841 + $0x10] sm:$0xf]
      %v7353 = vld [vmem:[%s6841 + $0x14] sm:$0x1]
      %v7354 = vld [vmem:[%s6841 + $0x18] sm:$0xf]
      %v7355 = vld [vmem:[%s6841 + $0x1c] sm:$0xf]
      %v7356 = vld [vmem:[%s6841 + $0x20] sm:$0x1]
      %v7357 = vld [vmem:[%s6841 + $0x24] sm:$0xf]
      %v7358 = vld [vmem:[%s6841 + $0x28] sm:$0xf]
      %v7359 = vld [vmem:[%s6841 + $0x2c] sm:$0x1]
      %v7360 = vld [vmem:[%s6841 + $0x30] sm:$0xf]
      %v7361 = vld [vmem:[%s6841 + $0x34] sm:$0xf]
      %v7362 = vld [vmem:[%s6841 + $0x38] sm:$0x1]
      %v7363 = vld [vmem:[%s6841 + $0x3c] sm:$0xf]
      %v7364 = vld [vmem:[%s6841 + $0x40] sm:$0xf]
      %v7365 = vld [vmem:[%s6841 + $0x44] sm:$0x1]
      %v7366 = vld [vmem:[%s6841 + $0x48] sm:$0xf]
      %v7367 = vld [vmem:[%s6841 + $0x4c] sm:$0xf]
      %v7368 = vld [vmem:[%s6841 + $0x50] sm:$0x1]
      %v7369 = vld [vmem:[%s6841 + $0x54] sm:$0xf]
      %v7370 = vld [vmem:[%s6841 + $0x58] sm:$0xf]
      %v7371 = vld [vmem:[%s6841 + $0x5c] sm:$0x1]
      %v7373 = vshrl.u32 %v7348, 16
      %v7375 = vrot.slane %v7373, 4
      %v7376 = vshll.u32 %v7348, 16
      %v7378 = vrot.slane %v7376, 5
      %v7379 = vor.u32 %v7375, %v7378
      %v7380 = vrot.slane %v7379, 4
      %v7382 = vshll.u32 %v7349, 16
      %v7384 = vrot.slane %v7382, 5
      %v7385 = vsel %vm1294, %v7380, %v7384
      %v7386 = vshrl.u32 %v7349, 16
      %v7388 = vrot.slane %v7386, 4
      %v7389 = vor.u32 %v7388, %v7384
      %v7390 = vrot.slane %v7389, 4
      %v7392 = vshll.u32 %v7350, 16
      %v7394 = vrot.slane %v7392, 5
      %v7395 = vsel %vm1294, %v7390, %v7394
      %v7397 = vshrl.u32 %v7351, 16
      %v7399 = vrot.slane %v7397, 4
      %v7400 = vshll.u32 %v7351, 16
      %v7402 = vrot.slane %v7400, 5
      %v7403 = vor.u32 %v7399, %v7402
      %v7404 = vrot.slane %v7403, 4
      %v7406 = vshll.u32 %v7352, 16
      %v7408 = vrot.slane %v7406, 5
      %v7409 = vsel %vm1294, %v7404, %v7408
      %v7410 = vshrl.u32 %v7352, 16
      %v7412 = vrot.slane %v7410, 4
      %v7413 = vor.u32 %v7412, %v7408
      %v7414 = vrot.slane %v7413, 4
      %v7416 = vshll.u32 %v7353, 16
      %v7418 = vrot.slane %v7416, 5
      %v7419 = vsel %vm1294, %v7414, %v7418
      %v7421 = vshrl.u32 %v7354, 16
      %v7423 = vrot.slane %v7421, 4
      %v7424 = vshll.u32 %v7354, 16
      %v7426 = vrot.slane %v7424, 5
      %v7427 = vor.u32 %v7423, %v7426
      %v7428 = vrot.slane %v7427, 4
      %v7430 = vshll.u32 %v7355, 16
      %v7432 = vrot.slane %v7430, 5
      %v7433 = vsel %vm1294, %v7428, %v7432
      %v7434 = vshrl.u32 %v7355, 16
      %v7436 = vrot.slane %v7434, 4
      %v7437 = vor.u32 %v7436, %v7432
      %v7438 = vrot.slane %v7437, 4
      %v7440 = vshll.u32 %v7356, 16
      %v7442 = vrot.slane %v7440, 5
      %v7443 = vsel %vm1294, %v7438, %v7442
      %v7445 = vshrl.u32 %v7357, 16
      %v7447 = vrot.slane %v7445, 4
      %v7448 = vshll.u32 %v7357, 16
      %v7450 = vrot.slane %v7448, 5
      %v7451 = vor.u32 %v7447, %v7450
      %v7452 = vrot.slane %v7451, 4
      %v7454 = vshll.u32 %v7358, 16
      %v7456 = vrot.slane %v7454, 5
      %v7457 = vsel %vm1294, %v7452, %v7456
      %v7458 = vshrl.u32 %v7358, 16
      %v7460 = vrot.slane %v7458, 4
      %v7461 = vor.u32 %v7460, %v7456
      %v7462 = vrot.slane %v7461, 4
      %v7464 = vshll.u32 %v7359, 16
      %v7466 = vrot.slane %v7464, 5
      %v7467 = vsel %vm1294, %v7462, %v7466
      %v7469 = vshrl.u32 %v7360, 16
      %v7471 = vrot.slane %v7469, 4
      %v7472 = vshll.u32 %v7360, 16
      %v7474 = vrot.slane %v7472, 5
      %v7475 = vor.u32 %v7471, %v7474
      %v7476 = vrot.slane %v7475, 4
      %v7478 = vshll.u32 %v7361, 16
      %v7480 = vrot.slane %v7478, 5
      %v7481 = vsel %vm1294, %v7476, %v7480
      %v7482 = vshrl.u32 %v7361, 16
      %v7484 = vrot.slane %v7482, 4
      %v7485 = vor.u32 %v7484, %v7480
      %v7486 = vrot.slane %v7485, 4
      %v7488 = vshll.u32 %v7362, 16
      %v7490 = vrot.slane %v7488, 5
      %v7491 = vsel %vm1294, %v7486, %v7490
      %v7493 = vshrl.u32 %v7363, 16
      %v7495 = vrot.slane %v7493, 4
      %v7496 = vshll.u32 %v7363, 16
      %v7498 = vrot.slane %v7496, 5
      %v7499 = vor.u32 %v7495, %v7498
      %v7500 = vrot.slane %v7499, 4
      %v7502 = vshll.u32 %v7364, 16
      %v7504 = vrot.slane %v7502, 5
      %v7505 = vsel %vm1294, %v7500, %v7504
      %v7506 = vshrl.u32 %v7364, 16
      %v7508 = vrot.slane %v7506, 4
      %v7509 = vor.u32 %v7508, %v7504
      %v7510 = vrot.slane %v7509, 4
      %v7512 = vshll.u32 %v7365, 16
      %v7514 = vrot.slane %v7512, 5
      %v7515 = vsel %vm1294, %v7510, %v7514
      %v7517 = vshrl.u32 %v7366, 16
      %v7519 = vrot.slane %v7517, 4
      %v7520 = vshll.u32 %v7366, 16
      %v7522 = vrot.slane %v7520, 5
      %v7523 = vor.u32 %v7519, %v7522
      %v7524 = vrot.slane %v7523, 4
      %v7526 = vshll.u32 %v7367, 16
      %v7528 = vrot.slane %v7526, 5
      %v7529 = vsel %vm1294, %v7524, %v7528
      %v7530 = vshrl.u32 %v7367, 16
      %v7532 = vrot.slane %v7530, 4
      %v7533 = vor.u32 %v7532, %v7528
      %v7534 = vrot.slane %v7533, 4
      %v7536 = vshll.u32 %v7368, 16
      %v7538 = vrot.slane %v7536, 5
      %v7539 = vsel %vm1294, %v7534, %v7538
      %v7541 = vshrl.u32 %v7369, 16
      %v7543 = vrot.slane %v7541, 4
      %v7544 = vshll.u32 %v7369, 16
      %v7546 = vrot.slane %v7544, 5
      %v7547 = vor.u32 %v7543, %v7546
      %v7548 = vrot.slane %v7547, 4
      %v7550 = vshll.u32 %v7370, 16
      %v7552 = vrot.slane %v7550, 5
      %v7553 = vsel %vm1294, %v7548, %v7552
      %v7554 = vshrl.u32 %v7370, 16
      %v7556 = vrot.slane %v7554, 4
      %v7557 = vor.u32 %v7556, %v7552
      %v7558 = vrot.slane %v7557, 4
      %v7560 = vshll.u32 %v7371, 16
      %v7562 = vrot.slane %v7560, 5
      %v7563 = vsel %vm1294, %v7558, %v7562
      %s7564 = scalar_lea.vmem %s4, 14
      %v7565 = vld [vmem:[%s7564] sm:$0x3]
      %v7566 = vunpack.c.l.b16 %v7169
      %v7567 = vunpack.c.l.b16 %v7179
      %v7568 = vunpack.c.l.b16 %v7193
      %v7569 = vunpack.c.l.b16 %v7203
      %v7570 = vunpack.c.l.b16 %v7217
      %v7571 = vunpack.c.l.b16 %v7227
      %v7572 = vunpack.c.l.b16 %v7241
      %v7573 = vunpack.c.l.b16 %v7251
      %v7574 = vunpack.c.l.b16 %v7265
      %v7575 = vunpack.c.l.b16 %v7275
      %v7576 = vunpack.c.l.b16 %v7289
      %v7577 = vunpack.c.l.b16 %v7299
      %v7578 = vunpack.c.l.b16 %v7313
      %v7579 = vunpack.c.l.b16 %v7323
      %v7580 = vunpack.c.l.b16 %v7337
      %v7581 = vunpack.c.l.b16 %v7347
      %v7582 = vpack.c.b16 %v7567, %v7566
      %v7583 = vpack.c.b16 %v7569, %v7568
      %v7584 = vpack.c.b16 %v7571, %v7570
      %v7585 = vpack.c.b16 %v7573, %v7572
      %v7586 = vpack.c.b16 %v7575, %v7574
      %v7587 = vpack.c.b16 %v7577, %v7576
      %v7588 = vpack.c.b16 %v7579, %v7578
      %v7589 = vpack.c.b16 %v7581, %v7580
      %v7591 = vsel %vm396, %v7582, 0
      %v7594 = vsel %vm396, %v7583, 0
      %v7597 = vsel %vm396, %v7584, 0
      %v7600 = vsel %vm396, %v7585, 0
      %v7603 = vsel %vm396, %v7586, 0
      %v7606 = vsel %vm396, %v7587, 0
      %v7609 = vsel %vm396, %v7588, 0
      %v7612 = vsel %vm396, %v7589, 0
      %v7615 = vsel %vm433, %v7565, 0
      %7617 = vmatpush.bf16.msra.mxu0 0
      %7618 = vmatpush.bf16.msra.mxu0 0
      %7619 = vmatpush.bf16.msra.mxu0 0
      %7620 = vmatpush.bf16.msra.mxu0 0
      %7621 = vmatpush.bf16.msra.mxu0 0
      %7622 = vmatpush.bf16.msra.mxu0 0
      %7623 = vmatpush.bf16.msra.mxu0 0
      %7624 = vmatpush.bf16.msra.mxu0 %v7615
      %7625 = vmatmul.bf16.gmra.mxu0 %v7591
      %v7626 = vpop.f32.mrf.mxu0
      %v7627 = vadd.f32 0.0, %v7626
      %v7628 = vpop.f32.mrf.mxu0
      %v7629 = vadd.f32 0.0, %v7628
      %7630 = vmatmul.bf16.gmra.mxu0 %v7594
      %v7631 = vpop.f32.mrf.mxu0
      %v7632 = vadd.f32 0.0, %v7631
      %v7633 = vpop.f32.mrf.mxu0
      %v7634 = vadd.f32 0.0, %v7633
      %7635 = vmatmul.bf16.gmra.mxu0 %v7597
      %v7636 = vpop.f32.mrf.mxu0
      %v7637 = vadd.f32 0.0, %v7636
      %v7638 = vpop.f32.mrf.mxu0
      %v7639 = vadd.f32 0.0, %v7638
      %7640 = vmatmul.bf16.gmra.mxu0 %v7600
      %v7641 = vpop.f32.mrf.mxu0
      %v7642 = vadd.f32 0.0, %v7641
      %v7643 = vpop.f32.mrf.mxu0
      %v7644 = vadd.f32 0.0, %v7643
      %7645 = vmatmul.bf16.gmra.mxu0 %v7603
      %v7646 = vpop.f32.mrf.mxu0
      %v7647 = vadd.f32 0.0, %v7646
      %v7648 = vpop.f32.mrf.mxu0
      %v7649 = vadd.f32 0.0, %v7648
      %7650 = vmatmul.bf16.gmra.mxu0 %v7606
      %v7651 = vpop.f32.mrf.mxu0
      %v7652 = vadd.f32 0.0, %v7651
      %v7653 = vpop.f32.mrf.mxu0
      %v7654 = vadd.f32 0.0, %v7653
      %7655 = vmatmul.bf16.gmra.mxu0 %v7609
      %v7656 = vpop.f32.mrf.mxu0
      %v7657 = vadd.f32 0.0, %v7656
      %v7658 = vpop.f32.mrf.mxu0
      %v7659 = vadd.f32 0.0, %v7658
      %7660 = vmatmul.bf16.gmra.mxu0 %v7612
      %v7661 = vpop.f32.mrf.mxu0
      %v7662 = vadd.f32 0.0, %v7661
      %v7663 = vpop.f32.mrf.mxu0
      %v7664 = vadd.f32 0.0, %v7663
      %7665 = vdwg.mxu0
      %v7666 = vadd.f32 %v7116, %v7627
      %v7667 = vadd.f32 %v7117, %v7629
      %v7668 = vadd.f32 %v7118, %v7632
      %v7669 = vadd.f32 %v7119, %v7634
      %v7670 = vadd.f32 %v7120, %v7637
      %v7671 = vadd.f32 %v7121, %v7639
      %v7672 = vadd.f32 %v7122, %v7642
      %v7673 = vadd.f32 %v7123, %v7644
      %v7674 = vadd.f32 %v7124, %v7647
      %v7675 = vadd.f32 %v7125, %v7649
      %v7676 = vadd.f32 %v7126, %v7652
      %v7677 = vadd.f32 %v7127, %v7654
      %v7678 = vadd.f32 %v7128, %v7657
      %v7679 = vadd.f32 %v7129, %v7659
      %v7680 = vadd.f32 %v7130, %v7662
      %v7681 = vadd.f32 %v7131, %v7664
      %s7682 = scalar_lea.vmem %s5, 56
      %v7683 = vld [vmem:[%s7682] sm:$0xf]
      %v7684 = vld [vmem:[%s7682 + $0x4] sm:$0x3]
      %v7685 = vunpack.c.l.b16 %v7385
      %v7686 = vunpack.c.l.b16 %v7395
      %v7687 = vunpack.c.l.b16 %v7409
      %v7688 = vunpack.c.l.b16 %v7419
      %v7689 = vunpack.c.l.b16 %v7433
      %v7690 = vunpack.c.l.b16 %v7443
      %v7691 = vunpack.c.l.b16 %v7457
      %v7692 = vunpack.c.l.b16 %v7467
      %v7693 = vunpack.c.l.b16 %v7481
      %v7694 = vunpack.c.l.b16 %v7491
      %v7695 = vunpack.c.l.b16 %v7505
      %v7696 = vunpack.c.l.b16 %v7515
      %v7697 = vunpack.c.l.b16 %v7529
      %v7698 = vunpack.c.l.b16 %v7539
      %v7699 = vunpack.c.l.b16 %v7553
      %v7700 = vunpack.c.l.b16 %v7563
      %v7701 = vpack.c.b16 %v7686, %v7685
      %v7702 = vpack.c.b16 %v7688, %v7687
      %v7703 = vpack.c.b16 %v7690, %v7689
      %v7704 = vpack.c.b16 %v7692, %v7691
      %v7705 = vpack.c.b16 %v7694, %v7693
      %v7706 = vpack.c.b16 %v7696, %v7695
      %v7707 = vpack.c.b16 %v7698, %v7697
      %v7708 = vpack.c.b16 %v7700, %v7699
      %v7711 = vunpack.c.l.b16 %v7683
      %v7712 = vunpack.c.l.b16 %v7684
      %v7713 = vpack.c.b16 %v7712, %v7711
      %v7715 = vsel %vm4139, %v7701, 0
      %v7718 = vsel %vm4139, %v7702, 0
      %v7721 = vsel %vm4139, %v7703, 0
      %v7724 = vsel %vm4139, %v7704, 0
      %v7727 = vsel %vm4139, %v7705, 0
      %v7730 = vsel %vm4139, %v7706, 0
      %v7733 = vsel %vm4139, %v7707, 0
      %v7736 = vsel %vm4139, %v7708, 0
      %v7739 = vsel %vm4164, %v7713, 0
      %7741 = vmatpush.bf16.msra.mxu0 0
      %7742 = vmatpush.bf16.msra.mxu0 0
      %7743 = vmatpush.bf16.msra.mxu0 0
      %7744 = vmatpush.bf16.msra.mxu0 0
      %7745 = vmatpush.bf16.msra.mxu0 0
      %7746 = vmatpush.bf16.msra.mxu0 0
      %7747 = vmatpush.bf16.msra.mxu0 0
      %7748 = vmatpush.bf16.msra.mxu0 %v7739
      %7749 = vmatmul.bf16.gmra.mxu0 %v7715
      %v7750 = vpop.f32.mrf.mxu0
      %v7751 = vadd.f32 0.0, %v7750
      %v7752 = vpop.f32.mrf.mxu0
      %v7753 = vadd.f32 0.0, %v7752
      %7754 = vmatmul.bf16.gmra.mxu0 %v7718
      %v7755 = vpop.f32.mrf.mxu0
      %v7756 = vadd.f32 0.0, %v7755
      %v7757 = vpop.f32.mrf.mxu0
      %v7758 = vadd.f32 0.0, %v7757
      %7759 = vmatmul.bf16.gmra.mxu0 %v7721
      %v7760 = vpop.f32.mrf.mxu0
      %v7761 = vadd.f32 0.0, %v7760
      %v7762 = vpop.f32.mrf.mxu0
      %v7763 = vadd.f32 0.0, %v7762
      %7764 = vmatmul.bf16.gmra.mxu0 %v7724
      %v7765 = vpop.f32.mrf.mxu0
      %v7766 = vadd.f32 0.0, %v7765
      %v7767 = vpop.f32.mrf.mxu0
      %v7768 = vadd.f32 0.0, %v7767
      %7769 = vmatmul.bf16.gmra.mxu0 %v7727
      %v7770 = vpop.f32.mrf.mxu0
      %v7771 = vadd.f32 0.0, %v7770
      %v7772 = vpop.f32.mrf.mxu0
      %v7773 = vadd.f32 0.0, %v7772
      %7774 = vmatmul.bf16.gmra.mxu0 %v7730
      %v7775 = vpop.f32.mrf.mxu0
      %v7776 = vadd.f32 0.0, %v7775
      %v7777 = vpop.f32.mrf.mxu0
      %v7778 = vadd.f32 0.0, %v7777
      %7779 = vmatmul.bf16.gmra.mxu0 %v7733
      %v7780 = vpop.f32.mrf.mxu0
      %v7781 = vadd.f32 0.0, %v7780
      %v7782 = vpop.f32.mrf.mxu0
      %v7783 = vadd.f32 0.0, %v7782
      %7784 = vmatmul.bf16.gmra.mxu0 %v7736
      %v7785 = vpop.f32.mrf.mxu0
      %v7786 = vadd.f32 0.0, %v7785
      %v7787 = vpop.f32.mrf.mxu0
      %v7788 = vadd.f32 0.0, %v7787
      %7789 = vdwg.mxu0
      %v7790 = vadd.f32 %v7666, %v7751
      %v7791 = vadd.f32 %v7667, %v7753
      %v7792 = vadd.f32 %v7668, %v7756
      %v7793 = vadd.f32 %v7669, %v7758
      %v7794 = vadd.f32 %v7670, %v7761
      %v7795 = vadd.f32 %v7671, %v7763
      %v7796 = vadd.f32 %v7672, %v7766
      %v7797 = vadd.f32 %v7673, %v7768
      %v7798 = vadd.f32 %v7674, %v7771
      %v7799 = vadd.f32 %v7675, %v7773
      %v7800 = vadd.f32 %v7676, %v7776
      %v7801 = vadd.f32 %v7677, %v7778
      %v7802 = vadd.f32 %v7678, %v7781
      %v7803 = vadd.f32 %v7679, %v7783
      %v7804 = vadd.f32 %v7680, %v7786
      %v7805 = vadd.f32 %v7681, %v7788
      %v7806 = vld [vmem:[%s6824] sm:$0xe]
      %v7807 = vld [vmem:[%s6824 + $0xc] sm:$0xe]
      %v7808 = vld [vmem:[%s6824 + $0x18] sm:$0xe]
      %v7809 = vld [vmem:[%s6824 + $0x24] sm:$0xe]
      %v7810 = vld [vmem:[%s6824 + $0x30] sm:$0xe]
      %v7811 = vld [vmem:[%s6824 + $0x3c] sm:$0xe]
      %v7812 = vld [vmem:[%s6824 + $0x48] sm:$0xe]
      %v7813 = vld [vmem:[%s6824 + $0x54] sm:$0xe]
      %v7838 = vrot.slane %v7806, 5
      %v7839 = vrot.slane %v7838, 4
      %v7840 = vrot.slane %v7133, 5
      %v7841 = vsel %vm1833, %v7839, %v7840
      %v7842 = vrot.slane %v7840, 4
      %v7843 = vrot.slane %v7134, 5
      %v7844 = vsel %vm1833, %v7842, %v7843
      %v7845 = vrot.slane %v7807, 5
      %v7846 = vrot.slane %v7845, 4
      %v7847 = vrot.slane %v7136, 5
      %v7848 = vsel %vm1833, %v7846, %v7847
      %v7849 = vrot.slane %v7847, 4
      %v7850 = vrot.slane %v7137, 5
      %v7851 = vsel %vm1833, %v7849, %v7850
      %v7852 = vrot.slane %v7808, 5
      %v7853 = vrot.slane %v7852, 4
      %v7854 = vrot.slane %v7139, 5
      %v7855 = vsel %vm1833, %v7853, %v7854
      %v7856 = vrot.slane %v7854, 4
      %v7857 = vrot.slane %v7140, 5
      %v7858 = vsel %vm1833, %v7856, %v7857
      %v7859 = vrot.slane %v7809, 5
      %v7860 = vrot.slane %v7859, 4
      %v7861 = vrot.slane %v7142, 5
      %v7862 = vsel %vm1833, %v7860, %v7861
      %v7863 = vrot.slane %v7861, 4
      %v7864 = vrot.slane %v7143, 5
      %v7865 = vsel %vm1833, %v7863, %v7864
      %v7866 = vrot.slane %v7810, 5
      %v7867 = vrot.slane %v7866, 4
      %v7868 = vrot.slane %v7145, 5
      %v7869 = vsel %vm1833, %v7867, %v7868
      %v7870 = vrot.slane %v7868, 4
      %v7871 = vrot.slane %v7146, 5
      %v7872 = vsel %vm1833, %v7870, %v7871
      %v7873 = vrot.slane %v7811, 5
      %v7874 = vrot.slane %v7873, 4
      %v7875 = vrot.slane %v7148, 5
      %v7876 = vsel %vm1833, %v7874, %v7875
      %v7877 = vrot.slane %v7875, 4
      %v7878 = vrot.slane %v7149, 5
      %v7879 = vsel %vm1833, %v7877, %v7878
      %v7880 = vrot.slane %v7812, 5
      %v7881 = vrot.slane %v7880, 4
      %v7882 = vrot.slane %v7151, 5
      %v7883 = vsel %vm1833, %v7881, %v7882
      %v7884 = vrot.slane %v7882, 4
      %v7885 = vrot.slane %v7152, 5
      %v7886 = vsel %vm1833, %v7884, %v7885
      %v7887 = vrot.slane %v7813, 5
      %v7888 = vrot.slane %v7887, 4
      %v7889 = vrot.slane %v7154, 5
      %v7890 = vsel %vm1833, %v7888, %v7889
      %v7891 = vrot.slane %v7889, 4
      %v7892 = vrot.slane %v7155, 5
      %v7893 = vsel %vm1833, %v7891, %v7892
      %v7894 = vld [vmem:[%s6841] sm:$0xe]
      %v7895 = vld [vmem:[%s6841 + $0xc] sm:$0xe]
      %v7896 = vld [vmem:[%s6841 + $0x18] sm:$0xe]
      %v7897 = vld [vmem:[%s6841 + $0x24] sm:$0xe]
      %v7898 = vld [vmem:[%s6841 + $0x30] sm:$0xe]
      %v7899 = vld [vmem:[%s6841 + $0x3c] sm:$0xe]
      %v7900 = vld [vmem:[%s6841 + $0x48] sm:$0xe]
      %v7901 = vld [vmem:[%s6841 + $0x54] sm:$0xe]
      %v7926 = vrot.slane %v7894, 5
      %v7927 = vrot.slane %v7926, 4
      %v7928 = vrot.slane %v7349, 5
      %v7929 = vsel %vm1833, %v7927, %v7928
      %v7930 = vrot.slane %v7928, 4
      %v7931 = vrot.slane %v7350, 5
      %v7932 = vsel %vm1833, %v7930, %v7931
      %v7933 = vrot.slane %v7895, 5
      %v7934 = vrot.slane %v7933, 4
      %v7935 = vrot.slane %v7352, 5
      %v7936 = vsel %vm1833, %v7934, %v7935
      %v7937 = vrot.slane %v7935, 4
      %v7938 = vrot.slane %v7353, 5
      %v7939 = vsel %vm1833, %v7937, %v7938
      %v7940 = vrot.slane %v7896, 5
      %v7941 = vrot.slane %v7940, 4
      %v7942 = vrot.slane %v7355, 5
      %v7943 = vsel %vm1833, %v7941, %v7942
      %v7944 = vrot.slane %v7942, 4
      %v7945 = vrot.slane %v7356, 5
      %v7946 = vsel %vm1833, %v7944, %v7945
      %v7947 = vrot.slane %v7897, 5
      %v7948 = vrot.slane %v7947, 4
      %v7949 = vrot.slane %v7358, 5
      %v7950 = vsel %vm1833, %v7948, %v7949
      %v7951 = vrot.slane %v7949, 4
      %v7952 = vrot.slane %v7359, 5
      %v7953 = vsel %vm1833, %v7951, %v7952
      %v7954 = vrot.slane %v7898, 5
      %v7955 = vrot.slane %v7954, 4
      %v7956 = vrot.slane %v7361, 5
      %v7957 = vsel %vm1833, %v7955, %v7956
      %v7958 = vrot.slane %v7956, 4
      %v7959 = vrot.slane %v7362, 5
      %v7960 = vsel %vm1833, %v7958, %v7959
      %v7961 = vrot.slane %v7899, 5
      %v7962 = vrot.slane %v7961, 4
      %v7963 = vrot.slane %v7364, 5
      %v7964 = vsel %vm1833, %v7962, %v7963
      %v7965 = vrot.slane %v7963, 4
      %v7966 = vrot.slane %v7365, 5
      %v7967 = vsel %vm1833, %v7965, %v7966
      %v7968 = vrot.slane %v7900, 5
      %v7969 = vrot.slane %v7968, 4
      %v7970 = vrot.slane %v7367, 5
      %v7971 = vsel %vm1833, %v7969, %v7970
      %v7972 = vrot.slane %v7970, 4
      %v7973 = vrot.slane %v7368, 5
      %v7974 = vsel %vm1833, %v7972, %v7973
      %v7975 = vrot.slane %v7901, 5
      %v7976 = vrot.slane %v7975, 4
      %v7977 = vrot.slane %v7370, 5
      %v7978 = vsel %vm1833, %v7976, %v7977
      %v7979 = vrot.slane %v7977, 4
      %v7980 = vrot.slane %v7371, 5
      %v7981 = vsel %vm1833, %v7979, %v7980
      %s7982 = scalar_lea.vmem %s4, 16
      %v7983 = vld [vmem:[%s7982] sm:$0x3]
      %v7984 = vunpack.c.l.b16 %v7841
      %v7985 = vunpack.c.l.b16 %v7844
      %v7986 = vunpack.c.l.b16 %v7848
      %v7987 = vunpack.c.l.b16 %v7851
      %v7988 = vunpack.c.l.b16 %v7855
      %v7989 = vunpack.c.l.b16 %v7858
      %v7990 = vunpack.c.l.b16 %v7862
      %v7991 = vunpack.c.l.b16 %v7865
      %v7992 = vunpack.c.l.b16 %v7869
      %v7993 = vunpack.c.l.b16 %v7872
      %v7994 = vunpack.c.l.b16 %v7876
      %v7995 = vunpack.c.l.b16 %v7879
      %v7996 = vunpack.c.l.b16 %v7883
      %v7997 = vunpack.c.l.b16 %v7886
      %v7998 = vunpack.c.l.b16 %v7890
      %v7999 = vunpack.c.l.b16 %v7893
      %v8000 = vpack.c.b16 %v7985, %v7984
      %v8001 = vpack.c.b16 %v7987, %v7986
      %v8002 = vpack.c.b16 %v7989, %v7988
      %v8003 = vpack.c.b16 %v7991, %v7990
      %v8004 = vpack.c.b16 %v7993, %v7992
      %v8005 = vpack.c.b16 %v7995, %v7994
      %v8006 = vpack.c.b16 %v7997, %v7996
      %v8007 = vpack.c.b16 %v7999, %v7998
      %v8009 = vsel %vm396, %v8000, 0
      %v8012 = vsel %vm396, %v8001, 0
      %v8015 = vsel %vm396, %v8002, 0
      %v8018 = vsel %vm396, %v8003, 0
      %v8021 = vsel %vm396, %v8004, 0
      %v8024 = vsel %vm396, %v8005, 0
      %v8027 = vsel %vm396, %v8006, 0
      %v8030 = vsel %vm396, %v8007, 0
      %v8033 = vsel %vm433, %v7983, 0
      %8035 = vmatpush.bf16.msra.mxu0 0
      %8036 = vmatpush.bf16.msra.mxu0 0
      %8037 = vmatpush.bf16.msra.mxu0 0
      %8038 = vmatpush.bf16.msra.mxu0 0
      %8039 = vmatpush.bf16.msra.mxu0 0
      %8040 = vmatpush.bf16.msra.mxu0 0
      %8041 = vmatpush.bf16.msra.mxu0 0
      %8042 = vmatpush.bf16.msra.mxu0 %v8033
      %8043 = vmatmul.bf16.gmra.mxu0 %v8009
      %v8044 = vpop.f32.mrf.mxu0
      %v8045 = vadd.f32 0.0, %v8044
      %v8046 = vpop.f32.mrf.mxu0
      %v8047 = vadd.f32 0.0, %v8046
      %8048 = vmatmul.bf16.gmra.mxu0 %v8012
      %v8049 = vpop.f32.mrf.mxu0
      %v8050 = vadd.f32 0.0, %v8049
      %v8051 = vpop.f32.mrf.mxu0
      %v8052 = vadd.f32 0.0, %v8051
      %8053 = vmatmul.bf16.gmra.mxu0 %v8015
      %v8054 = vpop.f32.mrf.mxu0
      %v8055 = vadd.f32 0.0, %v8054
      %v8056 = vpop.f32.mrf.mxu0
      %v8057 = vadd.f32 0.0, %v8056
      %8058 = vmatmul.bf16.gmra.mxu0 %v8018
      %v8059 = vpop.f32.mrf.mxu0
      %v8060 = vadd.f32 0.0, %v8059
      %v8061 = vpop.f32.mrf.mxu0
      %v8062 = vadd.f32 0.0, %v8061
      %8063 = vmatmul.bf16.gmra.mxu0 %v8021
      %v8064 = vpop.f32.mrf.mxu0
      %v8065 = vadd.f32 0.0, %v8064
      %v8066 = vpop.f32.mrf.mxu0
      %v8067 = vadd.f32 0.0, %v8066
      %8068 = vmatmul.bf16.gmra.mxu0 %v8024
      %v8069 = vpop.f32.mrf.mxu0
      %v8070 = vadd.f32 0.0, %v8069
      %v8071 = vpop.f32.mrf.mxu0
      %v8072 = vadd.f32 0.0, %v8071
      %8073 = vmatmul.bf16.gmra.mxu0 %v8027
      %v8074 = vpop.f32.mrf.mxu0
      %v8075 = vadd.f32 0.0, %v8074
      %v8076 = vpop.f32.mrf.mxu0
      %v8077 = vadd.f32 0.0, %v8076
      %8078 = vmatmul.bf16.gmra.mxu0 %v8030
      %v8079 = vpop.f32.mrf.mxu0
      %v8080 = vadd.f32 0.0, %v8079
      %v8081 = vpop.f32.mrf.mxu0
      %v8082 = vadd.f32 0.0, %v8081
      %8083 = vdwg.mxu0
      %v8084 = vadd.f32 %v7790, %v8045
      %v8085 = vadd.f32 %v7791, %v8047
      %v8086 = vadd.f32 %v7792, %v8050
      %v8087 = vadd.f32 %v7793, %v8052
      %v8088 = vadd.f32 %v7794, %v8055
      %v8089 = vadd.f32 %v7795, %v8057
      %v8090 = vadd.f32 %v7796, %v8060
      %v8091 = vadd.f32 %v7797, %v8062
      %v8092 = vadd.f32 %v7798, %v8065
      %v8093 = vadd.f32 %v7799, %v8067
      %v8094 = vadd.f32 %v7800, %v8070
      %v8095 = vadd.f32 %v7801, %v8072
      %v8096 = vadd.f32 %v7802, %v8075
      %v8097 = vadd.f32 %v7803, %v8077
      %v8098 = vadd.f32 %v7804, %v8080
      %v8099 = vadd.f32 %v7805, %v8082
      %s8100 = scalar_lea.vmem %s5, 64
      %v8101 = vld [vmem:[%s8100] sm:$0xf]
      %v8102 = vld [vmem:[%s8100 + $0x4] sm:$0x3]
      %v8103 = vunpack.c.l.b16 %v7929
      %v8104 = vunpack.c.l.b16 %v7932
      %v8105 = vunpack.c.l.b16 %v7936
      %v8106 = vunpack.c.l.b16 %v7939
      %v8107 = vunpack.c.l.b16 %v7943
      %v8108 = vunpack.c.l.b16 %v7946
      %v8109 = vunpack.c.l.b16 %v7950
      %v8110 = vunpack.c.l.b16 %v7953
      %v8111 = vunpack.c.l.b16 %v7957
      %v8112 = vunpack.c.l.b16 %v7960
      %v8113 = vunpack.c.l.b16 %v7964
      %v8114 = vunpack.c.l.b16 %v7967
      %v8115 = vunpack.c.l.b16 %v7971
      %v8116 = vunpack.c.l.b16 %v7974
      %v8117 = vunpack.c.l.b16 %v7978
      %v8118 = vunpack.c.l.b16 %v7981
      %v8119 = vpack.c.b16 %v8104, %v8103
      %v8120 = vpack.c.b16 %v8106, %v8105
      %v8121 = vpack.c.b16 %v8108, %v8107
      %v8122 = vpack.c.b16 %v8110, %v8109
      %v8123 = vpack.c.b16 %v8112, %v8111
      %v8124 = vpack.c.b16 %v8114, %v8113
      %v8125 = vpack.c.b16 %v8116, %v8115
      %v8126 = vpack.c.b16 %v8118, %v8117
      %v8129 = vunpack.c.l.b16 %v8101
      %v8130 = vunpack.c.l.b16 %v8102
      %v8131 = vpack.c.b16 %v8130, %v8129
      %v8133 = vsel %vm4139, %v8119, 0
      %v8136 = vsel %vm4139, %v8120, 0
      %v8139 = vsel %vm4139, %v8121, 0
      %v8142 = vsel %vm4139, %v8122, 0
      %v8145 = vsel %vm4139, %v8123, 0
      %v8148 = vsel %vm4139, %v8124, 0
      %v8151 = vsel %vm4139, %v8125, 0
      %v8154 = vsel %vm4139, %v8126, 0
      %v8157 = vsel %vm4164, %v8131, 0
      %8159 = vmatpush.bf16.msra.mxu0 0
      %8160 = vmatpush.bf16.msra.mxu0 0
      %8161 = vmatpush.bf16.msra.mxu0 0
      %8162 = vmatpush.bf16.msra.mxu0 0
      %8163 = vmatpush.bf16.msra.mxu0 0
      %8164 = vmatpush.bf16.msra.mxu0 0
      %8165 = vmatpush.bf16.msra.mxu0 0
      %8166 = vmatpush.bf16.msra.mxu0 %v8157
      %8167 = vmatmul.bf16.gmra.mxu0 %v8133
      %v8168 = vpop.f32.mrf.mxu0
      %v8169 = vadd.f32 0.0, %v8168
      %v8170 = vpop.f32.mrf.mxu0
      %v8171 = vadd.f32 0.0, %v8170
      %8172 = vmatmul.bf16.gmra.mxu0 %v8136
      %v8173 = vpop.f32.mrf.mxu0
      %v8174 = vadd.f32 0.0, %v8173
      %v8175 = vpop.f32.mrf.mxu0
      %v8176 = vadd.f32 0.0, %v8175
      %8177 = vmatmul.bf16.gmra.mxu0 %v8139
      %v8178 = vpop.f32.mrf.mxu0
      %v8179 = vadd.f32 0.0, %v8178
      %v8180 = vpop.f32.mrf.mxu0
      %v8181 = vadd.f32 0.0, %v8180
      %8182 = vmatmul.bf16.gmra.mxu0 %v8142
      %v8183 = vpop.f32.mrf.mxu0
      %v8184 = vadd.f32 0.0, %v8183
      %v8185 = vpop.f32.mrf.mxu0
      %v8186 = vadd.f32 0.0, %v8185
      %8187 = vmatmul.bf16.gmra.mxu0 %v8145
      %v8188 = vpop.f32.mrf.mxu0
      %v8189 = vadd.f32 0.0, %v8188
      %v8190 = vpop.f32.mrf.mxu0
      %v8191 = vadd.f32 0.0, %v8190
      %8192 = vmatmul.bf16.gmra.mxu0 %v8148
      %v8193 = vpop.f32.mrf.mxu0
      %v8194 = vadd.f32 0.0, %v8193
      %v8195 = vpop.f32.mrf.mxu0
      %v8196 = vadd.f32 0.0, %v8195
      %8197 = vmatmul.bf16.gmra.mxu0 %v8151
      %v8198 = vpop.f32.mrf.mxu0
      %v8199 = vadd.f32 0.0, %v8198
      %v8200 = vpop.f32.mrf.mxu0
      %v8201 = vadd.f32 0.0, %v8200
      %8202 = vmatmul.bf16.gmra.mxu0 %v8154
      %v8203 = vpop.f32.mrf.mxu0
      %v8204 = vadd.f32 0.0, %v8203
      %v8205 = vpop.f32.mrf.mxu0
      %v8206 = vadd.f32 0.0, %v8205
      %8207 = vdwg.mxu0
      %v8208 = vadd.f32 %v8084, %v8169
      %v8209 = vadd.f32 %v8085, %v8171
      %v8210 = vadd.f32 %v8086, %v8174
      %v8211 = vadd.f32 %v8087, %v8176
      %v8212 = vadd.f32 %v8088, %v8179
      %v8213 = vadd.f32 %v8089, %v8181
      %v8214 = vadd.f32 %v8090, %v8184
      %v8215 = vadd.f32 %v8091, %v8186
      %v8216 = vadd.f32 %v8092, %v8189
      %v8217 = vadd.f32 %v8093, %v8191
      %v8218 = vadd.f32 %v8094, %v8194
      %v8219 = vadd.f32 %v8095, %v8196
      %v8220 = vadd.f32 %v8096, %v8199
      %v8221 = vadd.f32 %v8097, %v8201
      %v8222 = vadd.f32 %v8098, %v8204
      %v8223 = vadd.f32 %v8099, %v8206
      %v8224 = vld [vmem:[%s6] sm:$0x1]
      %v8226 = vperm.slane %v8224, 0
      %v8228 = vadd.f32 %v8208, %v8226
      %v8229 = vadd.f32 %v8209, %v8226
      %v8230 = vadd.f32 %v8210, %v8226
      %v8231 = vadd.f32 %v8211, %v8226
      %v8232 = vadd.f32 %v8212, %v8226
      %v8233 = vadd.f32 %v8213, %v8226
      %v8234 = vadd.f32 %v8214, %v8226
      %v8235 = vadd.f32 %v8215, %v8226
      %v8236 = vadd.f32 %v8216, %v8226
      %v8237 = vadd.f32 %v8217, %v8226
      %v8238 = vadd.f32 %v8218, %v8226
      %v8239 = vadd.f32 %v8219, %v8226
      %v8240 = vadd.f32 %v8220, %v8226
      %v8241 = vadd.f32 %v8221, %v8226
      %v8242 = vadd.f32 %v8222, %v8226
      %v8243 = vadd.f32 %v8223, %v8226
      %v8244 = vxor.u32 %v8228, 2147483648
      %v8245 = vxor.u32 %v8229, 2147483648
      %v8246 = vxor.u32 %v8230, 2147483648
      %v8247 = vxor.u32 %v8231, 2147483648
      %v8248 = vxor.u32 %v8232, 2147483648
      %v8249 = vxor.u32 %v8233, 2147483648
      %v8250 = vxor.u32 %v8234, 2147483648
      %v8251 = vxor.u32 %v8235, 2147483648
      %v8252 = vxor.u32 %v8236, 2147483648
      %v8253 = vxor.u32 %v8237, 2147483648
      %v8254 = vxor.u32 %v8238, 2147483648
      %v8255 = vxor.u32 %v8239, 2147483648
      %v8256 = vxor.u32 %v8240, 2147483648
      %v8257 = vxor.u32 %v8241, 2147483648
      %v8258 = vxor.u32 %v8242, 2147483648
      %v8259 = vxor.u32 %v8243, 2147483648
      %v8260 = vmul.f32 %v8244, 1.442695
      %v8261 = vpow.pop %v8260
      %v8262 = vmul.f32 %v8245, 1.442695
      %v8263 = vpow.pop %v8262
      %v8264 = vmul.f32 %v8246, 1.442695
      %v8265 = vpow.pop %v8264
      %v8266 = vmul.f32 %v8247, 1.442695
      %v8267 = vpow.pop %v8266
      %v8268 = vmul.f32 %v8248, 1.442695
      %v8269 = vpow.pop %v8268
      %v8270 = vmul.f32 %v8249, 1.442695
      %v8271 = vpow.pop %v8270
      %v8272 = vmul.f32 %v8250, 1.442695
      %v8273 = vpow.pop %v8272
      %v8274 = vmul.f32 %v8251, 1.442695
      %v8275 = vpow.pop %v8274
      %v8276 = vmul.f32 %v8252, 1.442695
      %v8277 = vpow.pop %v8276
      %v8278 = vmul.f32 %v8253, 1.442695
      %v8279 = vpow.pop %v8278
      %v8280 = vmul.f32 %v8254, 1.442695
      %v8281 = vpow.pop %v8280
      %v8282 = vmul.f32 %v8255, 1.442695
      %v8283 = vpow.pop %v8282
      %v8284 = vmul.f32 %v8256, 1.442695
      %v8285 = vpow.pop %v8284
      %v8286 = vmul.f32 %v8257, 1.442695
      %v8287 = vpow.pop %v8286
      %v8288 = vmul.f32 %v8258, 1.442695
      %v8289 = vpow.pop %v8288
      %v8290 = vmul.f32 %v8259, 1.442695
      %v8291 = vpow.pop %v8290
      %v8292 = vadd.f32 %v8261, 1.0
      %v8293 = vadd.f32 %v8263, 1.0
      %v8294 = vadd.f32 %v8265, 1.0
      %v8295 = vadd.f32 %v8267, 1.0
      %v8296 = vadd.f32 %v8269, 1.0
      %v8297 = vadd.f32 %v8271, 1.0
      %v8298 = vadd.f32 %v8273, 1.0
      %v8299 = vadd.f32 %v8275, 1.0
      %v8300 = vadd.f32 %v8277, 1.0
      %v8301 = vadd.f32 %v8279, 1.0
      %v8302 = vadd.f32 %v8281, 1.0
      %v8303 = vadd.f32 %v8283, 1.0
      %v8304 = vadd.f32 %v8285, 1.0
      %v8305 = vadd.f32 %v8287, 1.0
      %v8306 = vadd.f32 %v8289, 1.0
      %v8307 = vadd.f32 %v8291, 1.0
      %v8308 = vrcp.pop %v8292
      %v8309 = vmul.f32 %v8292, %v8308
      %v8310 = vsub.f32 1.0, %v8309
      %v8311 = vmul.f32 %v8308, %v8310
      %v8312 = vadd.f32 %v8308, %v8311
      %vm8313 = vweird.f32 %v8292
      %vm8314 = vweird.f32 %v8308
      %vm8315 = vmor %vm8313, %vm8314
      %v8316 = vsel %vm8315, %v8308, %v8312
      %v8317 = vand.u32 2147483647, %v8292
      %vm8318 = vcmp.eq.f32.partialorder %v8317, 8.507059e+37
      %v8319 = vand.u32 %v8292, 2147483648
      %v8320 = vor.u32 1.1754944e-38, %v8319
      %v8321 = vsel %vm8318, %v8320, %v8316
      %v8322 = vmul.f32 1.0, %v8321
      %v8323 = vrcp.pop %v8293
      %v8324 = vmul.f32 %v8293, %v8323
      %v8325 = vsub.f32 1.0, %v8324
      %v8326 = vmul.f32 %v8323, %v8325
      %v8327 = vadd.f32 %v8323, %v8326
      %vm8328 = vweird.f32 %v8293
      %vm8329 = vweird.f32 %v8323
      %vm8330 = vmor %vm8328, %vm8329
      %v8331 = vsel %vm8330, %v8323, %v8327
      %v8332 = vand.u32 2147483647, %v8293
      %vm8333 = vcmp.eq.f32.partialorder %v8332, 8.507059e+37
      %v8334 = vand.u32 %v8293, 2147483648
      %v8335 = vor.u32 1.1754944e-38, %v8334
      %v8336 = vsel %vm8333, %v8335, %v8331
      %v8337 = vmul.f32 1.0, %v8336
      %v8338 = vrcp.pop %v8294
      %v8339 = vmul.f32 %v8294, %v8338
      %v8340 = vsub.f32 1.0, %v8339
      %v8341 = vmul.f32 %v8338, %v8340
      %v8342 = vadd.f32 %v8338, %v8341
      %vm8343 = vweird.f32 %v8294
      %vm8344 = vweird.f32 %v8338
      %vm8345 = vmor %vm8343, %vm8344
      %v8346 = vsel %vm8345, %v8338, %v8342
      %v8347 = vand.u32 2147483647, %v8294
      %vm8348 = vcmp.eq.f32.partialorder %v8347, 8.507059e+37
      %v8349 = vand.u32 %v8294, 2147483648
      %v8350 = vor.u32 1.1754944e-38, %v8349
      %v8351 = vsel %vm8348, %v8350, %v8346
      %v8352 = vmul.f32 1.0, %v8351
      %v8353 = vrcp.pop %v8295
      %v8354 = vmul.f32 %v8295, %v8353
      %v8355 = vsub.f32 1.0, %v8354
      %v8356 = vmul.f32 %v8353, %v8355
      %v8357 = vadd.f32 %v8353, %v8356
      %vm8358 = vweird.f32 %v8295
      %vm8359 = vweird.f32 %v8353
      %vm8360 = vmor %vm8358, %vm8359
      %v8361 = vsel %vm8360, %v8353, %v8357
      %v8362 = vand.u32 2147483647, %v8295
      %vm8363 = vcmp.eq.f32.partialorder %v8362, 8.507059e+37
      %v8364 = vand.u32 %v8295, 2147483648
      %v8365 = vor.u32 1.1754944e-38, %v8364
      %v8366 = vsel %vm8363, %v8365, %v8361
      %v8367 = vmul.f32 1.0, %v8366
      %v8368 = vrcp.pop %v8296
      %v8369 = vmul.f32 %v8296, %v8368
      %v8370 = vsub.f32 1.0, %v8369
      %v8371 = vmul.f32 %v8368, %v8370
      %v8372 = vadd.f32 %v8368, %v8371
      %vm8373 = vweird.f32 %v8296
      %vm8374 = vweird.f32 %v8368
      %vm8375 = vmor %vm8373, %vm8374
      %v8376 = vsel %vm8375, %v8368, %v8372
      %v8377 = vand.u32 2147483647, %v8296
      %vm8378 = vcmp.eq.f32.partialorder %v8377, 8.507059e+37
      %v8379 = vand.u32 %v8296, 2147483648
      %v8380 = vor.u32 1.1754944e-38, %v8379
      %v8381 = vsel %vm8378, %v8380, %v8376
      %v8382 = vmul.f32 1.0, %v8381
      %v8383 = vrcp.pop %v8297
      %v8384 = vmul.f32 %v8297, %v8383
      %v8385 = vsub.f32 1.0, %v8384
      %v8386 = vmul.f32 %v8383, %v8385
      %v8387 = vadd.f32 %v8383, %v8386
      %vm8388 = vweird.f32 %v8297
      %vm8389 = vweird.f32 %v8383
      %vm8390 = vmor %vm8388, %vm8389
      %v8391 = vsel %vm8390, %v8383, %v8387
      %v8392 = vand.u32 2147483647, %v8297
      %vm8393 = vcmp.eq.f32.partialorder %v8392, 8.507059e+37
      %v8394 = vand.u32 %v8297, 2147483648
      %v8395 = vor.u32 1.1754944e-38, %v8394
      %v8396 = vsel %vm8393, %v8395, %v8391
      %v8397 = vmul.f32 1.0, %v8396
      %v8398 = vrcp.pop %v8298
      %v8399 = vmul.f32 %v8298, %v8398
      %v8400 = vsub.f32 1.0, %v8399
      %v8401 = vmul.f32 %v8398, %v8400
      %v8402 = vadd.f32 %v8398, %v8401
      %vm8403 = vweird.f32 %v8298
      %vm8404 = vweird.f32 %v8398
      %vm8405 = vmor %vm8403, %vm8404
      %v8406 = vsel %vm8405, %v8398, %v8402
      %v8407 = vand.u32 2147483647, %v8298
      %vm8408 = vcmp.eq.f32.partialorder %v8407, 8.507059e+37
      %v8409 = vand.u32 %v8298, 2147483648
      %v8410 = vor.u32 1.1754944e-38, %v8409
      %v8411 = vsel %vm8408, %v8410, %v8406
      %v8412 = vmul.f32 1.0, %v8411
      %v8413 = vrcp.pop %v8299
      %v8414 = vmul.f32 %v8299, %v8413
      %v8415 = vsub.f32 1.0, %v8414
      %v8416 = vmul.f32 %v8413, %v8415
      %v8417 = vadd.f32 %v8413, %v8416
      %vm8418 = vweird.f32 %v8299
      %vm8419 = vweird.f32 %v8413
      %vm8420 = vmor %vm8418, %vm8419
      %v8421 = vsel %vm8420, %v8413, %v8417
      %v8422 = vand.u32 2147483647, %v8299
      %vm8423 = vcmp.eq.f32.partialorder %v8422, 8.507059e+37
      %v8424 = vand.u32 %v8299, 2147483648
      %v8425 = vor.u32 1.1754944e-38, %v8424
      %v8426 = vsel %vm8423, %v8425, %v8421
      %v8427 = vmul.f32 1.0, %v8426
      %v8428 = vrcp.pop %v8300
      %v8429 = vmul.f32 %v8300, %v8428
      %v8430 = vsub.f32 1.0, %v8429
      %v8431 = vmul.f32 %v8428, %v8430
      %v8432 = vadd.f32 %v8428, %v8431
      %vm8433 = vweird.f32 %v8300
      %vm8434 = vweird.f32 %v8428
      %vm8435 = vmor %vm8433, %vm8434
      %v8436 = vsel %vm8435, %v8428, %v8432
      %v8437 = vand.u32 2147483647, %v8300
      %vm8438 = vcmp.eq.f32.partialorder %v8437, 8.507059e+37
      %v8439 = vand.u32 %v8300, 2147483648
      %v8440 = vor.u32 1.1754944e-38, %v8439
      %v8441 = vsel %vm8438, %v8440, %v8436
      %v8442 = vmul.f32 1.0, %v8441
      %v8443 = vrcp.pop %v8301
      %v8444 = vmul.f32 %v8301, %v8443
      %v8445 = vsub.f32 1.0, %v8444
      %v8446 = vmul.f32 %v8443, %v8445
      %v8447 = vadd.f32 %v8443, %v8446
      %vm8448 = vweird.f32 %v8301
      %vm8449 = vweird.f32 %v8443
      %vm8450 = vmor %vm8448, %vm8449
      %v8451 = vsel %vm8450, %v8443, %v8447
      %v8452 = vand.u32 2147483647, %v8301
      %vm8453 = vcmp.eq.f32.partialorder %v8452, 8.507059e+37
      %v8454 = vand.u32 %v8301, 2147483648
      %v8455 = vor.u32 1.1754944e-38, %v8454
      %v8456 = vsel %vm8453, %v8455, %v8451
      %v8457 = vmul.f32 1.0, %v8456
      %v8458 = vrcp.pop %v8302
      %v8459 = vmul.f32 %v8302, %v8458
      %v8460 = vsub.f32 1.0, %v8459
      %v8461 = vmul.f32 %v8458, %v8460
      %v8462 = vadd.f32 %v8458, %v8461
      %vm8463 = vweird.f32 %v8302
      %vm8464 = vweird.f32 %v8458
      %vm8465 = vmor %vm8463, %vm8464
      %v8466 = vsel %vm8465, %v8458, %v8462
      %v8467 = vand.u32 2147483647, %v8302
      %vm8468 = vcmp.eq.f32.partialorder %v8467, 8.507059e+37
      %v8469 = vand.u32 %v8302, 2147483648
      %v8470 = vor.u32 1.1754944e-38, %v8469
      %v8471 = vsel %vm8468, %v8470, %v8466
      %v8472 = vmul.f32 1.0, %v8471
      %v8473 = vrcp.pop %v8303
      %v8474 = vmul.f32 %v8303, %v8473
      %v8475 = vsub.f32 1.0, %v8474
      %v8476 = vmul.f32 %v8473, %v8475
      %v8477 = vadd.f32 %v8473, %v8476
      %vm8478 = vweird.f32 %v8303
      %vm8479 = vweird.f32 %v8473
      %vm8480 = vmor %vm8478, %vm8479
      %v8481 = vsel %vm8480, %v8473, %v8477
      %v8482 = vand.u32 2147483647, %v8303
      %vm8483 = vcmp.eq.f32.partialorder %v8482, 8.507059e+37
      %v8484 = vand.u32 %v8303, 2147483648
      %v8485 = vor.u32 1.1754944e-38, %v8484
      %v8486 = vsel %vm8483, %v8485, %v8481
      %v8487 = vmul.f32 1.0, %v8486
      %v8488 = vrcp.pop %v8304
      %v8489 = vmul.f32 %v8304, %v8488
      %v8490 = vsub.f32 1.0, %v8489
      %v8491 = vmul.f32 %v8488, %v8490
      %v8492 = vadd.f32 %v8488, %v8491
      %vm8493 = vweird.f32 %v8304
      %vm8494 = vweird.f32 %v8488
      %vm8495 = vmor %vm8493, %vm8494
      %v8496 = vsel %vm8495, %v8488, %v8492
      %v8497 = vand.u32 2147483647, %v8304
      %vm8498 = vcmp.eq.f32.partialorder %v8497, 8.507059e+37
      %v8499 = vand.u32 %v8304, 2147483648
      %v8500 = vor.u32 1.1754944e-38, %v8499
      %v8501 = vsel %vm8498, %v8500, %v8496
      %v8502 = vmul.f32 1.0, %v8501
      %v8503 = vrcp.pop %v8305
      %v8504 = vmul.f32 %v8305, %v8503
      %v8505 = vsub.f32 1.0, %v8504
      %v8506 = vmul.f32 %v8503, %v8505
      %v8507 = vadd.f32 %v8503, %v8506
      %vm8508 = vweird.f32 %v8305
      %vm8509 = vweird.f32 %v8503
      %vm8510 = vmor %vm8508, %vm8509
      %v8511 = vsel %vm8510, %v8503, %v8507
      %v8512 = vand.u32 2147483647, %v8305
      %vm8513 = vcmp.eq.f32.partialorder %v8512, 8.507059e+37
      %v8514 = vand.u32 %v8305, 2147483648
      %v8515 = vor.u32 1.1754944e-38, %v8514
      %v8516 = vsel %vm8513, %v8515, %v8511
      %v8517 = vmul.f32 1.0, %v8516
      %v8518 = vrcp.pop %v8306
      %v8519 = vmul.f32 %v8306, %v8518
      %v8520 = vsub.f32 1.0, %v8519
      %v8521 = vmul.f32 %v8518, %v8520
      %v8522 = vadd.f32 %v8518, %v8521
      %vm8523 = vweird.f32 %v8306
      %vm8524 = vweird.f32 %v8518
      %vm8525 = vmor %vm8523, %vm8524
      %v8526 = vsel %vm8525, %v8518, %v8522
      %v8527 = vand.u32 2147483647, %v8306
      %vm8528 = vcmp.eq.f32.partialorder %v8527, 8.507059e+37
      %v8529 = vand.u32 %v8306, 2147483648
      %v8530 = vor.u32 1.1754944e-38, %v8529
      %v8531 = vsel %vm8528, %v8530, %v8526
      %v8532 = vmul.f32 1.0, %v8531
      %v8533 = vrcp.pop %v8307
      %v8534 = vmul.f32 %v8307, %v8533
      %v8535 = vsub.f32 1.0, %v8534
      %v8536 = vmul.f32 %v8533, %v8535
      %v8537 = vadd.f32 %v8533, %v8536
      %vm8538 = vweird.f32 %v8307
      %vm8539 = vweird.f32 %v8533
      %vm8540 = vmor %vm8538, %vm8539
      %v8541 = vsel %vm8540, %v8533, %v8537
      %v8542 = vand.u32 2147483647, %v8307
      %vm8543 = vcmp.eq.f32.partialorder %v8542, 8.507059e+37
      %v8544 = vand.u32 %v8307, 2147483648
      %v8545 = vor.u32 1.1754944e-38, %v8544
      %v8546 = vsel %vm8543, %v8545, %v8541
      %v8547 = vmul.f32 1.0, %v8546
      %v8548 = vmul.f32 %v8228, %v8322
      %v8549 = vmul.f32 %v8229, %v8337
      %v8550 = vmul.f32 %v8230, %v8352
      %v8551 = vmul.f32 %v8231, %v8367
      %v8552 = vmul.f32 %v8232, %v8382
      %v8553 = vmul.f32 %v8233, %v8397
      %v8554 = vmul.f32 %v8234, %v8412
      %v8555 = vmul.f32 %v8235, %v8427
      %v8556 = vmul.f32 %v8236, %v8442
      %v8557 = vmul.f32 %v8237, %v8457
      %v8558 = vmul.f32 %v8238, %v8472
      %v8559 = vmul.f32 %v8239, %v8487
      %v8560 = vmul.f32 %v8240, %v8502
      %v8561 = vmul.f32 %v8241, %v8517
      %v8562 = vmul.f32 %v8242, %v8532
      %v8563 = vmul.f32 %v8243, %v8547
      %v8564 = vld [vmem:[#allocation4] sm:$0xff]
      %v8565 = vld [vmem:[#allocation4 + $0x8] sm:$0xff]
      %v8566 = vld [vmem:[#allocation4 + $0x10] sm:$0xff]
      %v8567 = vld [vmem:[#allocation4 + $0x18] sm:$0xff]
      %v8568 = vld [vmem:[#allocation4 + $0x20] sm:$0xff]
      %v8569 = vld [vmem:[#allocation4 + $0x28] sm:$0xff]
      %v8570 = vld [vmem:[#allocation4 + $0x30] sm:$0xff]
      %v8571 = vld [vmem:[#allocation4 + $0x38] sm:$0xff]
      %v8572 = vld [vmem:[#allocation4 + $0x40] sm:$0xff]
      %v8573 = vld [vmem:[#allocation4 + $0x48] sm:$0xff]
      %v8574 = vld [vmem:[#allocation4 + $0x50] sm:$0xff]
      %v8575 = vld [vmem:[#allocation4 + $0x58] sm:$0xff]
      %v8576 = vld [vmem:[#allocation4 + $0x60] sm:$0xff]
      %v8577 = vld [vmem:[#allocation4 + $0x68] sm:$0xff]
      %v8578 = vld [vmem:[#allocation4 + $0x70] sm:$0xff]
      %v8579 = vld [vmem:[#allocation4 + $0x78] sm:$0xff]
      %v8580 = vadd.f32 %v8564, %v8548
      %v8581 = vadd.f32 %v8565, %v8549
      %v8582 = vadd.f32 %v8566, %v8550
      %v8583 = vadd.f32 %v8567, %v8551
      %v8584 = vadd.f32 %v8568, %v8552
      %v8585 = vadd.f32 %v8569, %v8553
      %v8586 = vadd.f32 %v8570, %v8554
      %v8587 = vadd.f32 %v8571, %v8555
      %v8588 = vadd.f32 %v8572, %v8556
      %v8589 = vadd.f32 %v8573, %v8557
      %v8590 = vadd.f32 %v8574, %v8558
      %v8591 = vadd.f32 %v8575, %v8559
      %v8592 = vadd.f32 %v8576, %v8560
      %v8593 = vadd.f32 %v8577, %v8561
      %v8594 = vadd.f32 %v8578, %v8562
      %v8595 = vadd.f32 %v8579, %v8563
      %v8596 = vpack.c.bf16 %v8580, %v8580
      %v8597 = vpack.c.bf16 %v8581, %v8581
      %v8598 = vpack.c.bf16 %v8582, %v8582
      %v8599 = vpack.c.bf16 %v8583, %v8583
      %v8600 = vpack.c.bf16 %v8584, %v8584
      %v8601 = vpack.c.bf16 %v8585, %v8585
      %v8602 = vpack.c.bf16 %v8586, %v8586
      %v8603 = vpack.c.bf16 %v8587, %v8587
      %v8604 = vpack.c.bf16 %v8588, %v8588
      %v8605 = vpack.c.bf16 %v8589, %v8589
      %v8606 = vpack.c.bf16 %v8590, %v8590
      %v8607 = vpack.c.bf16 %v8591, %v8591
      %v8608 = vpack.c.bf16 %v8592, %v8592
      %v8609 = vpack.c.bf16 %v8593, %v8593
      %v8610 = vpack.c.bf16 %v8594, %v8594
      %v8611 = vpack.c.bf16 %v8595, %v8595
      %vm8612 = vcmask 125952
      %8613 = vst.msk [vmem:[%s300] sm:$0xf] %vm8612, %v8596
      %8614 = vst.msk [vmem:[%s300 + $0x4] sm:$0xf] %vm8612, %v8597
      %8615 = vst.msk [vmem:[%s300 + $0x8] sm:$0xf] %vm8612, %v8598
      %8616 = vst.msk [vmem:[%s300 + $0xc] sm:$0xf] %vm8612, %v8599
      %8617 = vst.msk [vmem:[%s300 + $0x10] sm:$0xf] %vm8612, %v8600
      %8618 = vst.msk [vmem:[%s300 + $0x14] sm:$0xf] %vm8612, %v8601
      %8619 = vst.msk [vmem:[%s300 + $0x18] sm:$0xf] %vm8612, %v8602
      %8620 = vst.msk [vmem:[%s300 + $0x1c] sm:$0xf] %vm8612, %v8603
      %8621 = vst.msk [vmem:[%s300 + $0x20] sm:$0xf] %vm8612, %v8604
      %8622 = vst.msk [vmem:[%s300 + $0x24] sm:$0xf] %vm8612, %v8605
      %8623 = vst.msk [vmem:[%s300 + $0x28] sm:$0xf] %vm8612, %v8606
      %8624 = vst.msk [vmem:[%s300 + $0x2c] sm:$0xf] %vm8612, %v8607
      %8625 = vst.msk [vmem:[%s300 + $0x30] sm:$0xf] %vm8612, %v8608
      %8626 = vst.msk [vmem:[%s300 + $0x34] sm:$0xf] %vm8612, %v8609
      %8627 = vst.msk [vmem:[%s300 + $0x38] sm:$0xf] %vm8612, %v8610
      %8628 = vst.msk [vmem:[%s300 + $0x3c] sm:$0xf] %vm8612, %v8611
      %s8629 = smul.u32 16, %s23
      %p8630 = scmp.lt.s32.totalorder %s22, 1
      %s8631 = scalar_select %p8630, %s22, 1
      %p8632 = scmp.lt.s32.totalorder %s8629, 31
      %s8633 = scalar_select %p8632, %s8629, 31
      %s8634 = smul.addr %s8631, 32
      %s8635 = sadd.s32 %s8633, %s8634
      %s8636 = smul.addr %s8635, 4
      %s8637 = scalar_lea.vmem %s7, %s8636
      // Predicated region
      $region65: #{tpu_custom_call.1} parent=47 // pred_check
        %p8638 = pneg %p202
      $region66: #{tpu_custom_call.1} parent=47 // pred_check_branch
        %8640 = sbr.rel (%p8638) target = $region68
      $region67: #{tpu_custom_call.1} parent=47 // pred_region
        %s8641 = smul.u32 16, %s23
      $region68: #{tpu_custom_call.1} parent=47 // pred_fallthru
        _
    $region48: #{tpu_custom_call.1} parent=5 // pred_fallthru
      _
    %p8642 = scmp.le.s32.totalorder 2, %s13
    // Predicated region
    $region69: #{tpu_custom_call.1} parent=5 // pred_check
      %p8643 = pneg %p8642
    $region70: #{tpu_custom_call.1} parent=5 // pred_check_branch
      %8645 = sbr.rel (%p8643) target = $region72
    $region71: #{tpu_custom_call.1} parent=5 // pred_region
      %s8646 = ssub.s32 %s13, 2
      // Predicated region
      $region73: #{tpu_custom_call.1} parent=71 // pred_check
        %p8647 = pneg %p208
      $region74: #{tpu_custom_call.1} parent=71 // pred_check_branch
        %8649 = sbr.rel (%p8647) target = $region76
      $region75: #{tpu_custom_call.1} parent=71 // pred_region
        %s8650 = smul.u32 16, %s25
        %p8651 = scmp.lt.s32.totalorder %s24, 1
        %s8652 = scalar_select %p8651, %s24, 1
        %p8653 = scmp.lt.s32.totalorder %s8650, 31
        %s8654 = scalar_select %p8653, %s8650, 31
        %s8655 = smul.addr %s8652, 32
        %s8656 = sadd.s32 %s8654, %s8655
        %s8657 = smul.addr %s8656, 4
        %s8658 = scalar_lea.vmem %s7, %s8657
      $region76: #{tpu_custom_call.1} parent=71 // pred_fallthru
        _
    $region72: #{tpu_custom_call.1} parent=5 // pred_fallthru
      _
  $region6: #{tpu_custom_call.1} parent=0 // loop_footer
    %s17 = sadd.s32 1, %s13
  $region7: #{tpu_custom_call.1} parent=0 // loop_footer_branch
    %12 = sbr.rel target = $region3
  $region8: #{tpu_custom_call.1} parent=0 // loop_exit
    _

</llo_original>
